<compile_context>
chip_gen: v7x
topology: tpu7x:2x2x1
jax: 0.10.0
libtpu: 0.0.40
codegen_flags: <defaults>
</compile_context>

<pallas_src>
import jax
import jax.numpy as jnp
from jax.experimental import pallas as pl
from jax.experimental.pallas import tpu as pltpu

IN_FEATURES = 5120
HIDDEN = 2560
NUM_CLASS = 10
TN = 1280                      # HIDDEN tile -> 2 grid steps
NC_PAD = 128                   # lane-dense padded logits width
N_BLOCKS = HIDDEN // TN


# ---------------------------------------------------------------------------
# Fused kernel.  Per N-block n:
#   h_n   = relu((x @ dequant(W1_n)) * s1_n + b1_n)          (f32)
#   out  += h_n @ W3_n                                        (f32 accumulator)
# At n == last:  out += b3   (final logits, padded to 128 lanes)
# ---------------------------------------------------------------------------
def fused_mlp_kernel(x_ref, w1_ref, s1_ref, b1_ref, w3_ref, b3_ref, out_ref):
    n = pl.program_id(0)

    @pl.when(n == 0)
    def _():
        out_ref[...] = jnp.zeros_like(out_ref)

    # fc1 chunk on the MXU: bf16 x bf16(int8 weights, exact) -> f32 accumulate.
    w1_bf = w1_ref[...].astype(jnp.bfloat16)                     # int8 -> bf16 (exact)
    h = jnp.dot(x_ref[...], w1_bf, preferred_element_type=jnp.float32)
    # Per-output-channel dequant scale applied on the tiny (B, TN) result.
    h = jnp.maximum(h * s1_ref[...] + b1_ref[...], 0.0)

    # fc3 partial for this N chunk, accumulated in-place (f32).
    out_ref[...] += jnp.dot(h.astype(jnp.bfloat16), w3_ref[...],
                            preferred_element_type=jnp.float32)

    @pl.when(n == pl.num_programs(0) - 1)
    def _():
        out_ref[...] += b3_ref[...]


def fused_mlp(x_bf16, w1_i8, s1, b1, w3p, b3p):
    B, K = x_bf16.shape
    assert K == IN_FEATURES
    nc_pad = w3p.shape[1]

    return pl.pallas_call(
        fused_mlp_kernel,
        out_shape=jax.ShapeDtypeStruct((B, nc_pad), jnp.float32),
        grid_spec=pltpu.PrefetchScalarGridSpec(
            num_scalar_prefetch=0,
            grid=(N_BLOCKS,),
            in_specs=[
                pl.BlockSpec((B, IN_FEATURES), lambda n: (0, 0)),        # x resident
                pl.BlockSpec((None, IN_FEATURES, TN), lambda n: (n, 0, 0)),  # W1 slab (int8, contiguous)
                pl.BlockSpec((1, TN), lambda n: (0, n)),                 # per-channel scales
                pl.BlockSpec((1, TN), lambda n: (0, n)),                 # b1 chunk
                pl.BlockSpec((TN, nc_pad), lambda n: (n, 0)),            # W3 chunk
                pl.BlockSpec((1, nc_pad), lambda n: (0, 0)),             # b3 (padded)
            ],
            out_specs=pl.BlockSpec((B, nc_pad), lambda n: (0, 0)),       # resident accumulator
        ),
        compiler_params=pltpu.CompilerParams(
            dimension_semantics=("arbitrary",),   # N is a reduction into the accumulator
            vmem_limit_bytes=40 << 20,            # ~13 MiB double-buffered W1 + small rest
        ),
    )(x_bf16, w1_i8, s1, b1, w3p, b3p)


# ---------------------------------------------------------------------------
# Full forward pass (glue in plain JAX)
# ---------------------------------------------------------------------------
def mlp_forward(x_nchw, params):
    B = x_nchw.shape[0]
    x = x_nchw.reshape(B, -1).astype(jnp.bfloat16)   # Flatten(start_dim=1) + bf16
    # dropout (eval mode) -> identity
    logits_pad = fused_mlp(x, params["w1"], params["s1"], params["b1"],
                           params["w3"], params["b3"])
    return logits_pad[:, :NUM_CLASS]


def init_params(key, num_class=NUM_CLASS):
    k1, k2, k3, k4 = jax.random.split(key, 4)
    # PyTorch Linear init: U(-1/sqrt(fan_in), 1/sqrt(fan_in)).
    s1 = 1.0 / jnp.sqrt(IN_FEATURES)
    s3 = 1.0 / jnp.sqrt(HIDDEN)
    w1 = jax.random.uniform(k1, (IN_FEATURES, HIDDEN), jnp.float32, -s1, s1)
    b1 = jax.random.uniform(k2, (1, HIDDEN), jnp.float32, -s1, s1)
    w3 = jax.random.uniform(k3, (HIDDEN, num_class), jnp.float32, -s3, s3)
    b3 = jax.random.uniform(k4, (1, num_class), jnp.float32, -s3, s3)

    # --- W1: int8 weight-only quantization, per-output-channel scales -------
    absmax = jnp.max(jnp.abs(w1), axis=0, keepdims=True)            # (1, HIDDEN)
    scale = jnp.where(absmax > 0, absmax / 127.0, 1.0).astype(jnp.float32)
    w1_i8 = jnp.clip(jnp.round(w1 / scale), -127, 127).astype(jnp.int8)
    # Pre-tile as (n_blocks, IN_FEATURES, TN): each grid slab is contiguous in HBM.
    w1_tiled = w1_i8.reshape(IN_FEATURES, N_BLOCKS, TN).transpose(1, 0, 2)

    # --- W3 / b3: bf16 weights, zero-padded to 128 lanes ---------------------
    w3p = jnp.zeros((HIDDEN, NC_PAD), jnp.bfloat16).at[:, :num_class].set(
        w3.astype(jnp.bfloat16))
    b3p = jnp.zeros((1, NC_PAD), jnp.float32).at[:, :num_class].set(b3)

    return {
        "w1": w1_tiled,    # (N_BLOCKS, IN_FEATURES, TN) int8
        "s1": scale,       # (1, HIDDEN) f32
        "b1": b1,          # (1, HIDDEN) f32
        "w3": w3p,         # (HIDDEN, NC_PAD) bf16
        "b3": b3p,         # (1, NC_PAD) f32
    }


if __name__ == "__main__":
    key = jax.random.PRNGKey(0)
    kx, kp = jax.random.split(key)

    # B=2, C=5, H=W=32  ->  flatten gives 5*32*32 = 5120 features (matches fc1).
    x = jax.random.normal(kx, (2, 5, 32, 32), dtype=jnp.float32)
    params = init_params(kp, NUM_CLASS)

    fwd = jax.jit(mlp_forward)
    out = fwd(x, params)
    out = jax.block_until_ready(out)

    # Reference (eval-mode semantics, same int8/bf16 quantization, f32 accumulation).
    xf = x.reshape(2, -1).astype(jnp.bfloat16).astype(jnp.float32)
    w1_deq = (params["w1"].transpose(1, 0, 2).reshape(IN_FEATURES, HIDDEN)
              .astype(jnp.float32)) * params["s1"]
    w3f = params["w3"][:, :NUM_CLASS].astype(jnp.float32)
    h_ref = jnp.maximum(xf @ w1_deq + params["b1"], 0.0)
    ref = (h_ref.astype(jnp.bfloat16).astype(jnp.float32) @ w3f
           + params["b3"][:, :NUM_CLASS])

    assert out.shape == (2, NUM_CLASS)
    assert jnp.allclose(out, ref, atol=2e-2, rtol=2e-2), (
        float(jnp.max(jnp.abs(out - ref))))

    print("KERNEL_OK")
</pallas_src>

<mosaic_0001>
module attributes {stable_mosaic.version = 11 : i64} {
  func.func @fused_mlp_kernel(%arg0: i32, %arg1: memref<2x5120xbf16, #tpu.memory_space<vmem>>, %arg2: memref<1x5120x1280xi8, #tpu.memory_space<vmem>>, %arg3: memref<1x1280xf32, #tpu.memory_space<vmem>>, %arg4: memref<1x1280xf32, #tpu.memory_space<vmem>>, %arg5: memref<1280x128xbf16, #tpu.memory_space<vmem>>, %arg6: memref<1x128xf32, #tpu.memory_space<vmem>>, %arg7: memref<2x128xf32, #tpu.memory_space<vmem>>) attributes {dimension_semantics = [#tpu.dimension_semantics<arbitrary>], iteration_bounds = array<i64: 2>, scalar_prefetch = 0 : i64, scratch_operands = 0 : i64, tpu.core_type = #tpu.core_type<tc>, window_params = [{pipeline_mode = #tpu.pipeline_mode<synchronous>, transform_indices = @transform_0, window_bounds = array<i64: 2, 5120>}, {transform_indices = @transform_1, window_bounds = array<i64: 1, 5120, 1280>}, {transform_indices = @transform_2, window_bounds = array<i64: 1, 1280>}, {transform_indices = @transform_3, window_bounds = array<i64: 1, 1280>}, {transform_indices = @transform_4, window_bounds = array<i64: 1280, 128>}, {pipeline_mode = #tpu.pipeline_mode<synchronous>, transform_indices = @transform_5, window_bounds = array<i64: 1, 128>}, {pipeline_mode = #tpu.pipeline_mode<synchronous>, transform_indices = @transform_6, window_bounds = array<i64: 2, 128>}]} {
    %c0_i32 = arith.constant 0 : i32
    %0 = arith.cmpi eq, %arg0, %c0_i32 : i32
    %1 = arith.extui %0 : i1 to i32
    %c0_i32_0 = arith.constant 0 : i32
    %2 = arith.cmpi ne, %1, %c0_i32_0 : i32
    scf.if %2 {
      %cst_18 = arith.constant 0.000000e+00 : f32
      %25 = vector.broadcast %cst_18 : f32 to vector<2x128xf32>
      %c0_19 = arith.constant 0 : index
      %c0_20 = arith.constant 0 : index
      %26 = vector.load %arg7[%c0_19, %c0_20] : memref<2x128xf32, #tpu.memory_space<vmem>>, vector<2x128xf32>
      tpu.vector_store %arg7[%c0_19, %c0_20], %25 {strides = array<i32>} : memref<2x128xf32, #tpu.memory_space<vmem>>, vector<2x128xf32>,
    } else {
    }
    %c0 = arith.constant 0 : index
    %c0_1 = arith.constant 0 : index
    %c0_2 = arith.constant 0 : index
    %3 = vector.load %arg2[%c0, %c0_1, %c0_2] : memref<1x5120x1280xi8, #tpu.memory_space<vmem>>, vector<1x5120x1280xi8>
    %4 = vector.shape_cast %3 : vector<1x5120x1280xi8> to vector<5120x1280xi8>
    %5 = arith.sitofp %4 : vector<5120x1280xi8> to vector<5120x1280xbf16>
    %c0_3 = arith.constant 0 : index
    %c0_4 = arith.constant 0 : index
    %6 = vector.load %arg1[%c0_3, %c0_4] : memref<2x5120xbf16, #tpu.memory_space<vmem>>, vector<2x5120xbf16>
    %cst = arith.constant dense<0.000000e+00> : vector<2x1280xf32>
    %7 = tpu.matmul %6, %5, %cst {dimension_numbers = #tpu.dot_dimension_numbers<[1], [0], [0], [1], [0, 0, 1, 1], [], []>} : vector<2x5120xbf16>, vector<5120x1280xbf16>, vector<2x1280xf32> -> vector<2x1280xf32>
    %c0_5 = arith.constant 0 : index
    %c0_6 = arith.constant 0 : index
    %8 = vector.load %arg3[%c0_5, %c0_6] : memref<1x1280xf32, #tpu.memory_space<vmem>>, vector<1x1280xf32>
    %9 = vector.broadcast %8 : vector<1x1280xf32> to vector<2x1280xf32>
    %10 = arith.mulf %7, %9 : vector<2x1280xf32>
    %c0_7 = arith.constant 0 : index
    %c0_8 = arith.constant 0 : index
    %11 = vector.load %arg4[%c0_7, %c0_8] : memref<1x1280xf32, #tpu.memory_space<vmem>>, vector<1x1280xf32>
    %12 = vector.broadcast %11 : vector<1x1280xf32> to vector<2x1280xf32>
    %13 = arith.addf %10, %12 : vector<2x1280xf32>
    %cst_9 = arith.constant 0.000000e+00 : f32
    %14 = vector.broadcast %cst_9 : f32 to vector<2x1280xf32>
    %15 = arith.maximumf %13, %14 : vector<2x1280xf32>
    %c0_10 = arith.constant 0 : index
    %c0_11 = arith.constant 0 : index
    %16 = vector.load %arg7[%c0_10, %c0_11] : memref<2x128xf32, #tpu.memory_space<vmem>>, vector<2x128xf32>
    %17 = arith.truncf %15 : vector<2x1280xf32> to vector<2x1280xbf16>
    %c0_12 = arith.constant 0 : index
    %c0_13 = arith.constant 0 : index
    %18 = vector.load %arg5[%c0_12, %c0_13] : memref<1280x128xbf16, #tpu.memory_space<vmem>>, vector<1280x128xbf16>
    %cst_14 = arith.constant dense<0.000000e+00> : vector<2x128xf32>
    %19 = tpu.matmul %17, %18, %cst_14 {dimension_numbers = #tpu.dot_dimension_numbers<[1], [0], [0], [1], [0, 0, 1, 1], [], []>} : vector<2x1280xbf16>, vector<1280x128xbf16>, vector<2x128xf32> -> vector<2x128xf32>
    %20 = arith.addf %16, %19 : vector<2x128xf32>
    %c0_15 = arith.constant 0 : index
    %c0_16 = arith.constant 0 : index
    %21 = vector.load %arg7[%c0_15, %c0_16] : memref<2x128xf32, #tpu.memory_space<vmem>>, vector<2x128xf32>
    tpu.vector_store %arg7[%c0_15, %c0_16], %20 {strides = array<i32>} : memref<2x128xf32, #tpu.memory_space<vmem>>, vector<2x128xf32>,
    %c1_i32 = arith.constant 1 : i32
    %22 = arith.cmpi eq, %arg0, %c1_i32 : i32
    %23 = arith.extui %22 : i1 to i32
    %c0_i32_17 = arith.constant 0 : i32
    %24 = arith.cmpi ne, %23, %c0_i32_17 : i32
    scf.if %24 {
      %c0_18 = arith.constant 0 : index
      %c0_19 = arith.constant 0 : index
      %25 = vector.load %arg7[%c0_18, %c0_19] : memref<2x128xf32, #tpu.memory_space<vmem>>, vector<2x128xf32>
      %c0_20 = arith.constant 0 : index
      %c0_21 = arith.constant 0 : index
      %26 = vector.load %arg6[%c0_20, %c0_21] : memref<1x128xf32, #tpu.memory_space<vmem>>, vector<1x128xf32>
      %27 = vector.broadcast %26 : vector<1x128xf32> to vector<2x128xf32>
      %28 = arith.addf %25, %27 : vector<2x128xf32>
      %c0_22 = arith.constant 0 : index
      %c0_23 = arith.constant 0 : index
      %29 = vector.load %arg7[%c0_22, %c0_23] : memref<2x128xf32, #tpu.memory_space<vmem>>, vector<2x128xf32>
      tpu.vector_store %arg7[%c0_22, %c0_23], %28 {strides = array<i32>} : memref<2x128xf32, #tpu.memory_space<vmem>>, vector<2x128xf32>,
    } else {
    }
    return
  }
  func.func @transform_0(%arg0: i32) -> (i32, i32) {
    %c0_i32 = arith.constant 0 : i32
    %c0_i32_0 = arith.constant 0 : i32
    %c0_i32_1 = arith.constant 0 : i32
    return %c0_i32, %c0_i32_0 : i32, i32
  }
  func.func @transform_1(%arg0: i32) -> (i32, i32, i32) {
    %c0_i32 = arith.constant 0 : i32
    %c0_i32_0 = arith.constant 0 : i32
    %c0_i32_1 = arith.constant 0 : i32
    return %arg0, %c0_i32, %c0_i32_0 : i32, i32, i32
  }
  func.func @transform_2(%arg0: i32) -> (i32, i32) {
    %c0_i32 = arith.constant 0 : i32
    %c0_i32_0 = arith.constant 0 : i32
    return %c0_i32, %arg0 : i32, i32
  }
  func.func @transform_3(%arg0: i32) -> (i32, i32) {
    %c0_i32 = arith.constant 0 : i32
    %c0_i32_0 = arith.constant 0 : i32
    return %c0_i32, %arg0 : i32, i32
  }
  func.func @transform_4(%arg0: i32) -> (i32, i32) {
    %c0_i32 = arith.constant 0 : i32
    %c0_i32_0 = arith.constant 0 : i32
    return %arg0, %c0_i32 : i32, i32
  }
  func.func @transform_5(%arg0: i32) -> (i32, i32) {
    %c0_i32 = arith.constant 0 : i32
    %c0_i32_0 = arith.constant 0 : i32
    %c0_i32_1 = arith.constant 0 : i32
    return %c0_i32, %c0_i32_0 : i32, i32
  }
  func.func @transform_6(%arg0: i32) -> (i32, i32) {
    %c0_i32 = arith.constant 0 : i32
    %c0_i32_0 = arith.constant 0 : i32
    %c0_i32_1 = arith.constant 0 : i32
    return %c0_i32, %c0_i32_0 : i32, i32
  }
}

</mosaic_0001>

<llo_original>
// kernel: mlp_forward.1
$region0: #{mlp_forward.1}
  #allocation0 [shape = 'u32[]', space=smem, size = 0x4, offset = 0x4, fixed_abs, tag = 'smem constant byte address 0x4 - core index']
  #allocation1 [shape = 'u32[144,128]{1,0:T(1,128)}', space=vmem, size = 0x12000, scoped, tag = 'internal scratch']
  %s0 = inlined_call_operand.vmem [shape: bf16[2,5120], index: 0, kind: input, shape index: {}]
  %s1 = inlined_call_operand.hbm [shape: s8[2,5120,1280], index: 1, kind: input, shape index: {}]
  %s2 = inlined_call_operand.hbm [shape: f32[1,2560], index: 2, kind: input, shape index: {}]
  %s3 = inlined_call_operand.hbm [shape: f32[1,2560], index: 3, kind: input, shape index: {}]
  %s4 = inlined_call_operand.hbm [shape: bf16[2560,128], index: 4, kind: input, shape index: {}]
  %s5 = inlined_call_operand.hbm [shape: f32[1,128], index: 5, kind: input, shape index: {}]
  %s6 = inlined_call_operand.hbm [shape: f32[2,128], index: 6, kind: output, shape index: {}]
  %s7 = sld [smem:[#allocation0]]
  $region85: #{mlp_forward.1} parent=0
    _
  %s9 = ssub.s32 1, %s7
  %s10 = scalar_select 0, %s9, %s7
  $region1: #{mlp_forward.1} parent=0
    #allocation2 [shape = 'u8[13107200]{0}', space=vmem, size = 0xc80000, scoped, tag = 'input window, operand 1']
    #allocation3 [shape = 's32[2]{0}', space=sflag, size = 0x8, scoped, tag = 'scoped memory for mlp_forward.1']
    #allocation4 [shape = 's32[2]{0}', space=sflag, size = 0x8, scoped, tag = 'scoped memory for mlp_forward.1']
    #allocation5 [shape = 'u8[10240]{0}', space=vmem, size = 0x2800, scoped, tag = 'input window, operand 2']
    #allocation6 [shape = 's32[2]{0}', space=sflag, size = 0x8, scoped, tag = 'scoped memory for mlp_forward.1']
    #allocation7 [shape = 'u8[10240]{0}', space=vmem, size = 0x2800, scoped, tag = 'input window, operand 3']
    #allocation8 [shape = 'u8[655360]{0}', space=vmem, size = 0xa0000, scoped, tag = 'input window, operand 4']
    #allocation9 [shape = 's32[2]{0}', space=sflag, size = 0x8, scoped, tag = 'scoped memory for mlp_forward.1']
    #allocation10 [shape = 'u8[512]{0}', space=vmem, size = 0x400, scoped, tag = 'input window, operand 5, single buffered']
    #allocation11 [shape = 'u8[1024]{0}', space=vmem, size = 0x400, scoped, tag = 'output window, operand 0, single buffered']
    %11 = vsyncpa [#allocation3], 0
    %s12 = scalar_lea.sflag [#allocation3], 1
    %13 = vsyncpa %s12, 0
    %14 = vsyncpa [#allocation6], 0
    %s15 = scalar_lea.sflag [#allocation6], 1
    %16 = vsyncpa %s15, 0
    %17 = vsyncpa [#allocation9], 0
    %s18 = scalar_lea.sflag [#allocation9], 1
    %19 = vsyncpa %s18, 0
    %20 = vsyncpa [#allocation4], 0
    loop: start=0, step=1, limit=4
    $region2: #{mlp_forward.1} parent=1 // loop_pre_header
      _
    $region3: #{mlp_forward.1} parent=1 // loop_header
      %s22 = sphi 0, %s26
      %p23 = scmp.ge.s32.totalorder %s22, 4
      %s30 = sphi 0, %s30
      %s32 = sphi 0, %s30
      %s33 = sphi 0, %s32
      %s47 = sphi 0, %s33
      %s53 = sphi 0, %s55
      %s56 = sphi 0, %s53
      %s57 = sphi 0, %s56
      %s73 = sphi 0, %s57
      %s79 = sphi 0, %s81
      %s82 = sphi 0, %s79
      %s83 = sphi 0, %s82
      %s99 = sphi 0, %s83
      %s105 = sphi 0, %s107
      %s108 = sphi 0, %s105
      %s109 = sphi 0, %s108
      %s125 = sphi 0, %s109
      %s131 = sphi 0, %s133
      %s134 = sphi 0, %s131
      %s135 = sphi 0, %s134
      %s151 = sphi 0, %s135
      %s155 = sphi 0, %s155
      %s157 = sphi 0, %s155
      %s158 = sphi 0, %s157
      %s172 = sphi 0, %s158
      %s176 = sphi 0, %s176
      %s178 = sphi 0, %s176
      %s179 = sphi 0, %s178
      %s193 = sphi 0, %s179
    $region4: #{mlp_forward.1} parent=1 // loop_header_branch
      %25 = sbr.rel (%p23) target = $region8
    $region5: #{mlp_forward.1} parent=1 // loop_body
      %s27 = ssub.s32 %s22, 1
      %s28 = ssub.s32 %s22, 2
      %s29 = sadd.s32 %s22, 1
      %s31 = sadd.s32 %s30, 1
      %p34 = scmp.eq.s32.totalorder %s22, 1
      %p35 = scmp.ne.s32.totalorder %s30, %s32
      %p36 = scmp.eq.s32.totalorder %s22, 0
      %p37 = por %p35, %p36
      %p38 = scmp.ne.s32.totalorder %s30, %s32
      %p39 = scmp.eq.s32.totalorder %s27, 1
      %p40 = por %p38, %p39
      %p41 = scmp.ne.s32.totalorder %s32, %s33
      %p42 = scmp.eq.s32.totalorder %s27, 0
      %p43 = por %p41, %p42
      %p44 = scmp.ne.s32.totalorder %s32, %s33
      %p45 = scmp.eq.s32.totalorder %s28, 1
      %p46 = por %p44, %p45
      %p48 = scmp.ne.s32.totalorder %s33, %s47
      %p49 = scmp.eq.s32.totalorder %s28, 0
      %p50 = por %p48, %p49
      %s51 = ssub.s32 %s22, %s29
      %p52 = scmp.eq.s32.totalorder %s51, 0
      %s54 = sadd.s32 %s53, 1
      %s55 = scalar_select %p52, %s53, %s54
      %p58 = pneg %p52
      %p59 = scmp.eq.s32.totalorder %s22, 1
      %p60 = por %p58, %p59
      %p61 = scmp.ne.s32.totalorder %s53, %s56
      %p62 = scmp.eq.s32.totalorder %s22, 0
      %p63 = por %p61, %p62
      %p64 = scmp.ne.s32.totalorder %s53, %s56
      %p65 = scmp.eq.s32.totalorder %s27, 1
      %p66 = por %p64, %p65
      %p67 = scmp.ne.s32.totalorder %s56, %s57
      %p68 = scmp.eq.s32.totalorder %s27, 0
      %p69 = por %p67, %p68
      %p70 = scmp.ne.s32.totalorder %s56, %s57
      %p71 = scmp.eq.s32.totalorder %s28, 1
      %p72 = por %p70, %p71
      %p74 = scmp.ne.s32.totalorder %s57, %s73
      %p75 = scmp.eq.s32.totalorder %s28, 0
      %p76 = por %p74, %p75
      %s77 = ssub.s32 %s22, %s29
      %p78 = scmp.eq.s32.totalorder %s77, 0
      %s80 = sadd.s32 %s79, 1
      %s81 = scalar_select %p78, %s79, %s80
      %p84 = pneg %p78
      %p85 = scmp.eq.s32.totalorder %s22, 1
      %p86 = por %p84, %p85
      %p87 = scmp.ne.s32.totalorder %s79, %s82
      %p88 = scmp.eq.s32.totalorder %s22, 0
      %p89 = por %p87, %p88
      %p90 = scmp.ne.s32.totalorder %s79, %s82
      %p91 = scmp.eq.s32.totalorder %s27, 1
      %p92 = por %p90, %p91
      %p93 = scmp.ne.s32.totalorder %s82, %s83
      %p94 = scmp.eq.s32.totalorder %s27, 0
      %p95 = por %p93, %p94
      %p96 = scmp.ne.s32.totalorder %s82, %s83
      %p97 = scmp.eq.s32.totalorder %s28, 1
      %p98 = por %p96, %p97
      %p100 = scmp.ne.s32.totalorder %s83, %s99
      %p101 = scmp.eq.s32.totalorder %s28, 0
      %p102 = por %p100, %p101
      %s103 = ssub.s32 %s22, %s29
      %p104 = scmp.eq.s32.totalorder %s103, 0
      %s106 = sadd.s32 %s105, 1
      %s107 = scalar_select %p104, %s105, %s106
      %p110 = pneg %p104
      %p111 = scmp.eq.s32.totalorder %s22, 1
      %p112 = por %p110, %p111
      %p113 = scmp.ne.s32.totalorder %s105, %s108
      %p114 = scmp.eq.s32.totalorder %s22, 0
      %p115 = por %p113, %p114
      %p116 = scmp.ne.s32.totalorder %s105, %s108
      %p117 = scmp.eq.s32.totalorder %s27, 1
      %p118 = por %p116, %p117
      %p119 = scmp.ne.s32.totalorder %s108, %s109
      %p120 = scmp.eq.s32.totalorder %s27, 0
      %p121 = por %p119, %p120
      %p122 = scmp.ne.s32.totalorder %s108, %s109
      %p123 = scmp.eq.s32.totalorder %s28, 1
      %p124 = por %p122, %p123
      %p126 = scmp.ne.s32.totalorder %s109, %s125
      %p127 = scmp.eq.s32.totalorder %s28, 0
      %p128 = por %p126, %p127
      %s129 = ssub.s32 %s22, %s29
      %p130 = scmp.eq.s32.totalorder %s129, 0
      %s132 = sadd.s32 %s131, 1
      %s133 = scalar_select %p130, %s131, %s132
      %p136 = pneg %p130
      %p137 = scmp.eq.s32.totalorder %s22, 1
      %p138 = por %p136, %p137
      %p139 = scmp.ne.s32.totalorder %s131, %s134
      %p140 = scmp.eq.s32.totalorder %s22, 0
      %p141 = por %p139, %p140
      %p142 = scmp.ne.s32.totalorder %s131, %s134
      %p143 = scmp.eq.s32.totalorder %s27, 1
      %p144 = por %p142, %p143
      %p145 = scmp.ne.s32.totalorder %s134, %s135
      %p146 = scmp.eq.s32.totalorder %s27, 0
      %p147 = por %p145, %p146
      %p148 = scmp.ne.s32.totalorder %s134, %s135
      %p149 = scmp.eq.s32.totalorder %s28, 1
      %p150 = por %p148, %p149
      %p152 = scmp.ne.s32.totalorder %s135, %s151
      %p153 = scmp.eq.s32.totalorder %s28, 0
      %p154 = por %p152, %p153
      %s156 = sadd.s32 %s155, 1
      %p159 = scmp.eq.s32.totalorder %s22, 1
      %p160 = scmp.ne.s32.totalorder %s155, %s157
      %p161 = scmp.eq.s32.totalorder %s22, 0
      %p162 = por %p160, %p161
      %p163 = scmp.ne.s32.totalorder %s155, %s157
      %p164 = scmp.eq.s32.totalorder %s27, 1
      %p165 = por %p163, %p164
      %p166 = scmp.ne.s32.totalorder %s157, %s158
      %p167 = scmp.eq.s32.totalorder %s27, 0
      %p168 = por %p166, %p167
      %p169 = scmp.ne.s32.totalorder %s157, %s158
      %p170 = scmp.eq.s32.totalorder %s28, 1
      %p171 = por %p169, %p170
      %p173 = scmp.ne.s32.totalorder %s158, %s172
      %p174 = scmp.eq.s32.totalorder %s28, 0
      %p175 = por %p173, %p174
      %s177 = sadd.s32 %s176, 1
      %p180 = scmp.eq.s32.totalorder %s22, 1
      %p181 = scmp.ne.s32.totalorder %s176, %s178
      %p182 = scmp.eq.s32.totalorder %s22, 0
      %p183 = por %p181, %p182
      %p184 = scmp.ne.s32.totalorder %s176, %s178
      %p185 = scmp.eq.s32.totalorder %s27, 1
      %p186 = por %p184, %p185
      %p187 = scmp.ne.s32.totalorder %s178, %s179
      %p188 = scmp.eq.s32.totalorder %s27, 0
      %p189 = por %p187, %p188
      %p190 = scmp.ne.s32.totalorder %s178, %s179
      %p191 = scmp.eq.s32.totalorder %s28, 1
      %p192 = por %p190, %p191
      %p194 = scmp.ne.s32.totalorder %s179, %s193
      %p195 = scmp.eq.s32.totalorder %s28, 0
      %p196 = por %p194, %p195
      %p197 = scmp.le.s32.totalorder 1, %s22
      %p198 = scmp.lt.s32.totalorder %s22, 3
      %p199 = pnand %p197, %p198
      %p200 = pneg %p199
      // Predicated region
      $region9: #{mlp_forward.1} parent=5 // pred_check
        _
      $region10: #{mlp_forward.1} parent=5 // pred_check_branch
        %202 = sbr.rel (%p199) target = $region12
      $region11: #{mlp_forward.1} parent=5 // pred_region
        %s203 = ssub.s32 %s22, 1
        // Predicated region
        $region13: #{mlp_forward.1} parent=11 // pred_check
          %p204 = pneg %p43
        $region14: #{mlp_forward.1} parent=11 // pred_check_branch
          %206 = sbr.rel (%p204) target = $region16
        $region15: #{mlp_forward.1} parent=11 // pred_region
          _
        $region16: #{mlp_forward.1} parent=11 // pred_fallthru
          _
        // Predicated region
        $region17: #{mlp_forward.1} parent=11 // pred_check
          %p207 = pneg %p168
        $region18: #{mlp_forward.1} parent=11 // pred_check_branch
          %209 = sbr.rel (%p207) target = $region20
        $region19: #{mlp_forward.1} parent=11 // pred_region
          %s211 = ssub.s32 16, 16
          %212 = vsyncadd [#allocation9], %s211
          %s214 = sshll.u32 [#allocation10], 4
          %s215 = int_to_ptr.vmem [resolvable:$true] %s214
          %217 = dma.hbm_to_vmem [thread:$0]  %s5, 16, %s215, [#allocation9]
        $region20: #{mlp_forward.1} parent=11 // pred_fallthru
          _
      $region12: #{mlp_forward.1} parent=5 // pred_fallthru
        _
      %p218 = scmp.lt.s32.totalorder %s22, 2
      // Predicated region
      $region21: #{mlp_forward.1} parent=5 // pred_check
        %p219 = pneg %p218
      $region22: #{mlp_forward.1} parent=5 // pred_check_branch
        %221 = sbr.rel (%p219) target = $region24
      $region23: #{mlp_forward.1} parent=5 // pred_region
        // Predicated region
        $region25: #{mlp_forward.1} parent=23 // pred_check
          %p222 = pneg %p63
        $region26: #{mlp_forward.1} parent=23 // pred_check_branch
          %224 = sbr.rel (%p222) target = $region28
        $region27: #{mlp_forward.1} parent=23 // pred_region
          %s225 = sand.u32 %s53, 1
          %s226 = scalar_lea.sflag [#allocation3], %s225
          %s227 = sand.u32 %s53, 1
          %s228 = smul.addr %s227, 12800
          %s229 = scalar_lea.vmem [#allocation2], %s228
          %s231 = ssub.s32 204800, 204800
          %232 = vsyncadd %s226, %s231
          %s233 = smul.addr %s22, 1600
          %s234 = smul.addr %s233, 128
          %s235 = scalar_lea.hbm %s1, %s234
          %s236 = sshll.u32 %s229, 4
          %s237 = int_to_ptr.vmem [resolvable:$true] %s236
          %242 = dma.hbm_to_vmem [thread:$0]  %s235, 204800, %s237, %s226, 1280, 1280, 80
        $region28: #{mlp_forward.1} parent=23 // pred_fallthru
          _
        // Predicated region
        $region29: #{mlp_forward.1} parent=23 // pred_check
          %p243 = pneg %p89
        $region30: #{mlp_forward.1} parent=23 // pred_check_branch
          %245 = sbr.rel (%p243) target = $region32
        $region31: #{mlp_forward.1} parent=23 // pred_region
          %s246 = sand.u32 %s22, 1
          %s247 = scalar_lea.sflag [#allocation6], %s246
          %s248 = sand.u32 %s79, 1
          %s249 = smul.addr %s248, 10
          %s250 = scalar_lea.vmem [#allocation5], %s249
          %s251 = smul.u32 10, %s22
          %s253 = ssub.s32 160, 160
          %254 = vsyncadd %s247, %s253
          %s255 = smul.addr %s251, 16
          %s256 = scalar_lea.hbm %s2, %s255
          %s258 = sshll.u32 %s250, 4
          %s259 = int_to_ptr.vmem [resolvable:$true] %s258
          %261 = dma.hbm_to_vmem [thread:$0]  %s256, 160, %s259, %s247
        $region32: #{mlp_forward.1} parent=23 // pred_fallthru
          _
        // Predicated region
        $region33: #{mlp_forward.1} parent=23 // pred_check
          %p262 = pneg %p115
        $region34: #{mlp_forward.1} parent=23 // pred_check_branch
          %264 = sbr.rel (%p262) target = $region36
        $region35: #{mlp_forward.1} parent=23 // pred_region
          %s265 = sand.u32 %s22, 1
          %s266 = scalar_lea.sflag [#allocation6], %s265
          %s267 = sand.u32 %s105, 1
          %s268 = smul.addr %s267, 10
          %s269 = scalar_lea.vmem [#allocation7], %s268
          %s270 = smul.u32 10, %s22
          %s272 = ssub.s32 160, 160
          %273 = vsyncadd %s266, %s272
          %s274 = smul.addr %s270, 16
          %s275 = scalar_lea.hbm %s3, %s274
          %s277 = sshll.u32 %s269, 4
          %s278 = int_to_ptr.vmem [resolvable:$true] %s277
          %280 = dma.hbm_to_vmem [thread:$0]  %s275, 160, %s278, %s266
        $region36: #{mlp_forward.1} parent=23 // pred_fallthru
          _
        // Predicated region
        $region37: #{mlp_forward.1} parent=23 // pred_check
          %p281 = pneg %p141
        $region38: #{mlp_forward.1} parent=23 // pred_check_branch
          %283 = sbr.rel (%p281) target = $region40
        $region39: #{mlp_forward.1} parent=23 // pred_region
          %s284 = sand.u32 %s22, 1
          %s285 = scalar_lea.sflag [#allocation9], %s284
          %s286 = sand.u32 %s131, 1
          %s287 = smul.addr %s286, 640
          %s288 = scalar_lea.vmem [#allocation8], %s287
          %s289 = smul.u32 160, %s22
          %s291 = ssub.s32 10240, 10240
          %292 = vsyncadd %s285, %s291
          %s293 = smul.addr %s289, 64
          %s294 = scalar_lea.hbm %s4, %s293
          %s295 = sshll.u32 %s288, 4
          %s296 = int_to_ptr.vmem [resolvable:$true] %s295
          %301 = dma.hbm_to_vmem [thread:$0]  %s294, 10240, %s296, %s285, 64, 64, 4
        $region40: #{mlp_forward.1} parent=23 // pred_fallthru
          _
      $region24: #{mlp_forward.1} parent=5 // pred_fallthru
        _
      %p302 = scmp.le.s32.totalorder 1, %s22
      %p303 = scmp.lt.s32.totalorder %s22, 3
      %p304 = pnand %p302, %p303
      %p305 = pneg %p304
      // Predicated region
      $region41: #{mlp_forward.1} parent=5 // pred_check
        _
      $region42: #{mlp_forward.1} parent=5 // pred_check_branch
        %307 = sbr.rel (%p304) target = $region44
      $region43: #{mlp_forward.1} parent=5 // pred_region
        %s308 = ssub.s32 %s22, 1
        %s309 = sand.u32 %s56, 1
        %s310 = scalar_lea.sflag [#allocation3], %s309
        %s311 = sand.u32 %s56, 1
        %s312 = smul.addr %s311, 12800
        %s313 = scalar_lea.vmem [#allocation2], %s312
        // Predicated region
        $region45: #{mlp_forward.1} parent=43 // pred_check
          %p314 = pneg %p69
        $region46: #{mlp_forward.1} parent=43 // pred_check_branch
          %316 = sbr.rel (%p314) target = $region48
        $region47: #{mlp_forward.1} parent=43 // pred_region
          %317 = dma.done %s310, 204800
        $region48: #{mlp_forward.1} parent=43 // pred_fallthru
          _
        %s318 = sand.u32 %s27, 1
        %s319 = scalar_lea.sflag [#allocation6], %s318
        %s320 = sand.u32 %s82, 1
        %s321 = smul.addr %s320, 10
        %s322 = scalar_lea.vmem [#allocation5], %s321
        // Predicated region
        $region49: #{mlp_forward.1} parent=43 // pred_check
          %p323 = pneg %p95
        $region50: #{mlp_forward.1} parent=43 // pred_check_branch
          %325 = sbr.rel (%p323) target = $region52
        $region51: #{mlp_forward.1} parent=43 // pred_region
          %326 = dma.done %s319, 160
        $region52: #{mlp_forward.1} parent=43 // pred_fallthru
          _
        %s327 = sand.u32 %s27, 1
        %s328 = scalar_lea.sflag [#allocation6], %s327
        %s329 = sand.u32 %s108, 1
        %s330 = smul.addr %s329, 10
        %s331 = scalar_lea.vmem [#allocation7], %s330
        // Predicated region
        $region53: #{mlp_forward.1} parent=43 // pred_check
          %p332 = pneg %p121
        $region54: #{mlp_forward.1} parent=43 // pred_check_branch
          %334 = sbr.rel (%p332) target = $region56
        $region55: #{mlp_forward.1} parent=43 // pred_region
          %335 = dma.done %s328, 160
        $region56: #{mlp_forward.1} parent=43 // pred_fallthru
          _
        %s336 = sand.u32 %s27, 1
        %s337 = scalar_lea.sflag [#allocation9], %s336
        %s338 = sand.u32 %s134, 1
        %s339 = smul.addr %s338, 640
        %s340 = scalar_lea.vmem [#allocation8], %s339
        // Predicated region
        $region57: #{mlp_forward.1} parent=43 // pred_check
          %p341 = pneg %p147
        $region58: #{mlp_forward.1} parent=43 // pred_check_branch
          %343 = sbr.rel (%p341) target = $region60
        $region59: #{mlp_forward.1} parent=43 // pred_region
          %344 = dma.done %s337, 10240
        $region60: #{mlp_forward.1} parent=43 // pred_fallthru
          _
        // Predicated region
        $region61: #{mlp_forward.1} parent=43 // pred_check
          %p345 = pneg %p168
        $region62: #{mlp_forward.1} parent=43 // pred_check_branch
          %347 = sbr.rel (%p345) target = $region64
        $region63: #{mlp_forward.1} parent=43 // pred_region
          %348 = dma.done [#allocation9], 16
        $region64: #{mlp_forward.1} parent=43 // pred_fallthru
          _
        %p349 = pneg %p43
        %p350 = pneg %p40
        %s351 = sand.u32 %s56, 1
        %s352 = scalar_lea.sflag [#allocation3], %s351
        %s353 = sand.u32 %s56, 1
        %s354 = smul.addr %s353, 12800
        %s355 = scalar_lea.vmem [#allocation2], %s354
        %p356 = pneg %p69
        %p357 = pneg %p66
        %s358 = sand.u32 %s27, 1
        %s359 = scalar_lea.sflag [#allocation6], %s358
        %s360 = sand.u32 %s82, 1
        %s361 = smul.addr %s360, 10
        %s362 = scalar_lea.vmem [#allocation5], %s361
        %p363 = pneg %p95
        %p364 = pneg %p92
        %s365 = sand.u32 %s27, 1
        %s366 = scalar_lea.sflag [#allocation6], %s365
        %s367 = sand.u32 %s108, 1
        %s368 = smul.addr %s367, 10
        %s369 = scalar_lea.vmem [#allocation7], %s368
        %p370 = pneg %p121
        %p371 = pneg %p118
        %s372 = sand.u32 %s27, 1
        %s373 = scalar_lea.sflag [#allocation9], %s372
        %s374 = sand.u32 %s134, 1
        %s375 = smul.addr %s374, 640
        %s376 = scalar_lea.vmem [#allocation8], %s375
        %p377 = pneg %p147
        %p378 = pneg %p144
        %p379 = pneg %p168
        %p380 = pneg %p165
        %p381 = pneg %p189
        %p382 = pneg %p186
        %s383 = smul.u32 10, %s27
        %s384 = smul.u32 10, %s27
        %s385 = smul.u32 160, %s27
        %p387 = scmp.eq.s32.totalorder %s27, 0
        // Predicated region
        $region65: #{mlp_forward.1} parent=43 // pred_check
          %p388 = pneg %p387
        $region66: #{mlp_forward.1} parent=43 // pred_check_branch
          %390 = sbr.rel (%p388) target = $region68
        $region67: #{mlp_forward.1} parent=43 // pred_region
          %391 = vst [vmem:[#allocation11] sm:$0x3] 0.0
        $region68: #{mlp_forward.1} parent=43 // pred_fallthru
          _
        %v392 = vld [vmem:[%s313] sm:$0xff]
        %v393 = vld [vmem:[%s313 + $0x8] sm:$0xff]
        %v394 = vld [vmem:[%s313 + $0x10] sm:$0xff]
        %v395 = vld [vmem:[%s313 + $0x18] sm:$0xff]
        %v396 = vld [vmem:[%s313 + $0x20] sm:$0xff]
        %v397 = vld [vmem:[%s313 + $0x28] sm:$0xff]
        %v398 = vld [vmem:[%s313 + $0x30] sm:$0xff]
        %v399 = vld [vmem:[%s313 + $0x38] sm:$0xff]
        %v400 = vld [vmem:[%s313 + $0x40] sm:$0xff]
        %v401 = vld [vmem:[%s313 + $0x48] sm:$0xff]
        %v402 = vld [vmem:[%s313 + $0x50] sm:$0xff]
        %v403 = vld [vmem:[%s313 + $0x58] sm:$0xff]
        %v404 = vld [vmem:[%s313 + $0x60] sm:$0xff]
        %v405 = vld [vmem:[%s313 + $0x68] sm:$0xff]
        %v406 = vld [vmem:[%s313 + $0x70] sm:$0xff]
        %v407 = vld [vmem:[%s313 + $0x78] sm:$0xff]
        %v408 = vld [vmem:[%s313 + $0x80] sm:$0xff]
        %v409 = vld [vmem:[%s313 + $0x88] sm:$0xff]
        %v410 = vld [vmem:[%s313 + $0x90] sm:$0xff]
        %v411 = vld [vmem:[%s313 + $0x98] sm:$0xff]
        %v412 = vld [vmem:[%s313 + $0xa0] sm:$0xff]
        %v413 = vld [vmem:[%s313 + $0xa8] sm:$0xff]
        %v414 = vld [vmem:[%s313 + $0xb0] sm:$0xff]
        %v415 = vld [vmem:[%s313 + $0xb8] sm:$0xff]
        %v416 = vld [vmem:[%s313 + $0xc0] sm:$0xff]
        %v417 = vld [vmem:[%s313 + $0xc8] sm:$0xff]
        %v418 = vld [vmem:[%s313 + $0xd0] sm:$0xff]
        %v419 = vld [vmem:[%s313 + $0xd8] sm:$0xff]
        %v420 = vld [vmem:[%s313 + $0xe0] sm:$0xff]
        %v421 = vld [vmem:[%s313 + $0xe8] sm:$0xff]
        %v422 = vld [vmem:[%s313 + $0xf0] sm:$0xff]
        %v423 = vld [vmem:[%s313 + $0xf8] sm:$0xff]
        %v424 = vld [vmem:[%s313 + $0x100] sm:$0xff]
        %v425 = vld [vmem:[%s313 + $0x108] sm:$0xff]
        %v426 = vld [vmem:[%s313 + $0x110] sm:$0xff]
        %v427 = vld [vmem:[%s313 + $0x118] sm:$0xff]
        %v428 = vld [vmem:[%s313 + $0x120] sm:$0xff]
        %v429 = vld [vmem:[%s313 + $0x128] sm:$0xff]
        %v430 = vld [vmem:[%s313 + $0x130] sm:$0xff]
        %v431 = vld [vmem:[%s313 + $0x138] sm:$0xff]
        %v432 = vld [vmem:[%s313 + $0x140] sm:$0xff]
        %v433 = vld [vmem:[%s313 + $0x148] sm:$0xff]
        %v434 = vld [vmem:[%s313 + $0x150] sm:$0xff]
        %v435 = vld [vmem:[%s313 + $0x158] sm:$0xff]
        %v436 = vld [vmem:[%s313 + $0x160] sm:$0xff]
        %v437 = vld [vmem:[%s313 + $0x168] sm:$0xff]
        %v438 = vld [vmem:[%s313 + $0x170] sm:$0xff]
        %v439 = vld [vmem:[%s313 + $0x178] sm:$0xff]
        %v440 = vld [vmem:[%s313 + $0x180] sm:$0xff]
        %v441 = vld [vmem:[%s313 + $0x188] sm:$0xff]
        %v442 = vld [vmem:[%s313 + $0x190] sm:$0xff]
        %v443 = vld [vmem:[%s313 + $0x198] sm:$0xff]
        %v444 = vld [vmem:[%s313 + $0x1a0] sm:$0xff]
        %v445 = vld [vmem:[%s313 + $0x1a8] sm:$0xff]
        %v446 = vld [vmem:[%s313 + $0x1b0] sm:$0xff]
        %v447 = vld [vmem:[%s313 + $0x1b8] sm:$0xff]
        %v448 = vld [vmem:[%s313 + $0x1c0] sm:$0xff]
        %v449 = vld [vmem:[%s313 + $0x1c8] sm:$0xff]
        %v450 = vld [vmem:[%s313 + $0x1d0] sm:$0xff]
        %v451 = vld [vmem:[%s313 + $0x1d8] sm:$0xff]
        %v452 = vld [vmem:[%s313 + $0x1e0] sm:$0xff]
        %v453 = vld [vmem:[%s313 + $0x1e8] sm:$0xff]
        %v454 = vld [vmem:[%s313 + $0x1f0] sm:$0xff]
        %v455 = vld [vmem:[%s313 + $0x1f8] sm:$0xff]
        %v456 = vld [vmem:[%s313 + $0x200] sm:$0xff]
        %v457 = vld [vmem:[%s313 + $0x208] sm:$0xff]
        %v458 = vld [vmem:[%s313 + $0x210] sm:$0xff]
        %v459 = vld [vmem:[%s313 + $0x218] sm:$0xff]
        %v460 = vld [vmem:[%s313 + $0x220] sm:$0xff]
        %v461 = vld [vmem:[%s313 + $0x228] sm:$0xff]
        %v462 = vld [vmem:[%s313 + $0x230] sm:$0xff]
        %v463 = vld [vmem:[%s313 + $0x238] sm:$0xff]
        %v464 = vld [vmem:[%s313 + $0x240] sm:$0xff]
        %v465 = vld [vmem:[%s313 + $0x248] sm:$0xff]
        %v466 = vld [vmem:[%s313 + $0x250] sm:$0xff]
        %v467 = vld [vmem:[%s313 + $0x258] sm:$0xff]
        %v468 = vld [vmem:[%s313 + $0x260] sm:$0xff]
        %v469 = vld [vmem:[%s313 + $0x268] sm:$0xff]
        %v470 = vld [vmem:[%s313 + $0x270] sm:$0xff]
        %v471 = vld [vmem:[%s313 + $0x278] sm:$0xff]
        %v472 = vld [vmem:[%s313 + $0x280] sm:$0xff]
        %v473 = vld [vmem:[%s313 + $0x288] sm:$0xff]
        %v474 = vld [vmem:[%s313 + $0x290] sm:$0xff]
        %v475 = vld [vmem:[%s313 + $0x298] sm:$0xff]
        %v476 = vld [vmem:[%s313 + $0x2a0] sm:$0xff]
        %v477 = vld [vmem:[%s313 + $0x2a8] sm:$0xff]
        %v478 = vld [vmem:[%s313 + $0x2b0] sm:$0xff]
        %v479 = vld [vmem:[%s313 + $0x2b8] sm:$0xff]
        %v480 = vld [vmem:[%s313 + $0x2c0] sm:$0xff]
        %v481 = vld [vmem:[%s313 + $0x2c8] sm:$0xff]
        %v482 = vld [vmem:[%s313 + $0x2d0] sm:$0xff]
        %v483 = vld [vmem:[%s313 + $0x2d8] sm:$0xff]
        %v484 = vld [vmem:[%s313 + $0x2e0] sm:$0xff]
        %v485 = vld [vmem:[%s313 + $0x2e8] sm:$0xff]
        %v486 = vld [vmem:[%s313 + $0x2f0] sm:$0xff]
        %v487 = vld [vmem:[%s313 + $0x2f8] sm:$0xff]
        %v488 = vld [vmem:[%s313 + $0x300] sm:$0xff]
        %v489 = vld [vmem:[%s313 + $0x308] sm:$0xff]
        %v490 = vld [vmem:[%s313 + $0x310] sm:$0xff]
        %v491 = vld [vmem:[%s313 + $0x318] sm:$0xff]
        %v492 = vld [vmem:[%s313 + $0x320] sm:$0xff]
        %v493 = vld [vmem:[%s313 + $0x328] sm:$0xff]
        %v494 = vld [vmem:[%s313 + $0x330] sm:$0xff]
        %v495 = vld [vmem:[%s313 + $0x338] sm:$0xff]
        %v496 = vld [vmem:[%s313 + $0x340] sm:$0xff]
        %v497 = vld [vmem:[%s313 + $0x348] sm:$0xff]
        %v498 = vld [vmem:[%s313 + $0x350] sm:$0xff]
        %v499 = vld [vmem:[%s313 + $0x358] sm:$0xff]
        %v500 = vld [vmem:[%s313 + $0x360] sm:$0xff]
        %v501 = vld [vmem:[%s313 + $0x368] sm:$0xff]
        %v502 = vld [vmem:[%s313 + $0x370] sm:$0xff]
        %v503 = vld [vmem:[%s313 + $0x378] sm:$0xff]
        %v504 = vld [vmem:[%s313 + $0x380] sm:$0xff]
        %v505 = vld [vmem:[%s313 + $0x388] sm:$0xff]
        %v506 = vld [vmem:[%s313 + $0x390] sm:$0xff]
        %v507 = vld [vmem:[%s313 + $0x398] sm:$0xff]
        %v508 = vld [vmem:[%s313 + $0x3a0] sm:$0xff]
        %v509 = vld [vmem:[%s313 + $0x3a8] sm:$0xff]
        %v510 = vld [vmem:[%s313 + $0x3b0] sm:$0xff]
        %v511 = vld [vmem:[%s313 + $0x3b8] sm:$0xff]
        %v512 = vld [vmem:[%s313 + $0x3c0] sm:$0xff]
        %v513 = vld [vmem:[%s313 + $0x3c8] sm:$0xff]
        %v514 = vld [vmem:[%s313 + $0x3d0] sm:$0xff]
        %v515 = vld [vmem:[%s313 + $0x3d8] sm:$0xff]
        %v516 = vld [vmem:[%s313 + $0x3e0] sm:$0xff]
        %v517 = vld [vmem:[%s313 + $0x3e8] sm:$0xff]
        %v518 = vld [vmem:[%s313 + $0x3f0] sm:$0xff]
        %v519 = vld [vmem:[%s313 + $0x3f8] sm:$0xff]
        %v520 = vld [vmem:[%s313 + $0x400] sm:$0xff]
        %v521 = vld [vmem:[%s313 + $0x408] sm:$0xff]
        %v522 = vld [vmem:[%s313 + $0x410] sm:$0xff]
        %v523 = vld [vmem:[%s313 + $0x418] sm:$0xff]
        %v524 = vld [vmem:[%s313 + $0x420] sm:$0xff]
        %v525 = vld [vmem:[%s313 + $0x428] sm:$0xff]
        %v526 = vld [vmem:[%s313 + $0x430] sm:$0xff]
        %v527 = vld [vmem:[%s313 + $0x438] sm:$0xff]
        %v528 = vld [vmem:[%s313 + $0x440] sm:$0xff]
        %v529 = vld [vmem:[%s313 + $0x448] sm:$0xff]
        %v530 = vld [vmem:[%s313 + $0x450] sm:$0xff]
        %v531 = vld [vmem:[%s313 + $0x458] sm:$0xff]
        %v532 = vld [vmem:[%s313 + $0x460] sm:$0xff]
        %v533 = vld [vmem:[%s313 + $0x468] sm:$0xff]
        %v534 = vld [vmem:[%s313 + $0x470] sm:$0xff]
        %v535 = vld [vmem:[%s313 + $0x478] sm:$0xff]
        %v536 = vld [vmem:[%s313 + $0x480] sm:$0xff]
        %v537 = vld [vmem:[%s313 + $0x488] sm:$0xff]
        %v538 = vld [vmem:[%s313 + $0x490] sm:$0xff]
        %v539 = vld [vmem:[%s313 + $0x498] sm:$0xff]
        %v540 = vld [vmem:[%s313 + $0x4a0] sm:$0xff]
        %v541 = vld [vmem:[%s313 + $0x4a8] sm:$0xff]
        %v542 = vld [vmem:[%s313 + $0x4b0] sm:$0xff]
        %v543 = vld [vmem:[%s313 + $0x4b8] sm:$0xff]
        %v544 = vld [vmem:[%s313 + $0x4c0] sm:$0xff]
        %v545 = vld [vmem:[%s313 + $0x4c8] sm:$0xff]
        %v546 = vld [vmem:[%s313 + $0x4d0] sm:$0xff]
        %v547 = vld [vmem:[%s313 + $0x4d8] sm:$0xff]
        %v548 = vld [vmem:[%s313 + $0x4e0] sm:$0xff]
        %v549 = vld [vmem:[%s313 + $0x4e8] sm:$0xff]
        %v550 = vld [vmem:[%s313 + $0x4f0] sm:$0xff]
        %v551 = vld [vmem:[%s313 + $0x4f8] sm:$0xff]
        %v552 = vld [vmem:[%s313 + $0x500] sm:$0xff]
        %v553 = vld [vmem:[%s313 + $0x508] sm:$0xff]
        %v554 = vld [vmem:[%s313 + $0x510] sm:$0xff]
        %v555 = vld [vmem:[%s313 + $0x518] sm:$0xff]
        %v556 = vld [vmem:[%s313 + $0x520] sm:$0xff]
        %v557 = vld [vmem:[%s313 + $0x528] sm:$0xff]
        %v558 = vld [vmem:[%s313 + $0x530] sm:$0xff]
        %v559 = vld [vmem:[%s313 + $0x538] sm:$0xff]
        %v560 = vld [vmem:[%s313 + $0x540] sm:$0xff]
        %v561 = vld [vmem:[%s313 + $0x548] sm:$0xff]
        %v562 = vld [vmem:[%s313 + $0x550] sm:$0xff]
        %v563 = vld [vmem:[%s313 + $0x558] sm:$0xff]
        %v564 = vld [vmem:[%s313 + $0x560] sm:$0xff]
        %v565 = vld [vmem:[%s313 + $0x568] sm:$0xff]
        %v566 = vld [vmem:[%s313 + $0x570] sm:$0xff]
        %v567 = vld [vmem:[%s313 + $0x578] sm:$0xff]
        %v568 = vld [vmem:[%s313 + $0x580] sm:$0xff]
        %v569 = vld [vmem:[%s313 + $0x588] sm:$0xff]
        %v570 = vld [vmem:[%s313 + $0x590] sm:$0xff]
        %v571 = vld [vmem:[%s313 + $0x598] sm:$0xff]
        %v572 = vld [vmem:[%s313 + $0x5a0] sm:$0xff]
        %v573 = vld [vmem:[%s313 + $0x5a8] sm:$0xff]
        %v574 = vld [vmem:[%s313 + $0x5b0] sm:$0xff]
        %v575 = vld [vmem:[%s313 + $0x5b8] sm:$0xff]
        %v576 = vld [vmem:[%s313 + $0x5c0] sm:$0xff]
        %v577 = vld [vmem:[%s313 + $0x5c8] sm:$0xff]
        %v578 = vld [vmem:[%s313 + $0x5d0] sm:$0xff]
        %v579 = vld [vmem:[%s313 + $0x5d8] sm:$0xff]
        %v580 = vld [vmem:[%s313 + $0x5e0] sm:$0xff]
        %v581 = vld [vmem:[%s313 + $0x5e8] sm:$0xff]
        %v582 = vld [vmem:[%s313 + $0x5f0] sm:$0xff]
        %v583 = vld [vmem:[%s313 + $0x5f8] sm:$0xff]
        %v584 = vld [vmem:[%s313 + $0x600] sm:$0xff]
        %v585 = vld [vmem:[%s313 + $0x608] sm:$0xff]
        %v586 = vld [vmem:[%s313 + $0x610] sm:$0xff]
        %v587 = vld [vmem:[%s313 + $0x618] sm:$0xff]
        %v588 = vld [vmem:[%s313 + $0x620] sm:$0xff]
        %v589 = vld [vmem:[%s313 + $0x628] sm:$0xff]
        %v590 = vld [vmem:[%s313 + $0x630] sm:$0xff]
        %v591 = vld [vmem:[%s313 + $0x638] sm:$0xff]
        %v592 = vld [vmem:[%s313 + $0x640] sm:$0xff]
        %v593 = vld [vmem:[%s313 + $0x648] sm:$0xff]
        %v594 = vld [vmem:[%s313 + $0x650] sm:$0xff]
        %v595 = vld [vmem:[%s313 + $0x658] sm:$0xff]
        %v596 = vld [vmem:[%s313 + $0x660] sm:$0xff]
        %v597 = vld [vmem:[%s313 + $0x668] sm:$0xff]
        %v598 = vld [vmem:[%s313 + $0x670] sm:$0xff]
        %v599 = vld [vmem:[%s313 + $0x678] sm:$0xff]
        %v600 = vld [vmem:[%s313 + $0x680] sm:$0xff]
        %v601 = vld [vmem:[%s313 + $0x688] sm:$0xff]
        %v602 = vld [vmem:[%s313 + $0x690] sm:$0xff]
        %v603 = vld [vmem:[%s313 + $0x698] sm:$0xff]
        %v604 = vld [vmem:[%s313 + $0x6a0] sm:$0xff]
        %v605 = vld [vmem:[%s313 + $0x6a8] sm:$0xff]
        %v606 = vld [vmem:[%s313 + $0x6b0] sm:$0xff]
        %v607 = vld [vmem:[%s313 + $0x6b8] sm:$0xff]
        %v608 = vld [vmem:[%s313 + $0x6c0] sm:$0xff]
        %v609 = vld [vmem:[%s313 + $0x6c8] sm:$0xff]
        %v610 = vld [vmem:[%s313 + $0x6d0] sm:$0xff]
        %v611 = vld [vmem:[%s313 + $0x6d8] sm:$0xff]
        %v612 = vld [vmem:[%s313 + $0x6e0] sm:$0xff]
        %v613 = vld [vmem:[%s313 + $0x6e8] sm:$0xff]
        %v614 = vld [vmem:[%s313 + $0x6f0] sm:$0xff]
        %v615 = vld [vmem:[%s313 + $0x6f8] sm:$0xff]
        %v616 = vld [vmem:[%s313 + $0x700] sm:$0xff]
        %v617 = vld [vmem:[%s313 + $0x708] sm:$0xff]
        %v618 = vld [vmem:[%s313 + $0x710] sm:$0xff]
        %v619 = vld [vmem:[%s313 + $0x718] sm:$0xff]
        %v620 = vld [vmem:[%s313 + $0x720] sm:$0xff]
        %v621 = vld [vmem:[%s313 + $0x728] sm:$0xff]
        %v622 = vld [vmem:[%s313 + $0x730] sm:$0xff]
        %v623 = vld [vmem:[%s313 + $0x738] sm:$0xff]
        %v624 = vld [vmem:[%s313 + $0x740] sm:$0xff]
        %v625 = vld [vmem:[%s313 + $0x748] sm:$0xff]
        %v626 = vld [vmem:[%s313 + $0x750] sm:$0xff]
        %v627 = vld [vmem:[%s313 + $0x758] sm:$0xff]
        %v628 = vld [vmem:[%s313 + $0x760] sm:$0xff]
        %v629 = vld [vmem:[%s313 + $0x768] sm:$0xff]
        %v630 = vld [vmem:[%s313 + $0x770] sm:$0xff]
        %v631 = vld [vmem:[%s313 + $0x778] sm:$0xff]
        %v632 = vld [vmem:[%s313 + $0x780] sm:$0xff]
        %v633 = vld [vmem:[%s313 + $0x788] sm:$0xff]
        %v634 = vld [vmem:[%s313 + $0x790] sm:$0xff]
        %v635 = vld [vmem:[%s313 + $0x798] sm:$0xff]
        %v636 = vld [vmem:[%s313 + $0x7a0] sm:$0xff]
        %v637 = vld [vmem:[%s313 + $0x7a8] sm:$0xff]
        %v638 = vld [vmem:[%s313 + $0x7b0] sm:$0xff]
        %v639 = vld [vmem:[%s313 + $0x7b8] sm:$0xff]
        %v640 = vld [vmem:[%s313 + $0x7c0] sm:$0xff]
        %v641 = vld [vmem:[%s313 + $0x7c8] sm:$0xff]
        %v642 = vld [vmem:[%s313 + $0x7d0] sm:$0xff]
        %v643 = vld [vmem:[%s313 + $0x7d8] sm:$0xff]
        %v644 = vld [vmem:[%s313 + $0x7e0] sm:$0xff]
        %v645 = vld [vmem:[%s313 + $0x7e8] sm:$0xff]
        %v646 = vld [vmem:[%s313 + $0x7f0] sm:$0xff]
        %v647 = vld [vmem:[%s313 + $0x7f8] sm:$0xff]
        %v648 = vld [vmem:[%s313 + $0x800] sm:$0xff]
        %v649 = vld [vmem:[%s313 + $0x808] sm:$0xff]
        %v650 = vld [vmem:[%s313 + $0x810] sm:$0xff]
        %v651 = vld [vmem:[%s313 + $0x818] sm:$0xff]
        %v652 = vld [vmem:[%s313 + $0x820] sm:$0xff]
        %v653 = vld [vmem:[%s313 + $0x828] sm:$0xff]
        %v654 = vld [vmem:[%s313 + $0x830] sm:$0xff]
        %v655 = vld [vmem:[%s313 + $0x838] sm:$0xff]
        %v656 = vld [vmem:[%s313 + $0x840] sm:$0xff]
        %v657 = vld [vmem:[%s313 + $0x848] sm:$0xff]
        %v658 = vld [vmem:[%s313 + $0x850] sm:$0xff]
        %v659 = vld [vmem:[%s313 + $0x858] sm:$0xff]
        %v660 = vld [vmem:[%s313 + $0x860] sm:$0xff]
        %v661 = vld [vmem:[%s313 + $0x868] sm:$0xff]
        %v662 = vld [vmem:[%s313 + $0x870] sm:$0xff]
        %v663 = vld [vmem:[%s313 + $0x878] sm:$0xff]
        %v664 = vld [vmem:[%s313 + $0x880] sm:$0xff]
        %v665 = vld [vmem:[%s313 + $0x888] sm:$0xff]
        %v666 = vld [vmem:[%s313 + $0x890] sm:$0xff]
        %v667 = vld [vmem:[%s313 + $0x898] sm:$0xff]
        %v668 = vld [vmem:[%s313 + $0x8a0] sm:$0xff]
        %v669 = vld [vmem:[%s313 + $0x8a8] sm:$0xff]
        %v670 = vld [vmem:[%s313 + $0x8b0] sm:$0xff]
        %v671 = vld [vmem:[%s313 + $0x8b8] sm:$0xff]
        %v672 = vld [vmem:[%s313 + $0x8c0] sm:$0xff]
        %v673 = vld [vmem:[%s313 + $0x8c8] sm:$0xff]
        %v674 = vld [vmem:[%s313 + $0x8d0] sm:$0xff]
        %v675 = vld [vmem:[%s313 + $0x8d8] sm:$0xff]
        %v676 = vld [vmem:[%s313 + $0x8e0] sm:$0xff]
        %v677 = vld [vmem:[%s313 + $0x8e8] sm:$0xff]
        %v678 = vld [vmem:[%s313 + $0x8f0] sm:$0xff]
        %v679 = vld [vmem:[%s313 + $0x8f8] sm:$0xff]
        %v680 = vld [vmem:[%s313 + $0x900] sm:$0xff]
        %v681 = vld [vmem:[%s313 + $0x908] sm:$0xff]
        %v682 = vld [vmem:[%s313 + $0x910] sm:$0xff]
        %v683 = vld [vmem:[%s313 + $0x918] sm:$0xff]
        %v684 = vld [vmem:[%s313 + $0x920] sm:$0xff]
        %v685 = vld [vmem:[%s313 + $0x928] sm:$0xff]
        %v686 = vld [vmem:[%s313 + $0x930] sm:$0xff]
        %v687 = vld [vmem:[%s313 + $0x938] sm:$0xff]
        %v688 = vld [vmem:[%s313 + $0x940] sm:$0xff]
        %v689 = vld [vmem:[%s313 + $0x948] sm:$0xff]
        %v690 = vld [vmem:[%s313 + $0x950] sm:$0xff]
        %v691 = vld [vmem:[%s313 + $0x958] sm:$0xff]
        %v692 = vld [vmem:[%s313 + $0x960] sm:$0xff]
        %v693 = vld [vmem:[%s313 + $0x968] sm:$0xff]
        %v694 = vld [vmem:[%s313 + $0x970] sm:$0xff]
        %v695 = vld [vmem:[%s313 + $0x978] sm:$0xff]
        %v696 = vld [vmem:[%s313 + $0x980] sm:$0xff]
        %v697 = vld [vmem:[%s313 + $0x988] sm:$0xff]
        %v698 = vld [vmem:[%s313 + $0x990] sm:$0xff]
        %v699 = vld [vmem:[%s313 + $0x998] sm:$0xff]
        %v700 = vld [vmem:[%s313 + $0x9a0] sm:$0xff]
        %v701 = vld [vmem:[%s313 + $0x9a8] sm:$0xff]
        %v702 = vld [vmem:[%s313 + $0x9b0] sm:$0xff]
        %v703 = vld [vmem:[%s313 + $0x9b8] sm:$0xff]
        %v704 = vld [vmem:[%s313 + $0x9c0] sm:$0xff]
        %v705 = vld [vmem:[%s313 + $0x9c8] sm:$0xff]
        %v706 = vld [vmem:[%s313 + $0x9d0] sm:$0xff]
        %v707 = vld [vmem:[%s313 + $0x9d8] sm:$0xff]
        %v708 = vld [vmem:[%s313 + $0x9e0] sm:$0xff]
        %v709 = vld [vmem:[%s313 + $0x9e8] sm:$0xff]
        %v710 = vld [vmem:[%s313 + $0x9f0] sm:$0xff]
        %v711 = vld [vmem:[%s313 + $0x9f8] sm:$0xff]
        %v712 = vld [vmem:[%s313 + $0xa00] sm:$0xff]
        %v713 = vld [vmem:[%s313 + $0xa08] sm:$0xff]
        %v714 = vld [vmem:[%s313 + $0xa10] sm:$0xff]
        %v715 = vld [vmem:[%s313 + $0xa18] sm:$0xff]
        %v716 = vld [vmem:[%s313 + $0xa20] sm:$0xff]
        %v717 = vld [vmem:[%s313 + $0xa28] sm:$0xff]
        %v718 = vld [vmem:[%s313 + $0xa30] sm:$0xff]
        %v719 = vld [vmem:[%s313 + $0xa38] sm:$0xff]
        %v720 = vld [vmem:[%s313 + $0xa40] sm:$0xff]
        %v721 = vld [vmem:[%s313 + $0xa48] sm:$0xff]
        %v722 = vld [vmem:[%s313 + $0xa50] sm:$0xff]
        %v723 = vld [vmem:[%s313 + $0xa58] sm:$0xff]
        %v724 = vld [vmem:[%s313 + $0xa60] sm:$0xff]
        %v725 = vld [vmem:[%s313 + $0xa68] sm:$0xff]
        %v726 = vld [vmem:[%s313 + $0xa70] sm:$0xff]
        %v727 = vld [vmem:[%s313 + $0xa78] sm:$0xff]
        %v728 = vld [vmem:[%s313 + $0xa80] sm:$0xff]
        %v729 = vld [vmem:[%s313 + $0xa88] sm:$0xff]
        %v730 = vld [vmem:[%s313 + $0xa90] sm:$0xff]
        %v731 = vld [vmem:[%s313 + $0xa98] sm:$0xff]
        %v732 = vld [vmem:[%s313 + $0xaa0] sm:$0xff]
        %v733 = vld [vmem:[%s313 + $0xaa8] sm:$0xff]
        %v734 = vld [vmem:[%s313 + $0xab0] sm:$0xff]
        %v735 = vld [vmem:[%s313 + $0xab8] sm:$0xff]
        %v736 = vld [vmem:[%s313 + $0xac0] sm:$0xff]
        %v737 = vld [vmem:[%s313 + $0xac8] sm:$0xff]
        %v738 = vld [vmem:[%s313 + $0xad0] sm:$0xff]
        %v739 = vld [vmem:[%s313 + $0xad8] sm:$0xff]
        %v740 = vld [vmem:[%s313 + $0xae0] sm:$0xff]
        %v741 = vld [vmem:[%s313 + $0xae8] sm:$0xff]
        %v742 = vld [vmem:[%s313 + $0xaf0] sm:$0xff]
        %v743 = vld [vmem:[%s313 + $0xaf8] sm:$0xff]
        %v744 = vld [vmem:[%s313 + $0xb00] sm:$0xff]
        %v745 = vld [vmem:[%s313 + $0xb08] sm:$0xff]
        %v746 = vld [vmem:[%s313 + $0xb10] sm:$0xff]
        %v747 = vld [vmem:[%s313 + $0xb18] sm:$0xff]
        %v748 = vld [vmem:[%s313 + $0xb20] sm:$0xff]
        %v749 = vld [vmem:[%s313 + $0xb28] sm:$0xff]
        %v750 = vld [vmem:[%s313 + $0xb30] sm:$0xff]
        %v751 = vld [vmem:[%s313 + $0xb38] sm:$0xff]
        %v752 = vld [vmem:[%s313 + $0xb40] sm:$0xff]
        %v753 = vld [vmem:[%s313 + $0xb48] sm:$0xff]
        %v754 = vld [vmem:[%s313 + $0xb50] sm:$0xff]
        %v755 = vld [vmem:[%s313 + $0xb58] sm:$0xff]
        %v756 = vld [vmem:[%s313 + $0xb60] sm:$0xff]
        %v757 = vld [vmem:[%s313 + $0xb68] sm:$0xff]
        %v758 = vld [vmem:[%s313 + $0xb70] sm:$0xff]
        %v759 = vld [vmem:[%s313 + $0xb78] sm:$0xff]
        %v760 = vld [vmem:[%s313 + $0xb80] sm:$0xff]
        %v761 = vld [vmem:[%s313 + $0xb88] sm:$0xff]
        %v762 = vld [vmem:[%s313 + $0xb90] sm:$0xff]
        %v763 = vld [vmem:[%s313 + $0xb98] sm:$0xff]
        %v764 = vld [vmem:[%s313 + $0xba0] sm:$0xff]
        %v765 = vld [vmem:[%s313 + $0xba8] sm:$0xff]
        %v766 = vld [vmem:[%s313 + $0xbb0] sm:$0xff]
        %v767 = vld [vmem:[%s313 + $0xbb8] sm:$0xff]
        %v768 = vld [vmem:[%s313 + $0xbc0] sm:$0xff]
        %v769 = vld [vmem:[%s313 + $0xbc8] sm:$0xff]
        %v770 = vld [vmem:[%s313 + $0xbd0] sm:$0xff]
        %v771 = vld [vmem:[%s313 + $0xbd8] sm:$0xff]
        %v772 = vld [vmem:[%s313 + $0xbe0] sm:$0xff]
        %v773 = vld [vmem:[%s313 + $0xbe8] sm:$0xff]
        %v774 = vld [vmem:[%s313 + $0xbf0] sm:$0xff]
        %v775 = vld [vmem:[%s313 + $0xbf8] sm:$0xff]
        %v776 = vld [vmem:[%s313 + $0xc00] sm:$0xff]
        %v777 = vld [vmem:[%s313 + $0xc08] sm:$0xff]
        %v778 = vld [vmem:[%s313 + $0xc10] sm:$0xff]
        %v779 = vld [vmem:[%s313 + $0xc18] sm:$0xff]
        %v780 = vld [vmem:[%s313 + $0xc20] sm:$0xff]
        %v781 = vld [vmem:[%s313 + $0xc28] sm:$0xff]
        %v782 = vld [vmem:[%s313 + $0xc30] sm:$0xff]
        %v783 = vld [vmem:[%s313 + $0xc38] sm:$0xff]
        %v784 = vld [vmem:[%s313 + $0xc40] sm:$0xff]
        %v785 = vld [vmem:[%s313 + $0xc48] sm:$0xff]
        %v786 = vld [vmem:[%s313 + $0xc50] sm:$0xff]
        %v787 = vld [vmem:[%s313 + $0xc58] sm:$0xff]
        %v788 = vld [vmem:[%s313 + $0xc60] sm:$0xff]
        %v789 = vld [vmem:[%s313 + $0xc68] sm:$0xff]
        %v790 = vld [vmem:[%s313 + $0xc70] sm:$0xff]
        %v791 = vld [vmem:[%s313 + $0xc78] sm:$0xff]
        %v792 = vld [vmem:[%s313 + $0xc80] sm:$0xff]
        %v793 = vld [vmem:[%s313 + $0xc88] sm:$0xff]
        %v794 = vld [vmem:[%s313 + $0xc90] sm:$0xff]
        %v795 = vld [vmem:[%s313 + $0xc98] sm:$0xff]
        %v796 = vld [vmem:[%s313 + $0xca0] sm:$0xff]
        %v797 = vld [vmem:[%s313 + $0xca8] sm:$0xff]
        %v798 = vld [vmem:[%s313 + $0xcb0] sm:$0xff]
        %v799 = vld [vmem:[%s313 + $0xcb8] sm:$0xff]
        %v800 = vld [vmem:[%s313 + $0xcc0] sm:$0xff]
        %v801 = vld [vmem:[%s313 + $0xcc8] sm:$0xff]
        %v802 = vld [vmem:[%s313 + $0xcd0] sm:$0xff]
        %v803 = vld [vmem:[%s313 + $0xcd8] sm:$0xff]
        %v804 = vld [vmem:[%s313 + $0xce0] sm:$0xff]
        %v805 = vld [vmem:[%s313 + $0xce8] sm:$0xff]
        %v806 = vld [vmem:[%s313 + $0xcf0] sm:$0xff]
        %v807 = vld [vmem:[%s313 + $0xcf8] sm:$0xff]
        %v808 = vld [vmem:[%s313 + $0xd00] sm:$0xff]
        %v809 = vld [vmem:[%s313 + $0xd08] sm:$0xff]
        %v810 = vld [vmem:[%s313 + $0xd10] sm:$0xff]
        %v811 = vld [vmem:[%s313 + $0xd18] sm:$0xff]
        %v812 = vld [vmem:[%s313 + $0xd20] sm:$0xff]
        %v813 = vld [vmem:[%s313 + $0xd28] sm:$0xff]
        %v814 = vld [vmem:[%s313 + $0xd30] sm:$0xff]
        %v815 = vld [vmem:[%s313 + $0xd38] sm:$0xff]
        %v816 = vld [vmem:[%s313 + $0xd40] sm:$0xff]
        %v817 = vld [vmem:[%s313 + $0xd48] sm:$0xff]
        %v818 = vld [vmem:[%s313 + $0xd50] sm:$0xff]
        %v819 = vld [vmem:[%s313 + $0xd58] sm:$0xff]
        %v820 = vld [vmem:[%s313 + $0xd60] sm:$0xff]
        %v821 = vld [vmem:[%s313 + $0xd68] sm:$0xff]
        %v822 = vld [vmem:[%s313 + $0xd70] sm:$0xff]
        %v823 = vld [vmem:[%s313 + $0xd78] sm:$0xff]
        %v824 = vld [vmem:[%s313 + $0xd80] sm:$0xff]
        %v825 = vld [vmem:[%s313 + $0xd88] sm:$0xff]
        %v826 = vld [vmem:[%s313 + $0xd90] sm:$0xff]
        %v827 = vld [vmem:[%s313 + $0xd98] sm:$0xff]
        %v828 = vld [vmem:[%s313 + $0xda0] sm:$0xff]
        %v829 = vld [vmem:[%s313 + $0xda8] sm:$0xff]
        %v830 = vld [vmem:[%s313 + $0xdb0] sm:$0xff]
        %v831 = vld [vmem:[%s313 + $0xdb8] sm:$0xff]
        %v832 = vld [vmem:[%s313 + $0xdc0] sm:$0xff]
        %v833 = vld [vmem:[%s313 + $0xdc8] sm:$0xff]
        %v834 = vld [vmem:[%s313 + $0xdd0] sm:$0xff]
        %v835 = vld [vmem:[%s313 + $0xdd8] sm:$0xff]
        %v836 = vld [vmem:[%s313 + $0xde0] sm:$0xff]
        %v837 = vld [vmem:[%s313 + $0xde8] sm:$0xff]
        %v838 = vld [vmem:[%s313 + $0xdf0] sm:$0xff]
        %v839 = vld [vmem:[%s313 + $0xdf8] sm:$0xff]
        %v840 = vld [vmem:[%s313 + $0xe00] sm:$0xff]
        %v841 = vld [vmem:[%s313 + $0xe08] sm:$0xff]
        %v842 = vld [vmem:[%s313 + $0xe10] sm:$0xff]
        %v843 = vld [vmem:[%s313 + $0xe18] sm:$0xff]
        %v844 = vld [vmem:[%s313 + $0xe20] sm:$0xff]
        %v845 = vld [vmem:[%s313 + $0xe28] sm:$0xff]
        %v846 = vld [vmem:[%s313 + $0xe30] sm:$0xff]
        %v847 = vld [vmem:[%s313 + $0xe38] sm:$0xff]
        %v848 = vld [vmem:[%s313 + $0xe40] sm:$0xff]
        %v849 = vld [vmem:[%s313 + $0xe48] sm:$0xff]
        %v850 = vld [vmem:[%s313 + $0xe50] sm:$0xff]
        %v851 = vld [vmem:[%s313 + $0xe58] sm:$0xff]
        %v852 = vld [vmem:[%s313 + $0xe60] sm:$0xff]
        %v853 = vld [vmem:[%s313 + $0xe68] sm:$0xff]
        %v854 = vld [vmem:[%s313 + $0xe70] sm:$0xff]
        %v855 = vld [vmem:[%s313 + $0xe78] sm:$0xff]
        %v856 = vld [vmem:[%s313 + $0xe80] sm:$0xff]
        %v857 = vld [vmem:[%s313 + $0xe88] sm:$0xff]
        %v858 = vld [vmem:[%s313 + $0xe90] sm:$0xff]
        %v859 = vld [vmem:[%s313 + $0xe98] sm:$0xff]
        %v860 = vld [vmem:[%s313 + $0xea0] sm:$0xff]
        %v861 = vld [vmem:[%s313 + $0xea8] sm:$0xff]
        %v862 = vld [vmem:[%s313 + $0xeb0] sm:$0xff]
        %v863 = vld [vmem:[%s313 + $0xeb8] sm:$0xff]
        %v864 = vld [vmem:[%s313 + $0xec0] sm:$0xff]
        %v865 = vld [vmem:[%s313 + $0xec8] sm:$0xff]
        %v866 = vld [vmem:[%s313 + $0xed0] sm:$0xff]
        %v867 = vld [vmem:[%s313 + $0xed8] sm:$0xff]
        %v868 = vld [vmem:[%s313 + $0xee0] sm:$0xff]
        %v869 = vld [vmem:[%s313 + $0xee8] sm:$0xff]
        %v870 = vld [vmem:[%s313 + $0xef0] sm:$0xff]
        %v871 = vld [vmem:[%s313 + $0xef8] sm:$0xff]
        %v872 = vld [vmem:[%s313 + $0xf00] sm:$0xff]
        %v873 = vld [vmem:[%s313 + $0xf08] sm:$0xff]
        %v874 = vld [vmem:[%s313 + $0xf10] sm:$0xff]
        %v875 = vld [vmem:[%s313 + $0xf18] sm:$0xff]
        %v876 = vld [vmem:[%s313 + $0xf20] sm:$0xff]
        %v877 = vld [vmem:[%s313 + $0xf28] sm:$0xff]
        %v878 = vld [vmem:[%s313 + $0xf30] sm:$0xff]
        %v879 = vld [vmem:[%s313 + $0xf38] sm:$0xff]
        %v880 = vld [vmem:[%s313 + $0xf40] sm:$0xff]
        %v881 = vld [vmem:[%s313 + $0xf48] sm:$0xff]
        %v882 = vld [vmem:[%s313 + $0xf50] sm:$0xff]
        %v883 = vld [vmem:[%s313 + $0xf58] sm:$0xff]
        %v884 = vld [vmem:[%s313 + $0xf60] sm:$0xff]
        %v885 = vld [vmem:[%s313 + $0xf68] sm:$0xff]
        %v886 = vld [vmem:[%s313 + $0xf70] sm:$0xff]
        %v887 = vld [vmem:[%s313 + $0xf78] sm:$0xff]
        %v888 = vld [vmem:[%s313 + $0xf80] sm:$0xff]
        %v889 = vld [vmem:[%s313 + $0xf88] sm:$0xff]
        %v890 = vld [vmem:[%s313 + $0xf90] sm:$0xff]
        %v891 = vld [vmem:[%s313 + $0xf98] sm:$0xff]
        %v892 = vld [vmem:[%s313 + $0xfa0] sm:$0xff]
        %v893 = vld [vmem:[%s313 + $0xfa8] sm:$0xff]
        %v894 = vld [vmem:[%s313 + $0xfb0] sm:$0xff]
        %v895 = vld [vmem:[%s313 + $0xfb8] sm:$0xff]
        %v896 = vld [vmem:[%s313 + $0xfc0] sm:$0xff]
        %v897 = vld [vmem:[%s313 + $0xfc8] sm:$0xff]
        %v898 = vld [vmem:[%s313 + $0xfd0] sm:$0xff]
        %v899 = vld [vmem:[%s313 + $0xfd8] sm:$0xff]
        %v900 = vld [vmem:[%s313 + $0xfe0] sm:$0xff]
        %v901 = vld [vmem:[%s313 + $0xfe8] sm:$0xff]
        %v902 = vld [vmem:[%s313 + $0xff0] sm:$0xff]
        %v903 = vld [vmem:[%s313 + $0xff8] sm:$0xff]
        %v904 = vld [vmem:[%s313 + $0x1000] sm:$0xff]
        %v905 = vld [vmem:[%s313 + $0x1008] sm:$0xff]
        %v906 = vld [vmem:[%s313 + $0x1010] sm:$0xff]
        %v907 = vld [vmem:[%s313 + $0x1018] sm:$0xff]
        %v908 = vld [vmem:[%s313 + $0x1020] sm:$0xff]
        %v909 = vld [vmem:[%s313 + $0x1028] sm:$0xff]
        %v910 = vld [vmem:[%s313 + $0x1030] sm:$0xff]
        %v911 = vld [vmem:[%s313 + $0x1038] sm:$0xff]
        %v912 = vld [vmem:[%s313 + $0x1040] sm:$0xff]
        %v913 = vld [vmem:[%s313 + $0x1048] sm:$0xff]
        %v914 = vld [vmem:[%s313 + $0x1050] sm:$0xff]
        %v915 = vld [vmem:[%s313 + $0x1058] sm:$0xff]
        %v916 = vld [vmem:[%s313 + $0x1060] sm:$0xff]
        %v917 = vld [vmem:[%s313 + $0x1068] sm:$0xff]
        %v918 = vld [vmem:[%s313 + $0x1070] sm:$0xff]
        %v919 = vld [vmem:[%s313 + $0x1078] sm:$0xff]
        %v920 = vld [vmem:[%s313 + $0x1080] sm:$0xff]
        %v921 = vld [vmem:[%s313 + $0x1088] sm:$0xff]
        %v922 = vld [vmem:[%s313 + $0x1090] sm:$0xff]
        %v923 = vld [vmem:[%s313 + $0x1098] sm:$0xff]
        %v924 = vld [vmem:[%s313 + $0x10a0] sm:$0xff]
        %v925 = vld [vmem:[%s313 + $0x10a8] sm:$0xff]
        %v926 = vld [vmem:[%s313 + $0x10b0] sm:$0xff]
        %v927 = vld [vmem:[%s313 + $0x10b8] sm:$0xff]
        %v928 = vld [vmem:[%s313 + $0x10c0] sm:$0xff]
        %v929 = vld [vmem:[%s313 + $0x10c8] sm:$0xff]
        %v930 = vld [vmem:[%s313 + $0x10d0] sm:$0xff]
        %v931 = vld [vmem:[%s313 + $0x10d8] sm:$0xff]
        %v932 = vld [vmem:[%s313 + $0x10e0] sm:$0xff]
        %v933 = vld [vmem:[%s313 + $0x10e8] sm:$0xff]
        %v934 = vld [vmem:[%s313 + $0x10f0] sm:$0xff]
        %v935 = vld [vmem:[%s313 + $0x10f8] sm:$0xff]
        %v936 = vld [vmem:[%s313 + $0x1100] sm:$0xff]
        %v937 = vld [vmem:[%s313 + $0x1108] sm:$0xff]
        %v938 = vld [vmem:[%s313 + $0x1110] sm:$0xff]
        %v939 = vld [vmem:[%s313 + $0x1118] sm:$0xff]
        %v940 = vld [vmem:[%s313 + $0x1120] sm:$0xff]
        %v941 = vld [vmem:[%s313 + $0x1128] sm:$0xff]
        %v942 = vld [vmem:[%s313 + $0x1130] sm:$0xff]
        %v943 = vld [vmem:[%s313 + $0x1138] sm:$0xff]
        %v944 = vld [vmem:[%s313 + $0x1140] sm:$0xff]
        %v945 = vld [vmem:[%s313 + $0x1148] sm:$0xff]
        %v946 = vld [vmem:[%s313 + $0x1150] sm:$0xff]
        %v947 = vld [vmem:[%s313 + $0x1158] sm:$0xff]
        %v948 = vld [vmem:[%s313 + $0x1160] sm:$0xff]
        %v949 = vld [vmem:[%s313 + $0x1168] sm:$0xff]
        %v950 = vld [vmem:[%s313 + $0x1170] sm:$0xff]
        %v951 = vld [vmem:[%s313 + $0x1178] sm:$0xff]
        %v952 = vld [vmem:[%s313 + $0x1180] sm:$0xff]
        %v953 = vld [vmem:[%s313 + $0x1188] sm:$0xff]
        %v954 = vld [vmem:[%s313 + $0x1190] sm:$0xff]
        %v955 = vld [vmem:[%s313 + $0x1198] sm:$0xff]
        %v956 = vld [vmem:[%s313 + $0x11a0] sm:$0xff]
        %v957 = vld [vmem:[%s313 + $0x11a8] sm:$0xff]
        %v958 = vld [vmem:[%s313 + $0x11b0] sm:$0xff]
        %v959 = vld [vmem:[%s313 + $0x11b8] sm:$0xff]
        %v960 = vld [vmem:[%s313 + $0x11c0] sm:$0xff]
        %v961 = vld [vmem:[%s313 + $0x11c8] sm:$0xff]
        %v962 = vld [vmem:[%s313 + $0x11d0] sm:$0xff]
        %v963 = vld [vmem:[%s313 + $0x11d8] sm:$0xff]
        %v964 = vld [vmem:[%s313 + $0x11e0] sm:$0xff]
        %v965 = vld [vmem:[%s313 + $0x11e8] sm:$0xff]
        %v966 = vld [vmem:[%s313 + $0x11f0] sm:$0xff]
        %v967 = vld [vmem:[%s313 + $0x11f8] sm:$0xff]
        %v968 = vld [vmem:[%s313 + $0x1200] sm:$0xff]
        %v969 = vld [vmem:[%s313 + $0x1208] sm:$0xff]
        %v970 = vld [vmem:[%s313 + $0x1210] sm:$0xff]
        %v971 = vld [vmem:[%s313 + $0x1218] sm:$0xff]
        %v972 = vld [vmem:[%s313 + $0x1220] sm:$0xff]
        %v973 = vld [vmem:[%s313 + $0x1228] sm:$0xff]
        %v974 = vld [vmem:[%s313 + $0x1230] sm:$0xff]
        %v975 = vld [vmem:[%s313 + $0x1238] sm:$0xff]
        %v976 = vld [vmem:[%s313 + $0x1240] sm:$0xff]
        %v977 = vld [vmem:[%s313 + $0x1248] sm:$0xff]
        %v978 = vld [vmem:[%s313 + $0x1250] sm:$0xff]
        %v979 = vld [vmem:[%s313 + $0x1258] sm:$0xff]
        %v980 = vld [vmem:[%s313 + $0x1260] sm:$0xff]
        %v981 = vld [vmem:[%s313 + $0x1268] sm:$0xff]
        %v982 = vld [vmem:[%s313 + $0x1270] sm:$0xff]
        %v983 = vld [vmem:[%s313 + $0x1278] sm:$0xff]
        %v984 = vld [vmem:[%s313 + $0x1280] sm:$0xff]
        %v985 = vld [vmem:[%s313 + $0x1288] sm:$0xff]
        %v986 = vld [vmem:[%s313 + $0x1290] sm:$0xff]
        %v987 = vld [vmem:[%s313 + $0x1298] sm:$0xff]
        %v988 = vld [vmem:[%s313 + $0x12a0] sm:$0xff]
        %v989 = vld [vmem:[%s313 + $0x12a8] sm:$0xff]
        %v990 = vld [vmem:[%s313 + $0x12b0] sm:$0xff]
        %v991 = vld [vmem:[%s313 + $0x12b8] sm:$0xff]
        %v992 = vld [vmem:[%s313 + $0x12c0] sm:$0xff]
        %v993 = vld [vmem:[%s313 + $0x12c8] sm:$0xff]
        %v994 = vld [vmem:[%s313 + $0x12d0] sm:$0xff]
        %v995 = vld [vmem:[%s313 + $0x12d8] sm:$0xff]
        %v996 = vld [vmem:[%s313 + $0x12e0] sm:$0xff]
        %v997 = vld [vmem:[%s313 + $0x12e8] sm:$0xff]
        %v998 = vld [vmem:[%s313 + $0x12f0] sm:$0xff]
        %v999 = vld [vmem:[%s313 + $0x12f8] sm:$0xff]
        %v1000 = vld [vmem:[%s313 + $0x1300] sm:$0xff]
        %v1001 = vld [vmem:[%s313 + $0x1308] sm:$0xff]
        %v1002 = vld [vmem:[%s313 + $0x1310] sm:$0xff]
        %v1003 = vld [vmem:[%s313 + $0x1318] sm:$0xff]
        %v1004 = vld [vmem:[%s313 + $0x1320] sm:$0xff]
        %v1005 = vld [vmem:[%s313 + $0x1328] sm:$0xff]
        %v1006 = vld [vmem:[%s313 + $0x1330] sm:$0xff]
        %v1007 = vld [vmem:[%s313 + $0x1338] sm:$0xff]
        %v1008 = vld [vmem:[%s313 + $0x1340] sm:$0xff]
        %v1009 = vld [vmem:[%s313 + $0x1348] sm:$0xff]
        %v1010 = vld [vmem:[%s313 + $0x1350] sm:$0xff]
        %v1011 = vld [vmem:[%s313 + $0x1358] sm:$0xff]
        %v1012 = vld [vmem:[%s313 + $0x1360] sm:$0xff]
        %v1013 = vld [vmem:[%s313 + $0x1368] sm:$0xff]
        %v1014 = vld [vmem:[%s313 + $0x1370] sm:$0xff]
        %v1015 = vld [vmem:[%s313 + $0x1378] sm:$0xff]
        %v1016 = vld [vmem:[%s313 + $0x1380] sm:$0xff]
        %v1017 = vld [vmem:[%s313 + $0x1388] sm:$0xff]
        %v1018 = vld [vmem:[%s313 + $0x1390] sm:$0xff]
        %v1019 = vld [vmem:[%s313 + $0x1398] sm:$0xff]
        %v1020 = vld [vmem:[%s313 + $0x13a0] sm:$0xff]
        %v1021 = vld [vmem:[%s313 + $0x13a8] sm:$0xff]
        %v1022 = vld [vmem:[%s313 + $0x13b0] sm:$0xff]
        %v1023 = vld [vmem:[%s313 + $0x13b8] sm:$0xff]
        %v1024 = vld [vmem:[%s313 + $0x13c0] sm:$0xff]
        %v1025 = vld [vmem:[%s313 + $0x13c8] sm:$0xff]
        %v1026 = vld [vmem:[%s313 + $0x13d0] sm:$0xff]
        %v1027 = vld [vmem:[%s313 + $0x13d8] sm:$0xff]
        %v1028 = vld [vmem:[%s313 + $0x13e0] sm:$0xff]
        %v1029 = vld [vmem:[%s313 + $0x13e8] sm:$0xff]
        %v1030 = vld [vmem:[%s313 + $0x13f0] sm:$0xff]
        %v1031 = vld [vmem:[%s313 + $0x13f8] sm:$0xff]
        %v1032 = vld [vmem:[%s313 + $0x1400] sm:$0xff]
        %v1033 = vld [vmem:[%s313 + $0x1408] sm:$0xff]
        %v1034 = vld [vmem:[%s313 + $0x1410] sm:$0xff]
        %v1035 = vld [vmem:[%s313 + $0x1418] sm:$0xff]
        %v1036 = vld [vmem:[%s313 + $0x1420] sm:$0xff]
        %v1037 = vld [vmem:[%s313 + $0x1428] sm:$0xff]
        %v1038 = vld [vmem:[%s313 + $0x1430] sm:$0xff]
        %v1039 = vld [vmem:[%s313 + $0x1438] sm:$0xff]
        %v1040 = vld [vmem:[%s313 + $0x1440] sm:$0xff]
        %v1041 = vld [vmem:[%s313 + $0x1448] sm:$0xff]
        %v1042 = vld [vmem:[%s313 + $0x1450] sm:$0xff]
        %v1043 = vld [vmem:[%s313 + $0x1458] sm:$0xff]
        %v1044 = vld [vmem:[%s313 + $0x1460] sm:$0xff]
        %v1045 = vld [vmem:[%s313 + $0x1468] sm:$0xff]
        %v1046 = vld [vmem:[%s313 + $0x1470] sm:$0xff]
        %v1047 = vld [vmem:[%s313 + $0x1478] sm:$0xff]
        %v1048 = vld [vmem:[%s313 + $0x1480] sm:$0xff]
        %v1049 = vld [vmem:[%s313 + $0x1488] sm:$0xff]
        %v1050 = vld [vmem:[%s313 + $0x1490] sm:$0xff]
        %v1051 = vld [vmem:[%s313 + $0x1498] sm:$0xff]
        %v1052 = vld [vmem:[%s313 + $0x14a0] sm:$0xff]
        %v1053 = vld [vmem:[%s313 + $0x14a8] sm:$0xff]
        %v1054 = vld [vmem:[%s313 + $0x14b0] sm:$0xff]
        %v1055 = vld [vmem:[%s313 + $0x14b8] sm:$0xff]
        %v1056 = vld [vmem:[%s313 + $0x14c0] sm:$0xff]
        %v1057 = vld [vmem:[%s313 + $0x14c8] sm:$0xff]
        %v1058 = vld [vmem:[%s313 + $0x14d0] sm:$0xff]
        %v1059 = vld [vmem:[%s313 + $0x14d8] sm:$0xff]
        %v1060 = vld [vmem:[%s313 + $0x14e0] sm:$0xff]
        %v1061 = vld [vmem:[%s313 + $0x14e8] sm:$0xff]
        %v1062 = vld [vmem:[%s313 + $0x14f0] sm:$0xff]
        %v1063 = vld [vmem:[%s313 + $0x14f8] sm:$0xff]
        %v1064 = vld [vmem:[%s313 + $0x1500] sm:$0xff]
        %v1065 = vld [vmem:[%s313 + $0x1508] sm:$0xff]
        %v1066 = vld [vmem:[%s313 + $0x1510] sm:$0xff]
        %v1067 = vld [vmem:[%s313 + $0x1518] sm:$0xff]
        %v1068 = vld [vmem:[%s313 + $0x1520] sm:$0xff]
        %v1069 = vld [vmem:[%s313 + $0x1528] sm:$0xff]
        %v1070 = vld [vmem:[%s313 + $0x1530] sm:$0xff]
        %v1071 = vld [vmem:[%s313 + $0x1538] sm:$0xff]
        %v1072 = vld [vmem:[%s313 + $0x1540] sm:$0xff]
        %v1073 = vld [vmem:[%s313 + $0x1548] sm:$0xff]
        %v1074 = vld [vmem:[%s313 + $0x1550] sm:$0xff]
        %v1075 = vld [vmem:[%s313 + $0x1558] sm:$0xff]
        %v1076 = vld [vmem:[%s313 + $0x1560] sm:$0xff]
        %v1077 = vld [vmem:[%s313 + $0x1568] sm:$0xff]
        %v1078 = vld [vmem:[%s313 + $0x1570] sm:$0xff]
        %v1079 = vld [vmem:[%s313 + $0x1578] sm:$0xff]
        %v1080 = vld [vmem:[%s313 + $0x1580] sm:$0xff]
        %v1081 = vld [vmem:[%s313 + $0x1588] sm:$0xff]
        %v1082 = vld [vmem:[%s313 + $0x1590] sm:$0xff]
        %v1083 = vld [vmem:[%s313 + $0x1598] sm:$0xff]
        %v1084 = vld [vmem:[%s313 + $0x15a0] sm:$0xff]
        %v1085 = vld [vmem:[%s313 + $0x15a8] sm:$0xff]
        %v1086 = vld [vmem:[%s313 + $0x15b0] sm:$0xff]
        %v1087 = vld [vmem:[%s313 + $0x15b8] sm:$0xff]
        %v1088 = vld [vmem:[%s313 + $0x15c0] sm:$0xff]
        %v1089 = vld [vmem:[%s313 + $0x15c8] sm:$0xff]
        %v1090 = vld [vmem:[%s313 + $0x15d0] sm:$0xff]
        %v1091 = vld [vmem:[%s313 + $0x15d8] sm:$0xff]
        %v1092 = vld [vmem:[%s313 + $0x15e0] sm:$0xff]
        %v1093 = vld [vmem:[%s313 + $0x15e8] sm:$0xff]
        %v1094 = vld [vmem:[%s313 + $0x15f0] sm:$0xff]
        %v1095 = vld [vmem:[%s313 + $0x15f8] sm:$0xff]
        %v1096 = vld [vmem:[%s313 + $0x1600] sm:$0xff]
        %v1097 = vld [vmem:[%s313 + $0x1608] sm:$0xff]
        %v1098 = vld [vmem:[%s313 + $0x1610] sm:$0xff]
        %v1099 = vld [vmem:[%s313 + $0x1618] sm:$0xff]
        %v1100 = vld [vmem:[%s313 + $0x1620] sm:$0xff]
        %v1101 = vld [vmem:[%s313 + $0x1628] sm:$0xff]
        %v1102 = vld [vmem:[%s313 + $0x1630] sm:$0xff]
        %v1103 = vld [vmem:[%s313 + $0x1638] sm:$0xff]
        %v1104 = vld [vmem:[%s313 + $0x1640] sm:$0xff]
        %v1105 = vld [vmem:[%s313 + $0x1648] sm:$0xff]
        %v1106 = vld [vmem:[%s313 + $0x1650] sm:$0xff]
        %v1107 = vld [vmem:[%s313 + $0x1658] sm:$0xff]
        %v1108 = vld [vmem:[%s313 + $0x1660] sm:$0xff]
        %v1109 = vld [vmem:[%s313 + $0x1668] sm:$0xff]
        %v1110 = vld [vmem:[%s313 + $0x1670] sm:$0xff]
        %v1111 = vld [vmem:[%s313 + $0x1678] sm:$0xff]
        %v1112 = vld [vmem:[%s313 + $0x1680] sm:$0xff]
        %v1113 = vld [vmem:[%s313 + $0x1688] sm:$0xff]
        %v1114 = vld [vmem:[%s313 + $0x1690] sm:$0xff]
        %v1115 = vld [vmem:[%s313 + $0x1698] sm:$0xff]
        %v1116 = vld [vmem:[%s313 + $0x16a0] sm:$0xff]
        %v1117 = vld [vmem:[%s313 + $0x16a8] sm:$0xff]
        %v1118 = vld [vmem:[%s313 + $0x16b0] sm:$0xff]
        %v1119 = vld [vmem:[%s313 + $0x16b8] sm:$0xff]
        %v1120 = vld [vmem:[%s313 + $0x16c0] sm:$0xff]
        %v1121 = vld [vmem:[%s313 + $0x16c8] sm:$0xff]
        %v1122 = vld [vmem:[%s313 + $0x16d0] sm:$0xff]
        %v1123 = vld [vmem:[%s313 + $0x16d8] sm:$0xff]
        %v1124 = vld [vmem:[%s313 + $0x16e0] sm:$0xff]
        %v1125 = vld [vmem:[%s313 + $0x16e8] sm:$0xff]
        %v1126 = vld [vmem:[%s313 + $0x16f0] sm:$0xff]
        %v1127 = vld [vmem:[%s313 + $0x16f8] sm:$0xff]
        %v1128 = vld [vmem:[%s313 + $0x1700] sm:$0xff]
        %v1129 = vld [vmem:[%s313 + $0x1708] sm:$0xff]
        %v1130 = vld [vmem:[%s313 + $0x1710] sm:$0xff]
        %v1131 = vld [vmem:[%s313 + $0x1718] sm:$0xff]
        %v1132 = vld [vmem:[%s313 + $0x1720] sm:$0xff]
        %v1133 = vld [vmem:[%s313 + $0x1728] sm:$0xff]
        %v1134 = vld [vmem:[%s313 + $0x1730] sm:$0xff]
        %v1135 = vld [vmem:[%s313 + $0x1738] sm:$0xff]
        %v1136 = vld [vmem:[%s313 + $0x1740] sm:$0xff]
        %v1137 = vld [vmem:[%s313 + $0x1748] sm:$0xff]
        %v1138 = vld [vmem:[%s313 + $0x1750] sm:$0xff]
        %v1139 = vld [vmem:[%s313 + $0x1758] sm:$0xff]
        %v1140 = vld [vmem:[%s313 + $0x1760] sm:$0xff]
        %v1141 = vld [vmem:[%s313 + $0x1768] sm:$0xff]
        %v1142 = vld [vmem:[%s313 + $0x1770] sm:$0xff]
        %v1143 = vld [vmem:[%s313 + $0x1778] sm:$0xff]
        %v1144 = vld [vmem:[%s313 + $0x1780] sm:$0xff]
        %v1145 = vld [vmem:[%s313 + $0x1788] sm:$0xff]
        %v1146 = vld [vmem:[%s313 + $0x1790] sm:$0xff]
        %v1147 = vld [vmem:[%s313 + $0x1798] sm:$0xff]
        %v1148 = vld [vmem:[%s313 + $0x17a0] sm:$0xff]
        %v1149 = vld [vmem:[%s313 + $0x17a8] sm:$0xff]
        %v1150 = vld [vmem:[%s313 + $0x17b0] sm:$0xff]
        %v1151 = vld [vmem:[%s313 + $0x17b8] sm:$0xff]
        %v1152 = vld [vmem:[%s313 + $0x17c0] sm:$0xff]
        %v1153 = vld [vmem:[%s313 + $0x17c8] sm:$0xff]
        %v1154 = vld [vmem:[%s313 + $0x17d0] sm:$0xff]
        %v1155 = vld [vmem:[%s313 + $0x17d8] sm:$0xff]
        %v1156 = vld [vmem:[%s313 + $0x17e0] sm:$0xff]
        %v1157 = vld [vmem:[%s313 + $0x17e8] sm:$0xff]
        %v1158 = vld [vmem:[%s313 + $0x17f0] sm:$0xff]
        %v1159 = vld [vmem:[%s313 + $0x17f8] sm:$0xff]
        %v1160 = vld [vmem:[%s313 + $0x1800] sm:$0xff]
        %v1161 = vld [vmem:[%s313 + $0x1808] sm:$0xff]
        %v1162 = vld [vmem:[%s313 + $0x1810] sm:$0xff]
        %v1163 = vld [vmem:[%s313 + $0x1818] sm:$0xff]
        %v1164 = vld [vmem:[%s313 + $0x1820] sm:$0xff]
        %v1165 = vld [vmem:[%s313 + $0x1828] sm:$0xff]
        %v1166 = vld [vmem:[%s313 + $0x1830] sm:$0xff]
        %v1167 = vld [vmem:[%s313 + $0x1838] sm:$0xff]
        %v1168 = vld [vmem:[%s313 + $0x1840] sm:$0xff]
        %v1169 = vld [vmem:[%s313 + $0x1848] sm:$0xff]
        %v1170 = vld [vmem:[%s313 + $0x1850] sm:$0xff]
        %v1171 = vld [vmem:[%s313 + $0x1858] sm:$0xff]
        %v1172 = vld [vmem:[%s313 + $0x1860] sm:$0xff]
        %v1173 = vld [vmem:[%s313 + $0x1868] sm:$0xff]
        %v1174 = vld [vmem:[%s313 + $0x1870] sm:$0xff]
        %v1175 = vld [vmem:[%s313 + $0x1878] sm:$0xff]
        %v1176 = vld [vmem:[%s313 + $0x1880] sm:$0xff]
        %v1177 = vld [vmem:[%s313 + $0x1888] sm:$0xff]
        %v1178 = vld [vmem:[%s313 + $0x1890] sm:$0xff]
        %v1179 = vld [vmem:[%s313 + $0x1898] sm:$0xff]
        %v1180 = vld [vmem:[%s313 + $0x18a0] sm:$0xff]
        %v1181 = vld [vmem:[%s313 + $0x18a8] sm:$0xff]
        %v1182 = vld [vmem:[%s313 + $0x18b0] sm:$0xff]
        %v1183 = vld [vmem:[%s313 + $0x18b8] sm:$0xff]
        %v1184 = vld [vmem:[%s313 + $0x18c0] sm:$0xff]
        %v1185 = vld [vmem:[%s313 + $0x18c8] sm:$0xff]
        %v1186 = vld [vmem:[%s313 + $0x18d0] sm:$0xff]
        %v1187 = vld [vmem:[%s313 + $0x18d8] sm:$0xff]
        %v1188 = vld [vmem:[%s313 + $0x18e0] sm:$0xff]
        %v1189 = vld [vmem:[%s313 + $0x18e8] sm:$0xff]
        %v1190 = vld [vmem:[%s313 + $0x18f0] sm:$0xff]
        %v1191 = vld [vmem:[%s313 + $0x18f8] sm:$0xff]
        %v1192 = vld [vmem:[%s313 + $0x1900] sm:$0xff]
        %v1193 = vld [vmem:[%s313 + $0x1908] sm:$0xff]
        %v1194 = vld [vmem:[%s313 + $0x1910] sm:$0xff]
        %v1195 = vld [vmem:[%s313 + $0x1918] sm:$0xff]
        %v1196 = vld [vmem:[%s313 + $0x1920] sm:$0xff]
        %v1197 = vld [vmem:[%s313 + $0x1928] sm:$0xff]
        %v1198 = vld [vmem:[%s313 + $0x1930] sm:$0xff]
        %v1199 = vld [vmem:[%s313 + $0x1938] sm:$0xff]
        %v1200 = vld [vmem:[%s313 + $0x1940] sm:$0xff]
        %v1201 = vld [vmem:[%s313 + $0x1948] sm:$0xff]
        %v1202 = vld [vmem:[%s313 + $0x1950] sm:$0xff]
        %v1203 = vld [vmem:[%s313 + $0x1958] sm:$0xff]
        %v1204 = vld [vmem:[%s313 + $0x1960] sm:$0xff]
        %v1205 = vld [vmem:[%s313 + $0x1968] sm:$0xff]
        %v1206 = vld [vmem:[%s313 + $0x1970] sm:$0xff]
        %v1207 = vld [vmem:[%s313 + $0x1978] sm:$0xff]
        %v1208 = vld [vmem:[%s313 + $0x1980] sm:$0xff]
        %v1209 = vld [vmem:[%s313 + $0x1988] sm:$0xff]
        %v1210 = vld [vmem:[%s313 + $0x1990] sm:$0xff]
        %v1211 = vld [vmem:[%s313 + $0x1998] sm:$0xff]
        %v1212 = vld [vmem:[%s313 + $0x19a0] sm:$0xff]
        %v1213 = vld [vmem:[%s313 + $0x19a8] sm:$0xff]
        %v1214 = vld [vmem:[%s313 + $0x19b0] sm:$0xff]
        %v1215 = vld [vmem:[%s313 + $0x19b8] sm:$0xff]
        %v1216 = vld [vmem:[%s313 + $0x19c0] sm:$0xff]
        %v1217 = vld [vmem:[%s313 + $0x19c8] sm:$0xff]
        %v1218 = vld [vmem:[%s313 + $0x19d0] sm:$0xff]
        %v1219 = vld [vmem:[%s313 + $0x19d8] sm:$0xff]
        %v1220 = vld [vmem:[%s313 + $0x19e0] sm:$0xff]
        %v1221 = vld [vmem:[%s313 + $0x19e8] sm:$0xff]
        %v1222 = vld [vmem:[%s313 + $0x19f0] sm:$0xff]
        %v1223 = vld [vmem:[%s313 + $0x19f8] sm:$0xff]
        %v1224 = vld [vmem:[%s313 + $0x1a00] sm:$0xff]
        %v1225 = vld [vmem:[%s313 + $0x1a08] sm:$0xff]
        %v1226 = vld [vmem:[%s313 + $0x1a10] sm:$0xff]
        %v1227 = vld [vmem:[%s313 + $0x1a18] sm:$0xff]
        %v1228 = vld [vmem:[%s313 + $0x1a20] sm:$0xff]
        %v1229 = vld [vmem:[%s313 + $0x1a28] sm:$0xff]
        %v1230 = vld [vmem:[%s313 + $0x1a30] sm:$0xff]
        %v1231 = vld [vmem:[%s313 + $0x1a38] sm:$0xff]
        %v1232 = vld [vmem:[%s313 + $0x1a40] sm:$0xff]
        %v1233 = vld [vmem:[%s313 + $0x1a48] sm:$0xff]
        %v1234 = vld [vmem:[%s313 + $0x1a50] sm:$0xff]
        %v1235 = vld [vmem:[%s313 + $0x1a58] sm:$0xff]
        %v1236 = vld [vmem:[%s313 + $0x1a60] sm:$0xff]
        %v1237 = vld [vmem:[%s313 + $0x1a68] sm:$0xff]
        %v1238 = vld [vmem:[%s313 + $0x1a70] sm:$0xff]
        %v1239 = vld [vmem:[%s313 + $0x1a78] sm:$0xff]
        %v1240 = vld [vmem:[%s313 + $0x1a80] sm:$0xff]
        %v1241 = vld [vmem:[%s313 + $0x1a88] sm:$0xff]
        %v1242 = vld [vmem:[%s313 + $0x1a90] sm:$0xff]
        %v1243 = vld [vmem:[%s313 + $0x1a98] sm:$0xff]
        %v1244 = vld [vmem:[%s313 + $0x1aa0] sm:$0xff]
        %v1245 = vld [vmem:[%s313 + $0x1aa8] sm:$0xff]
        %v1246 = vld [vmem:[%s313 + $0x1ab0] sm:$0xff]
        %v1247 = vld [vmem:[%s313 + $0x1ab8] sm:$0xff]
        %v1248 = vld [vmem:[%s313 + $0x1ac0] sm:$0xff]
        %v1249 = vld [vmem:[%s313 + $0x1ac8] sm:$0xff]
        %v1250 = vld [vmem:[%s313 + $0x1ad0] sm:$0xff]
        %v1251 = vld [vmem:[%s313 + $0x1ad8] sm:$0xff]
        %v1252 = vld [vmem:[%s313 + $0x1ae0] sm:$0xff]
        %v1253 = vld [vmem:[%s313 + $0x1ae8] sm:$0xff]
        %v1254 = vld [vmem:[%s313 + $0x1af0] sm:$0xff]
        %v1255 = vld [vmem:[%s313 + $0x1af8] sm:$0xff]
        %v1256 = vld [vmem:[%s313 + $0x1b00] sm:$0xff]
        %v1257 = vld [vmem:[%s313 + $0x1b08] sm:$0xff]
        %v1258 = vld [vmem:[%s313 + $0x1b10] sm:$0xff]
        %v1259 = vld [vmem:[%s313 + $0x1b18] sm:$0xff]
        %v1260 = vld [vmem:[%s313 + $0x1b20] sm:$0xff]
        %v1261 = vld [vmem:[%s313 + $0x1b28] sm:$0xff]
        %v1262 = vld [vmem:[%s313 + $0x1b30] sm:$0xff]
        %v1263 = vld [vmem:[%s313 + $0x1b38] sm:$0xff]
        %v1264 = vld [vmem:[%s313 + $0x1b40] sm:$0xff]
        %v1265 = vld [vmem:[%s313 + $0x1b48] sm:$0xff]
        %v1266 = vld [vmem:[%s313 + $0x1b50] sm:$0xff]
        %v1267 = vld [vmem:[%s313 + $0x1b58] sm:$0xff]
        %v1268 = vld [vmem:[%s313 + $0x1b60] sm:$0xff]
        %v1269 = vld [vmem:[%s313 + $0x1b68] sm:$0xff]
        %v1270 = vld [vmem:[%s313 + $0x1b70] sm:$0xff]
        %v1271 = vld [vmem:[%s313 + $0x1b78] sm:$0xff]
        %v1272 = vld [vmem:[%s313 + $0x1b80] sm:$0xff]
        %v1273 = vld [vmem:[%s313 + $0x1b88] sm:$0xff]
        %v1274 = vld [vmem:[%s313 + $0x1b90] sm:$0xff]
        %v1275 = vld [vmem:[%s313 + $0x1b98] sm:$0xff]
        %v1276 = vld [vmem:[%s313 + $0x1ba0] sm:$0xff]
        %v1277 = vld [vmem:[%s313 + $0x1ba8] sm:$0xff]
        %v1278 = vld [vmem:[%s313 + $0x1bb0] sm:$0xff]
        %v1279 = vld [vmem:[%s313 + $0x1bb8] sm:$0xff]
        %v1280 = vld [vmem:[%s313 + $0x1bc0] sm:$0xff]
        %v1281 = vld [vmem:[%s313 + $0x1bc8] sm:$0xff]
        %v1282 = vld [vmem:[%s313 + $0x1bd0] sm:$0xff]
        %v1283 = vld [vmem:[%s313 + $0x1bd8] sm:$0xff]
        %v1284 = vld [vmem:[%s313 + $0x1be0] sm:$0xff]
        %v1285 = vld [vmem:[%s313 + $0x1be8] sm:$0xff]
        %v1286 = vld [vmem:[%s313 + $0x1bf0] sm:$0xff]
        %v1287 = vld [vmem:[%s313 + $0x1bf8] sm:$0xff]
        %v1288 = vld [vmem:[%s313 + $0x1c00] sm:$0xff]
        %v1289 = vld [vmem:[%s313 + $0x1c08] sm:$0xff]
        %v1290 = vld [vmem:[%s313 + $0x1c10] sm:$0xff]
        %v1291 = vld [vmem:[%s313 + $0x1c18] sm:$0xff]
        %v1292 = vld [vmem:[%s313 + $0x1c20] sm:$0xff]
        %v1293 = vld [vmem:[%s313 + $0x1c28] sm:$0xff]
        %v1294 = vld [vmem:[%s313 + $0x1c30] sm:$0xff]
        %v1295 = vld [vmem:[%s313 + $0x1c38] sm:$0xff]
        %v1296 = vld [vmem:[%s313 + $0x1c40] sm:$0xff]
        %v1297 = vld [vmem:[%s313 + $0x1c48] sm:$0xff]
        %v1298 = vld [vmem:[%s313 + $0x1c50] sm:$0xff]
        %v1299 = vld [vmem:[%s313 + $0x1c58] sm:$0xff]
        %v1300 = vld [vmem:[%s313 + $0x1c60] sm:$0xff]
        %v1301 = vld [vmem:[%s313 + $0x1c68] sm:$0xff]
        %v1302 = vld [vmem:[%s313 + $0x1c70] sm:$0xff]
        %v1303 = vld [vmem:[%s313 + $0x1c78] sm:$0xff]
        %v1304 = vld [vmem:[%s313 + $0x1c80] sm:$0xff]
        %v1305 = vld [vmem:[%s313 + $0x1c88] sm:$0xff]
        %v1306 = vld [vmem:[%s313 + $0x1c90] sm:$0xff]
        %v1307 = vld [vmem:[%s313 + $0x1c98] sm:$0xff]
        %v1308 = vld [vmem:[%s313 + $0x1ca0] sm:$0xff]
        %v1309 = vld [vmem:[%s313 + $0x1ca8] sm:$0xff]
        %v1310 = vld [vmem:[%s313 + $0x1cb0] sm:$0xff]
        %v1311 = vld [vmem:[%s313 + $0x1cb8] sm:$0xff]
        %v1312 = vld [vmem:[%s313 + $0x1cc0] sm:$0xff]
        %v1313 = vld [vmem:[%s313 + $0x1cc8] sm:$0xff]
        %v1314 = vld [vmem:[%s313 + $0x1cd0] sm:$0xff]
        %v1315 = vld [vmem:[%s313 + $0x1cd8] sm:$0xff]
        %v1316 = vld [vmem:[%s313 + $0x1ce0] sm:$0xff]
        %v1317 = vld [vmem:[%s313 + $0x1ce8] sm:$0xff]
        %v1318 = vld [vmem:[%s313 + $0x1cf0] sm:$0xff]
        %v1319 = vld [vmem:[%s313 + $0x1cf8] sm:$0xff]
        %v1320 = vld [vmem:[%s313 + $0x1d00] sm:$0xff]
        %v1321 = vld [vmem:[%s313 + $0x1d08] sm:$0xff]
        %v1322 = vld [vmem:[%s313 + $0x1d10] sm:$0xff]
        %v1323 = vld [vmem:[%s313 + $0x1d18] sm:$0xff]
        %v1324 = vld [vmem:[%s313 + $0x1d20] sm:$0xff]
        %v1325 = vld [vmem:[%s313 + $0x1d28] sm:$0xff]
        %v1326 = vld [vmem:[%s313 + $0x1d30] sm:$0xff]
        %v1327 = vld [vmem:[%s313 + $0x1d38] sm:$0xff]
        %v1328 = vld [vmem:[%s313 + $0x1d40] sm:$0xff]
        %v1329 = vld [vmem:[%s313 + $0x1d48] sm:$0xff]
        %v1330 = vld [vmem:[%s313 + $0x1d50] sm:$0xff]
        %v1331 = vld [vmem:[%s313 + $0x1d58] sm:$0xff]
        %v1332 = vld [vmem:[%s313 + $0x1d60] sm:$0xff]
        %v1333 = vld [vmem:[%s313 + $0x1d68] sm:$0xff]
        %v1334 = vld [vmem:[%s313 + $0x1d70] sm:$0xff]
        %v1335 = vld [vmem:[%s313 + $0x1d78] sm:$0xff]
        %v1336 = vld [vmem:[%s313 + $0x1d80] sm:$0xff]
        %v1337 = vld [vmem:[%s313 + $0x1d88] sm:$0xff]
        %v1338 = vld [vmem:[%s313 + $0x1d90] sm:$0xff]
        %v1339 = vld [vmem:[%s313 + $0x1d98] sm:$0xff]
        %v1340 = vld [vmem:[%s313 + $0x1da0] sm:$0xff]
        %v1341 = vld [vmem:[%s313 + $0x1da8] sm:$0xff]
        %v1342 = vld [vmem:[%s313 + $0x1db0] sm:$0xff]
        %v1343 = vld [vmem:[%s313 + $0x1db8] sm:$0xff]
        %v1344 = vld [vmem:[%s313 + $0x1dc0] sm:$0xff]
        %v1345 = vld [vmem:[%s313 + $0x1dc8] sm:$0xff]
        %v1346 = vld [vmem:[%s313 + $0x1dd0] sm:$0xff]
        %v1347 = vld [vmem:[%s313 + $0x1dd8] sm:$0xff]
        %v1348 = vld [vmem:[%s313 + $0x1de0] sm:$0xff]
        %v1349 = vld [vmem:[%s313 + $0x1de8] sm:$0xff]
        %v1350 = vld [vmem:[%s313 + $0x1df0] sm:$0xff]
        %v1351 = vld [vmem:[%s313 + $0x1df8] sm:$0xff]
        %v1352 = vld [vmem:[%s313 + $0x1e00] sm:$0xff]
        %v1353 = vld [vmem:[%s313 + $0x1e08] sm:$0xff]
        %v1354 = vld [vmem:[%s313 + $0x1e10] sm:$0xff]
        %v1355 = vld [vmem:[%s313 + $0x1e18] sm:$0xff]
        %v1356 = vld [vmem:[%s313 + $0x1e20] sm:$0xff]
        %v1357 = vld [vmem:[%s313 + $0x1e28] sm:$0xff]
        %v1358 = vld [vmem:[%s313 + $0x1e30] sm:$0xff]
        %v1359 = vld [vmem:[%s313 + $0x1e38] sm:$0xff]
        %v1360 = vld [vmem:[%s313 + $0x1e40] sm:$0xff]
        %v1361 = vld [vmem:[%s313 + $0x1e48] sm:$0xff]
        %v1362 = vld [vmem:[%s313 + $0x1e50] sm:$0xff]
        %v1363 = vld [vmem:[%s313 + $0x1e58] sm:$0xff]
        %v1364 = vld [vmem:[%s313 + $0x1e60] sm:$0xff]
        %v1365 = vld [vmem:[%s313 + $0x1e68] sm:$0xff]
        %v1366 = vld [vmem:[%s313 + $0x1e70] sm:$0xff]
        %v1367 = vld [vmem:[%s313 + $0x1e78] sm:$0xff]
        %v1368 = vld [vmem:[%s313 + $0x1e80] sm:$0xff]
        %v1369 = vld [vmem:[%s313 + $0x1e88] sm:$0xff]
        %v1370 = vld [vmem:[%s313 + $0x1e90] sm:$0xff]
        %v1371 = vld [vmem:[%s313 + $0x1e98] sm:$0xff]
        %v1372 = vld [vmem:[%s313 + $0x1ea0] sm:$0xff]
        %v1373 = vld [vmem:[%s313 + $0x1ea8] sm:$0xff]
        %v1374 = vld [vmem:[%s313 + $0x1eb0] sm:$0xff]
        %v1375 = vld [vmem:[%s313 + $0x1eb8] sm:$0xff]
        %v1376 = vld [vmem:[%s313 + $0x1ec0] sm:$0xff]
        %v1377 = vld [vmem:[%s313 + $0x1ec8] sm:$0xff]
        %v1378 = vld [vmem:[%s313 + $0x1ed0] sm:$0xff]
        %v1379 = vld [vmem:[%s313 + $0x1ed8] sm:$0xff]
        %v1380 = vld [vmem:[%s313 + $0x1ee0] sm:$0xff]
        %v1381 = vld [vmem:[%s313 + $0x1ee8] sm:$0xff]
        %v1382 = vld [vmem:[%s313 + $0x1ef0] sm:$0xff]
        %v1383 = vld [vmem:[%s313 + $0x1ef8] sm:$0xff]
        %v1384 = vld [vmem:[%s313 + $0x1f00] sm:$0xff]
        %v1385 = vld [vmem:[%s313 + $0x1f08] sm:$0xff]
        %v1386 = vld [vmem:[%s313 + $0x1f10] sm:$0xff]
        %v1387 = vld [vmem:[%s313 + $0x1f18] sm:$0xff]
        %v1388 = vld [vmem:[%s313 + $0x1f20] sm:$0xff]
        %v1389 = vld [vmem:[%s313 + $0x1f28] sm:$0xff]
        %v1390 = vld [vmem:[%s313 + $0x1f30] sm:$0xff]
        %v1391 = vld [vmem:[%s313 + $0x1f38] sm:$0xff]
        %v1392 = vld [vmem:[%s313 + $0x1f40] sm:$0xff]
        %v1393 = vld [vmem:[%s313 + $0x1f48] sm:$0xff]
        %v1394 = vld [vmem:[%s313 + $0x1f50] sm:$0xff]
        %v1395 = vld [vmem:[%s313 + $0x1f58] sm:$0xff]
        %v1396 = vld [vmem:[%s313 + $0x1f60] sm:$0xff]
        %v1397 = vld [vmem:[%s313 + $0x1f68] sm:$0xff]
        %v1398 = vld [vmem:[%s313 + $0x1f70] sm:$0xff]
        %v1399 = vld [vmem:[%s313 + $0x1f78] sm:$0xff]
        %v1400 = vld [vmem:[%s313 + $0x1f80] sm:$0xff]
        %v1401 = vld [vmem:[%s313 + $0x1f88] sm:$0xff]
        %v1402 = vld [vmem:[%s313 + $0x1f90] sm:$0xff]
        %v1403 = vld [vmem:[%s313 + $0x1f98] sm:$0xff]
        %v1404 = vld [vmem:[%s313 + $0x1fa0] sm:$0xff]
        %v1405 = vld [vmem:[%s313 + $0x1fa8] sm:$0xff]
        %v1406 = vld [vmem:[%s313 + $0x1fb0] sm:$0xff]
        %v1407 = vld [vmem:[%s313 + $0x1fb8] sm:$0xff]
        %v1408 = vld [vmem:[%s313 + $0x1fc0] sm:$0xff]
        %v1409 = vld [vmem:[%s313 + $0x1fc8] sm:$0xff]
        %v1410 = vld [vmem:[%s313 + $0x1fd0] sm:$0xff]
        %v1411 = vld [vmem:[%s313 + $0x1fd8] sm:$0xff]
        %v1412 = vld [vmem:[%s313 + $0x1fe0] sm:$0xff]
        %v1413 = vld [vmem:[%s313 + $0x1fe8] sm:$0xff]
        %v1414 = vld [vmem:[%s313 + $0x1ff0] sm:$0xff]
        %v1415 = vld [vmem:[%s313 + $0x1ff8] sm:$0xff]
        %v1416 = vld [vmem:[%s313 + $0x2000] sm:$0xff]
        %v1417 = vld [vmem:[%s313 + $0x2008] sm:$0xff]
        %v1418 = vld [vmem:[%s313 + $0x2010] sm:$0xff]
        %v1419 = vld [vmem:[%s313 + $0x2018] sm:$0xff]
        %v1420 = vld [vmem:[%s313 + $0x2020] sm:$0xff]
        %v1421 = vld [vmem:[%s313 + $0x2028] sm:$0xff]
        %v1422 = vld [vmem:[%s313 + $0x2030] sm:$0xff]
        %v1423 = vld [vmem:[%s313 + $0x2038] sm:$0xff]
        %v1424 = vld [vmem:[%s313 + $0x2040] sm:$0xff]
        %v1425 = vld [vmem:[%s313 + $0x2048] sm:$0xff]
        %v1426 = vld [vmem:[%s313 + $0x2050] sm:$0xff]
        %v1427 = vld [vmem:[%s313 + $0x2058] sm:$0xff]
        %v1428 = vld [vmem:[%s313 + $0x2060] sm:$0xff]
        %v1429 = vld [vmem:[%s313 + $0x2068] sm:$0xff]
        %v1430 = vld [vmem:[%s313 + $0x2070] sm:$0xff]
        %v1431 = vld [vmem:[%s313 + $0x2078] sm:$0xff]
        %v1432 = vld [vmem:[%s313 + $0x2080] sm:$0xff]
        %v1433 = vld [vmem:[%s313 + $0x2088] sm:$0xff]
        %v1434 = vld [vmem:[%s313 + $0x2090] sm:$0xff]
        %v1435 = vld [vmem:[%s313 + $0x2098] sm:$0xff]
        %v1436 = vld [vmem:[%s313 + $0x20a0] sm:$0xff]
        %v1437 = vld [vmem:[%s313 + $0x20a8] sm:$0xff]
        %v1438 = vld [vmem:[%s313 + $0x20b0] sm:$0xff]
        %v1439 = vld [vmem:[%s313 + $0x20b8] sm:$0xff]
        %v1440 = vld [vmem:[%s313 + $0x20c0] sm:$0xff]
        %v1441 = vld [vmem:[%s313 + $0x20c8] sm:$0xff]
        %v1442 = vld [vmem:[%s313 + $0x20d0] sm:$0xff]
        %v1443 = vld [vmem:[%s313 + $0x20d8] sm:$0xff]
        %v1444 = vld [vmem:[%s313 + $0x20e0] sm:$0xff]
        %v1445 = vld [vmem:[%s313 + $0x20e8] sm:$0xff]
        %v1446 = vld [vmem:[%s313 + $0x20f0] sm:$0xff]
        %v1447 = vld [vmem:[%s313 + $0x20f8] sm:$0xff]
        %v1448 = vld [vmem:[%s313 + $0x2100] sm:$0xff]
        %v1449 = vld [vmem:[%s313 + $0x2108] sm:$0xff]
        %v1450 = vld [vmem:[%s313 + $0x2110] sm:$0xff]
        %v1451 = vld [vmem:[%s313 + $0x2118] sm:$0xff]
        %v1452 = vld [vmem:[%s313 + $0x2120] sm:$0xff]
        %v1453 = vld [vmem:[%s313 + $0x2128] sm:$0xff]
        %v1454 = vld [vmem:[%s313 + $0x2130] sm:$0xff]
        %v1455 = vld [vmem:[%s313 + $0x2138] sm:$0xff]
        %v1456 = vld [vmem:[%s313 + $0x2140] sm:$0xff]
        %v1457 = vld [vmem:[%s313 + $0x2148] sm:$0xff]
        %v1458 = vld [vmem:[%s313 + $0x2150] sm:$0xff]
        %v1459 = vld [vmem:[%s313 + $0x2158] sm:$0xff]
        %v1460 = vld [vmem:[%s313 + $0x2160] sm:$0xff]
        %v1461 = vld [vmem:[%s313 + $0x2168] sm:$0xff]
        %v1462 = vld [vmem:[%s313 + $0x2170] sm:$0xff]
        %v1463 = vld [vmem:[%s313 + $0x2178] sm:$0xff]
        %v1464 = vld [vmem:[%s313 + $0x2180] sm:$0xff]
        %v1465 = vld [vmem:[%s313 + $0x2188] sm:$0xff]
        %v1466 = vld [vmem:[%s313 + $0x2190] sm:$0xff]
        %v1467 = vld [vmem:[%s313 + $0x2198] sm:$0xff]
        %v1468 = vld [vmem:[%s313 + $0x21a0] sm:$0xff]
        %v1469 = vld [vmem:[%s313 + $0x21a8] sm:$0xff]
        %v1470 = vld [vmem:[%s313 + $0x21b0] sm:$0xff]
        %v1471 = vld [vmem:[%s313 + $0x21b8] sm:$0xff]
        %v1472 = vld [vmem:[%s313 + $0x21c0] sm:$0xff]
        %v1473 = vld [vmem:[%s313 + $0x21c8] sm:$0xff]
        %v1474 = vld [vmem:[%s313 + $0x21d0] sm:$0xff]
        %v1475 = vld [vmem:[%s313 + $0x21d8] sm:$0xff]
        %v1476 = vld [vmem:[%s313 + $0x21e0] sm:$0xff]
        %v1477 = vld [vmem:[%s313 + $0x21e8] sm:$0xff]
        %v1478 = vld [vmem:[%s313 + $0x21f0] sm:$0xff]
        %v1479 = vld [vmem:[%s313 + $0x21f8] sm:$0xff]
        %v1480 = vld [vmem:[%s313 + $0x2200] sm:$0xff]
        %v1481 = vld [vmem:[%s313 + $0x2208] sm:$0xff]
        %v1482 = vld [vmem:[%s313 + $0x2210] sm:$0xff]
        %v1483 = vld [vmem:[%s313 + $0x2218] sm:$0xff]
        %v1484 = vld [vmem:[%s313 + $0x2220] sm:$0xff]
        %v1485 = vld [vmem:[%s313 + $0x2228] sm:$0xff]
        %v1486 = vld [vmem:[%s313 + $0x2230] sm:$0xff]
        %v1487 = vld [vmem:[%s313 + $0x2238] sm:$0xff]
        %v1488 = vld [vmem:[%s313 + $0x2240] sm:$0xff]
        %v1489 = vld [vmem:[%s313 + $0x2248] sm:$0xff]
        %v1490 = vld [vmem:[%s313 + $0x2250] sm:$0xff]
        %v1491 = vld [vmem:[%s313 + $0x2258] sm:$0xff]
        %v1492 = vld [vmem:[%s313 + $0x2260] sm:$0xff]
        %v1493 = vld [vmem:[%s313 + $0x2268] sm:$0xff]
        %v1494 = vld [vmem:[%s313 + $0x2270] sm:$0xff]
        %v1495 = vld [vmem:[%s313 + $0x2278] sm:$0xff]
        %v1496 = vld [vmem:[%s313 + $0x2280] sm:$0xff]
        %v1497 = vld [vmem:[%s313 + $0x2288] sm:$0xff]
        %v1498 = vld [vmem:[%s313 + $0x2290] sm:$0xff]
        %v1499 = vld [vmem:[%s313 + $0x2298] sm:$0xff]
        %v1500 = vld [vmem:[%s313 + $0x22a0] sm:$0xff]
        %v1501 = vld [vmem:[%s313 + $0x22a8] sm:$0xff]
        %v1502 = vld [vmem:[%s313 + $0x22b0] sm:$0xff]
        %v1503 = vld [vmem:[%s313 + $0x22b8] sm:$0xff]
        %v1504 = vld [vmem:[%s313 + $0x22c0] sm:$0xff]
        %v1505 = vld [vmem:[%s313 + $0x22c8] sm:$0xff]
        %v1506 = vld [vmem:[%s313 + $0x22d0] sm:$0xff]
        %v1507 = vld [vmem:[%s313 + $0x22d8] sm:$0xff]
        %v1508 = vld [vmem:[%s313 + $0x22e0] sm:$0xff]
        %v1509 = vld [vmem:[%s313 + $0x22e8] sm:$0xff]
        %v1510 = vld [vmem:[%s313 + $0x22f0] sm:$0xff]
        %v1511 = vld [vmem:[%s313 + $0x22f8] sm:$0xff]
        %v1512 = vld [vmem:[%s313 + $0x2300] sm:$0xff]
        %v1513 = vld [vmem:[%s313 + $0x2308] sm:$0xff]
        %v1514 = vld [vmem:[%s313 + $0x2310] sm:$0xff]
        %v1515 = vld [vmem:[%s313 + $0x2318] sm:$0xff]
        %v1516 = vld [vmem:[%s313 + $0x2320] sm:$0xff]
        %v1517 = vld [vmem:[%s313 + $0x2328] sm:$0xff]
        %v1518 = vld [vmem:[%s313 + $0x2330] sm:$0xff]
        %v1519 = vld [vmem:[%s313 + $0x2338] sm:$0xff]
        %v1520 = vld [vmem:[%s313 + $0x2340] sm:$0xff]
        %v1521 = vld [vmem:[%s313 + $0x2348] sm:$0xff]
        %v1522 = vld [vmem:[%s313 + $0x2350] sm:$0xff]
        %v1523 = vld [vmem:[%s313 + $0x2358] sm:$0xff]
        %v1524 = vld [vmem:[%s313 + $0x2360] sm:$0xff]
        %v1525 = vld [vmem:[%s313 + $0x2368] sm:$0xff]
        %v1526 = vld [vmem:[%s313 + $0x2370] sm:$0xff]
        %v1527 = vld [vmem:[%s313 + $0x2378] sm:$0xff]
        %v1528 = vld [vmem:[%s313 + $0x2380] sm:$0xff]
        %v1529 = vld [vmem:[%s313 + $0x2388] sm:$0xff]
        %v1530 = vld [vmem:[%s313 + $0x2390] sm:$0xff]
        %v1531 = vld [vmem:[%s313 + $0x2398] sm:$0xff]
        %v1532 = vld [vmem:[%s313 + $0x23a0] sm:$0xff]
        %v1533 = vld [vmem:[%s313 + $0x23a8] sm:$0xff]
        %v1534 = vld [vmem:[%s313 + $0x23b0] sm:$0xff]
        %v1535 = vld [vmem:[%s313 + $0x23b8] sm:$0xff]
        %v1536 = vld [vmem:[%s313 + $0x23c0] sm:$0xff]
        %v1537 = vld [vmem:[%s313 + $0x23c8] sm:$0xff]
        %v1538 = vld [vmem:[%s313 + $0x23d0] sm:$0xff]
        %v1539 = vld [vmem:[%s313 + $0x23d8] sm:$0xff]
        %v1540 = vld [vmem:[%s313 + $0x23e0] sm:$0xff]
        %v1541 = vld [vmem:[%s313 + $0x23e8] sm:$0xff]
        %v1542 = vld [vmem:[%s313 + $0x23f0] sm:$0xff]
        %v1543 = vld [vmem:[%s313 + $0x23f8] sm:$0xff]
        %v1544 = vld [vmem:[%s313 + $0x2400] sm:$0xff]
        %v1545 = vld [vmem:[%s313 + $0x2408] sm:$0xff]
        %v1546 = vld [vmem:[%s313 + $0x2410] sm:$0xff]
        %v1547 = vld [vmem:[%s313 + $0x2418] sm:$0xff]
        %v1548 = vld [vmem:[%s313 + $0x2420] sm:$0xff]
        %v1549 = vld [vmem:[%s313 + $0x2428] sm:$0xff]
        %v1550 = vld [vmem:[%s313 + $0x2430] sm:$0xff]
        %v1551 = vld [vmem:[%s313 + $0x2438] sm:$0xff]
        %v1552 = vld [vmem:[%s313 + $0x2440] sm:$0xff]
        %v1553 = vld [vmem:[%s313 + $0x2448] sm:$0xff]
        %v1554 = vld [vmem:[%s313 + $0x2450] sm:$0xff]
        %v1555 = vld [vmem:[%s313 + $0x2458] sm:$0xff]
        %v1556 = vld [vmem:[%s313 + $0x2460] sm:$0xff]
        %v1557 = vld [vmem:[%s313 + $0x2468] sm:$0xff]
        %v1558 = vld [vmem:[%s313 + $0x2470] sm:$0xff]
        %v1559 = vld [vmem:[%s313 + $0x2478] sm:$0xff]
        %v1560 = vld [vmem:[%s313 + $0x2480] sm:$0xff]
        %v1561 = vld [vmem:[%s313 + $0x2488] sm:$0xff]
        %v1562 = vld [vmem:[%s313 + $0x2490] sm:$0xff]
        %v1563 = vld [vmem:[%s313 + $0x2498] sm:$0xff]
        %v1564 = vld [vmem:[%s313 + $0x24a0] sm:$0xff]
        %v1565 = vld [vmem:[%s313 + $0x24a8] sm:$0xff]
        %v1566 = vld [vmem:[%s313 + $0x24b0] sm:$0xff]
        %v1567 = vld [vmem:[%s313 + $0x24b8] sm:$0xff]
        %v1568 = vld [vmem:[%s313 + $0x24c0] sm:$0xff]
        %v1569 = vld [vmem:[%s313 + $0x24c8] sm:$0xff]
        %v1570 = vld [vmem:[%s313 + $0x24d0] sm:$0xff]
        %v1571 = vld [vmem:[%s313 + $0x24d8] sm:$0xff]
        %v1572 = vld [vmem:[%s313 + $0x24e0] sm:$0xff]
        %v1573 = vld [vmem:[%s313 + $0x24e8] sm:$0xff]
        %v1574 = vld [vmem:[%s313 + $0x24f0] sm:$0xff]
        %v1575 = vld [vmem:[%s313 + $0x24f8] sm:$0xff]
        %v1576 = vld [vmem:[%s313 + $0x2500] sm:$0xff]
        %v1577 = vld [vmem:[%s313 + $0x2508] sm:$0xff]
        %v1578 = vld [vmem:[%s313 + $0x2510] sm:$0xff]
        %v1579 = vld [vmem:[%s313 + $0x2518] sm:$0xff]
        %v1580 = vld [vmem:[%s313 + $0x2520] sm:$0xff]
        %v1581 = vld [vmem:[%s313 + $0x2528] sm:$0xff]
        %v1582 = vld [vmem:[%s313 + $0x2530] sm:$0xff]
        %v1583 = vld [vmem:[%s313 + $0x2538] sm:$0xff]
        %v1584 = vld [vmem:[%s313 + $0x2540] sm:$0xff]
        %v1585 = vld [vmem:[%s313 + $0x2548] sm:$0xff]
        %v1586 = vld [vmem:[%s313 + $0x2550] sm:$0xff]
        %v1587 = vld [vmem:[%s313 + $0x2558] sm:$0xff]
        %v1588 = vld [vmem:[%s313 + $0x2560] sm:$0xff]
        %v1589 = vld [vmem:[%s313 + $0x2568] sm:$0xff]
        %v1590 = vld [vmem:[%s313 + $0x2570] sm:$0xff]
        %v1591 = vld [vmem:[%s313 + $0x2578] sm:$0xff]
        %v1592 = vld [vmem:[%s313 + $0x2580] sm:$0xff]
        %v1593 = vld [vmem:[%s313 + $0x2588] sm:$0xff]
        %v1594 = vld [vmem:[%s313 + $0x2590] sm:$0xff]
        %v1595 = vld [vmem:[%s313 + $0x2598] sm:$0xff]
        %v1596 = vld [vmem:[%s313 + $0x25a0] sm:$0xff]
        %v1597 = vld [vmem:[%s313 + $0x25a8] sm:$0xff]
        %v1598 = vld [vmem:[%s313 + $0x25b0] sm:$0xff]
        %v1599 = vld [vmem:[%s313 + $0x25b8] sm:$0xff]
        %v1600 = vld [vmem:[%s313 + $0x25c0] sm:$0xff]
        %v1601 = vld [vmem:[%s313 + $0x25c8] sm:$0xff]
        %v1602 = vld [vmem:[%s313 + $0x25d0] sm:$0xff]
        %v1603 = vld [vmem:[%s313 + $0x25d8] sm:$0xff]
        %v1604 = vld [vmem:[%s313 + $0x25e0] sm:$0xff]
        %v1605 = vld [vmem:[%s313 + $0x25e8] sm:$0xff]
        %v1606 = vld [vmem:[%s313 + $0x25f0] sm:$0xff]
        %v1607 = vld [vmem:[%s313 + $0x25f8] sm:$0xff]
        %v1608 = vld [vmem:[%s313 + $0x2600] sm:$0xff]
        %v1609 = vld [vmem:[%s313 + $0x2608] sm:$0xff]
        %v1610 = vld [vmem:[%s313 + $0x2610] sm:$0xff]
        %v1611 = vld [vmem:[%s313 + $0x2618] sm:$0xff]
        %v1612 = vld [vmem:[%s313 + $0x2620] sm:$0xff]
        %v1613 = vld [vmem:[%s313 + $0x2628] sm:$0xff]
        %v1614 = vld [vmem:[%s313 + $0x2630] sm:$0xff]
        %v1615 = vld [vmem:[%s313 + $0x2638] sm:$0xff]
        %v1616 = vld [vmem:[%s313 + $0x2640] sm:$0xff]
        %v1617 = vld [vmem:[%s313 + $0x2648] sm:$0xff]
        %v1618 = vld [vmem:[%s313 + $0x2650] sm:$0xff]
        %v1619 = vld [vmem:[%s313 + $0x2658] sm:$0xff]
        %v1620 = vld [vmem:[%s313 + $0x2660] sm:$0xff]
        %v1621 = vld [vmem:[%s313 + $0x2668] sm:$0xff]
        %v1622 = vld [vmem:[%s313 + $0x2670] sm:$0xff]
        %v1623 = vld [vmem:[%s313 + $0x2678] sm:$0xff]
        %v1624 = vld [vmem:[%s313 + $0x2680] sm:$0xff]
        %v1625 = vld [vmem:[%s313 + $0x2688] sm:$0xff]
        %v1626 = vld [vmem:[%s313 + $0x2690] sm:$0xff]
        %v1627 = vld [vmem:[%s313 + $0x2698] sm:$0xff]
        %v1628 = vld [vmem:[%s313 + $0x26a0] sm:$0xff]
        %v1629 = vld [vmem:[%s313 + $0x26a8] sm:$0xff]
        %v1630 = vld [vmem:[%s313 + $0x26b0] sm:$0xff]
        %v1631 = vld [vmem:[%s313 + $0x26b8] sm:$0xff]
        %v1632 = vld [vmem:[%s313 + $0x26c0] sm:$0xff]
        %v1633 = vld [vmem:[%s313 + $0x26c8] sm:$0xff]
        %v1634 = vld [vmem:[%s313 + $0x26d0] sm:$0xff]
        %v1635 = vld [vmem:[%s313 + $0x26d8] sm:$0xff]
        %v1636 = vld [vmem:[%s313 + $0x26e0] sm:$0xff]
        %v1637 = vld [vmem:[%s313 + $0x26e8] sm:$0xff]
        %v1638 = vld [vmem:[%s313 + $0x26f0] sm:$0xff]
        %v1639 = vld [vmem:[%s313 + $0x26f8] sm:$0xff]
        %v1640 = vld [vmem:[%s313 + $0x2700] sm:$0xff]
        %v1641 = vld [vmem:[%s313 + $0x2708] sm:$0xff]
        %v1642 = vld [vmem:[%s313 + $0x2710] sm:$0xff]
        %v1643 = vld [vmem:[%s313 + $0x2718] sm:$0xff]
        %v1644 = vld [vmem:[%s313 + $0x2720] sm:$0xff]
        %v1645 = vld [vmem:[%s313 + $0x2728] sm:$0xff]
        %v1646 = vld [vmem:[%s313 + $0x2730] sm:$0xff]
        %v1647 = vld [vmem:[%s313 + $0x2738] sm:$0xff]
        %v1648 = vld [vmem:[%s313 + $0x2740] sm:$0xff]
        %v1649 = vld [vmem:[%s313 + $0x2748] sm:$0xff]
        %v1650 = vld [vmem:[%s313 + $0x2750] sm:$0xff]
        %v1651 = vld [vmem:[%s313 + $0x2758] sm:$0xff]
        %v1652 = vld [vmem:[%s313 + $0x2760] sm:$0xff]
        %v1653 = vld [vmem:[%s313 + $0x2768] sm:$0xff]
        %v1654 = vld [vmem:[%s313 + $0x2770] sm:$0xff]
        %v1655 = vld [vmem:[%s313 + $0x2778] sm:$0xff]
        %v1656 = vld [vmem:[%s313 + $0x2780] sm:$0xff]
        %v1657 = vld [vmem:[%s313 + $0x2788] sm:$0xff]
        %v1658 = vld [vmem:[%s313 + $0x2790] sm:$0xff]
        %v1659 = vld [vmem:[%s313 + $0x2798] sm:$0xff]
        %v1660 = vld [vmem:[%s313 + $0x27a0] sm:$0xff]
        %v1661 = vld [vmem:[%s313 + $0x27a8] sm:$0xff]
        %v1662 = vld [vmem:[%s313 + $0x27b0] sm:$0xff]
        %v1663 = vld [vmem:[%s313 + $0x27b8] sm:$0xff]
        %v1664 = vld [vmem:[%s313 + $0x27c0] sm:$0xff]
        %v1665 = vld [vmem:[%s313 + $0x27c8] sm:$0xff]
        %v1666 = vld [vmem:[%s313 + $0x27d0] sm:$0xff]
        %v1667 = vld [vmem:[%s313 + $0x27d8] sm:$0xff]
        %v1668 = vld [vmem:[%s313 + $0x27e0] sm:$0xff]
        %v1669 = vld [vmem:[%s313 + $0x27e8] sm:$0xff]
        %v1670 = vld [vmem:[%s313 + $0x27f0] sm:$0xff]
        %v1671 = vld [vmem:[%s313 + $0x27f8] sm:$0xff]
        %v1672 = vld [vmem:[%s313 + $0x2800] sm:$0xff]
        %v1673 = vld [vmem:[%s313 + $0x2808] sm:$0xff]
        %v1674 = vld [vmem:[%s313 + $0x2810] sm:$0xff]
        %v1675 = vld [vmem:[%s313 + $0x2818] sm:$0xff]
        %v1676 = vld [vmem:[%s313 + $0x2820] sm:$0xff]
        %v1677 = vld [vmem:[%s313 + $0x2828] sm:$0xff]
        %v1678 = vld [vmem:[%s313 + $0x2830] sm:$0xff]
        %v1679 = vld [vmem:[%s313 + $0x2838] sm:$0xff]
        %v1680 = vld [vmem:[%s313 + $0x2840] sm:$0xff]
        %v1681 = vld [vmem:[%s313 + $0x2848] sm:$0xff]
        %v1682 = vld [vmem:[%s313 + $0x2850] sm:$0xff]
        %v1683 = vld [vmem:[%s313 + $0x2858] sm:$0xff]
        %v1684 = vld [vmem:[%s313 + $0x2860] sm:$0xff]
        %v1685 = vld [vmem:[%s313 + $0x2868] sm:$0xff]
        %v1686 = vld [vmem:[%s313 + $0x2870] sm:$0xff]
        %v1687 = vld [vmem:[%s313 + $0x2878] sm:$0xff]
        %v1688 = vld [vmem:[%s313 + $0x2880] sm:$0xff]
        %v1689 = vld [vmem:[%s313 + $0x2888] sm:$0xff]
        %v1690 = vld [vmem:[%s313 + $0x2890] sm:$0xff]
        %v1691 = vld [vmem:[%s313 + $0x2898] sm:$0xff]
        %v1692 = vld [vmem:[%s313 + $0x28a0] sm:$0xff]
        %v1693 = vld [vmem:[%s313 + $0x28a8] sm:$0xff]
        %v1694 = vld [vmem:[%s313 + $0x28b0] sm:$0xff]
        %v1695 = vld [vmem:[%s313 + $0x28b8] sm:$0xff]
        %v1696 = vld [vmem:[%s313 + $0x28c0] sm:$0xff]
        %v1697 = vld [vmem:[%s313 + $0x28c8] sm:$0xff]
        %v1698 = vld [vmem:[%s313 + $0x28d0] sm:$0xff]
        %v1699 = vld [vmem:[%s313 + $0x28d8] sm:$0xff]
        %v1700 = vld [vmem:[%s313 + $0x28e0] sm:$0xff]
        %v1701 = vld [vmem:[%s313 + $0x28e8] sm:$0xff]
        %v1702 = vld [vmem:[%s313 + $0x28f0] sm:$0xff]
        %v1703 = vld [vmem:[%s313 + $0x28f8] sm:$0xff]
        %v1704 = vld [vmem:[%s313 + $0x2900] sm:$0xff]
        %v1705 = vld [vmem:[%s313 + $0x2908] sm:$0xff]
        %v1706 = vld [vmem:[%s313 + $0x2910] sm:$0xff]
        %v1707 = vld [vmem:[%s313 + $0x2918] sm:$0xff]
        %v1708 = vld [vmem:[%s313 + $0x2920] sm:$0xff]
        %v1709 = vld [vmem:[%s313 + $0x2928] sm:$0xff]
        %v1710 = vld [vmem:[%s313 + $0x2930] sm:$0xff]
        %v1711 = vld [vmem:[%s313 + $0x2938] sm:$0xff]
        %v1712 = vld [vmem:[%s313 + $0x2940] sm:$0xff]
        %v1713 = vld [vmem:[%s313 + $0x2948] sm:$0xff]
        %v1714 = vld [vmem:[%s313 + $0x2950] sm:$0xff]
        %v1715 = vld [vmem:[%s313 + $0x2958] sm:$0xff]
        %v1716 = vld [vmem:[%s313 + $0x2960] sm:$0xff]
        %v1717 = vld [vmem:[%s313 + $0x2968] sm:$0xff]
        %v1718 = vld [vmem:[%s313 + $0x2970] sm:$0xff]
        %v1719 = vld [vmem:[%s313 + $0x2978] sm:$0xff]
        %v1720 = vld [vmem:[%s313 + $0x2980] sm:$0xff]
        %v1721 = vld [vmem:[%s313 + $0x2988] sm:$0xff]
        %v1722 = vld [vmem:[%s313 + $0x2990] sm:$0xff]
        %v1723 = vld [vmem:[%s313 + $0x2998] sm:$0xff]
        %v1724 = vld [vmem:[%s313 + $0x29a0] sm:$0xff]
        %v1725 = vld [vmem:[%s313 + $0x29a8] sm:$0xff]
        %v1726 = vld [vmem:[%s313 + $0x29b0] sm:$0xff]
        %v1727 = vld [vmem:[%s313 + $0x29b8] sm:$0xff]
        %v1728 = vld [vmem:[%s313 + $0x29c0] sm:$0xff]
        %v1729 = vld [vmem:[%s313 + $0x29c8] sm:$0xff]
        %v1730 = vld [vmem:[%s313 + $0x29d0] sm:$0xff]
        %v1731 = vld [vmem:[%s313 + $0x29d8] sm:$0xff]
        %v1732 = vld [vmem:[%s313 + $0x29e0] sm:$0xff]
        %v1733 = vld [vmem:[%s313 + $0x29e8] sm:$0xff]
        %v1734 = vld [vmem:[%s313 + $0x29f0] sm:$0xff]
        %v1735 = vld [vmem:[%s313 + $0x29f8] sm:$0xff]
        %v1736 = vld [vmem:[%s313 + $0x2a00] sm:$0xff]
        %v1737 = vld [vmem:[%s313 + $0x2a08] sm:$0xff]
        %v1738 = vld [vmem:[%s313 + $0x2a10] sm:$0xff]
        %v1739 = vld [vmem:[%s313 + $0x2a18] sm:$0xff]
        %v1740 = vld [vmem:[%s313 + $0x2a20] sm:$0xff]
        %v1741 = vld [vmem:[%s313 + $0x2a28] sm:$0xff]
        %v1742 = vld [vmem:[%s313 + $0x2a30] sm:$0xff]
        %v1743 = vld [vmem:[%s313 + $0x2a38] sm:$0xff]
        %v1744 = vld [vmem:[%s313 + $0x2a40] sm:$0xff]
        %v1745 = vld [vmem:[%s313 + $0x2a48] sm:$0xff]
        %v1746 = vld [vmem:[%s313 + $0x2a50] sm:$0xff]
        %v1747 = vld [vmem:[%s313 + $0x2a58] sm:$0xff]
        %v1748 = vld [vmem:[%s313 + $0x2a60] sm:$0xff]
        %v1749 = vld [vmem:[%s313 + $0x2a68] sm:$0xff]
        %v1750 = vld [vmem:[%s313 + $0x2a70] sm:$0xff]
        %v1751 = vld [vmem:[%s313 + $0x2a78] sm:$0xff]
        %v1752 = vld [vmem:[%s313 + $0x2a80] sm:$0xff]
        %v1753 = vld [vmem:[%s313 + $0x2a88] sm:$0xff]
        %v1754 = vld [vmem:[%s313 + $0x2a90] sm:$0xff]
        %v1755 = vld [vmem:[%s313 + $0x2a98] sm:$0xff]
        %v1756 = vld [vmem:[%s313 + $0x2aa0] sm:$0xff]
        %v1757 = vld [vmem:[%s313 + $0x2aa8] sm:$0xff]
        %v1758 = vld [vmem:[%s313 + $0x2ab0] sm:$0xff]
        %v1759 = vld [vmem:[%s313 + $0x2ab8] sm:$0xff]
        %v1760 = vld [vmem:[%s313 + $0x2ac0] sm:$0xff]
        %v1761 = vld [vmem:[%s313 + $0x2ac8] sm:$0xff]
        %v1762 = vld [vmem:[%s313 + $0x2ad0] sm:$0xff]
        %v1763 = vld [vmem:[%s313 + $0x2ad8] sm:$0xff]
        %v1764 = vld [vmem:[%s313 + $0x2ae0] sm:$0xff]
        %v1765 = vld [vmem:[%s313 + $0x2ae8] sm:$0xff]
        %v1766 = vld [vmem:[%s313 + $0x2af0] sm:$0xff]
        %v1767 = vld [vmem:[%s313 + $0x2af8] sm:$0xff]
        %v1768 = vld [vmem:[%s313 + $0x2b00] sm:$0xff]
        %v1769 = vld [vmem:[%s313 + $0x2b08] sm:$0xff]
        %v1770 = vld [vmem:[%s313 + $0x2b10] sm:$0xff]
        %v1771 = vld [vmem:[%s313 + $0x2b18] sm:$0xff]
        %v1772 = vld [vmem:[%s313 + $0x2b20] sm:$0xff]
        %v1773 = vld [vmem:[%s313 + $0x2b28] sm:$0xff]
        %v1774 = vld [vmem:[%s313 + $0x2b30] sm:$0xff]
        %v1775 = vld [vmem:[%s313 + $0x2b38] sm:$0xff]
        %v1776 = vld [vmem:[%s313 + $0x2b40] sm:$0xff]
        %v1777 = vld [vmem:[%s313 + $0x2b48] sm:$0xff]
        %v1778 = vld [vmem:[%s313 + $0x2b50] sm:$0xff]
        %v1779 = vld [vmem:[%s313 + $0x2b58] sm:$0xff]
        %v1780 = vld [vmem:[%s313 + $0x2b60] sm:$0xff]
        %v1781 = vld [vmem:[%s313 + $0x2b68] sm:$0xff]
        %v1782 = vld [vmem:[%s313 + $0x2b70] sm:$0xff]
        %v1783 = vld [vmem:[%s313 + $0x2b78] sm:$0xff]
        %v1784 = vld [vmem:[%s313 + $0x2b80] sm:$0xff]
        %v1785 = vld [vmem:[%s313 + $0x2b88] sm:$0xff]
        %v1786 = vld [vmem:[%s313 + $0x2b90] sm:$0xff]
        %v1787 = vld [vmem:[%s313 + $0x2b98] sm:$0xff]
        %v1788 = vld [vmem:[%s313 + $0x2ba0] sm:$0xff]
        %v1789 = vld [vmem:[%s313 + $0x2ba8] sm:$0xff]
        %v1790 = vld [vmem:[%s313 + $0x2bb0] sm:$0xff]
        %v1791 = vld [vmem:[%s313 + $0x2bb8] sm:$0xff]
        %v1792 = vld [vmem:[%s313 + $0x2bc0] sm:$0xff]
        %v1793 = vld [vmem:[%s313 + $0x2bc8] sm:$0xff]
        %v1794 = vld [vmem:[%s313 + $0x2bd0] sm:$0xff]
        %v1795 = vld [vmem:[%s313 + $0x2bd8] sm:$0xff]
        %v1796 = vld [vmem:[%s313 + $0x2be0] sm:$0xff]
        %v1797 = vld [vmem:[%s313 + $0x2be8] sm:$0xff]
        %v1798 = vld [vmem:[%s313 + $0x2bf0] sm:$0xff]
        %v1799 = vld [vmem:[%s313 + $0x2bf8] sm:$0xff]
        %v1800 = vld [vmem:[%s313 + $0x2c00] sm:$0xff]
        %v1801 = vld [vmem:[%s313 + $0x2c08] sm:$0xff]
        %v1802 = vld [vmem:[%s313 + $0x2c10] sm:$0xff]
        %v1803 = vld [vmem:[%s313 + $0x2c18] sm:$0xff]
        %v1804 = vld [vmem:[%s313 + $0x2c20] sm:$0xff]
        %v1805 = vld [vmem:[%s313 + $0x2c28] sm:$0xff]
        %v1806 = vld [vmem:[%s313 + $0x2c30] sm:$0xff]
        %v1807 = vld [vmem:[%s313 + $0x2c38] sm:$0xff]
        %v1808 = vld [vmem:[%s313 + $0x2c40] sm:$0xff]
        %v1809 = vld [vmem:[%s313 + $0x2c48] sm:$0xff]
        %v1810 = vld [vmem:[%s313 + $0x2c50] sm:$0xff]
        %v1811 = vld [vmem:[%s313 + $0x2c58] sm:$0xff]
        %v1812 = vld [vmem:[%s313 + $0x2c60] sm:$0xff]
        %v1813 = vld [vmem:[%s313 + $0x2c68] sm:$0xff]
        %v1814 = vld [vmem:[%s313 + $0x2c70] sm:$0xff]
        %v1815 = vld [vmem:[%s313 + $0x2c78] sm:$0xff]
        %v1816 = vld [vmem:[%s313 + $0x2c80] sm:$0xff]
        %v1817 = vld [vmem:[%s313 + $0x2c88] sm:$0xff]
        %v1818 = vld [vmem:[%s313 + $0x2c90] sm:$0xff]
        %v1819 = vld [vmem:[%s313 + $0x2c98] sm:$0xff]
        %v1820 = vld [vmem:[%s313 + $0x2ca0] sm:$0xff]
        %v1821 = vld [vmem:[%s313 + $0x2ca8] sm:$0xff]
        %v1822 = vld [vmem:[%s313 + $0x2cb0] sm:$0xff]
        %v1823 = vld [vmem:[%s313 + $0x2cb8] sm:$0xff]
        %v1824 = vld [vmem:[%s313 + $0x2cc0] sm:$0xff]
        %v1825 = vld [vmem:[%s313 + $0x2cc8] sm:$0xff]
        %v1826 = vld [vmem:[%s313 + $0x2cd0] sm:$0xff]
        %v1827 = vld [vmem:[%s313 + $0x2cd8] sm:$0xff]
        %v1828 = vld [vmem:[%s313 + $0x2ce0] sm:$0xff]
        %v1829 = vld [vmem:[%s313 + $0x2ce8] sm:$0xff]
        %v1830 = vld [vmem:[%s313 + $0x2cf0] sm:$0xff]
        %v1831 = vld [vmem:[%s313 + $0x2cf8] sm:$0xff]
        %v1832 = vld [vmem:[%s313 + $0x2d00] sm:$0xff]
        %v1833 = vld [vmem:[%s313 + $0x2d08] sm:$0xff]
        %v1834 = vld [vmem:[%s313 + $0x2d10] sm:$0xff]
        %v1835 = vld [vmem:[%s313 + $0x2d18] sm:$0xff]
        %v1836 = vld [vmem:[%s313 + $0x2d20] sm:$0xff]
        %v1837 = vld [vmem:[%s313 + $0x2d28] sm:$0xff]
        %v1838 = vld [vmem:[%s313 + $0x2d30] sm:$0xff]
        %v1839 = vld [vmem:[%s313 + $0x2d38] sm:$0xff]
        %v1840 = vld [vmem:[%s313 + $0x2d40] sm:$0xff]
        %v1841 = vld [vmem:[%s313 + $0x2d48] sm:$0xff]
        %v1842 = vld [vmem:[%s313 + $0x2d50] sm:$0xff]
        %v1843 = vld [vmem:[%s313 + $0x2d58] sm:$0xff]
        %v1844 = vld [vmem:[%s313 + $0x2d60] sm:$0xff]
        %v1845 = vld [vmem:[%s313 + $0x2d68] sm:$0xff]
        %v1846 = vld [vmem:[%s313 + $0x2d70] sm:$0xff]
        %v1847 = vld [vmem:[%s313 + $0x2d78] sm:$0xff]
        %v1848 = vld [vmem:[%s313 + $0x2d80] sm:$0xff]
        %v1849 = vld [vmem:[%s313 + $0x2d88] sm:$0xff]
        %v1850 = vld [vmem:[%s313 + $0x2d90] sm:$0xff]
        %v1851 = vld [vmem:[%s313 + $0x2d98] sm:$0xff]
        %v1852 = vld [vmem:[%s313 + $0x2da0] sm:$0xff]
        %v1853 = vld [vmem:[%s313 + $0x2da8] sm:$0xff]
        %v1854 = vld [vmem:[%s313 + $0x2db0] sm:$0xff]
        %v1855 = vld [vmem:[%s313 + $0x2db8] sm:$0xff]
        %v1856 = vld [vmem:[%s313 + $0x2dc0] sm:$0xff]
        %v1857 = vld [vmem:[%s313 + $0x2dc8] sm:$0xff]
        %v1858 = vld [vmem:[%s313 + $0x2dd0] sm:$0xff]
        %v1859 = vld [vmem:[%s313 + $0x2dd8] sm:$0xff]
        %v1860 = vld [vmem:[%s313 + $0x2de0] sm:$0xff]
        %v1861 = vld [vmem:[%s313 + $0x2de8] sm:$0xff]
        %v1862 = vld [vmem:[%s313 + $0x2df0] sm:$0xff]
        %v1863 = vld [vmem:[%s313 + $0x2df8] sm:$0xff]
        %v1864 = vld [vmem:[%s313 + $0x2e00] sm:$0xff]
        %v1865 = vld [vmem:[%s313 + $0x2e08] sm:$0xff]
        %v1866 = vld [vmem:[%s313 + $0x2e10] sm:$0xff]
        %v1867 = vld [vmem:[%s313 + $0x2e18] sm:$0xff]
        %v1868 = vld [vmem:[%s313 + $0x2e20] sm:$0xff]
        %v1869 = vld [vmem:[%s313 + $0x2e28] sm:$0xff]
        %v1870 = vld [vmem:[%s313 + $0x2e30] sm:$0xff]
        %v1871 = vld [vmem:[%s313 + $0x2e38] sm:$0xff]
        %v1872 = vld [vmem:[%s313 + $0x2e40] sm:$0xff]
        %v1873 = vld [vmem:[%s313 + $0x2e48] sm:$0xff]
        %v1874 = vld [vmem:[%s313 + $0x2e50] sm:$0xff]
        %v1875 = vld [vmem:[%s313 + $0x2e58] sm:$0xff]
        %v1876 = vld [vmem:[%s313 + $0x2e60] sm:$0xff]
        %v1877 = vld [vmem:[%s313 + $0x2e68] sm:$0xff]
        %v1878 = vld [vmem:[%s313 + $0x2e70] sm:$0xff]
        %v1879 = vld [vmem:[%s313 + $0x2e78] sm:$0xff]
        %v1880 = vld [vmem:[%s313 + $0x2e80] sm:$0xff]
        %v1881 = vld [vmem:[%s313 + $0x2e88] sm:$0xff]
        %v1882 = vld [vmem:[%s313 + $0x2e90] sm:$0xff]
        %v1883 = vld [vmem:[%s313 + $0x2e98] sm:$0xff]
        %v1884 = vld [vmem:[%s313 + $0x2ea0] sm:$0xff]
        %v1885 = vld [vmem:[%s313 + $0x2ea8] sm:$0xff]
        %v1886 = vld [vmem:[%s313 + $0x2eb0] sm:$0xff]
        %v1887 = vld [vmem:[%s313 + $0x2eb8] sm:$0xff]
        %v1888 = vld [vmem:[%s313 + $0x2ec0] sm:$0xff]
        %v1889 = vld [vmem:[%s313 + $0x2ec8] sm:$0xff]
        %v1890 = vld [vmem:[%s313 + $0x2ed0] sm:$0xff]
        %v1891 = vld [vmem:[%s313 + $0x2ed8] sm:$0xff]
        %v1892 = vld [vmem:[%s313 + $0x2ee0] sm:$0xff]
        %v1893 = vld [vmem:[%s313 + $0x2ee8] sm:$0xff]
        %v1894 = vld [vmem:[%s313 + $0x2ef0] sm:$0xff]
        %v1895 = vld [vmem:[%s313 + $0x2ef8] sm:$0xff]
        %v1896 = vld [vmem:[%s313 + $0x2f00] sm:$0xff]
        %v1897 = vld [vmem:[%s313 + $0x2f08] sm:$0xff]
        %v1898 = vld [vmem:[%s313 + $0x2f10] sm:$0xff]
        %v1899 = vld [vmem:[%s313 + $0x2f18] sm:$0xff]
        %v1900 = vld [vmem:[%s313 + $0x2f20] sm:$0xff]
        %v1901 = vld [vmem:[%s313 + $0x2f28] sm:$0xff]
        %v1902 = vld [vmem:[%s313 + $0x2f30] sm:$0xff]
        %v1903 = vld [vmem:[%s313 + $0x2f38] sm:$0xff]
        %v1904 = vld [vmem:[%s313 + $0x2f40] sm:$0xff]
        %v1905 = vld [vmem:[%s313 + $0x2f48] sm:$0xff]
        %v1906 = vld [vmem:[%s313 + $0x2f50] sm:$0xff]
        %v1907 = vld [vmem:[%s313 + $0x2f58] sm:$0xff]
        %v1908 = vld [vmem:[%s313 + $0x2f60] sm:$0xff]
        %v1909 = vld [vmem:[%s313 + $0x2f68] sm:$0xff]
        %v1910 = vld [vmem:[%s313 + $0x2f70] sm:$0xff]
        %v1911 = vld [vmem:[%s313 + $0x2f78] sm:$0xff]
        %v1912 = vld [vmem:[%s313 + $0x2f80] sm:$0xff]
        %v1913 = vld [vmem:[%s313 + $0x2f88] sm:$0xff]
        %v1914 = vld [vmem:[%s313 + $0x2f90] sm:$0xff]
        %v1915 = vld [vmem:[%s313 + $0x2f98] sm:$0xff]
        %v1916 = vld [vmem:[%s313 + $0x2fa0] sm:$0xff]
        %v1917 = vld [vmem:[%s313 + $0x2fa8] sm:$0xff]
        %v1918 = vld [vmem:[%s313 + $0x2fb0] sm:$0xff]
        %v1919 = vld [vmem:[%s313 + $0x2fb8] sm:$0xff]
        %v1920 = vld [vmem:[%s313 + $0x2fc0] sm:$0xff]
        %v1921 = vld [vmem:[%s313 + $0x2fc8] sm:$0xff]
        %v1922 = vld [vmem:[%s313 + $0x2fd0] sm:$0xff]
        %v1923 = vld [vmem:[%s313 + $0x2fd8] sm:$0xff]
        %v1924 = vld [vmem:[%s313 + $0x2fe0] sm:$0xff]
        %v1925 = vld [vmem:[%s313 + $0x2fe8] sm:$0xff]
        %v1926 = vld [vmem:[%s313 + $0x2ff0] sm:$0xff]
        %v1927 = vld [vmem:[%s313 + $0x2ff8] sm:$0xff]
        %v1928 = vld [vmem:[%s313 + $0x3000] sm:$0xff]
        %v1929 = vld [vmem:[%s313 + $0x3008] sm:$0xff]
        %v1930 = vld [vmem:[%s313 + $0x3010] sm:$0xff]
        %v1931 = vld [vmem:[%s313 + $0x3018] sm:$0xff]
        %v1932 = vld [vmem:[%s313 + $0x3020] sm:$0xff]
        %v1933 = vld [vmem:[%s313 + $0x3028] sm:$0xff]
        %v1934 = vld [vmem:[%s313 + $0x3030] sm:$0xff]
        %v1935 = vld [vmem:[%s313 + $0x3038] sm:$0xff]
        %v1936 = vld [vmem:[%s313 + $0x3040] sm:$0xff]
        %v1937 = vld [vmem:[%s313 + $0x3048] sm:$0xff]
        %v1938 = vld [vmem:[%s313 + $0x3050] sm:$0xff]
        %v1939 = vld [vmem:[%s313 + $0x3058] sm:$0xff]
        %v1940 = vld [vmem:[%s313 + $0x3060] sm:$0xff]
        %v1941 = vld [vmem:[%s313 + $0x3068] sm:$0xff]
        %v1942 = vld [vmem:[%s313 + $0x3070] sm:$0xff]
        %v1943 = vld [vmem:[%s313 + $0x3078] sm:$0xff]
        %v1944 = vld [vmem:[%s313 + $0x3080] sm:$0xff]
        %v1945 = vld [vmem:[%s313 + $0x3088] sm:$0xff]
        %v1946 = vld [vmem:[%s313 + $0x3090] sm:$0xff]
        %v1947 = vld [vmem:[%s313 + $0x3098] sm:$0xff]
        %v1948 = vld [vmem:[%s313 + $0x30a0] sm:$0xff]
        %v1949 = vld [vmem:[%s313 + $0x30a8] sm:$0xff]
        %v1950 = vld [vmem:[%s313 + $0x30b0] sm:$0xff]
        %v1951 = vld [vmem:[%s313 + $0x30b8] sm:$0xff]
        %v1952 = vld [vmem:[%s313 + $0x30c0] sm:$0xff]
        %v1953 = vld [vmem:[%s313 + $0x30c8] sm:$0xff]
        %v1954 = vld [vmem:[%s313 + $0x30d0] sm:$0xff]
        %v1955 = vld [vmem:[%s313 + $0x30d8] sm:$0xff]
        %v1956 = vld [vmem:[%s313 + $0x30e0] sm:$0xff]
        %v1957 = vld [vmem:[%s313 + $0x30e8] sm:$0xff]
        %v1958 = vld [vmem:[%s313 + $0x30f0] sm:$0xff]
        %v1959 = vld [vmem:[%s313 + $0x30f8] sm:$0xff]
        %v1960 = vld [vmem:[%s313 + $0x3100] sm:$0xff]
        %v1961 = vld [vmem:[%s313 + $0x3108] sm:$0xff]
        %v1962 = vld [vmem:[%s313 + $0x3110] sm:$0xff]
        %v1963 = vld [vmem:[%s313 + $0x3118] sm:$0xff]
        %v1964 = vld [vmem:[%s313 + $0x3120] sm:$0xff]
        %v1965 = vld [vmem:[%s313 + $0x3128] sm:$0xff]
        %v1966 = vld [vmem:[%s313 + $0x3130] sm:$0xff]
        %v1967 = vld [vmem:[%s313 + $0x3138] sm:$0xff]
        %v1968 = vld [vmem:[%s313 + $0x3140] sm:$0xff]
        %v1969 = vld [vmem:[%s313 + $0x3148] sm:$0xff]
        %v1970 = vld [vmem:[%s313 + $0x3150] sm:$0xff]
        %v1971 = vld [vmem:[%s313 + $0x3158] sm:$0xff]
        %v1972 = vld [vmem:[%s313 + $0x3160] sm:$0xff]
        %v1973 = vld [vmem:[%s313 + $0x3168] sm:$0xff]
        %v1974 = vld [vmem:[%s313 + $0x3170] sm:$0xff]
        %v1975 = vld [vmem:[%s313 + $0x3178] sm:$0xff]
        %v1976 = vld [vmem:[%s313 + $0x3180] sm:$0xff]
        %v1977 = vld [vmem:[%s313 + $0x3188] sm:$0xff]
        %v1978 = vld [vmem:[%s313 + $0x3190] sm:$0xff]
        %v1979 = vld [vmem:[%s313 + $0x3198] sm:$0xff]
        %v1980 = vld [vmem:[%s313 + $0x31a0] sm:$0xff]
        %v1981 = vld [vmem:[%s313 + $0x31a8] sm:$0xff]
        %v1982 = vld [vmem:[%s313 + $0x31b0] sm:$0xff]
        %v1983 = vld [vmem:[%s313 + $0x31b8] sm:$0xff]
        %v1984 = vld [vmem:[%s313 + $0x31c0] sm:$0xff]
        %v1985 = vld [vmem:[%s313 + $0x31c8] sm:$0xff]
        %v1986 = vld [vmem:[%s313 + $0x31d0] sm:$0xff]
        %v1987 = vld [vmem:[%s313 + $0x31d8] sm:$0xff]
        %v1988 = vld [vmem:[%s313 + $0x31e0] sm:$0xff]
        %v1989 = vld [vmem:[%s313 + $0x31e8] sm:$0xff]
        %v1990 = vld [vmem:[%s313 + $0x31f0] sm:$0xff]
        %v1991 = vld [vmem:[%s313 + $0x31f8] sm:$0xff]
        %v1992 = vunpack.c.l.s8.bf16 %v392
        %v1993 = vunpack.c.l.s8.bf16 %v393
        %v1994 = vunpack.c.l.s8.bf16 %v394
        %v1995 = vunpack.c.l.s8.bf16 %v395
        %v1996 = vunpack.c.l.s8.bf16 %v396
        %v1997 = vunpack.c.l.s8.bf16 %v397
        %v1998 = vunpack.c.l.s8.bf16 %v398
        %v1999 = vunpack.c.l.s8.bf16 %v399
        %v2000 = vunpack.c.l.s8.bf16 %v400
        %v2001 = vunpack.c.l.s8.bf16 %v401
        %v2002 = vunpack.c.h.s8.bf16 %v392
        %v2003 = vunpack.c.h.s8.bf16 %v393
        %v2004 = vunpack.c.h.s8.bf16 %v394
        %v2005 = vunpack.c.h.s8.bf16 %v395
        %v2006 = vunpack.c.h.s8.bf16 %v396
        %v2007 = vunpack.c.h.s8.bf16 %v397
        %v2008 = vunpack.c.h.s8.bf16 %v398
        %v2009 = vunpack.c.h.s8.bf16 %v399
        %v2010 = vunpack.c.h.s8.bf16 %v400
        %v2011 = vunpack.c.h.s8.bf16 %v401
        %v2012 = vunpack.c.l.s8.bf16 %v402
        %v2013 = vunpack.c.l.s8.bf16 %v403
        %v2014 = vunpack.c.l.s8.bf16 %v404
        %v2015 = vunpack.c.l.s8.bf16 %v405
        %v2016 = vunpack.c.l.s8.bf16 %v406
        %v2017 = vunpack.c.l.s8.bf16 %v407
        %v2018 = vunpack.c.l.s8.bf16 %v408
        %v2019 = vunpack.c.l.s8.bf16 %v409
        %v2020 = vunpack.c.l.s8.bf16 %v410
        %v2021 = vunpack.c.l.s8.bf16 %v411
        %v2022 = vunpack.c.h.s8.bf16 %v402
        %v2023 = vunpack.c.h.s8.bf16 %v403
        %v2024 = vunpack.c.h.s8.bf16 %v404
        %v2025 = vunpack.c.h.s8.bf16 %v405
        %v2026 = vunpack.c.h.s8.bf16 %v406
        %v2027 = vunpack.c.h.s8.bf16 %v407
        %v2028 = vunpack.c.h.s8.bf16 %v408
        %v2029 = vunpack.c.h.s8.bf16 %v409
        %v2030 = vunpack.c.h.s8.bf16 %v410
        %v2031 = vunpack.c.h.s8.bf16 %v411
        %v2032 = vunpack.c.l.s8.bf16 %v412
        %v2033 = vunpack.c.l.s8.bf16 %v413
        %v2034 = vunpack.c.l.s8.bf16 %v414
        %v2035 = vunpack.c.l.s8.bf16 %v415
        %v2036 = vunpack.c.l.s8.bf16 %v416
        %v2037 = vunpack.c.l.s8.bf16 %v417
        %v2038 = vunpack.c.l.s8.bf16 %v418
        %v2039 = vunpack.c.l.s8.bf16 %v419
        %v2040 = vunpack.c.l.s8.bf16 %v420
        %v2041 = vunpack.c.l.s8.bf16 %v421
        %v2042 = vunpack.c.h.s8.bf16 %v412
        %v2043 = vunpack.c.h.s8.bf16 %v413
        %v2044 = vunpack.c.h.s8.bf16 %v414
        %v2045 = vunpack.c.h.s8.bf16 %v415
        %v2046 = vunpack.c.h.s8.bf16 %v416
        %v2047 = vunpack.c.h.s8.bf16 %v417
        %v2048 = vunpack.c.h.s8.bf16 %v418
        %v2049 = vunpack.c.h.s8.bf16 %v419
        %v2050 = vunpack.c.h.s8.bf16 %v420
        %v2051 = vunpack.c.h.s8.bf16 %v421
        %v2052 = vunpack.c.l.s8.bf16 %v422
        %v2053 = vunpack.c.l.s8.bf16 %v423
        %v2054 = vunpack.c.l.s8.bf16 %v424
        %v2055 = vunpack.c.l.s8.bf16 %v425
        %v2056 = vunpack.c.l.s8.bf16 %v426
        %v2057 = vunpack.c.l.s8.bf16 %v427
        %v2058 = vunpack.c.l.s8.bf16 %v428
        %v2059 = vunpack.c.l.s8.bf16 %v429
        %v2060 = vunpack.c.l.s8.bf16 %v430
        %v2061 = vunpack.c.l.s8.bf16 %v431
        %v2062 = vunpack.c.h.s8.bf16 %v422
        %v2063 = vunpack.c.h.s8.bf16 %v423
        %v2064 = vunpack.c.h.s8.bf16 %v424
        %v2065 = vunpack.c.h.s8.bf16 %v425
        %v2066 = vunpack.c.h.s8.bf16 %v426
        %v2067 = vunpack.c.h.s8.bf16 %v427
        %v2068 = vunpack.c.h.s8.bf16 %v428
        %v2069 = vunpack.c.h.s8.bf16 %v429
        %v2070 = vunpack.c.h.s8.bf16 %v430
        %v2071 = vunpack.c.h.s8.bf16 %v431
        %v2072 = vunpack.c.l.s8.bf16 %v432
        %v2073 = vunpack.c.l.s8.bf16 %v433
        %v2074 = vunpack.c.l.s8.bf16 %v434
        %v2075 = vunpack.c.l.s8.bf16 %v435
        %v2076 = vunpack.c.l.s8.bf16 %v436
        %v2077 = vunpack.c.l.s8.bf16 %v437
        %v2078 = vunpack.c.l.s8.bf16 %v438
        %v2079 = vunpack.c.l.s8.bf16 %v439
        %v2080 = vunpack.c.l.s8.bf16 %v440
        %v2081 = vunpack.c.l.s8.bf16 %v441
        %v2082 = vunpack.c.h.s8.bf16 %v432
        %v2083 = vunpack.c.h.s8.bf16 %v433
        %v2084 = vunpack.c.h.s8.bf16 %v434
        %v2085 = vunpack.c.h.s8.bf16 %v435
        %v2086 = vunpack.c.h.s8.bf16 %v436
        %v2087 = vunpack.c.h.s8.bf16 %v437
        %v2088 = vunpack.c.h.s8.bf16 %v438
        %v2089 = vunpack.c.h.s8.bf16 %v439
        %v2090 = vunpack.c.h.s8.bf16 %v440
        %v2091 = vunpack.c.h.s8.bf16 %v441
        %v2092 = vunpack.c.l.s8.bf16 %v442
        %v2093 = vunpack.c.l.s8.bf16 %v443
        %v2094 = vunpack.c.l.s8.bf16 %v444
        %v2095 = vunpack.c.l.s8.bf16 %v445
        %v2096 = vunpack.c.l.s8.bf16 %v446
        %v2097 = vunpack.c.l.s8.bf16 %v447
        %v2098 = vunpack.c.l.s8.bf16 %v448
        %v2099 = vunpack.c.l.s8.bf16 %v449
        %v2100 = vunpack.c.l.s8.bf16 %v450
        %v2101 = vunpack.c.l.s8.bf16 %v451
        %v2102 = vunpack.c.h.s8.bf16 %v442
        %v2103 = vunpack.c.h.s8.bf16 %v443
        %v2104 = vunpack.c.h.s8.bf16 %v444
        %v2105 = vunpack.c.h.s8.bf16 %v445
        %v2106 = vunpack.c.h.s8.bf16 %v446
        %v2107 = vunpack.c.h.s8.bf16 %v447
        %v2108 = vunpack.c.h.s8.bf16 %v448
        %v2109 = vunpack.c.h.s8.bf16 %v449
        %v2110 = vunpack.c.h.s8.bf16 %v450
        %v2111 = vunpack.c.h.s8.bf16 %v451
        %v2112 = vunpack.c.l.s8.bf16 %v452
        %v2113 = vunpack.c.l.s8.bf16 %v453
        %v2114 = vunpack.c.l.s8.bf16 %v454
        %v2115 = vunpack.c.l.s8.bf16 %v455
        %v2116 = vunpack.c.l.s8.bf16 %v456
        %v2117 = vunpack.c.l.s8.bf16 %v457
        %v2118 = vunpack.c.l.s8.bf16 %v458
        %v2119 = vunpack.c.l.s8.bf16 %v459
        %v2120 = vunpack.c.l.s8.bf16 %v460
        %v2121 = vunpack.c.l.s8.bf16 %v461
        %v2122 = vunpack.c.h.s8.bf16 %v452
        %v2123 = vunpack.c.h.s8.bf16 %v453
        %v2124 = vunpack.c.h.s8.bf16 %v454
        %v2125 = vunpack.c.h.s8.bf16 %v455
        %v2126 = vunpack.c.h.s8.bf16 %v456
        %v2127 = vunpack.c.h.s8.bf16 %v457
        %v2128 = vunpack.c.h.s8.bf16 %v458
        %v2129 = vunpack.c.h.s8.bf16 %v459
        %v2130 = vunpack.c.h.s8.bf16 %v460
        %v2131 = vunpack.c.h.s8.bf16 %v461
        %v2132 = vunpack.c.l.s8.bf16 %v462
        %v2133 = vunpack.c.l.s8.bf16 %v463
        %v2134 = vunpack.c.l.s8.bf16 %v464
        %v2135 = vunpack.c.l.s8.bf16 %v465
        %v2136 = vunpack.c.l.s8.bf16 %v466
        %v2137 = vunpack.c.l.s8.bf16 %v467
        %v2138 = vunpack.c.l.s8.bf16 %v468
        %v2139 = vunpack.c.l.s8.bf16 %v469
        %v2140 = vunpack.c.l.s8.bf16 %v470
        %v2141 = vunpack.c.l.s8.bf16 %v471
        %v2142 = vunpack.c.h.s8.bf16 %v462
        %v2143 = vunpack.c.h.s8.bf16 %v463
        %v2144 = vunpack.c.h.s8.bf16 %v464
        %v2145 = vunpack.c.h.s8.bf16 %v465
        %v2146 = vunpack.c.h.s8.bf16 %v466
        %v2147 = vunpack.c.h.s8.bf16 %v467
        %v2148 = vunpack.c.h.s8.bf16 %v468
        %v2149 = vunpack.c.h.s8.bf16 %v469
        %v2150 = vunpack.c.h.s8.bf16 %v470
        %v2151 = vunpack.c.h.s8.bf16 %v471
        %v2152 = vunpack.c.l.s8.bf16 %v472
        %v2153 = vunpack.c.l.s8.bf16 %v473
        %v2154 = vunpack.c.l.s8.bf16 %v474
        %v2155 = vunpack.c.l.s8.bf16 %v475
        %v2156 = vunpack.c.l.s8.bf16 %v476
        %v2157 = vunpack.c.l.s8.bf16 %v477
        %v2158 = vunpack.c.l.s8.bf16 %v478
        %v2159 = vunpack.c.l.s8.bf16 %v479
        %v2160 = vunpack.c.l.s8.bf16 %v480
        %v2161 = vunpack.c.l.s8.bf16 %v481
        %v2162 = vunpack.c.h.s8.bf16 %v472
        %v2163 = vunpack.c.h.s8.bf16 %v473
        %v2164 = vunpack.c.h.s8.bf16 %v474
        %v2165 = vunpack.c.h.s8.bf16 %v475
        %v2166 = vunpack.c.h.s8.bf16 %v476
        %v2167 = vunpack.c.h.s8.bf16 %v477
        %v2168 = vunpack.c.h.s8.bf16 %v478
        %v2169 = vunpack.c.h.s8.bf16 %v479
        %v2170 = vunpack.c.h.s8.bf16 %v480
        %v2171 = vunpack.c.h.s8.bf16 %v481
        %v2172 = vunpack.c.l.s8.bf16 %v482
        %v2173 = vunpack.c.l.s8.bf16 %v483
        %v2174 = vunpack.c.l.s8.bf16 %v484
        %v2175 = vunpack.c.l.s8.bf16 %v485
        %v2176 = vunpack.c.l.s8.bf16 %v486
        %v2177 = vunpack.c.l.s8.bf16 %v487
        %v2178 = vunpack.c.l.s8.bf16 %v488
        %v2179 = vunpack.c.l.s8.bf16 %v489
        %v2180 = vunpack.c.l.s8.bf16 %v490
        %v2181 = vunpack.c.l.s8.bf16 %v491
        %v2182 = vunpack.c.h.s8.bf16 %v482
        %v2183 = vunpack.c.h.s8.bf16 %v483
        %v2184 = vunpack.c.h.s8.bf16 %v484
        %v2185 = vunpack.c.h.s8.bf16 %v485
        %v2186 = vunpack.c.h.s8.bf16 %v486
        %v2187 = vunpack.c.h.s8.bf16 %v487
        %v2188 = vunpack.c.h.s8.bf16 %v488
        %v2189 = vunpack.c.h.s8.bf16 %v489
        %v2190 = vunpack.c.h.s8.bf16 %v490
        %v2191 = vunpack.c.h.s8.bf16 %v491
        %v2192 = vunpack.c.l.s8.bf16 %v492
        %v2193 = vunpack.c.l.s8.bf16 %v493
        %v2194 = vunpack.c.l.s8.bf16 %v494
        %v2195 = vunpack.c.l.s8.bf16 %v495
        %v2196 = vunpack.c.l.s8.bf16 %v496
        %v2197 = vunpack.c.l.s8.bf16 %v497
        %v2198 = vunpack.c.l.s8.bf16 %v498
        %v2199 = vunpack.c.l.s8.bf16 %v499
        %v2200 = vunpack.c.l.s8.bf16 %v500
        %v2201 = vunpack.c.l.s8.bf16 %v501
        %v2202 = vunpack.c.h.s8.bf16 %v492
        %v2203 = vunpack.c.h.s8.bf16 %v493
        %v2204 = vunpack.c.h.s8.bf16 %v494
        %v2205 = vunpack.c.h.s8.bf16 %v495
        %v2206 = vunpack.c.h.s8.bf16 %v496
        %v2207 = vunpack.c.h.s8.bf16 %v497
        %v2208 = vunpack.c.h.s8.bf16 %v498
        %v2209 = vunpack.c.h.s8.bf16 %v499
        %v2210 = vunpack.c.h.s8.bf16 %v500
        %v2211 = vunpack.c.h.s8.bf16 %v501
        %v2212 = vunpack.c.l.s8.bf16 %v502
        %v2213 = vunpack.c.l.s8.bf16 %v503
        %v2214 = vunpack.c.l.s8.bf16 %v504
        %v2215 = vunpack.c.l.s8.bf16 %v505
        %v2216 = vunpack.c.l.s8.bf16 %v506
        %v2217 = vunpack.c.l.s8.bf16 %v507
        %v2218 = vunpack.c.l.s8.bf16 %v508
        %v2219 = vunpack.c.l.s8.bf16 %v509
        %v2220 = vunpack.c.l.s8.bf16 %v510
        %v2221 = vunpack.c.l.s8.bf16 %v511
        %v2222 = vunpack.c.h.s8.bf16 %v502
        %v2223 = vunpack.c.h.s8.bf16 %v503
        %v2224 = vunpack.c.h.s8.bf16 %v504
        %v2225 = vunpack.c.h.s8.bf16 %v505
        %v2226 = vunpack.c.h.s8.bf16 %v506
        %v2227 = vunpack.c.h.s8.bf16 %v507
        %v2228 = vunpack.c.h.s8.bf16 %v508
        %v2229 = vunpack.c.h.s8.bf16 %v509
        %v2230 = vunpack.c.h.s8.bf16 %v510
        %v2231 = vunpack.c.h.s8.bf16 %v511
        %v2232 = vunpack.c.l.s8.bf16 %v512
        %v2233 = vunpack.c.l.s8.bf16 %v513
        %v2234 = vunpack.c.l.s8.bf16 %v514
        %v2235 = vunpack.c.l.s8.bf16 %v515
        %v2236 = vunpack.c.l.s8.bf16 %v516
        %v2237 = vunpack.c.l.s8.bf16 %v517
        %v2238 = vunpack.c.l.s8.bf16 %v518
        %v2239 = vunpack.c.l.s8.bf16 %v519
        %v2240 = vunpack.c.l.s8.bf16 %v520
        %v2241 = vunpack.c.l.s8.bf16 %v521
        %v2242 = vunpack.c.h.s8.bf16 %v512
        %v2243 = vunpack.c.h.s8.bf16 %v513
        %v2244 = vunpack.c.h.s8.bf16 %v514
        %v2245 = vunpack.c.h.s8.bf16 %v515
        %v2246 = vunpack.c.h.s8.bf16 %v516
        %v2247 = vunpack.c.h.s8.bf16 %v517
        %v2248 = vunpack.c.h.s8.bf16 %v518
        %v2249 = vunpack.c.h.s8.bf16 %v519
        %v2250 = vunpack.c.h.s8.bf16 %v520
        %v2251 = vunpack.c.h.s8.bf16 %v521
        %v2252 = vunpack.c.l.s8.bf16 %v522
        %v2253 = vunpack.c.l.s8.bf16 %v523
        %v2254 = vunpack.c.l.s8.bf16 %v524
        %v2255 = vunpack.c.l.s8.bf16 %v525
        %v2256 = vunpack.c.l.s8.bf16 %v526
        %v2257 = vunpack.c.l.s8.bf16 %v527
        %v2258 = vunpack.c.l.s8.bf16 %v528
        %v2259 = vunpack.c.l.s8.bf16 %v529
        %v2260 = vunpack.c.l.s8.bf16 %v530
        %v2261 = vunpack.c.l.s8.bf16 %v531
        %v2262 = vunpack.c.h.s8.bf16 %v522
        %v2263 = vunpack.c.h.s8.bf16 %v523
        %v2264 = vunpack.c.h.s8.bf16 %v524
        %v2265 = vunpack.c.h.s8.bf16 %v525
        %v2266 = vunpack.c.h.s8.bf16 %v526
        %v2267 = vunpack.c.h.s8.bf16 %v527
        %v2268 = vunpack.c.h.s8.bf16 %v528
        %v2269 = vunpack.c.h.s8.bf16 %v529
        %v2270 = vunpack.c.h.s8.bf16 %v530
        %v2271 = vunpack.c.h.s8.bf16 %v531
        %v2272 = vunpack.c.l.s8.bf16 %v532
        %v2273 = vunpack.c.l.s8.bf16 %v533
        %v2274 = vunpack.c.l.s8.bf16 %v534
        %v2275 = vunpack.c.l.s8.bf16 %v535
        %v2276 = vunpack.c.l.s8.bf16 %v536
        %v2277 = vunpack.c.l.s8.bf16 %v537
        %v2278 = vunpack.c.l.s8.bf16 %v538
        %v2279 = vunpack.c.l.s8.bf16 %v539
        %v2280 = vunpack.c.l.s8.bf16 %v540
        %v2281 = vunpack.c.l.s8.bf16 %v541
        %v2282 = vunpack.c.h.s8.bf16 %v532
        %v2283 = vunpack.c.h.s8.bf16 %v533
        %v2284 = vunpack.c.h.s8.bf16 %v534
        %v2285 = vunpack.c.h.s8.bf16 %v535
        %v2286 = vunpack.c.h.s8.bf16 %v536
        %v2287 = vunpack.c.h.s8.bf16 %v537
        %v2288 = vunpack.c.h.s8.bf16 %v538
        %v2289 = vunpack.c.h.s8.bf16 %v539
        %v2290 = vunpack.c.h.s8.bf16 %v540
        %v2291 = vunpack.c.h.s8.bf16 %v541
        %v2292 = vunpack.c.l.s8.bf16 %v542
        %v2293 = vunpack.c.l.s8.bf16 %v543
        %v2294 = vunpack.c.l.s8.bf16 %v544
        %v2295 = vunpack.c.l.s8.bf16 %v545
        %v2296 = vunpack.c.l.s8.bf16 %v546
        %v2297 = vunpack.c.l.s8.bf16 %v547
        %v2298 = vunpack.c.l.s8.bf16 %v548
        %v2299 = vunpack.c.l.s8.bf16 %v549
        %v2300 = vunpack.c.l.s8.bf16 %v550
        %v2301 = vunpack.c.l.s8.bf16 %v551
        %v2302 = vunpack.c.h.s8.bf16 %v542
        %v2303 = vunpack.c.h.s8.bf16 %v543
        %v2304 = vunpack.c.h.s8.bf16 %v544
        %v2305 = vunpack.c.h.s8.bf16 %v545
        %v2306 = vunpack.c.h.s8.bf16 %v546
        %v2307 = vunpack.c.h.s8.bf16 %v547
        %v2308 = vunpack.c.h.s8.bf16 %v548
        %v2309 = vunpack.c.h.s8.bf16 %v549
        %v2310 = vunpack.c.h.s8.bf16 %v550
        %v2311 = vunpack.c.h.s8.bf16 %v551
        %v2312 = vunpack.c.l.s8.bf16 %v552
        %v2313 = vunpack.c.l.s8.bf16 %v553
        %v2314 = vunpack.c.l.s8.bf16 %v554
        %v2315 = vunpack.c.l.s8.bf16 %v555
        %v2316 = vunpack.c.l.s8.bf16 %v556
        %v2317 = vunpack.c.l.s8.bf16 %v557
        %v2318 = vunpack.c.l.s8.bf16 %v558
        %v2319 = vunpack.c.l.s8.bf16 %v559
        %v2320 = vunpack.c.l.s8.bf16 %v560
        %v2321 = vunpack.c.l.s8.bf16 %v561
        %v2322 = vunpack.c.h.s8.bf16 %v552
        %v2323 = vunpack.c.h.s8.bf16 %v553
        %v2324 = vunpack.c.h.s8.bf16 %v554
        %v2325 = vunpack.c.h.s8.bf16 %v555
        %v2326 = vunpack.c.h.s8.bf16 %v556
        %v2327 = vunpack.c.h.s8.bf16 %v557
        %v2328 = vunpack.c.h.s8.bf16 %v558
        %v2329 = vunpack.c.h.s8.bf16 %v559
        %v2330 = vunpack.c.h.s8.bf16 %v560
        %v2331 = vunpack.c.h.s8.bf16 %v561
        %v2332 = vunpack.c.l.s8.bf16 %v562
        %v2333 = vunpack.c.l.s8.bf16 %v563
        %v2334 = vunpack.c.l.s8.bf16 %v564
        %v2335 = vunpack.c.l.s8.bf16 %v565
        %v2336 = vunpack.c.l.s8.bf16 %v566
        %v2337 = vunpack.c.l.s8.bf16 %v567
        %v2338 = vunpack.c.l.s8.bf16 %v568
        %v2339 = vunpack.c.l.s8.bf16 %v569
        %v2340 = vunpack.c.l.s8.bf16 %v570
        %v2341 = vunpack.c.l.s8.bf16 %v571
        %v2342 = vunpack.c.h.s8.bf16 %v562
        %v2343 = vunpack.c.h.s8.bf16 %v563
        %v2344 = vunpack.c.h.s8.bf16 %v564
        %v2345 = vunpack.c.h.s8.bf16 %v565
        %v2346 = vunpack.c.h.s8.bf16 %v566
        %v2347 = vunpack.c.h.s8.bf16 %v567
        %v2348 = vunpack.c.h.s8.bf16 %v568
        %v2349 = vunpack.c.h.s8.bf16 %v569
        %v2350 = vunpack.c.h.s8.bf16 %v570
        %v2351 = vunpack.c.h.s8.bf16 %v571
        %v2352 = vunpack.c.l.s8.bf16 %v572
        %v2353 = vunpack.c.l.s8.bf16 %v573
        %v2354 = vunpack.c.l.s8.bf16 %v574
        %v2355 = vunpack.c.l.s8.bf16 %v575
        %v2356 = vunpack.c.l.s8.bf16 %v576
        %v2357 = vunpack.c.l.s8.bf16 %v577
        %v2358 = vunpack.c.l.s8.bf16 %v578
        %v2359 = vunpack.c.l.s8.bf16 %v579
        %v2360 = vunpack.c.l.s8.bf16 %v580
        %v2361 = vunpack.c.l.s8.bf16 %v581
        %v2362 = vunpack.c.h.s8.bf16 %v572
        %v2363 = vunpack.c.h.s8.bf16 %v573
        %v2364 = vunpack.c.h.s8.bf16 %v574
        %v2365 = vunpack.c.h.s8.bf16 %v575
        %v2366 = vunpack.c.h.s8.bf16 %v576
        %v2367 = vunpack.c.h.s8.bf16 %v577
        %v2368 = vunpack.c.h.s8.bf16 %v578
        %v2369 = vunpack.c.h.s8.bf16 %v579
        %v2370 = vunpack.c.h.s8.bf16 %v580
        %v2371 = vunpack.c.h.s8.bf16 %v581
        %v2372 = vunpack.c.l.s8.bf16 %v582
        %v2373 = vunpack.c.l.s8.bf16 %v583
        %v2374 = vunpack.c.l.s8.bf16 %v584
        %v2375 = vunpack.c.l.s8.bf16 %v585
        %v2376 = vunpack.c.l.s8.bf16 %v586
        %v2377 = vunpack.c.l.s8.bf16 %v587
        %v2378 = vunpack.c.l.s8.bf16 %v588
        %v2379 = vunpack.c.l.s8.bf16 %v589
        %v2380 = vunpack.c.l.s8.bf16 %v590
        %v2381 = vunpack.c.l.s8.bf16 %v591
        %v2382 = vunpack.c.h.s8.bf16 %v582
        %v2383 = vunpack.c.h.s8.bf16 %v583
        %v2384 = vunpack.c.h.s8.bf16 %v584
        %v2385 = vunpack.c.h.s8.bf16 %v585
        %v2386 = vunpack.c.h.s8.bf16 %v586
        %v2387 = vunpack.c.h.s8.bf16 %v587
        %v2388 = vunpack.c.h.s8.bf16 %v588
        %v2389 = vunpack.c.h.s8.bf16 %v589
        %v2390 = vunpack.c.h.s8.bf16 %v590
        %v2391 = vunpack.c.h.s8.bf16 %v591
        %v2392 = vunpack.c.l.s8.bf16 %v592
        %v2393 = vunpack.c.l.s8.bf16 %v593
        %v2394 = vunpack.c.l.s8.bf16 %v594
        %v2395 = vunpack.c.l.s8.bf16 %v595
        %v2396 = vunpack.c.l.s8.bf16 %v596
        %v2397 = vunpack.c.l.s8.bf16 %v597
        %v2398 = vunpack.c.l.s8.bf16 %v598
        %v2399 = vunpack.c.l.s8.bf16 %v599
        %v2400 = vunpack.c.l.s8.bf16 %v600
        %v2401 = vunpack.c.l.s8.bf16 %v601
        %v2402 = vunpack.c.h.s8.bf16 %v592
        %v2403 = vunpack.c.h.s8.bf16 %v593
        %v2404 = vunpack.c.h.s8.bf16 %v594
        %v2405 = vunpack.c.h.s8.bf16 %v595
        %v2406 = vunpack.c.h.s8.bf16 %v596
        %v2407 = vunpack.c.h.s8.bf16 %v597
        %v2408 = vunpack.c.h.s8.bf16 %v598
        %v2409 = vunpack.c.h.s8.bf16 %v599
        %v2410 = vunpack.c.h.s8.bf16 %v600
        %v2411 = vunpack.c.h.s8.bf16 %v601
        %v2412 = vunpack.c.l.s8.bf16 %v602
        %v2413 = vunpack.c.l.s8.bf16 %v603
        %v2414 = vunpack.c.l.s8.bf16 %v604
        %v2415 = vunpack.c.l.s8.bf16 %v605
        %v2416 = vunpack.c.l.s8.bf16 %v606
        %v2417 = vunpack.c.l.s8.bf16 %v607
        %v2418 = vunpack.c.l.s8.bf16 %v608
        %v2419 = vunpack.c.l.s8.bf16 %v609
        %v2420 = vunpack.c.l.s8.bf16 %v610
        %v2421 = vunpack.c.l.s8.bf16 %v611
        %v2422 = vunpack.c.h.s8.bf16 %v602
        %v2423 = vunpack.c.h.s8.bf16 %v603
        %v2424 = vunpack.c.h.s8.bf16 %v604
        %v2425 = vunpack.c.h.s8.bf16 %v605
        %v2426 = vunpack.c.h.s8.bf16 %v606
        %v2427 = vunpack.c.h.s8.bf16 %v607
        %v2428 = vunpack.c.h.s8.bf16 %v608
        %v2429 = vunpack.c.h.s8.bf16 %v609
        %v2430 = vunpack.c.h.s8.bf16 %v610
        %v2431 = vunpack.c.h.s8.bf16 %v611
        %v2432 = vunpack.c.l.s8.bf16 %v612
        %v2433 = vunpack.c.l.s8.bf16 %v613
        %v2434 = vunpack.c.l.s8.bf16 %v614
        %v2435 = vunpack.c.l.s8.bf16 %v615
        %v2436 = vunpack.c.l.s8.bf16 %v616
        %v2437 = vunpack.c.l.s8.bf16 %v617
        %v2438 = vunpack.c.l.s8.bf16 %v618
        %v2439 = vunpack.c.l.s8.bf16 %v619
        %v2440 = vunpack.c.l.s8.bf16 %v620
        %v2441 = vunpack.c.l.s8.bf16 %v621
        %v2442 = vunpack.c.h.s8.bf16 %v612
        %v2443 = vunpack.c.h.s8.bf16 %v613
        %v2444 = vunpack.c.h.s8.bf16 %v614
        %v2445 = vunpack.c.h.s8.bf16 %v615
        %v2446 = vunpack.c.h.s8.bf16 %v616
        %v2447 = vunpack.c.h.s8.bf16 %v617
        %v2448 = vunpack.c.h.s8.bf16 %v618
        %v2449 = vunpack.c.h.s8.bf16 %v619
        %v2450 = vunpack.c.h.s8.bf16 %v620
        %v2451 = vunpack.c.h.s8.bf16 %v621
        %v2452 = vunpack.c.l.s8.bf16 %v622
        %v2453 = vunpack.c.l.s8.bf16 %v623
        %v2454 = vunpack.c.l.s8.bf16 %v624
        %v2455 = vunpack.c.l.s8.bf16 %v625
        %v2456 = vunpack.c.l.s8.bf16 %v626
        %v2457 = vunpack.c.l.s8.bf16 %v627
        %v2458 = vunpack.c.l.s8.bf16 %v628
        %v2459 = vunpack.c.l.s8.bf16 %v629
        %v2460 = vunpack.c.l.s8.bf16 %v630
        %v2461 = vunpack.c.l.s8.bf16 %v631
        %v2462 = vunpack.c.h.s8.bf16 %v622
        %v2463 = vunpack.c.h.s8.bf16 %v623
        %v2464 = vunpack.c.h.s8.bf16 %v624
        %v2465 = vunpack.c.h.s8.bf16 %v625
        %v2466 = vunpack.c.h.s8.bf16 %v626
        %v2467 = vunpack.c.h.s8.bf16 %v627
        %v2468 = vunpack.c.h.s8.bf16 %v628
        %v2469 = vunpack.c.h.s8.bf16 %v629
        %v2470 = vunpack.c.h.s8.bf16 %v630
        %v2471 = vunpack.c.h.s8.bf16 %v631
        %v2472 = vunpack.c.l.s8.bf16 %v632
        %v2473 = vunpack.c.l.s8.bf16 %v633
        %v2474 = vunpack.c.l.s8.bf16 %v634
        %v2475 = vunpack.c.l.s8.bf16 %v635
        %v2476 = vunpack.c.l.s8.bf16 %v636
        %v2477 = vunpack.c.l.s8.bf16 %v637
        %v2478 = vunpack.c.l.s8.bf16 %v638
        %v2479 = vunpack.c.l.s8.bf16 %v639
        %v2480 = vunpack.c.l.s8.bf16 %v640
        %v2481 = vunpack.c.l.s8.bf16 %v641
        %v2482 = vunpack.c.h.s8.bf16 %v632
        %v2483 = vunpack.c.h.s8.bf16 %v633
        %v2484 = vunpack.c.h.s8.bf16 %v634
        %v2485 = vunpack.c.h.s8.bf16 %v635
        %v2486 = vunpack.c.h.s8.bf16 %v636
        %v2487 = vunpack.c.h.s8.bf16 %v637
        %v2488 = vunpack.c.h.s8.bf16 %v638
        %v2489 = vunpack.c.h.s8.bf16 %v639
        %v2490 = vunpack.c.h.s8.bf16 %v640
        %v2491 = vunpack.c.h.s8.bf16 %v641
        %v2492 = vunpack.c.l.s8.bf16 %v642
        %v2493 = vunpack.c.l.s8.bf16 %v643
        %v2494 = vunpack.c.l.s8.bf16 %v644
        %v2495 = vunpack.c.l.s8.bf16 %v645
        %v2496 = vunpack.c.l.s8.bf16 %v646
        %v2497 = vunpack.c.l.s8.bf16 %v647
        %v2498 = vunpack.c.l.s8.bf16 %v648
        %v2499 = vunpack.c.l.s8.bf16 %v649
        %v2500 = vunpack.c.l.s8.bf16 %v650
        %v2501 = vunpack.c.l.s8.bf16 %v651
        %v2502 = vunpack.c.h.s8.bf16 %v642
        %v2503 = vunpack.c.h.s8.bf16 %v643
        %v2504 = vunpack.c.h.s8.bf16 %v644
        %v2505 = vunpack.c.h.s8.bf16 %v645
        %v2506 = vunpack.c.h.s8.bf16 %v646
        %v2507 = vunpack.c.h.s8.bf16 %v647
        %v2508 = vunpack.c.h.s8.bf16 %v648
        %v2509 = vunpack.c.h.s8.bf16 %v649
        %v2510 = vunpack.c.h.s8.bf16 %v650
        %v2511 = vunpack.c.h.s8.bf16 %v651
        %v2512 = vunpack.c.l.s8.bf16 %v652
        %v2513 = vunpack.c.l.s8.bf16 %v653
        %v2514 = vunpack.c.l.s8.bf16 %v654
        %v2515 = vunpack.c.l.s8.bf16 %v655
        %v2516 = vunpack.c.l.s8.bf16 %v656
        %v2517 = vunpack.c.l.s8.bf16 %v657
        %v2518 = vunpack.c.l.s8.bf16 %v658
        %v2519 = vunpack.c.l.s8.bf16 %v659
        %v2520 = vunpack.c.l.s8.bf16 %v660
        %v2521 = vunpack.c.l.s8.bf16 %v661
        %v2522 = vunpack.c.h.s8.bf16 %v652
        %v2523 = vunpack.c.h.s8.bf16 %v653
        %v2524 = vunpack.c.h.s8.bf16 %v654
        %v2525 = vunpack.c.h.s8.bf16 %v655
        %v2526 = vunpack.c.h.s8.bf16 %v656
        %v2527 = vunpack.c.h.s8.bf16 %v657
        %v2528 = vunpack.c.h.s8.bf16 %v658
        %v2529 = vunpack.c.h.s8.bf16 %v659
        %v2530 = vunpack.c.h.s8.bf16 %v660
        %v2531 = vunpack.c.h.s8.bf16 %v661
        %v2532 = vunpack.c.l.s8.bf16 %v662
        %v2533 = vunpack.c.l.s8.bf16 %v663
        %v2534 = vunpack.c.l.s8.bf16 %v664
        %v2535 = vunpack.c.l.s8.bf16 %v665
        %v2536 = vunpack.c.l.s8.bf16 %v666
        %v2537 = vunpack.c.l.s8.bf16 %v667
        %v2538 = vunpack.c.l.s8.bf16 %v668
        %v2539 = vunpack.c.l.s8.bf16 %v669
        %v2540 = vunpack.c.l.s8.bf16 %v670
        %v2541 = vunpack.c.l.s8.bf16 %v671
        %v2542 = vunpack.c.h.s8.bf16 %v662
        %v2543 = vunpack.c.h.s8.bf16 %v663
        %v2544 = vunpack.c.h.s8.bf16 %v664
        %v2545 = vunpack.c.h.s8.bf16 %v665
        %v2546 = vunpack.c.h.s8.bf16 %v666
        %v2547 = vunpack.c.h.s8.bf16 %v667
        %v2548 = vunpack.c.h.s8.bf16 %v668
        %v2549 = vunpack.c.h.s8.bf16 %v669
        %v2550 = vunpack.c.h.s8.bf16 %v670
        %v2551 = vunpack.c.h.s8.bf16 %v671
        %v2552 = vunpack.c.l.s8.bf16 %v672
        %v2553 = vunpack.c.l.s8.bf16 %v673
        %v2554 = vunpack.c.l.s8.bf16 %v674
        %v2555 = vunpack.c.l.s8.bf16 %v675
        %v2556 = vunpack.c.l.s8.bf16 %v676
        %v2557 = vunpack.c.l.s8.bf16 %v677
        %v2558 = vunpack.c.l.s8.bf16 %v678
        %v2559 = vunpack.c.l.s8.bf16 %v679
        %v2560 = vunpack.c.l.s8.bf16 %v680
        %v2561 = vunpack.c.l.s8.bf16 %v681
        %v2562 = vunpack.c.h.s8.bf16 %v672
        %v2563 = vunpack.c.h.s8.bf16 %v673
        %v2564 = vunpack.c.h.s8.bf16 %v674
        %v2565 = vunpack.c.h.s8.bf16 %v675
        %v2566 = vunpack.c.h.s8.bf16 %v676
        %v2567 = vunpack.c.h.s8.bf16 %v677
        %v2568 = vunpack.c.h.s8.bf16 %v678
        %v2569 = vunpack.c.h.s8.bf16 %v679
        %v2570 = vunpack.c.h.s8.bf16 %v680
        %v2571 = vunpack.c.h.s8.bf16 %v681
        %v2572 = vunpack.c.l.s8.bf16 %v682
        %v2573 = vunpack.c.l.s8.bf16 %v683
        %v2574 = vunpack.c.l.s8.bf16 %v684
        %v2575 = vunpack.c.l.s8.bf16 %v685
        %v2576 = vunpack.c.l.s8.bf16 %v686
        %v2577 = vunpack.c.l.s8.bf16 %v687
        %v2578 = vunpack.c.l.s8.bf16 %v688
        %v2579 = vunpack.c.l.s8.bf16 %v689
        %v2580 = vunpack.c.l.s8.bf16 %v690
        %v2581 = vunpack.c.l.s8.bf16 %v691
        %v2582 = vunpack.c.h.s8.bf16 %v682
        %v2583 = vunpack.c.h.s8.bf16 %v683
        %v2584 = vunpack.c.h.s8.bf16 %v684
        %v2585 = vunpack.c.h.s8.bf16 %v685
        %v2586 = vunpack.c.h.s8.bf16 %v686
        %v2587 = vunpack.c.h.s8.bf16 %v687
        %v2588 = vunpack.c.h.s8.bf16 %v688
        %v2589 = vunpack.c.h.s8.bf16 %v689
        %v2590 = vunpack.c.h.s8.bf16 %v690
        %v2591 = vunpack.c.h.s8.bf16 %v691
        %v2592 = vunpack.c.l.s8.bf16 %v692
        %v2593 = vunpack.c.l.s8.bf16 %v693
        %v2594 = vunpack.c.l.s8.bf16 %v694
        %v2595 = vunpack.c.l.s8.bf16 %v695
        %v2596 = vunpack.c.l.s8.bf16 %v696
        %v2597 = vunpack.c.l.s8.bf16 %v697
        %v2598 = vunpack.c.l.s8.bf16 %v698
        %v2599 = vunpack.c.l.s8.bf16 %v699
        %v2600 = vunpack.c.l.s8.bf16 %v700
        %v2601 = vunpack.c.l.s8.bf16 %v701
        %v2602 = vunpack.c.h.s8.bf16 %v692
        %v2603 = vunpack.c.h.s8.bf16 %v693
        %v2604 = vunpack.c.h.s8.bf16 %v694
        %v2605 = vunpack.c.h.s8.bf16 %v695
        %v2606 = vunpack.c.h.s8.bf16 %v696
        %v2607 = vunpack.c.h.s8.bf16 %v697
        %v2608 = vunpack.c.h.s8.bf16 %v698
        %v2609 = vunpack.c.h.s8.bf16 %v699
        %v2610 = vunpack.c.h.s8.bf16 %v700
        %v2611 = vunpack.c.h.s8.bf16 %v701
        %v2612 = vunpack.c.l.s8.bf16 %v702
        %v2613 = vunpack.c.l.s8.bf16 %v703
        %v2614 = vunpack.c.l.s8.bf16 %v704
        %v2615 = vunpack.c.l.s8.bf16 %v705
        %v2616 = vunpack.c.l.s8.bf16 %v706
        %v2617 = vunpack.c.l.s8.bf16 %v707
        %v2618 = vunpack.c.l.s8.bf16 %v708
        %v2619 = vunpack.c.l.s8.bf16 %v709
        %v2620 = vunpack.c.l.s8.bf16 %v710
        %v2621 = vunpack.c.l.s8.bf16 %v711
        %v2622 = vunpack.c.h.s8.bf16 %v702
        %v2623 = vunpack.c.h.s8.bf16 %v703
        %v2624 = vunpack.c.h.s8.bf16 %v704
        %v2625 = vunpack.c.h.s8.bf16 %v705
        %v2626 = vunpack.c.h.s8.bf16 %v706
        %v2627 = vunpack.c.h.s8.bf16 %v707
        %v2628 = vunpack.c.h.s8.bf16 %v708
        %v2629 = vunpack.c.h.s8.bf16 %v709
        %v2630 = vunpack.c.h.s8.bf16 %v710
        %v2631 = vunpack.c.h.s8.bf16 %v711
        %v2632 = vunpack.c.l.s8.bf16 %v712
        %v2633 = vunpack.c.l.s8.bf16 %v713
        %v2634 = vunpack.c.l.s8.bf16 %v714
        %v2635 = vunpack.c.l.s8.bf16 %v715
        %v2636 = vunpack.c.l.s8.bf16 %v716
        %v2637 = vunpack.c.l.s8.bf16 %v717
        %v2638 = vunpack.c.l.s8.bf16 %v718
        %v2639 = vunpack.c.l.s8.bf16 %v719
        %v2640 = vunpack.c.l.s8.bf16 %v720
        %v2641 = vunpack.c.l.s8.bf16 %v721
        %v2642 = vunpack.c.h.s8.bf16 %v712
        %v2643 = vunpack.c.h.s8.bf16 %v713
        %v2644 = vunpack.c.h.s8.bf16 %v714
        %v2645 = vunpack.c.h.s8.bf16 %v715
        %v2646 = vunpack.c.h.s8.bf16 %v716
        %v2647 = vunpack.c.h.s8.bf16 %v717
        %v2648 = vunpack.c.h.s8.bf16 %v718
        %v2649 = vunpack.c.h.s8.bf16 %v719
        %v2650 = vunpack.c.h.s8.bf16 %v720
        %v2651 = vunpack.c.h.s8.bf16 %v721
        %v2652 = vunpack.c.l.s8.bf16 %v722
        %v2653 = vunpack.c.l.s8.bf16 %v723
        %v2654 = vunpack.c.l.s8.bf16 %v724
        %v2655 = vunpack.c.l.s8.bf16 %v725
        %v2656 = vunpack.c.l.s8.bf16 %v726
        %v2657 = vunpack.c.l.s8.bf16 %v727
        %v2658 = vunpack.c.l.s8.bf16 %v728
        %v2659 = vunpack.c.l.s8.bf16 %v729
        %v2660 = vunpack.c.l.s8.bf16 %v730
        %v2661 = vunpack.c.l.s8.bf16 %v731
        %v2662 = vunpack.c.h.s8.bf16 %v722
        %v2663 = vunpack.c.h.s8.bf16 %v723
        %v2664 = vunpack.c.h.s8.bf16 %v724
        %v2665 = vunpack.c.h.s8.bf16 %v725
        %v2666 = vunpack.c.h.s8.bf16 %v726
        %v2667 = vunpack.c.h.s8.bf16 %v727
        %v2668 = vunpack.c.h.s8.bf16 %v728
        %v2669 = vunpack.c.h.s8.bf16 %v729
        %v2670 = vunpack.c.h.s8.bf16 %v730
        %v2671 = vunpack.c.h.s8.bf16 %v731
        %v2672 = vunpack.c.l.s8.bf16 %v732
        %v2673 = vunpack.c.l.s8.bf16 %v733
        %v2674 = vunpack.c.l.s8.bf16 %v734
        %v2675 = vunpack.c.l.s8.bf16 %v735
        %v2676 = vunpack.c.l.s8.bf16 %v736
        %v2677 = vunpack.c.l.s8.bf16 %v737
        %v2678 = vunpack.c.l.s8.bf16 %v738
        %v2679 = vunpack.c.l.s8.bf16 %v739
        %v2680 = vunpack.c.l.s8.bf16 %v740
        %v2681 = vunpack.c.l.s8.bf16 %v741
        %v2682 = vunpack.c.h.s8.bf16 %v732
        %v2683 = vunpack.c.h.s8.bf16 %v733
        %v2684 = vunpack.c.h.s8.bf16 %v734
        %v2685 = vunpack.c.h.s8.bf16 %v735
        %v2686 = vunpack.c.h.s8.bf16 %v736
        %v2687 = vunpack.c.h.s8.bf16 %v737
        %v2688 = vunpack.c.h.s8.bf16 %v738
        %v2689 = vunpack.c.h.s8.bf16 %v739
        %v2690 = vunpack.c.h.s8.bf16 %v740
        %v2691 = vunpack.c.h.s8.bf16 %v741
        %v2692 = vunpack.c.l.s8.bf16 %v742
        %v2693 = vunpack.c.l.s8.bf16 %v743
        %v2694 = vunpack.c.l.s8.bf16 %v744
        %v2695 = vunpack.c.l.s8.bf16 %v745
        %v2696 = vunpack.c.l.s8.bf16 %v746
        %v2697 = vunpack.c.l.s8.bf16 %v747
        %v2698 = vunpack.c.l.s8.bf16 %v748
        %v2699 = vunpack.c.l.s8.bf16 %v749
        %v2700 = vunpack.c.l.s8.bf16 %v750
        %v2701 = vunpack.c.l.s8.bf16 %v751
        %v2702 = vunpack.c.h.s8.bf16 %v742
        %v2703 = vunpack.c.h.s8.bf16 %v743
        %v2704 = vunpack.c.h.s8.bf16 %v744
        %v2705 = vunpack.c.h.s8.bf16 %v745
        %v2706 = vunpack.c.h.s8.bf16 %v746
        %v2707 = vunpack.c.h.s8.bf16 %v747
        %v2708 = vunpack.c.h.s8.bf16 %v748
        %v2709 = vunpack.c.h.s8.bf16 %v749
        %v2710 = vunpack.c.h.s8.bf16 %v750
        %v2711 = vunpack.c.h.s8.bf16 %v751
        %v2712 = vunpack.c.l.s8.bf16 %v752
        %v2713 = vunpack.c.l.s8.bf16 %v753
        %v2714 = vunpack.c.l.s8.bf16 %v754
        %v2715 = vunpack.c.l.s8.bf16 %v755
        %v2716 = vunpack.c.l.s8.bf16 %v756
        %v2717 = vunpack.c.l.s8.bf16 %v757
        %v2718 = vunpack.c.l.s8.bf16 %v758
        %v2719 = vunpack.c.l.s8.bf16 %v759
        %v2720 = vunpack.c.l.s8.bf16 %v760
        %v2721 = vunpack.c.l.s8.bf16 %v761
        %v2722 = vunpack.c.h.s8.bf16 %v752
        %v2723 = vunpack.c.h.s8.bf16 %v753
        %v2724 = vunpack.c.h.s8.bf16 %v754
        %v2725 = vunpack.c.h.s8.bf16 %v755
        %v2726 = vunpack.c.h.s8.bf16 %v756
        %v2727 = vunpack.c.h.s8.bf16 %v757
        %v2728 = vunpack.c.h.s8.bf16 %v758
        %v2729 = vunpack.c.h.s8.bf16 %v759
        %v2730 = vunpack.c.h.s8.bf16 %v760
        %v2731 = vunpack.c.h.s8.bf16 %v761
        %v2732 = vunpack.c.l.s8.bf16 %v762
        %v2733 = vunpack.c.l.s8.bf16 %v763
        %v2734 = vunpack.c.l.s8.bf16 %v764
        %v2735 = vunpack.c.l.s8.bf16 %v765
        %v2736 = vunpack.c.l.s8.bf16 %v766
        %v2737 = vunpack.c.l.s8.bf16 %v767
        %v2738 = vunpack.c.l.s8.bf16 %v768
        %v2739 = vunpack.c.l.s8.bf16 %v769
        %v2740 = vunpack.c.l.s8.bf16 %v770
        %v2741 = vunpack.c.l.s8.bf16 %v771
        %v2742 = vunpack.c.h.s8.bf16 %v762
        %v2743 = vunpack.c.h.s8.bf16 %v763
        %v2744 = vunpack.c.h.s8.bf16 %v764
        %v2745 = vunpack.c.h.s8.bf16 %v765
        %v2746 = vunpack.c.h.s8.bf16 %v766
        %v2747 = vunpack.c.h.s8.bf16 %v767
        %v2748 = vunpack.c.h.s8.bf16 %v768
        %v2749 = vunpack.c.h.s8.bf16 %v769
        %v2750 = vunpack.c.h.s8.bf16 %v770
        %v2751 = vunpack.c.h.s8.bf16 %v771
        %v2752 = vunpack.c.l.s8.bf16 %v772
        %v2753 = vunpack.c.l.s8.bf16 %v773
        %v2754 = vunpack.c.l.s8.bf16 %v774
        %v2755 = vunpack.c.l.s8.bf16 %v775
        %v2756 = vunpack.c.l.s8.bf16 %v776
        %v2757 = vunpack.c.l.s8.bf16 %v777
        %v2758 = vunpack.c.l.s8.bf16 %v778
        %v2759 = vunpack.c.l.s8.bf16 %v779
        %v2760 = vunpack.c.l.s8.bf16 %v780
        %v2761 = vunpack.c.l.s8.bf16 %v781
        %v2762 = vunpack.c.h.s8.bf16 %v772
        %v2763 = vunpack.c.h.s8.bf16 %v773
        %v2764 = vunpack.c.h.s8.bf16 %v774
        %v2765 = vunpack.c.h.s8.bf16 %v775
        %v2766 = vunpack.c.h.s8.bf16 %v776
        %v2767 = vunpack.c.h.s8.bf16 %v777
        %v2768 = vunpack.c.h.s8.bf16 %v778
        %v2769 = vunpack.c.h.s8.bf16 %v779
        %v2770 = vunpack.c.h.s8.bf16 %v780
        %v2771 = vunpack.c.h.s8.bf16 %v781
        %v2772 = vunpack.c.l.s8.bf16 %v782
        %v2773 = vunpack.c.l.s8.bf16 %v783
        %v2774 = vunpack.c.l.s8.bf16 %v784
        %v2775 = vunpack.c.l.s8.bf16 %v785
        %v2776 = vunpack.c.l.s8.bf16 %v786
        %v2777 = vunpack.c.l.s8.bf16 %v787
        %v2778 = vunpack.c.l.s8.bf16 %v788
        %v2779 = vunpack.c.l.s8.bf16 %v789
        %v2780 = vunpack.c.l.s8.bf16 %v790
        %v2781 = vunpack.c.l.s8.bf16 %v791
        %v2782 = vunpack.c.h.s8.bf16 %v782
        %v2783 = vunpack.c.h.s8.bf16 %v783
        %v2784 = vunpack.c.h.s8.bf16 %v784
        %v2785 = vunpack.c.h.s8.bf16 %v785
        %v2786 = vunpack.c.h.s8.bf16 %v786
        %v2787 = vunpack.c.h.s8.bf16 %v787
        %v2788 = vunpack.c.h.s8.bf16 %v788
        %v2789 = vunpack.c.h.s8.bf16 %v789
        %v2790 = vunpack.c.h.s8.bf16 %v790
        %v2791 = vunpack.c.h.s8.bf16 %v791
        %v2792 = vunpack.c.l.s8.bf16 %v792
        %v2793 = vunpack.c.l.s8.bf16 %v793
        %v2794 = vunpack.c.l.s8.bf16 %v794
        %v2795 = vunpack.c.l.s8.bf16 %v795
        %v2796 = vunpack.c.l.s8.bf16 %v796
        %v2797 = vunpack.c.l.s8.bf16 %v797
        %v2798 = vunpack.c.l.s8.bf16 %v798
        %v2799 = vunpack.c.l.s8.bf16 %v799
        %v2800 = vunpack.c.l.s8.bf16 %v800
        %v2801 = vunpack.c.l.s8.bf16 %v801
        %v2802 = vunpack.c.h.s8.bf16 %v792
        %v2803 = vunpack.c.h.s8.bf16 %v793
        %v2804 = vunpack.c.h.s8.bf16 %v794
        %v2805 = vunpack.c.h.s8.bf16 %v795
        %v2806 = vunpack.c.h.s8.bf16 %v796
        %v2807 = vunpack.c.h.s8.bf16 %v797
        %v2808 = vunpack.c.h.s8.bf16 %v798
        %v2809 = vunpack.c.h.s8.bf16 %v799
        %v2810 = vunpack.c.h.s8.bf16 %v800
        %v2811 = vunpack.c.h.s8.bf16 %v801
        %v2812 = vunpack.c.l.s8.bf16 %v802
        %v2813 = vunpack.c.l.s8.bf16 %v803
        %v2814 = vunpack.c.l.s8.bf16 %v804
        %v2815 = vunpack.c.l.s8.bf16 %v805
        %v2816 = vunpack.c.l.s8.bf16 %v806
        %v2817 = vunpack.c.l.s8.bf16 %v807
        %v2818 = vunpack.c.l.s8.bf16 %v808
        %v2819 = vunpack.c.l.s8.bf16 %v809
        %v2820 = vunpack.c.l.s8.bf16 %v810
        %v2821 = vunpack.c.l.s8.bf16 %v811
        %v2822 = vunpack.c.h.s8.bf16 %v802
        %v2823 = vunpack.c.h.s8.bf16 %v803
        %v2824 = vunpack.c.h.s8.bf16 %v804
        %v2825 = vunpack.c.h.s8.bf16 %v805
        %v2826 = vunpack.c.h.s8.bf16 %v806
        %v2827 = vunpack.c.h.s8.bf16 %v807
        %v2828 = vunpack.c.h.s8.bf16 %v808
        %v2829 = vunpack.c.h.s8.bf16 %v809
        %v2830 = vunpack.c.h.s8.bf16 %v810
        %v2831 = vunpack.c.h.s8.bf16 %v811
        %v2832 = vunpack.c.l.s8.bf16 %v812
        %v2833 = vunpack.c.l.s8.bf16 %v813
        %v2834 = vunpack.c.l.s8.bf16 %v814
        %v2835 = vunpack.c.l.s8.bf16 %v815
        %v2836 = vunpack.c.l.s8.bf16 %v816
        %v2837 = vunpack.c.l.s8.bf16 %v817
        %v2838 = vunpack.c.l.s8.bf16 %v818
        %v2839 = vunpack.c.l.s8.bf16 %v819
        %v2840 = vunpack.c.l.s8.bf16 %v820
        %v2841 = vunpack.c.l.s8.bf16 %v821
        %v2842 = vunpack.c.h.s8.bf16 %v812
        %v2843 = vunpack.c.h.s8.bf16 %v813
        %v2844 = vunpack.c.h.s8.bf16 %v814
        %v2845 = vunpack.c.h.s8.bf16 %v815
        %v2846 = vunpack.c.h.s8.bf16 %v816
        %v2847 = vunpack.c.h.s8.bf16 %v817
        %v2848 = vunpack.c.h.s8.bf16 %v818
        %v2849 = vunpack.c.h.s8.bf16 %v819
        %v2850 = vunpack.c.h.s8.bf16 %v820
        %v2851 = vunpack.c.h.s8.bf16 %v821
        %v2852 = vunpack.c.l.s8.bf16 %v822
        %v2853 = vunpack.c.l.s8.bf16 %v823
        %v2854 = vunpack.c.l.s8.bf16 %v824
        %v2855 = vunpack.c.l.s8.bf16 %v825
        %v2856 = vunpack.c.l.s8.bf16 %v826
        %v2857 = vunpack.c.l.s8.bf16 %v827
        %v2858 = vunpack.c.l.s8.bf16 %v828
        %v2859 = vunpack.c.l.s8.bf16 %v829
        %v2860 = vunpack.c.l.s8.bf16 %v830
        %v2861 = vunpack.c.l.s8.bf16 %v831
        %v2862 = vunpack.c.h.s8.bf16 %v822
        %v2863 = vunpack.c.h.s8.bf16 %v823
        %v2864 = vunpack.c.h.s8.bf16 %v824
        %v2865 = vunpack.c.h.s8.bf16 %v825
        %v2866 = vunpack.c.h.s8.bf16 %v826
        %v2867 = vunpack.c.h.s8.bf16 %v827
        %v2868 = vunpack.c.h.s8.bf16 %v828
        %v2869 = vunpack.c.h.s8.bf16 %v829
        %v2870 = vunpack.c.h.s8.bf16 %v830
        %v2871 = vunpack.c.h.s8.bf16 %v831
        %v2872 = vunpack.c.l.s8.bf16 %v832
        %v2873 = vunpack.c.l.s8.bf16 %v833
        %v2874 = vunpack.c.l.s8.bf16 %v834
        %v2875 = vunpack.c.l.s8.bf16 %v835
        %v2876 = vunpack.c.l.s8.bf16 %v836
        %v2877 = vunpack.c.l.s8.bf16 %v837
        %v2878 = vunpack.c.l.s8.bf16 %v838
        %v2879 = vunpack.c.l.s8.bf16 %v839
        %v2880 = vunpack.c.l.s8.bf16 %v840
        %v2881 = vunpack.c.l.s8.bf16 %v841
        %v2882 = vunpack.c.h.s8.bf16 %v832
        %v2883 = vunpack.c.h.s8.bf16 %v833
        %v2884 = vunpack.c.h.s8.bf16 %v834
        %v2885 = vunpack.c.h.s8.bf16 %v835
        %v2886 = vunpack.c.h.s8.bf16 %v836
        %v2887 = vunpack.c.h.s8.bf16 %v837
        %v2888 = vunpack.c.h.s8.bf16 %v838
        %v2889 = vunpack.c.h.s8.bf16 %v839
        %v2890 = vunpack.c.h.s8.bf16 %v840
        %v2891 = vunpack.c.h.s8.bf16 %v841
        %v2892 = vunpack.c.l.s8.bf16 %v842
        %v2893 = vunpack.c.l.s8.bf16 %v843
        %v2894 = vunpack.c.l.s8.bf16 %v844
        %v2895 = vunpack.c.l.s8.bf16 %v845
        %v2896 = vunpack.c.l.s8.bf16 %v846
        %v2897 = vunpack.c.l.s8.bf16 %v847
        %v2898 = vunpack.c.l.s8.bf16 %v848
        %v2899 = vunpack.c.l.s8.bf16 %v849
        %v2900 = vunpack.c.l.s8.bf16 %v850
        %v2901 = vunpack.c.l.s8.bf16 %v851
        %v2902 = vunpack.c.h.s8.bf16 %v842
        %v2903 = vunpack.c.h.s8.bf16 %v843
        %v2904 = vunpack.c.h.s8.bf16 %v844
        %v2905 = vunpack.c.h.s8.bf16 %v845
        %v2906 = vunpack.c.h.s8.bf16 %v846
        %v2907 = vunpack.c.h.s8.bf16 %v847
        %v2908 = vunpack.c.h.s8.bf16 %v848
        %v2909 = vunpack.c.h.s8.bf16 %v849
        %v2910 = vunpack.c.h.s8.bf16 %v850
        %v2911 = vunpack.c.h.s8.bf16 %v851
        %v2912 = vunpack.c.l.s8.bf16 %v852
        %v2913 = vunpack.c.l.s8.bf16 %v853
        %v2914 = vunpack.c.l.s8.bf16 %v854
        %v2915 = vunpack.c.l.s8.bf16 %v855
        %v2916 = vunpack.c.l.s8.bf16 %v856
        %v2917 = vunpack.c.l.s8.bf16 %v857
        %v2918 = vunpack.c.l.s8.bf16 %v858
        %v2919 = vunpack.c.l.s8.bf16 %v859
        %v2920 = vunpack.c.l.s8.bf16 %v860
        %v2921 = vunpack.c.l.s8.bf16 %v861
        %v2922 = vunpack.c.h.s8.bf16 %v852
        %v2923 = vunpack.c.h.s8.bf16 %v853
        %v2924 = vunpack.c.h.s8.bf16 %v854
        %v2925 = vunpack.c.h.s8.bf16 %v855
        %v2926 = vunpack.c.h.s8.bf16 %v856
        %v2927 = vunpack.c.h.s8.bf16 %v857
        %v2928 = vunpack.c.h.s8.bf16 %v858
        %v2929 = vunpack.c.h.s8.bf16 %v859
        %v2930 = vunpack.c.h.s8.bf16 %v860
        %v2931 = vunpack.c.h.s8.bf16 %v861
        %v2932 = vunpack.c.l.s8.bf16 %v862
        %v2933 = vunpack.c.l.s8.bf16 %v863
        %v2934 = vunpack.c.l.s8.bf16 %v864
        %v2935 = vunpack.c.l.s8.bf16 %v865
        %v2936 = vunpack.c.l.s8.bf16 %v866
        %v2937 = vunpack.c.l.s8.bf16 %v867
        %v2938 = vunpack.c.l.s8.bf16 %v868
        %v2939 = vunpack.c.l.s8.bf16 %v869
        %v2940 = vunpack.c.l.s8.bf16 %v870
        %v2941 = vunpack.c.l.s8.bf16 %v871
        %v2942 = vunpack.c.h.s8.bf16 %v862
        %v2943 = vunpack.c.h.s8.bf16 %v863
        %v2944 = vunpack.c.h.s8.bf16 %v864
        %v2945 = vunpack.c.h.s8.bf16 %v865
        %v2946 = vunpack.c.h.s8.bf16 %v866
        %v2947 = vunpack.c.h.s8.bf16 %v867
        %v2948 = vunpack.c.h.s8.bf16 %v868
        %v2949 = vunpack.c.h.s8.bf16 %v869
        %v2950 = vunpack.c.h.s8.bf16 %v870
        %v2951 = vunpack.c.h.s8.bf16 %v871
        %v2952 = vunpack.c.l.s8.bf16 %v872
        %v2953 = vunpack.c.l.s8.bf16 %v873
        %v2954 = vunpack.c.l.s8.bf16 %v874
        %v2955 = vunpack.c.l.s8.bf16 %v875
        %v2956 = vunpack.c.l.s8.bf16 %v876
        %v2957 = vunpack.c.l.s8.bf16 %v877
        %v2958 = vunpack.c.l.s8.bf16 %v878
        %v2959 = vunpack.c.l.s8.bf16 %v879
        %v2960 = vunpack.c.l.s8.bf16 %v880
        %v2961 = vunpack.c.l.s8.bf16 %v881
        %v2962 = vunpack.c.h.s8.bf16 %v872
        %v2963 = vunpack.c.h.s8.bf16 %v873
        %v2964 = vunpack.c.h.s8.bf16 %v874
        %v2965 = vunpack.c.h.s8.bf16 %v875
        %v2966 = vunpack.c.h.s8.bf16 %v876
        %v2967 = vunpack.c.h.s8.bf16 %v877
        %v2968 = vunpack.c.h.s8.bf16 %v878
        %v2969 = vunpack.c.h.s8.bf16 %v879
        %v2970 = vunpack.c.h.s8.bf16 %v880
        %v2971 = vunpack.c.h.s8.bf16 %v881
        %v2972 = vunpack.c.l.s8.bf16 %v882
        %v2973 = vunpack.c.l.s8.bf16 %v883
        %v2974 = vunpack.c.l.s8.bf16 %v884
        %v2975 = vunpack.c.l.s8.bf16 %v885
        %v2976 = vunpack.c.l.s8.bf16 %v886
        %v2977 = vunpack.c.l.s8.bf16 %v887
        %v2978 = vunpack.c.l.s8.bf16 %v888
        %v2979 = vunpack.c.l.s8.bf16 %v889
        %v2980 = vunpack.c.l.s8.bf16 %v890
        %v2981 = vunpack.c.l.s8.bf16 %v891
        %v2982 = vunpack.c.h.s8.bf16 %v882
        %v2983 = vunpack.c.h.s8.bf16 %v883
        %v2984 = vunpack.c.h.s8.bf16 %v884
        %v2985 = vunpack.c.h.s8.bf16 %v885
        %v2986 = vunpack.c.h.s8.bf16 %v886
        %v2987 = vunpack.c.h.s8.bf16 %v887
        %v2988 = vunpack.c.h.s8.bf16 %v888
        %v2989 = vunpack.c.h.s8.bf16 %v889
        %v2990 = vunpack.c.h.s8.bf16 %v890
        %v2991 = vunpack.c.h.s8.bf16 %v891
        %v2992 = vunpack.c.l.s8.bf16 %v892
        %v2993 = vunpack.c.l.s8.bf16 %v893
        %v2994 = vunpack.c.l.s8.bf16 %v894
        %v2995 = vunpack.c.l.s8.bf16 %v895
        %v2996 = vunpack.c.l.s8.bf16 %v896
        %v2997 = vunpack.c.l.s8.bf16 %v897
        %v2998 = vunpack.c.l.s8.bf16 %v898
        %v2999 = vunpack.c.l.s8.bf16 %v899
        %v3000 = vunpack.c.l.s8.bf16 %v900
        %v3001 = vunpack.c.l.s8.bf16 %v901
        %v3002 = vunpack.c.h.s8.bf16 %v892
        %v3003 = vunpack.c.h.s8.bf16 %v893
        %v3004 = vunpack.c.h.s8.bf16 %v894
        %v3005 = vunpack.c.h.s8.bf16 %v895
        %v3006 = vunpack.c.h.s8.bf16 %v896
        %v3007 = vunpack.c.h.s8.bf16 %v897
        %v3008 = vunpack.c.h.s8.bf16 %v898
        %v3009 = vunpack.c.h.s8.bf16 %v899
        %v3010 = vunpack.c.h.s8.bf16 %v900
        %v3011 = vunpack.c.h.s8.bf16 %v901
        %v3012 = vunpack.c.l.s8.bf16 %v902
        %v3013 = vunpack.c.l.s8.bf16 %v903
        %v3014 = vunpack.c.l.s8.bf16 %v904
        %v3015 = vunpack.c.l.s8.bf16 %v905
        %v3016 = vunpack.c.l.s8.bf16 %v906
        %v3017 = vunpack.c.l.s8.bf16 %v907
        %v3018 = vunpack.c.l.s8.bf16 %v908
        %v3019 = vunpack.c.l.s8.bf16 %v909
        %v3020 = vunpack.c.l.s8.bf16 %v910
        %v3021 = vunpack.c.l.s8.bf16 %v911
        %v3022 = vunpack.c.h.s8.bf16 %v902
        %v3023 = vunpack.c.h.s8.bf16 %v903
        %v3024 = vunpack.c.h.s8.bf16 %v904
        %v3025 = vunpack.c.h.s8.bf16 %v905
        %v3026 = vunpack.c.h.s8.bf16 %v906
        %v3027 = vunpack.c.h.s8.bf16 %v907
        %v3028 = vunpack.c.h.s8.bf16 %v908
        %v3029 = vunpack.c.h.s8.bf16 %v909
        %v3030 = vunpack.c.h.s8.bf16 %v910
        %v3031 = vunpack.c.h.s8.bf16 %v911
        %v3032 = vunpack.c.l.s8.bf16 %v912
        %v3033 = vunpack.c.l.s8.bf16 %v913
        %v3034 = vunpack.c.l.s8.bf16 %v914
        %v3035 = vunpack.c.l.s8.bf16 %v915
        %v3036 = vunpack.c.l.s8.bf16 %v916
        %v3037 = vunpack.c.l.s8.bf16 %v917
        %v3038 = vunpack.c.l.s8.bf16 %v918
        %v3039 = vunpack.c.l.s8.bf16 %v919
        %v3040 = vunpack.c.l.s8.bf16 %v920
        %v3041 = vunpack.c.l.s8.bf16 %v921
        %v3042 = vunpack.c.h.s8.bf16 %v912
        %v3043 = vunpack.c.h.s8.bf16 %v913
        %v3044 = vunpack.c.h.s8.bf16 %v914
        %v3045 = vunpack.c.h.s8.bf16 %v915
        %v3046 = vunpack.c.h.s8.bf16 %v916
        %v3047 = vunpack.c.h.s8.bf16 %v917
        %v3048 = vunpack.c.h.s8.bf16 %v918
        %v3049 = vunpack.c.h.s8.bf16 %v919
        %v3050 = vunpack.c.h.s8.bf16 %v920
        %v3051 = vunpack.c.h.s8.bf16 %v921
        %v3052 = vunpack.c.l.s8.bf16 %v922
        %v3053 = vunpack.c.l.s8.bf16 %v923
        %v3054 = vunpack.c.l.s8.bf16 %v924
        %v3055 = vunpack.c.l.s8.bf16 %v925
        %v3056 = vunpack.c.l.s8.bf16 %v926
        %v3057 = vunpack.c.l.s8.bf16 %v927
        %v3058 = vunpack.c.l.s8.bf16 %v928
        %v3059 = vunpack.c.l.s8.bf16 %v929
        %v3060 = vunpack.c.l.s8.bf16 %v930
        %v3061 = vunpack.c.l.s8.bf16 %v931
        %v3062 = vunpack.c.h.s8.bf16 %v922
        %v3063 = vunpack.c.h.s8.bf16 %v923
        %v3064 = vunpack.c.h.s8.bf16 %v924
        %v3065 = vunpack.c.h.s8.bf16 %v925
        %v3066 = vunpack.c.h.s8.bf16 %v926
        %v3067 = vunpack.c.h.s8.bf16 %v927
        %v3068 = vunpack.c.h.s8.bf16 %v928
        %v3069 = vunpack.c.h.s8.bf16 %v929
        %v3070 = vunpack.c.h.s8.bf16 %v930
        %v3071 = vunpack.c.h.s8.bf16 %v931
        %v3072 = vunpack.c.l.s8.bf16 %v932
        %v3073 = vunpack.c.l.s8.bf16 %v933
        %v3074 = vunpack.c.l.s8.bf16 %v934
        %v3075 = vunpack.c.l.s8.bf16 %v935
        %v3076 = vunpack.c.l.s8.bf16 %v936
        %v3077 = vunpack.c.l.s8.bf16 %v937
        %v3078 = vunpack.c.l.s8.bf16 %v938
        %v3079 = vunpack.c.l.s8.bf16 %v939
        %v3080 = vunpack.c.l.s8.bf16 %v940
        %v3081 = vunpack.c.l.s8.bf16 %v941
        %v3082 = vunpack.c.h.s8.bf16 %v932
        %v3083 = vunpack.c.h.s8.bf16 %v933
        %v3084 = vunpack.c.h.s8.bf16 %v934
        %v3085 = vunpack.c.h.s8.bf16 %v935
        %v3086 = vunpack.c.h.s8.bf16 %v936
        %v3087 = vunpack.c.h.s8.bf16 %v937
        %v3088 = vunpack.c.h.s8.bf16 %v938
        %v3089 = vunpack.c.h.s8.bf16 %v939
        %v3090 = vunpack.c.h.s8.bf16 %v940
        %v3091 = vunpack.c.h.s8.bf16 %v941
        %v3092 = vunpack.c.l.s8.bf16 %v942
        %v3093 = vunpack.c.l.s8.bf16 %v943
        %v3094 = vunpack.c.l.s8.bf16 %v944
        %v3095 = vunpack.c.l.s8.bf16 %v945
        %v3096 = vunpack.c.l.s8.bf16 %v946
        %v3097 = vunpack.c.l.s8.bf16 %v947
        %v3098 = vunpack.c.l.s8.bf16 %v948
        %v3099 = vunpack.c.l.s8.bf16 %v949
        %v3100 = vunpack.c.l.s8.bf16 %v950
        %v3101 = vunpack.c.l.s8.bf16 %v951
        %v3102 = vunpack.c.h.s8.bf16 %v942
        %v3103 = vunpack.c.h.s8.bf16 %v943
        %v3104 = vunpack.c.h.s8.bf16 %v944
        %v3105 = vunpack.c.h.s8.bf16 %v945
        %v3106 = vunpack.c.h.s8.bf16 %v946
        %v3107 = vunpack.c.h.s8.bf16 %v947
        %v3108 = vunpack.c.h.s8.bf16 %v948
        %v3109 = vunpack.c.h.s8.bf16 %v949
        %v3110 = vunpack.c.h.s8.bf16 %v950
        %v3111 = vunpack.c.h.s8.bf16 %v951
        %v3112 = vunpack.c.l.s8.bf16 %v952
        %v3113 = vunpack.c.l.s8.bf16 %v953
        %v3114 = vunpack.c.l.s8.bf16 %v954
        %v3115 = vunpack.c.l.s8.bf16 %v955
        %v3116 = vunpack.c.l.s8.bf16 %v956
        %v3117 = vunpack.c.l.s8.bf16 %v957
        %v3118 = vunpack.c.l.s8.bf16 %v958
        %v3119 = vunpack.c.l.s8.bf16 %v959
        %v3120 = vunpack.c.l.s8.bf16 %v960
        %v3121 = vunpack.c.l.s8.bf16 %v961
        %v3122 = vunpack.c.h.s8.bf16 %v952
        %v3123 = vunpack.c.h.s8.bf16 %v953
        %v3124 = vunpack.c.h.s8.bf16 %v954
        %v3125 = vunpack.c.h.s8.bf16 %v955
        %v3126 = vunpack.c.h.s8.bf16 %v956
        %v3127 = vunpack.c.h.s8.bf16 %v957
        %v3128 = vunpack.c.h.s8.bf16 %v958
        %v3129 = vunpack.c.h.s8.bf16 %v959
        %v3130 = vunpack.c.h.s8.bf16 %v960
        %v3131 = vunpack.c.h.s8.bf16 %v961
        %v3132 = vunpack.c.l.s8.bf16 %v962
        %v3133 = vunpack.c.l.s8.bf16 %v963
        %v3134 = vunpack.c.l.s8.bf16 %v964
        %v3135 = vunpack.c.l.s8.bf16 %v965
        %v3136 = vunpack.c.l.s8.bf16 %v966
        %v3137 = vunpack.c.l.s8.bf16 %v967
        %v3138 = vunpack.c.l.s8.bf16 %v968
        %v3139 = vunpack.c.l.s8.bf16 %v969
        %v3140 = vunpack.c.l.s8.bf16 %v970
        %v3141 = vunpack.c.l.s8.bf16 %v971
        %v3142 = vunpack.c.h.s8.bf16 %v962
        %v3143 = vunpack.c.h.s8.bf16 %v963
        %v3144 = vunpack.c.h.s8.bf16 %v964
        %v3145 = vunpack.c.h.s8.bf16 %v965
        %v3146 = vunpack.c.h.s8.bf16 %v966
        %v3147 = vunpack.c.h.s8.bf16 %v967
        %v3148 = vunpack.c.h.s8.bf16 %v968
        %v3149 = vunpack.c.h.s8.bf16 %v969
        %v3150 = vunpack.c.h.s8.bf16 %v970
        %v3151 = vunpack.c.h.s8.bf16 %v971
        %v3152 = vunpack.c.l.s8.bf16 %v972
        %v3153 = vunpack.c.l.s8.bf16 %v973
        %v3154 = vunpack.c.l.s8.bf16 %v974
        %v3155 = vunpack.c.l.s8.bf16 %v975
        %v3156 = vunpack.c.l.s8.bf16 %v976
        %v3157 = vunpack.c.l.s8.bf16 %v977
        %v3158 = vunpack.c.l.s8.bf16 %v978
        %v3159 = vunpack.c.l.s8.bf16 %v979
        %v3160 = vunpack.c.l.s8.bf16 %v980
        %v3161 = vunpack.c.l.s8.bf16 %v981
        %v3162 = vunpack.c.h.s8.bf16 %v972
        %v3163 = vunpack.c.h.s8.bf16 %v973
        %v3164 = vunpack.c.h.s8.bf16 %v974
        %v3165 = vunpack.c.h.s8.bf16 %v975
        %v3166 = vunpack.c.h.s8.bf16 %v976
        %v3167 = vunpack.c.h.s8.bf16 %v977
        %v3168 = vunpack.c.h.s8.bf16 %v978
        %v3169 = vunpack.c.h.s8.bf16 %v979
        %v3170 = vunpack.c.h.s8.bf16 %v980
        %v3171 = vunpack.c.h.s8.bf16 %v981
        %v3172 = vunpack.c.l.s8.bf16 %v982
        %v3173 = vunpack.c.l.s8.bf16 %v983
        %v3174 = vunpack.c.l.s8.bf16 %v984
        %v3175 = vunpack.c.l.s8.bf16 %v985
        %v3176 = vunpack.c.l.s8.bf16 %v986
        %v3177 = vunpack.c.l.s8.bf16 %v987
        %v3178 = vunpack.c.l.s8.bf16 %v988
        %v3179 = vunpack.c.l.s8.bf16 %v989
        %v3180 = vunpack.c.l.s8.bf16 %v990
        %v3181 = vunpack.c.l.s8.bf16 %v991
        %v3182 = vunpack.c.h.s8.bf16 %v982
        %v3183 = vunpack.c.h.s8.bf16 %v983
        %v3184 = vunpack.c.h.s8.bf16 %v984
        %v3185 = vunpack.c.h.s8.bf16 %v985
        %v3186 = vunpack.c.h.s8.bf16 %v986
        %v3187 = vunpack.c.h.s8.bf16 %v987
        %v3188 = vunpack.c.h.s8.bf16 %v988
        %v3189 = vunpack.c.h.s8.bf16 %v989
        %v3190 = vunpack.c.h.s8.bf16 %v990
        %v3191 = vunpack.c.h.s8.bf16 %v991
        %v3192 = vunpack.c.l.s8.bf16 %v992
        %v3193 = vunpack.c.l.s8.bf16 %v993
        %v3194 = vunpack.c.l.s8.bf16 %v994
        %v3195 = vunpack.c.l.s8.bf16 %v995
        %v3196 = vunpack.c.l.s8.bf16 %v996
        %v3197 = vunpack.c.l.s8.bf16 %v997
        %v3198 = vunpack.c.l.s8.bf16 %v998
        %v3199 = vunpack.c.l.s8.bf16 %v999
        %v3200 = vunpack.c.l.s8.bf16 %v1000
        %v3201 = vunpack.c.l.s8.bf16 %v1001
        %v3202 = vunpack.c.h.s8.bf16 %v992
        %v3203 = vunpack.c.h.s8.bf16 %v993
        %v3204 = vunpack.c.h.s8.bf16 %v994
        %v3205 = vunpack.c.h.s8.bf16 %v995
        %v3206 = vunpack.c.h.s8.bf16 %v996
        %v3207 = vunpack.c.h.s8.bf16 %v997
        %v3208 = vunpack.c.h.s8.bf16 %v998
        %v3209 = vunpack.c.h.s8.bf16 %v999
        %v3210 = vunpack.c.h.s8.bf16 %v1000
        %v3211 = vunpack.c.h.s8.bf16 %v1001
        %v3212 = vunpack.c.l.s8.bf16 %v1002
        %v3213 = vunpack.c.l.s8.bf16 %v1003
        %v3214 = vunpack.c.l.s8.bf16 %v1004
        %v3215 = vunpack.c.l.s8.bf16 %v1005
        %v3216 = vunpack.c.l.s8.bf16 %v1006
        %v3217 = vunpack.c.l.s8.bf16 %v1007
        %v3218 = vunpack.c.l.s8.bf16 %v1008
        %v3219 = vunpack.c.l.s8.bf16 %v1009
        %v3220 = vunpack.c.l.s8.bf16 %v1010
        %v3221 = vunpack.c.l.s8.bf16 %v1011
        %v3222 = vunpack.c.h.s8.bf16 %v1002
        %v3223 = vunpack.c.h.s8.bf16 %v1003
        %v3224 = vunpack.c.h.s8.bf16 %v1004
        %v3225 = vunpack.c.h.s8.bf16 %v1005
        %v3226 = vunpack.c.h.s8.bf16 %v1006
        %v3227 = vunpack.c.h.s8.bf16 %v1007
        %v3228 = vunpack.c.h.s8.bf16 %v1008
        %v3229 = vunpack.c.h.s8.bf16 %v1009
        %v3230 = vunpack.c.h.s8.bf16 %v1010
        %v3231 = vunpack.c.h.s8.bf16 %v1011
        %v3232 = vunpack.c.l.s8.bf16 %v1012
        %v3233 = vunpack.c.l.s8.bf16 %v1013
        %v3234 = vunpack.c.l.s8.bf16 %v1014
        %v3235 = vunpack.c.l.s8.bf16 %v1015
        %v3236 = vunpack.c.l.s8.bf16 %v1016
        %v3237 = vunpack.c.l.s8.bf16 %v1017
        %v3238 = vunpack.c.l.s8.bf16 %v1018
        %v3239 = vunpack.c.l.s8.bf16 %v1019
        %v3240 = vunpack.c.l.s8.bf16 %v1020
        %v3241 = vunpack.c.l.s8.bf16 %v1021
        %v3242 = vunpack.c.h.s8.bf16 %v1012
        %v3243 = vunpack.c.h.s8.bf16 %v1013
        %v3244 = vunpack.c.h.s8.bf16 %v1014
        %v3245 = vunpack.c.h.s8.bf16 %v1015
        %v3246 = vunpack.c.h.s8.bf16 %v1016
        %v3247 = vunpack.c.h.s8.bf16 %v1017
        %v3248 = vunpack.c.h.s8.bf16 %v1018
        %v3249 = vunpack.c.h.s8.bf16 %v1019
        %v3250 = vunpack.c.h.s8.bf16 %v1020
        %v3251 = vunpack.c.h.s8.bf16 %v1021
        %v3252 = vunpack.c.l.s8.bf16 %v1022
        %v3253 = vunpack.c.l.s8.bf16 %v1023
        %v3254 = vunpack.c.l.s8.bf16 %v1024
        %v3255 = vunpack.c.l.s8.bf16 %v1025
        %v3256 = vunpack.c.l.s8.bf16 %v1026
        %v3257 = vunpack.c.l.s8.bf16 %v1027
        %v3258 = vunpack.c.l.s8.bf16 %v1028
        %v3259 = vunpack.c.l.s8.bf16 %v1029
        %v3260 = vunpack.c.l.s8.bf16 %v1030
        %v3261 = vunpack.c.l.s8.bf16 %v1031
        %v3262 = vunpack.c.h.s8.bf16 %v1022
        %v3263 = vunpack.c.h.s8.bf16 %v1023
        %v3264 = vunpack.c.h.s8.bf16 %v1024
        %v3265 = vunpack.c.h.s8.bf16 %v1025
        %v3266 = vunpack.c.h.s8.bf16 %v1026
        %v3267 = vunpack.c.h.s8.bf16 %v1027
        %v3268 = vunpack.c.h.s8.bf16 %v1028
        %v3269 = vunpack.c.h.s8.bf16 %v1029
        %v3270 = vunpack.c.h.s8.bf16 %v1030
        %v3271 = vunpack.c.h.s8.bf16 %v1031
        %v3272 = vunpack.c.l.s8.bf16 %v1032
        %v3273 = vunpack.c.l.s8.bf16 %v1033
        %v3274 = vunpack.c.l.s8.bf16 %v1034
        %v3275 = vunpack.c.l.s8.bf16 %v1035
        %v3276 = vunpack.c.l.s8.bf16 %v1036
        %v3277 = vunpack.c.l.s8.bf16 %v1037
        %v3278 = vunpack.c.l.s8.bf16 %v1038
        %v3279 = vunpack.c.l.s8.bf16 %v1039
        %v3280 = vunpack.c.l.s8.bf16 %v1040
        %v3281 = vunpack.c.l.s8.bf16 %v1041
        %v3282 = vunpack.c.h.s8.bf16 %v1032
        %v3283 = vunpack.c.h.s8.bf16 %v1033
        %v3284 = vunpack.c.h.s8.bf16 %v1034
        %v3285 = vunpack.c.h.s8.bf16 %v1035
        %v3286 = vunpack.c.h.s8.bf16 %v1036
        %v3287 = vunpack.c.h.s8.bf16 %v1037
        %v3288 = vunpack.c.h.s8.bf16 %v1038
        %v3289 = vunpack.c.h.s8.bf16 %v1039
        %v3290 = vunpack.c.h.s8.bf16 %v1040
        %v3291 = vunpack.c.h.s8.bf16 %v1041
        %v3292 = vunpack.c.l.s8.bf16 %v1042
        %v3293 = vunpack.c.l.s8.bf16 %v1043
        %v3294 = vunpack.c.l.s8.bf16 %v1044
        %v3295 = vunpack.c.l.s8.bf16 %v1045
        %v3296 = vunpack.c.l.s8.bf16 %v1046
        %v3297 = vunpack.c.l.s8.bf16 %v1047
        %v3298 = vunpack.c.l.s8.bf16 %v1048
        %v3299 = vunpack.c.l.s8.bf16 %v1049
        %v3300 = vunpack.c.l.s8.bf16 %v1050
        %v3301 = vunpack.c.l.s8.bf16 %v1051
        %v3302 = vunpack.c.h.s8.bf16 %v1042
        %v3303 = vunpack.c.h.s8.bf16 %v1043
        %v3304 = vunpack.c.h.s8.bf16 %v1044
        %v3305 = vunpack.c.h.s8.bf16 %v1045
        %v3306 = vunpack.c.h.s8.bf16 %v1046
        %v3307 = vunpack.c.h.s8.bf16 %v1047
        %v3308 = vunpack.c.h.s8.bf16 %v1048
        %v3309 = vunpack.c.h.s8.bf16 %v1049
        %v3310 = vunpack.c.h.s8.bf16 %v1050
        %v3311 = vunpack.c.h.s8.bf16 %v1051
        %v3312 = vunpack.c.l.s8.bf16 %v1052
        %v3313 = vunpack.c.l.s8.bf16 %v1053
        %v3314 = vunpack.c.l.s8.bf16 %v1054
        %v3315 = vunpack.c.l.s8.bf16 %v1055
        %v3316 = vunpack.c.l.s8.bf16 %v1056
        %v3317 = vunpack.c.l.s8.bf16 %v1057
        %v3318 = vunpack.c.l.s8.bf16 %v1058
        %v3319 = vunpack.c.l.s8.bf16 %v1059
        %v3320 = vunpack.c.l.s8.bf16 %v1060
        %v3321 = vunpack.c.l.s8.bf16 %v1061
        %v3322 = vunpack.c.h.s8.bf16 %v1052
        %v3323 = vunpack.c.h.s8.bf16 %v1053
        %v3324 = vunpack.c.h.s8.bf16 %v1054
        %v3325 = vunpack.c.h.s8.bf16 %v1055
        %v3326 = vunpack.c.h.s8.bf16 %v1056
        %v3327 = vunpack.c.h.s8.bf16 %v1057
        %v3328 = vunpack.c.h.s8.bf16 %v1058
        %v3329 = vunpack.c.h.s8.bf16 %v1059
        %v3330 = vunpack.c.h.s8.bf16 %v1060
        %v3331 = vunpack.c.h.s8.bf16 %v1061
        %v3332 = vunpack.c.l.s8.bf16 %v1062
        %v3333 = vunpack.c.l.s8.bf16 %v1063
        %v3334 = vunpack.c.l.s8.bf16 %v1064
        %v3335 = vunpack.c.l.s8.bf16 %v1065
        %v3336 = vunpack.c.l.s8.bf16 %v1066
        %v3337 = vunpack.c.l.s8.bf16 %v1067
        %v3338 = vunpack.c.l.s8.bf16 %v1068
        %v3339 = vunpack.c.l.s8.bf16 %v1069
        %v3340 = vunpack.c.l.s8.bf16 %v1070
        %v3341 = vunpack.c.l.s8.bf16 %v1071
        %v3342 = vunpack.c.h.s8.bf16 %v1062
        %v3343 = vunpack.c.h.s8.bf16 %v1063
        %v3344 = vunpack.c.h.s8.bf16 %v1064
        %v3345 = vunpack.c.h.s8.bf16 %v1065
        %v3346 = vunpack.c.h.s8.bf16 %v1066
        %v3347 = vunpack.c.h.s8.bf16 %v1067
        %v3348 = vunpack.c.h.s8.bf16 %v1068
        %v3349 = vunpack.c.h.s8.bf16 %v1069
        %v3350 = vunpack.c.h.s8.bf16 %v1070
        %v3351 = vunpack.c.h.s8.bf16 %v1071
        %v3352 = vunpack.c.l.s8.bf16 %v1072
        %v3353 = vunpack.c.l.s8.bf16 %v1073
        %v3354 = vunpack.c.l.s8.bf16 %v1074
        %v3355 = vunpack.c.l.s8.bf16 %v1075
        %v3356 = vunpack.c.l.s8.bf16 %v1076
        %v3357 = vunpack.c.l.s8.bf16 %v1077
        %v3358 = vunpack.c.l.s8.bf16 %v1078
        %v3359 = vunpack.c.l.s8.bf16 %v1079
        %v3360 = vunpack.c.l.s8.bf16 %v1080
        %v3361 = vunpack.c.l.s8.bf16 %v1081
        %v3362 = vunpack.c.h.s8.bf16 %v1072
        %v3363 = vunpack.c.h.s8.bf16 %v1073
        %v3364 = vunpack.c.h.s8.bf16 %v1074
        %v3365 = vunpack.c.h.s8.bf16 %v1075
        %v3366 = vunpack.c.h.s8.bf16 %v1076
        %v3367 = vunpack.c.h.s8.bf16 %v1077
        %v3368 = vunpack.c.h.s8.bf16 %v1078
        %v3369 = vunpack.c.h.s8.bf16 %v1079
        %v3370 = vunpack.c.h.s8.bf16 %v1080
        %v3371 = vunpack.c.h.s8.bf16 %v1081
        %v3372 = vunpack.c.l.s8.bf16 %v1082
        %v3373 = vunpack.c.l.s8.bf16 %v1083
        %v3374 = vunpack.c.l.s8.bf16 %v1084
        %v3375 = vunpack.c.l.s8.bf16 %v1085
        %v3376 = vunpack.c.l.s8.bf16 %v1086
        %v3377 = vunpack.c.l.s8.bf16 %v1087
        %v3378 = vunpack.c.l.s8.bf16 %v1088
        %v3379 = vunpack.c.l.s8.bf16 %v1089
        %v3380 = vunpack.c.l.s8.bf16 %v1090
        %v3381 = vunpack.c.l.s8.bf16 %v1091
        %v3382 = vunpack.c.h.s8.bf16 %v1082
        %v3383 = vunpack.c.h.s8.bf16 %v1083
        %v3384 = vunpack.c.h.s8.bf16 %v1084
        %v3385 = vunpack.c.h.s8.bf16 %v1085
        %v3386 = vunpack.c.h.s8.bf16 %v1086
        %v3387 = vunpack.c.h.s8.bf16 %v1087
        %v3388 = vunpack.c.h.s8.bf16 %v1088
        %v3389 = vunpack.c.h.s8.bf16 %v1089
        %v3390 = vunpack.c.h.s8.bf16 %v1090
        %v3391 = vunpack.c.h.s8.bf16 %v1091
        %v3392 = vunpack.c.l.s8.bf16 %v1092
        %v3393 = vunpack.c.l.s8.bf16 %v1093
        %v3394 = vunpack.c.l.s8.bf16 %v1094
        %v3395 = vunpack.c.l.s8.bf16 %v1095
        %v3396 = vunpack.c.l.s8.bf16 %v1096
        %v3397 = vunpack.c.l.s8.bf16 %v1097
        %v3398 = vunpack.c.l.s8.bf16 %v1098
        %v3399 = vunpack.c.l.s8.bf16 %v1099
        %v3400 = vunpack.c.l.s8.bf16 %v1100
        %v3401 = vunpack.c.l.s8.bf16 %v1101
        %v3402 = vunpack.c.h.s8.bf16 %v1092
        %v3403 = vunpack.c.h.s8.bf16 %v1093
        %v3404 = vunpack.c.h.s8.bf16 %v1094
        %v3405 = vunpack.c.h.s8.bf16 %v1095
        %v3406 = vunpack.c.h.s8.bf16 %v1096
        %v3407 = vunpack.c.h.s8.bf16 %v1097
        %v3408 = vunpack.c.h.s8.bf16 %v1098
        %v3409 = vunpack.c.h.s8.bf16 %v1099
        %v3410 = vunpack.c.h.s8.bf16 %v1100
        %v3411 = vunpack.c.h.s8.bf16 %v1101
        %v3412 = vunpack.c.l.s8.bf16 %v1102
        %v3413 = vunpack.c.l.s8.bf16 %v1103
        %v3414 = vunpack.c.l.s8.bf16 %v1104
        %v3415 = vunpack.c.l.s8.bf16 %v1105
        %v3416 = vunpack.c.l.s8.bf16 %v1106
        %v3417 = vunpack.c.l.s8.bf16 %v1107
        %v3418 = vunpack.c.l.s8.bf16 %v1108
        %v3419 = vunpack.c.l.s8.bf16 %v1109
        %v3420 = vunpack.c.l.s8.bf16 %v1110
        %v3421 = vunpack.c.l.s8.bf16 %v1111
        %v3422 = vunpack.c.h.s8.bf16 %v1102
        %v3423 = vunpack.c.h.s8.bf16 %v1103
        %v3424 = vunpack.c.h.s8.bf16 %v1104
        %v3425 = vunpack.c.h.s8.bf16 %v1105
        %v3426 = vunpack.c.h.s8.bf16 %v1106
        %v3427 = vunpack.c.h.s8.bf16 %v1107
        %v3428 = vunpack.c.h.s8.bf16 %v1108
        %v3429 = vunpack.c.h.s8.bf16 %v1109
        %v3430 = vunpack.c.h.s8.bf16 %v1110
        %v3431 = vunpack.c.h.s8.bf16 %v1111
        %v3432 = vunpack.c.l.s8.bf16 %v1112
        %v3433 = vunpack.c.l.s8.bf16 %v1113
        %v3434 = vunpack.c.l.s8.bf16 %v1114
        %v3435 = vunpack.c.l.s8.bf16 %v1115
        %v3436 = vunpack.c.l.s8.bf16 %v1116
        %v3437 = vunpack.c.l.s8.bf16 %v1117
        %v3438 = vunpack.c.l.s8.bf16 %v1118
        %v3439 = vunpack.c.l.s8.bf16 %v1119
        %v3440 = vunpack.c.l.s8.bf16 %v1120
        %v3441 = vunpack.c.l.s8.bf16 %v1121
        %v3442 = vunpack.c.h.s8.bf16 %v1112
        %v3443 = vunpack.c.h.s8.bf16 %v1113
        %v3444 = vunpack.c.h.s8.bf16 %v1114
        %v3445 = vunpack.c.h.s8.bf16 %v1115
        %v3446 = vunpack.c.h.s8.bf16 %v1116
        %v3447 = vunpack.c.h.s8.bf16 %v1117
        %v3448 = vunpack.c.h.s8.bf16 %v1118
        %v3449 = vunpack.c.h.s8.bf16 %v1119
        %v3450 = vunpack.c.h.s8.bf16 %v1120
        %v3451 = vunpack.c.h.s8.bf16 %v1121
        %v3452 = vunpack.c.l.s8.bf16 %v1122
        %v3453 = vunpack.c.l.s8.bf16 %v1123
        %v3454 = vunpack.c.l.s8.bf16 %v1124
        %v3455 = vunpack.c.l.s8.bf16 %v1125
        %v3456 = vunpack.c.l.s8.bf16 %v1126
        %v3457 = vunpack.c.l.s8.bf16 %v1127
        %v3458 = vunpack.c.l.s8.bf16 %v1128
        %v3459 = vunpack.c.l.s8.bf16 %v1129
        %v3460 = vunpack.c.l.s8.bf16 %v1130
        %v3461 = vunpack.c.l.s8.bf16 %v1131
        %v3462 = vunpack.c.h.s8.bf16 %v1122
        %v3463 = vunpack.c.h.s8.bf16 %v1123
        %v3464 = vunpack.c.h.s8.bf16 %v1124
        %v3465 = vunpack.c.h.s8.bf16 %v1125
        %v3466 = vunpack.c.h.s8.bf16 %v1126
        %v3467 = vunpack.c.h.s8.bf16 %v1127
        %v3468 = vunpack.c.h.s8.bf16 %v1128
        %v3469 = vunpack.c.h.s8.bf16 %v1129
        %v3470 = vunpack.c.h.s8.bf16 %v1130
        %v3471 = vunpack.c.h.s8.bf16 %v1131
        %v3472 = vunpack.c.l.s8.bf16 %v1132
        %v3473 = vunpack.c.l.s8.bf16 %v1133
        %v3474 = vunpack.c.l.s8.bf16 %v1134
        %v3475 = vunpack.c.l.s8.bf16 %v1135
        %v3476 = vunpack.c.l.s8.bf16 %v1136
        %v3477 = vunpack.c.l.s8.bf16 %v1137
        %v3478 = vunpack.c.l.s8.bf16 %v1138
        %v3479 = vunpack.c.l.s8.bf16 %v1139
        %v3480 = vunpack.c.l.s8.bf16 %v1140
        %v3481 = vunpack.c.l.s8.bf16 %v1141
        %v3482 = vunpack.c.h.s8.bf16 %v1132
        %v3483 = vunpack.c.h.s8.bf16 %v1133
        %v3484 = vunpack.c.h.s8.bf16 %v1134
        %v3485 = vunpack.c.h.s8.bf16 %v1135
        %v3486 = vunpack.c.h.s8.bf16 %v1136
        %v3487 = vunpack.c.h.s8.bf16 %v1137
        %v3488 = vunpack.c.h.s8.bf16 %v1138
        %v3489 = vunpack.c.h.s8.bf16 %v1139
        %v3490 = vunpack.c.h.s8.bf16 %v1140
        %v3491 = vunpack.c.h.s8.bf16 %v1141
        %v3492 = vunpack.c.l.s8.bf16 %v1142
        %v3493 = vunpack.c.l.s8.bf16 %v1143
        %v3494 = vunpack.c.l.s8.bf16 %v1144
        %v3495 = vunpack.c.l.s8.bf16 %v1145
        %v3496 = vunpack.c.l.s8.bf16 %v1146
        %v3497 = vunpack.c.l.s8.bf16 %v1147
        %v3498 = vunpack.c.l.s8.bf16 %v1148
        %v3499 = vunpack.c.l.s8.bf16 %v1149
        %v3500 = vunpack.c.l.s8.bf16 %v1150
        %v3501 = vunpack.c.l.s8.bf16 %v1151
        %v3502 = vunpack.c.h.s8.bf16 %v1142
        %v3503 = vunpack.c.h.s8.bf16 %v1143
        %v3504 = vunpack.c.h.s8.bf16 %v1144
        %v3505 = vunpack.c.h.s8.bf16 %v1145
        %v3506 = vunpack.c.h.s8.bf16 %v1146
        %v3507 = vunpack.c.h.s8.bf16 %v1147
        %v3508 = vunpack.c.h.s8.bf16 %v1148
        %v3509 = vunpack.c.h.s8.bf16 %v1149
        %v3510 = vunpack.c.h.s8.bf16 %v1150
        %v3511 = vunpack.c.h.s8.bf16 %v1151
        %v3512 = vunpack.c.l.s8.bf16 %v1152
        %v3513 = vunpack.c.l.s8.bf16 %v1153
        %v3514 = vunpack.c.l.s8.bf16 %v1154
        %v3515 = vunpack.c.l.s8.bf16 %v1155
        %v3516 = vunpack.c.l.s8.bf16 %v1156
        %v3517 = vunpack.c.l.s8.bf16 %v1157
        %v3518 = vunpack.c.l.s8.bf16 %v1158
        %v3519 = vunpack.c.l.s8.bf16 %v1159
        %v3520 = vunpack.c.l.s8.bf16 %v1160
        %v3521 = vunpack.c.l.s8.bf16 %v1161
        %v3522 = vunpack.c.h.s8.bf16 %v1152
        %v3523 = vunpack.c.h.s8.bf16 %v1153
        %v3524 = vunpack.c.h.s8.bf16 %v1154
        %v3525 = vunpack.c.h.s8.bf16 %v1155
        %v3526 = vunpack.c.h.s8.bf16 %v1156
        %v3527 = vunpack.c.h.s8.bf16 %v1157
        %v3528 = vunpack.c.h.s8.bf16 %v1158
        %v3529 = vunpack.c.h.s8.bf16 %v1159
        %v3530 = vunpack.c.h.s8.bf16 %v1160
        %v3531 = vunpack.c.h.s8.bf16 %v1161
        %v3532 = vunpack.c.l.s8.bf16 %v1162
        %v3533 = vunpack.c.l.s8.bf16 %v1163
        %v3534 = vunpack.c.l.s8.bf16 %v1164
        %v3535 = vunpack.c.l.s8.bf16 %v1165
        %v3536 = vunpack.c.l.s8.bf16 %v1166
        %v3537 = vunpack.c.l.s8.bf16 %v1167
        %v3538 = vunpack.c.l.s8.bf16 %v1168
        %v3539 = vunpack.c.l.s8.bf16 %v1169
        %v3540 = vunpack.c.l.s8.bf16 %v1170
        %v3541 = vunpack.c.l.s8.bf16 %v1171
        %v3542 = vunpack.c.h.s8.bf16 %v1162
        %v3543 = vunpack.c.h.s8.bf16 %v1163
        %v3544 = vunpack.c.h.s8.bf16 %v1164
        %v3545 = vunpack.c.h.s8.bf16 %v1165
        %v3546 = vunpack.c.h.s8.bf16 %v1166
        %v3547 = vunpack.c.h.s8.bf16 %v1167
        %v3548 = vunpack.c.h.s8.bf16 %v1168
        %v3549 = vunpack.c.h.s8.bf16 %v1169
        %v3550 = vunpack.c.h.s8.bf16 %v1170
        %v3551 = vunpack.c.h.s8.bf16 %v1171
        %v3552 = vunpack.c.l.s8.bf16 %v1172
        %v3553 = vunpack.c.l.s8.bf16 %v1173
        %v3554 = vunpack.c.l.s8.bf16 %v1174
        %v3555 = vunpack.c.l.s8.bf16 %v1175
        %v3556 = vunpack.c.l.s8.bf16 %v1176
        %v3557 = vunpack.c.l.s8.bf16 %v1177
        %v3558 = vunpack.c.l.s8.bf16 %v1178
        %v3559 = vunpack.c.l.s8.bf16 %v1179
        %v3560 = vunpack.c.l.s8.bf16 %v1180
        %v3561 = vunpack.c.l.s8.bf16 %v1181
        %v3562 = vunpack.c.h.s8.bf16 %v1172
        %v3563 = vunpack.c.h.s8.bf16 %v1173
        %v3564 = vunpack.c.h.s8.bf16 %v1174
        %v3565 = vunpack.c.h.s8.bf16 %v1175
        %v3566 = vunpack.c.h.s8.bf16 %v1176
        %v3567 = vunpack.c.h.s8.bf16 %v1177
        %v3568 = vunpack.c.h.s8.bf16 %v1178
        %v3569 = vunpack.c.h.s8.bf16 %v1179
        %v3570 = vunpack.c.h.s8.bf16 %v1180
        %v3571 = vunpack.c.h.s8.bf16 %v1181
        %v3572 = vunpack.c.l.s8.bf16 %v1182
        %v3573 = vunpack.c.l.s8.bf16 %v1183
        %v3574 = vunpack.c.l.s8.bf16 %v1184
        %v3575 = vunpack.c.l.s8.bf16 %v1185
        %v3576 = vunpack.c.l.s8.bf16 %v1186
        %v3577 = vunpack.c.l.s8.bf16 %v1187
        %v3578 = vunpack.c.l.s8.bf16 %v1188
        %v3579 = vunpack.c.l.s8.bf16 %v1189
        %v3580 = vunpack.c.l.s8.bf16 %v1190
        %v3581 = vunpack.c.l.s8.bf16 %v1191
        %v3582 = vunpack.c.h.s8.bf16 %v1182
        %v3583 = vunpack.c.h.s8.bf16 %v1183
        %v3584 = vunpack.c.h.s8.bf16 %v1184
        %v3585 = vunpack.c.h.s8.bf16 %v1185
        %v3586 = vunpack.c.h.s8.bf16 %v1186
        %v3587 = vunpack.c.h.s8.bf16 %v1187
        %v3588 = vunpack.c.h.s8.bf16 %v1188
        %v3589 = vunpack.c.h.s8.bf16 %v1189
        %v3590 = vunpack.c.h.s8.bf16 %v1190
        %v3591 = vunpack.c.h.s8.bf16 %v1191
        %v3592 = vunpack.c.l.s8.bf16 %v1192
        %v3593 = vunpack.c.l.s8.bf16 %v1193
        %v3594 = vunpack.c.l.s8.bf16 %v1194
        %v3595 = vunpack.c.l.s8.bf16 %v1195
        %v3596 = vunpack.c.l.s8.bf16 %v1196
        %v3597 = vunpack.c.l.s8.bf16 %v1197
        %v3598 = vunpack.c.l.s8.bf16 %v1198
        %v3599 = vunpack.c.l.s8.bf16 %v1199
        %v3600 = vunpack.c.l.s8.bf16 %v1200
        %v3601 = vunpack.c.l.s8.bf16 %v1201
        %v3602 = vunpack.c.h.s8.bf16 %v1192
        %v3603 = vunpack.c.h.s8.bf16 %v1193
        %v3604 = vunpack.c.h.s8.bf16 %v1194
        %v3605 = vunpack.c.h.s8.bf16 %v1195
        %v3606 = vunpack.c.h.s8.bf16 %v1196
        %v3607 = vunpack.c.h.s8.bf16 %v1197
        %v3608 = vunpack.c.h.s8.bf16 %v1198
        %v3609 = vunpack.c.h.s8.bf16 %v1199
        %v3610 = vunpack.c.h.s8.bf16 %v1200
        %v3611 = vunpack.c.h.s8.bf16 %v1201
        %v3612 = vunpack.c.l.s8.bf16 %v1202
        %v3613 = vunpack.c.l.s8.bf16 %v1203
        %v3614 = vunpack.c.l.s8.bf16 %v1204
        %v3615 = vunpack.c.l.s8.bf16 %v1205
        %v3616 = vunpack.c.l.s8.bf16 %v1206
        %v3617 = vunpack.c.l.s8.bf16 %v1207
        %v3618 = vunpack.c.l.s8.bf16 %v1208
        %v3619 = vunpack.c.l.s8.bf16 %v1209
        %v3620 = vunpack.c.l.s8.bf16 %v1210
        %v3621 = vunpack.c.l.s8.bf16 %v1211
        %v3622 = vunpack.c.h.s8.bf16 %v1202
        %v3623 = vunpack.c.h.s8.bf16 %v1203
        %v3624 = vunpack.c.h.s8.bf16 %v1204
        %v3625 = vunpack.c.h.s8.bf16 %v1205
        %v3626 = vunpack.c.h.s8.bf16 %v1206
        %v3627 = vunpack.c.h.s8.bf16 %v1207
        %v3628 = vunpack.c.h.s8.bf16 %v1208
        %v3629 = vunpack.c.h.s8.bf16 %v1209
        %v3630 = vunpack.c.h.s8.bf16 %v1210
        %v3631 = vunpack.c.h.s8.bf16 %v1211
        %v3632 = vunpack.c.l.s8.bf16 %v1212
        %v3633 = vunpack.c.l.s8.bf16 %v1213
        %v3634 = vunpack.c.l.s8.bf16 %v1214
        %v3635 = vunpack.c.l.s8.bf16 %v1215
        %v3636 = vunpack.c.l.s8.bf16 %v1216
        %v3637 = vunpack.c.l.s8.bf16 %v1217
        %v3638 = vunpack.c.l.s8.bf16 %v1218
        %v3639 = vunpack.c.l.s8.bf16 %v1219
        %v3640 = vunpack.c.l.s8.bf16 %v1220
        %v3641 = vunpack.c.l.s8.bf16 %v1221
        %v3642 = vunpack.c.h.s8.bf16 %v1212
        %v3643 = vunpack.c.h.s8.bf16 %v1213
        %v3644 = vunpack.c.h.s8.bf16 %v1214
        %v3645 = vunpack.c.h.s8.bf16 %v1215
        %v3646 = vunpack.c.h.s8.bf16 %v1216
        %v3647 = vunpack.c.h.s8.bf16 %v1217
        %v3648 = vunpack.c.h.s8.bf16 %v1218
        %v3649 = vunpack.c.h.s8.bf16 %v1219
        %v3650 = vunpack.c.h.s8.bf16 %v1220
        %v3651 = vunpack.c.h.s8.bf16 %v1221
        %v3652 = vunpack.c.l.s8.bf16 %v1222
        %v3653 = vunpack.c.l.s8.bf16 %v1223
        %v3654 = vunpack.c.l.s8.bf16 %v1224
        %v3655 = vunpack.c.l.s8.bf16 %v1225
        %v3656 = vunpack.c.l.s8.bf16 %v1226
        %v3657 = vunpack.c.l.s8.bf16 %v1227
        %v3658 = vunpack.c.l.s8.bf16 %v1228
        %v3659 = vunpack.c.l.s8.bf16 %v1229
        %v3660 = vunpack.c.l.s8.bf16 %v1230
        %v3661 = vunpack.c.l.s8.bf16 %v1231
        %v3662 = vunpack.c.h.s8.bf16 %v1222
        %v3663 = vunpack.c.h.s8.bf16 %v1223
        %v3664 = vunpack.c.h.s8.bf16 %v1224
        %v3665 = vunpack.c.h.s8.bf16 %v1225
        %v3666 = vunpack.c.h.s8.bf16 %v1226
        %v3667 = vunpack.c.h.s8.bf16 %v1227
        %v3668 = vunpack.c.h.s8.bf16 %v1228
        %v3669 = vunpack.c.h.s8.bf16 %v1229
        %v3670 = vunpack.c.h.s8.bf16 %v1230
        %v3671 = vunpack.c.h.s8.bf16 %v1231
        %v3672 = vunpack.c.l.s8.bf16 %v1232
        %v3673 = vunpack.c.l.s8.bf16 %v1233
        %v3674 = vunpack.c.l.s8.bf16 %v1234
        %v3675 = vunpack.c.l.s8.bf16 %v1235
        %v3676 = vunpack.c.l.s8.bf16 %v1236
        %v3677 = vunpack.c.l.s8.bf16 %v1237
        %v3678 = vunpack.c.l.s8.bf16 %v1238
        %v3679 = vunpack.c.l.s8.bf16 %v1239
        %v3680 = vunpack.c.l.s8.bf16 %v1240
        %v3681 = vunpack.c.l.s8.bf16 %v1241
        %v3682 = vunpack.c.h.s8.bf16 %v1232
        %v3683 = vunpack.c.h.s8.bf16 %v1233
        %v3684 = vunpack.c.h.s8.bf16 %v1234
        %v3685 = vunpack.c.h.s8.bf16 %v1235
        %v3686 = vunpack.c.h.s8.bf16 %v1236
        %v3687 = vunpack.c.h.s8.bf16 %v1237
        %v3688 = vunpack.c.h.s8.bf16 %v1238
        %v3689 = vunpack.c.h.s8.bf16 %v1239
        %v3690 = vunpack.c.h.s8.bf16 %v1240
        %v3691 = vunpack.c.h.s8.bf16 %v1241
        %v3692 = vunpack.c.l.s8.bf16 %v1242
        %v3693 = vunpack.c.l.s8.bf16 %v1243
        %v3694 = vunpack.c.l.s8.bf16 %v1244
        %v3695 = vunpack.c.l.s8.bf16 %v1245
        %v3696 = vunpack.c.l.s8.bf16 %v1246
        %v3697 = vunpack.c.l.s8.bf16 %v1247
        %v3698 = vunpack.c.l.s8.bf16 %v1248
        %v3699 = vunpack.c.l.s8.bf16 %v1249
        %v3700 = vunpack.c.l.s8.bf16 %v1250
        %v3701 = vunpack.c.l.s8.bf16 %v1251
        %v3702 = vunpack.c.h.s8.bf16 %v1242
        %v3703 = vunpack.c.h.s8.bf16 %v1243
        %v3704 = vunpack.c.h.s8.bf16 %v1244
        %v3705 = vunpack.c.h.s8.bf16 %v1245
        %v3706 = vunpack.c.h.s8.bf16 %v1246
        %v3707 = vunpack.c.h.s8.bf16 %v1247
        %v3708 = vunpack.c.h.s8.bf16 %v1248
        %v3709 = vunpack.c.h.s8.bf16 %v1249
        %v3710 = vunpack.c.h.s8.bf16 %v1250
        %v3711 = vunpack.c.h.s8.bf16 %v1251
        %v3712 = vunpack.c.l.s8.bf16 %v1252
        %v3713 = vunpack.c.l.s8.bf16 %v1253
        %v3714 = vunpack.c.l.s8.bf16 %v1254
        %v3715 = vunpack.c.l.s8.bf16 %v1255
        %v3716 = vunpack.c.l.s8.bf16 %v1256
        %v3717 = vunpack.c.l.s8.bf16 %v1257
        %v3718 = vunpack.c.l.s8.bf16 %v1258
        %v3719 = vunpack.c.l.s8.bf16 %v1259
        %v3720 = vunpack.c.l.s8.bf16 %v1260
        %v3721 = vunpack.c.l.s8.bf16 %v1261
        %v3722 = vunpack.c.h.s8.bf16 %v1252
        %v3723 = vunpack.c.h.s8.bf16 %v1253
        %v3724 = vunpack.c.h.s8.bf16 %v1254
        %v3725 = vunpack.c.h.s8.bf16 %v1255
        %v3726 = vunpack.c.h.s8.bf16 %v1256
        %v3727 = vunpack.c.h.s8.bf16 %v1257
        %v3728 = vunpack.c.h.s8.bf16 %v1258
        %v3729 = vunpack.c.h.s8.bf16 %v1259
        %v3730 = vunpack.c.h.s8.bf16 %v1260
        %v3731 = vunpack.c.h.s8.bf16 %v1261
        %v3732 = vunpack.c.l.s8.bf16 %v1262
        %v3733 = vunpack.c.l.s8.bf16 %v1263
        %v3734 = vunpack.c.l.s8.bf16 %v1264
        %v3735 = vunpack.c.l.s8.bf16 %v1265
        %v3736 = vunpack.c.l.s8.bf16 %v1266
        %v3737 = vunpack.c.l.s8.bf16 %v1267
        %v3738 = vunpack.c.l.s8.bf16 %v1268
        %v3739 = vunpack.c.l.s8.bf16 %v1269
        %v3740 = vunpack.c.l.s8.bf16 %v1270
        %v3741 = vunpack.c.l.s8.bf16 %v1271
        %v3742 = vunpack.c.h.s8.bf16 %v1262
        %v3743 = vunpack.c.h.s8.bf16 %v1263
        %v3744 = vunpack.c.h.s8.bf16 %v1264
        %v3745 = vunpack.c.h.s8.bf16 %v1265
        %v3746 = vunpack.c.h.s8.bf16 %v1266
        %v3747 = vunpack.c.h.s8.bf16 %v1267
        %v3748 = vunpack.c.h.s8.bf16 %v1268
        %v3749 = vunpack.c.h.s8.bf16 %v1269
        %v3750 = vunpack.c.h.s8.bf16 %v1270
        %v3751 = vunpack.c.h.s8.bf16 %v1271
        %v3752 = vunpack.c.l.s8.bf16 %v1272
        %v3753 = vunpack.c.l.s8.bf16 %v1273
        %v3754 = vunpack.c.l.s8.bf16 %v1274
        %v3755 = vunpack.c.l.s8.bf16 %v1275
        %v3756 = vunpack.c.l.s8.bf16 %v1276
        %v3757 = vunpack.c.l.s8.bf16 %v1277
        %v3758 = vunpack.c.l.s8.bf16 %v1278
        %v3759 = vunpack.c.l.s8.bf16 %v1279
        %v3760 = vunpack.c.l.s8.bf16 %v1280
        %v3761 = vunpack.c.l.s8.bf16 %v1281
        %v3762 = vunpack.c.h.s8.bf16 %v1272
        %v3763 = vunpack.c.h.s8.bf16 %v1273
        %v3764 = vunpack.c.h.s8.bf16 %v1274
        %v3765 = vunpack.c.h.s8.bf16 %v1275
        %v3766 = vunpack.c.h.s8.bf16 %v1276
        %v3767 = vunpack.c.h.s8.bf16 %v1277
        %v3768 = vunpack.c.h.s8.bf16 %v1278
        %v3769 = vunpack.c.h.s8.bf16 %v1279
        %v3770 = vunpack.c.h.s8.bf16 %v1280
        %v3771 = vunpack.c.h.s8.bf16 %v1281
        %v3772 = vunpack.c.l.s8.bf16 %v1282
        %v3773 = vunpack.c.l.s8.bf16 %v1283
        %v3774 = vunpack.c.l.s8.bf16 %v1284
        %v3775 = vunpack.c.l.s8.bf16 %v1285
        %v3776 = vunpack.c.l.s8.bf16 %v1286
        %v3777 = vunpack.c.l.s8.bf16 %v1287
        %v3778 = vunpack.c.l.s8.bf16 %v1288
        %v3779 = vunpack.c.l.s8.bf16 %v1289
        %v3780 = vunpack.c.l.s8.bf16 %v1290
        %v3781 = vunpack.c.l.s8.bf16 %v1291
        %v3782 = vunpack.c.h.s8.bf16 %v1282
        %v3783 = vunpack.c.h.s8.bf16 %v1283
        %v3784 = vunpack.c.h.s8.bf16 %v1284
        %v3785 = vunpack.c.h.s8.bf16 %v1285
        %v3786 = vunpack.c.h.s8.bf16 %v1286
        %v3787 = vunpack.c.h.s8.bf16 %v1287
        %v3788 = vunpack.c.h.s8.bf16 %v1288
        %v3789 = vunpack.c.h.s8.bf16 %v1289
        %v3790 = vunpack.c.h.s8.bf16 %v1290
        %v3791 = vunpack.c.h.s8.bf16 %v1291
        %v3792 = vunpack.c.l.s8.bf16 %v1292
        %v3793 = vunpack.c.l.s8.bf16 %v1293
        %v3794 = vunpack.c.l.s8.bf16 %v1294
        %v3795 = vunpack.c.l.s8.bf16 %v1295
        %v3796 = vunpack.c.l.s8.bf16 %v1296
        %v3797 = vunpack.c.l.s8.bf16 %v1297
        %v3798 = vunpack.c.l.s8.bf16 %v1298
        %v3799 = vunpack.c.l.s8.bf16 %v1299
        %v3800 = vunpack.c.l.s8.bf16 %v1300
        %v3801 = vunpack.c.l.s8.bf16 %v1301
        %v3802 = vunpack.c.h.s8.bf16 %v1292
        %v3803 = vunpack.c.h.s8.bf16 %v1293
        %v3804 = vunpack.c.h.s8.bf16 %v1294
        %v3805 = vunpack.c.h.s8.bf16 %v1295
        %v3806 = vunpack.c.h.s8.bf16 %v1296
        %v3807 = vunpack.c.h.s8.bf16 %v1297
        %v3808 = vunpack.c.h.s8.bf16 %v1298
        %v3809 = vunpack.c.h.s8.bf16 %v1299
        %v3810 = vunpack.c.h.s8.bf16 %v1300
        %v3811 = vunpack.c.h.s8.bf16 %v1301
        %v3812 = vunpack.c.l.s8.bf16 %v1302
        %v3813 = vunpack.c.l.s8.bf16 %v1303
        %v3814 = vunpack.c.l.s8.bf16 %v1304
        %v3815 = vunpack.c.l.s8.bf16 %v1305
        %v3816 = vunpack.c.l.s8.bf16 %v1306
        %v3817 = vunpack.c.l.s8.bf16 %v1307
        %v3818 = vunpack.c.l.s8.bf16 %v1308
        %v3819 = vunpack.c.l.s8.bf16 %v1309
        %v3820 = vunpack.c.l.s8.bf16 %v1310
        %v3821 = vunpack.c.l.s8.bf16 %v1311
        %v3822 = vunpack.c.h.s8.bf16 %v1302
        %v3823 = vunpack.c.h.s8.bf16 %v1303
        %v3824 = vunpack.c.h.s8.bf16 %v1304
        %v3825 = vunpack.c.h.s8.bf16 %v1305
        %v3826 = vunpack.c.h.s8.bf16 %v1306
        %v3827 = vunpack.c.h.s8.bf16 %v1307
        %v3828 = vunpack.c.h.s8.bf16 %v1308
        %v3829 = vunpack.c.h.s8.bf16 %v1309
        %v3830 = vunpack.c.h.s8.bf16 %v1310
        %v3831 = vunpack.c.h.s8.bf16 %v1311
        %v3832 = vunpack.c.l.s8.bf16 %v1312
        %v3833 = vunpack.c.l.s8.bf16 %v1313
        %v3834 = vunpack.c.l.s8.bf16 %v1314
        %v3835 = vunpack.c.l.s8.bf16 %v1315
        %v3836 = vunpack.c.l.s8.bf16 %v1316
        %v3837 = vunpack.c.l.s8.bf16 %v1317
        %v3838 = vunpack.c.l.s8.bf16 %v1318
        %v3839 = vunpack.c.l.s8.bf16 %v1319
        %v3840 = vunpack.c.l.s8.bf16 %v1320
        %v3841 = vunpack.c.l.s8.bf16 %v1321
        %v3842 = vunpack.c.h.s8.bf16 %v1312
        %v3843 = vunpack.c.h.s8.bf16 %v1313
        %v3844 = vunpack.c.h.s8.bf16 %v1314
        %v3845 = vunpack.c.h.s8.bf16 %v1315
        %v3846 = vunpack.c.h.s8.bf16 %v1316
        %v3847 = vunpack.c.h.s8.bf16 %v1317
        %v3848 = vunpack.c.h.s8.bf16 %v1318
        %v3849 = vunpack.c.h.s8.bf16 %v1319
        %v3850 = vunpack.c.h.s8.bf16 %v1320
        %v3851 = vunpack.c.h.s8.bf16 %v1321
        %v3852 = vunpack.c.l.s8.bf16 %v1322
        %v3853 = vunpack.c.l.s8.bf16 %v1323
        %v3854 = vunpack.c.l.s8.bf16 %v1324
        %v3855 = vunpack.c.l.s8.bf16 %v1325
        %v3856 = vunpack.c.l.s8.bf16 %v1326
        %v3857 = vunpack.c.l.s8.bf16 %v1327
        %v3858 = vunpack.c.l.s8.bf16 %v1328
        %v3859 = vunpack.c.l.s8.bf16 %v1329
        %v3860 = vunpack.c.l.s8.bf16 %v1330
        %v3861 = vunpack.c.l.s8.bf16 %v1331
        %v3862 = vunpack.c.h.s8.bf16 %v1322
        %v3863 = vunpack.c.h.s8.bf16 %v1323
        %v3864 = vunpack.c.h.s8.bf16 %v1324
        %v3865 = vunpack.c.h.s8.bf16 %v1325
        %v3866 = vunpack.c.h.s8.bf16 %v1326
        %v3867 = vunpack.c.h.s8.bf16 %v1327
        %v3868 = vunpack.c.h.s8.bf16 %v1328
        %v3869 = vunpack.c.h.s8.bf16 %v1329
        %v3870 = vunpack.c.h.s8.bf16 %v1330
        %v3871 = vunpack.c.h.s8.bf16 %v1331
        %v3872 = vunpack.c.l.s8.bf16 %v1332
        %v3873 = vunpack.c.l.s8.bf16 %v1333
        %v3874 = vunpack.c.l.s8.bf16 %v1334
        %v3875 = vunpack.c.l.s8.bf16 %v1335
        %v3876 = vunpack.c.l.s8.bf16 %v1336
        %v3877 = vunpack.c.l.s8.bf16 %v1337
        %v3878 = vunpack.c.l.s8.bf16 %v1338
        %v3879 = vunpack.c.l.s8.bf16 %v1339
        %v3880 = vunpack.c.l.s8.bf16 %v1340
        %v3881 = vunpack.c.l.s8.bf16 %v1341
        %v3882 = vunpack.c.h.s8.bf16 %v1332
        %v3883 = vunpack.c.h.s8.bf16 %v1333
        %v3884 = vunpack.c.h.s8.bf16 %v1334
        %v3885 = vunpack.c.h.s8.bf16 %v1335
        %v3886 = vunpack.c.h.s8.bf16 %v1336
        %v3887 = vunpack.c.h.s8.bf16 %v1337
        %v3888 = vunpack.c.h.s8.bf16 %v1338
        %v3889 = vunpack.c.h.s8.bf16 %v1339
        %v3890 = vunpack.c.h.s8.bf16 %v1340
        %v3891 = vunpack.c.h.s8.bf16 %v1341
        %v3892 = vunpack.c.l.s8.bf16 %v1342
        %v3893 = vunpack.c.l.s8.bf16 %v1343
        %v3894 = vunpack.c.l.s8.bf16 %v1344
        %v3895 = vunpack.c.l.s8.bf16 %v1345
        %v3896 = vunpack.c.l.s8.bf16 %v1346
        %v3897 = vunpack.c.l.s8.bf16 %v1347
        %v3898 = vunpack.c.l.s8.bf16 %v1348
        %v3899 = vunpack.c.l.s8.bf16 %v1349
        %v3900 = vunpack.c.l.s8.bf16 %v1350
        %v3901 = vunpack.c.l.s8.bf16 %v1351
        %v3902 = vunpack.c.h.s8.bf16 %v1342
        %v3903 = vunpack.c.h.s8.bf16 %v1343
        %v3904 = vunpack.c.h.s8.bf16 %v1344
        %v3905 = vunpack.c.h.s8.bf16 %v1345
        %v3906 = vunpack.c.h.s8.bf16 %v1346
        %v3907 = vunpack.c.h.s8.bf16 %v1347
        %v3908 = vunpack.c.h.s8.bf16 %v1348
        %v3909 = vunpack.c.h.s8.bf16 %v1349
        %v3910 = vunpack.c.h.s8.bf16 %v1350
        %v3911 = vunpack.c.h.s8.bf16 %v1351
        %v3912 = vunpack.c.l.s8.bf16 %v1352
        %v3913 = vunpack.c.l.s8.bf16 %v1353
        %v3914 = vunpack.c.l.s8.bf16 %v1354
        %v3915 = vunpack.c.l.s8.bf16 %v1355
        %v3916 = vunpack.c.l.s8.bf16 %v1356
        %v3917 = vunpack.c.l.s8.bf16 %v1357
        %v3918 = vunpack.c.l.s8.bf16 %v1358
        %v3919 = vunpack.c.l.s8.bf16 %v1359
        %v3920 = vunpack.c.l.s8.bf16 %v1360
        %v3921 = vunpack.c.l.s8.bf16 %v1361
        %v3922 = vunpack.c.h.s8.bf16 %v1352
        %v3923 = vunpack.c.h.s8.bf16 %v1353
        %v3924 = vunpack.c.h.s8.bf16 %v1354
        %v3925 = vunpack.c.h.s8.bf16 %v1355
        %v3926 = vunpack.c.h.s8.bf16 %v1356
        %v3927 = vunpack.c.h.s8.bf16 %v1357
        %v3928 = vunpack.c.h.s8.bf16 %v1358
        %v3929 = vunpack.c.h.s8.bf16 %v1359
        %v3930 = vunpack.c.h.s8.bf16 %v1360
        %v3931 = vunpack.c.h.s8.bf16 %v1361
        %v3932 = vunpack.c.l.s8.bf16 %v1362
        %v3933 = vunpack.c.l.s8.bf16 %v1363
        %v3934 = vunpack.c.l.s8.bf16 %v1364
        %v3935 = vunpack.c.l.s8.bf16 %v1365
        %v3936 = vunpack.c.l.s8.bf16 %v1366
        %v3937 = vunpack.c.l.s8.bf16 %v1367
        %v3938 = vunpack.c.l.s8.bf16 %v1368
        %v3939 = vunpack.c.l.s8.bf16 %v1369
        %v3940 = vunpack.c.l.s8.bf16 %v1370
        %v3941 = vunpack.c.l.s8.bf16 %v1371
        %v3942 = vunpack.c.h.s8.bf16 %v1362
        %v3943 = vunpack.c.h.s8.bf16 %v1363
        %v3944 = vunpack.c.h.s8.bf16 %v1364
        %v3945 = vunpack.c.h.s8.bf16 %v1365
        %v3946 = vunpack.c.h.s8.bf16 %v1366
        %v3947 = vunpack.c.h.s8.bf16 %v1367
        %v3948 = vunpack.c.h.s8.bf16 %v1368
        %v3949 = vunpack.c.h.s8.bf16 %v1369
        %v3950 = vunpack.c.h.s8.bf16 %v1370
        %v3951 = vunpack.c.h.s8.bf16 %v1371
        %v3952 = vunpack.c.l.s8.bf16 %v1372
        %v3953 = vunpack.c.l.s8.bf16 %v1373
        %v3954 = vunpack.c.l.s8.bf16 %v1374
        %v3955 = vunpack.c.l.s8.bf16 %v1375
        %v3956 = vunpack.c.l.s8.bf16 %v1376
        %v3957 = vunpack.c.l.s8.bf16 %v1377
        %v3958 = vunpack.c.l.s8.bf16 %v1378
        %v3959 = vunpack.c.l.s8.bf16 %v1379
        %v3960 = vunpack.c.l.s8.bf16 %v1380
        %v3961 = vunpack.c.l.s8.bf16 %v1381
        %v3962 = vunpack.c.h.s8.bf16 %v1372
        %v3963 = vunpack.c.h.s8.bf16 %v1373
        %v3964 = vunpack.c.h.s8.bf16 %v1374
        %v3965 = vunpack.c.h.s8.bf16 %v1375
        %v3966 = vunpack.c.h.s8.bf16 %v1376
        %v3967 = vunpack.c.h.s8.bf16 %v1377
        %v3968 = vunpack.c.h.s8.bf16 %v1378
        %v3969 = vunpack.c.h.s8.bf16 %v1379
        %v3970 = vunpack.c.h.s8.bf16 %v1380
        %v3971 = vunpack.c.h.s8.bf16 %v1381
        %v3972 = vunpack.c.l.s8.bf16 %v1382
        %v3973 = vunpack.c.l.s8.bf16 %v1383
        %v3974 = vunpack.c.l.s8.bf16 %v1384
        %v3975 = vunpack.c.l.s8.bf16 %v1385
        %v3976 = vunpack.c.l.s8.bf16 %v1386
        %v3977 = vunpack.c.l.s8.bf16 %v1387
        %v3978 = vunpack.c.l.s8.bf16 %v1388
        %v3979 = vunpack.c.l.s8.bf16 %v1389
        %v3980 = vunpack.c.l.s8.bf16 %v1390
        %v3981 = vunpack.c.l.s8.bf16 %v1391
        %v3982 = vunpack.c.h.s8.bf16 %v1382
        %v3983 = vunpack.c.h.s8.bf16 %v1383
        %v3984 = vunpack.c.h.s8.bf16 %v1384
        %v3985 = vunpack.c.h.s8.bf16 %v1385
        %v3986 = vunpack.c.h.s8.bf16 %v1386
        %v3987 = vunpack.c.h.s8.bf16 %v1387
        %v3988 = vunpack.c.h.s8.bf16 %v1388
        %v3989 = vunpack.c.h.s8.bf16 %v1389
        %v3990 = vunpack.c.h.s8.bf16 %v1390
        %v3991 = vunpack.c.h.s8.bf16 %v1391
        %v3992 = vunpack.c.l.s8.bf16 %v1392
        %v3993 = vunpack.c.l.s8.bf16 %v1393
        %v3994 = vunpack.c.l.s8.bf16 %v1394
        %v3995 = vunpack.c.l.s8.bf16 %v1395
        %v3996 = vunpack.c.l.s8.bf16 %v1396
        %v3997 = vunpack.c.l.s8.bf16 %v1397
        %v3998 = vunpack.c.l.s8.bf16 %v1398
        %v3999 = vunpack.c.l.s8.bf16 %v1399
        %v4000 = vunpack.c.l.s8.bf16 %v1400
        %v4001 = vunpack.c.l.s8.bf16 %v1401
        %v4002 = vunpack.c.h.s8.bf16 %v1392
        %v4003 = vunpack.c.h.s8.bf16 %v1393
        %v4004 = vunpack.c.h.s8.bf16 %v1394
        %v4005 = vunpack.c.h.s8.bf16 %v1395
        %v4006 = vunpack.c.h.s8.bf16 %v1396
        %v4007 = vunpack.c.h.s8.bf16 %v1397
        %v4008 = vunpack.c.h.s8.bf16 %v1398
        %v4009 = vunpack.c.h.s8.bf16 %v1399
        %v4010 = vunpack.c.h.s8.bf16 %v1400
        %v4011 = vunpack.c.h.s8.bf16 %v1401
        %v4012 = vunpack.c.l.s8.bf16 %v1402
        %v4013 = vunpack.c.l.s8.bf16 %v1403
        %v4014 = vunpack.c.l.s8.bf16 %v1404
        %v4015 = vunpack.c.l.s8.bf16 %v1405
        %v4016 = vunpack.c.l.s8.bf16 %v1406
        %v4017 = vunpack.c.l.s8.bf16 %v1407
        %v4018 = vunpack.c.l.s8.bf16 %v1408
        %v4019 = vunpack.c.l.s8.bf16 %v1409
        %v4020 = vunpack.c.l.s8.bf16 %v1410
        %v4021 = vunpack.c.l.s8.bf16 %v1411
        %v4022 = vunpack.c.h.s8.bf16 %v1402
        %v4023 = vunpack.c.h.s8.bf16 %v1403
        %v4024 = vunpack.c.h.s8.bf16 %v1404
        %v4025 = vunpack.c.h.s8.bf16 %v1405
        %v4026 = vunpack.c.h.s8.bf16 %v1406
        %v4027 = vunpack.c.h.s8.bf16 %v1407
        %v4028 = vunpack.c.h.s8.bf16 %v1408
        %v4029 = vunpack.c.h.s8.bf16 %v1409
        %v4030 = vunpack.c.h.s8.bf16 %v1410
        %v4031 = vunpack.c.h.s8.bf16 %v1411
        %v4032 = vunpack.c.l.s8.bf16 %v1412
        %v4033 = vunpack.c.l.s8.bf16 %v1413
        %v4034 = vunpack.c.l.s8.bf16 %v1414
        %v4035 = vunpack.c.l.s8.bf16 %v1415
        %v4036 = vunpack.c.l.s8.bf16 %v1416
        %v4037 = vunpack.c.l.s8.bf16 %v1417
        %v4038 = vunpack.c.l.s8.bf16 %v1418
        %v4039 = vunpack.c.l.s8.bf16 %v1419
        %v4040 = vunpack.c.l.s8.bf16 %v1420
        %v4041 = vunpack.c.l.s8.bf16 %v1421
        %v4042 = vunpack.c.h.s8.bf16 %v1412
        %v4043 = vunpack.c.h.s8.bf16 %v1413
        %v4044 = vunpack.c.h.s8.bf16 %v1414
        %v4045 = vunpack.c.h.s8.bf16 %v1415
        %v4046 = vunpack.c.h.s8.bf16 %v1416
        %v4047 = vunpack.c.h.s8.bf16 %v1417
        %v4048 = vunpack.c.h.s8.bf16 %v1418
        %v4049 = vunpack.c.h.s8.bf16 %v1419
        %v4050 = vunpack.c.h.s8.bf16 %v1420
        %v4051 = vunpack.c.h.s8.bf16 %v1421
        %v4052 = vunpack.c.l.s8.bf16 %v1422
        %v4053 = vunpack.c.l.s8.bf16 %v1423
        %v4054 = vunpack.c.l.s8.bf16 %v1424
        %v4055 = vunpack.c.l.s8.bf16 %v1425
        %v4056 = vunpack.c.l.s8.bf16 %v1426
        %v4057 = vunpack.c.l.s8.bf16 %v1427
        %v4058 = vunpack.c.l.s8.bf16 %v1428
        %v4059 = vunpack.c.l.s8.bf16 %v1429
        %v4060 = vunpack.c.l.s8.bf16 %v1430
        %v4061 = vunpack.c.l.s8.bf16 %v1431
        %v4062 = vunpack.c.h.s8.bf16 %v1422
        %v4063 = vunpack.c.h.s8.bf16 %v1423
        %v4064 = vunpack.c.h.s8.bf16 %v1424
        %v4065 = vunpack.c.h.s8.bf16 %v1425
        %v4066 = vunpack.c.h.s8.bf16 %v1426
        %v4067 = vunpack.c.h.s8.bf16 %v1427
        %v4068 = vunpack.c.h.s8.bf16 %v1428
        %v4069 = vunpack.c.h.s8.bf16 %v1429
        %v4070 = vunpack.c.h.s8.bf16 %v1430
        %v4071 = vunpack.c.h.s8.bf16 %v1431
        %v4072 = vunpack.c.l.s8.bf16 %v1432
        %v4073 = vunpack.c.l.s8.bf16 %v1433
        %v4074 = vunpack.c.l.s8.bf16 %v1434
        %v4075 = vunpack.c.l.s8.bf16 %v1435
        %v4076 = vunpack.c.l.s8.bf16 %v1436
        %v4077 = vunpack.c.l.s8.bf16 %v1437
        %v4078 = vunpack.c.l.s8.bf16 %v1438
        %v4079 = vunpack.c.l.s8.bf16 %v1439
        %v4080 = vunpack.c.l.s8.bf16 %v1440
        %v4081 = vunpack.c.l.s8.bf16 %v1441
        %v4082 = vunpack.c.h.s8.bf16 %v1432
        %v4083 = vunpack.c.h.s8.bf16 %v1433
        %v4084 = vunpack.c.h.s8.bf16 %v1434
        %v4085 = vunpack.c.h.s8.bf16 %v1435
        %v4086 = vunpack.c.h.s8.bf16 %v1436
        %v4087 = vunpack.c.h.s8.bf16 %v1437
        %v4088 = vunpack.c.h.s8.bf16 %v1438
        %v4089 = vunpack.c.h.s8.bf16 %v1439
        %v4090 = vunpack.c.h.s8.bf16 %v1440
        %v4091 = vunpack.c.h.s8.bf16 %v1441
        %v4092 = vunpack.c.l.s8.bf16 %v1442
        %v4093 = vunpack.c.l.s8.bf16 %v1443
        %v4094 = vunpack.c.l.s8.bf16 %v1444
        %v4095 = vunpack.c.l.s8.bf16 %v1445
        %v4096 = vunpack.c.l.s8.bf16 %v1446
        %v4097 = vunpack.c.l.s8.bf16 %v1447
        %v4098 = vunpack.c.l.s8.bf16 %v1448
        %v4099 = vunpack.c.l.s8.bf16 %v1449
        %v4100 = vunpack.c.l.s8.bf16 %v1450
        %v4101 = vunpack.c.l.s8.bf16 %v1451
        %v4102 = vunpack.c.h.s8.bf16 %v1442
        %v4103 = vunpack.c.h.s8.bf16 %v1443
        %v4104 = vunpack.c.h.s8.bf16 %v1444
        %v4105 = vunpack.c.h.s8.bf16 %v1445
        %v4106 = vunpack.c.h.s8.bf16 %v1446
        %v4107 = vunpack.c.h.s8.bf16 %v1447
        %v4108 = vunpack.c.h.s8.bf16 %v1448
        %v4109 = vunpack.c.h.s8.bf16 %v1449
        %v4110 = vunpack.c.h.s8.bf16 %v1450
        %v4111 = vunpack.c.h.s8.bf16 %v1451
        %v4112 = vunpack.c.l.s8.bf16 %v1452
        %v4113 = vunpack.c.l.s8.bf16 %v1453
        %v4114 = vunpack.c.l.s8.bf16 %v1454
        %v4115 = vunpack.c.l.s8.bf16 %v1455
        %v4116 = vunpack.c.l.s8.bf16 %v1456
        %v4117 = vunpack.c.l.s8.bf16 %v1457
        %v4118 = vunpack.c.l.s8.bf16 %v1458
        %v4119 = vunpack.c.l.s8.bf16 %v1459
        %v4120 = vunpack.c.l.s8.bf16 %v1460
        %v4121 = vunpack.c.l.s8.bf16 %v1461
        %v4122 = vunpack.c.h.s8.bf16 %v1452
        %v4123 = vunpack.c.h.s8.bf16 %v1453
        %v4124 = vunpack.c.h.s8.bf16 %v1454
        %v4125 = vunpack.c.h.s8.bf16 %v1455
        %v4126 = vunpack.c.h.s8.bf16 %v1456
        %v4127 = vunpack.c.h.s8.bf16 %v1457
        %v4128 = vunpack.c.h.s8.bf16 %v1458
        %v4129 = vunpack.c.h.s8.bf16 %v1459
        %v4130 = vunpack.c.h.s8.bf16 %v1460
        %v4131 = vunpack.c.h.s8.bf16 %v1461
        %v4132 = vunpack.c.l.s8.bf16 %v1462
        %v4133 = vunpack.c.l.s8.bf16 %v1463
        %v4134 = vunpack.c.l.s8.bf16 %v1464
        %v4135 = vunpack.c.l.s8.bf16 %v1465
        %v4136 = vunpack.c.l.s8.bf16 %v1466
        %v4137 = vunpack.c.l.s8.bf16 %v1467
        %v4138 = vunpack.c.l.s8.bf16 %v1468
        %v4139 = vunpack.c.l.s8.bf16 %v1469
        %v4140 = vunpack.c.l.s8.bf16 %v1470
        %v4141 = vunpack.c.l.s8.bf16 %v1471
        %v4142 = vunpack.c.h.s8.bf16 %v1462
        %v4143 = vunpack.c.h.s8.bf16 %v1463
        %v4144 = vunpack.c.h.s8.bf16 %v1464
        %v4145 = vunpack.c.h.s8.bf16 %v1465
        %v4146 = vunpack.c.h.s8.bf16 %v1466
        %v4147 = vunpack.c.h.s8.bf16 %v1467
        %v4148 = vunpack.c.h.s8.bf16 %v1468
        %v4149 = vunpack.c.h.s8.bf16 %v1469
        %v4150 = vunpack.c.h.s8.bf16 %v1470
        %v4151 = vunpack.c.h.s8.bf16 %v1471
        %v4152 = vunpack.c.l.s8.bf16 %v1472
        %v4153 = vunpack.c.l.s8.bf16 %v1473
        %v4154 = vunpack.c.l.s8.bf16 %v1474
        %v4155 = vunpack.c.l.s8.bf16 %v1475
        %v4156 = vunpack.c.l.s8.bf16 %v1476
        %v4157 = vunpack.c.l.s8.bf16 %v1477
        %v4158 = vunpack.c.l.s8.bf16 %v1478
        %v4159 = vunpack.c.l.s8.bf16 %v1479
        %v4160 = vunpack.c.l.s8.bf16 %v1480
        %v4161 = vunpack.c.l.s8.bf16 %v1481
        %v4162 = vunpack.c.h.s8.bf16 %v1472
        %v4163 = vunpack.c.h.s8.bf16 %v1473
        %v4164 = vunpack.c.h.s8.bf16 %v1474
        %v4165 = vunpack.c.h.s8.bf16 %v1475
        %v4166 = vunpack.c.h.s8.bf16 %v1476
        %v4167 = vunpack.c.h.s8.bf16 %v1477
        %v4168 = vunpack.c.h.s8.bf16 %v1478
        %v4169 = vunpack.c.h.s8.bf16 %v1479
        %v4170 = vunpack.c.h.s8.bf16 %v1480
        %v4171 = vunpack.c.h.s8.bf16 %v1481
        %v4172 = vunpack.c.l.s8.bf16 %v1482
        %v4173 = vunpack.c.l.s8.bf16 %v1483
        %v4174 = vunpack.c.l.s8.bf16 %v1484
        %v4175 = vunpack.c.l.s8.bf16 %v1485
        %v4176 = vunpack.c.l.s8.bf16 %v1486
        %v4177 = vunpack.c.l.s8.bf16 %v1487
        %v4178 = vunpack.c.l.s8.bf16 %v1488
        %v4179 = vunpack.c.l.s8.bf16 %v1489
        %v4180 = vunpack.c.l.s8.bf16 %v1490
        %v4181 = vunpack.c.l.s8.bf16 %v1491
        %v4182 = vunpack.c.h.s8.bf16 %v1482
        %v4183 = vunpack.c.h.s8.bf16 %v1483
        %v4184 = vunpack.c.h.s8.bf16 %v1484
        %v4185 = vunpack.c.h.s8.bf16 %v1485
        %v4186 = vunpack.c.h.s8.bf16 %v1486
        %v4187 = vunpack.c.h.s8.bf16 %v1487
        %v4188 = vunpack.c.h.s8.bf16 %v1488
        %v4189 = vunpack.c.h.s8.bf16 %v1489
        %v4190 = vunpack.c.h.s8.bf16 %v1490
        %v4191 = vunpack.c.h.s8.bf16 %v1491
        %v4192 = vunpack.c.l.s8.bf16 %v1492
        %v4193 = vunpack.c.l.s8.bf16 %v1493
        %v4194 = vunpack.c.l.s8.bf16 %v1494
        %v4195 = vunpack.c.l.s8.bf16 %v1495
        %v4196 = vunpack.c.l.s8.bf16 %v1496
        %v4197 = vunpack.c.l.s8.bf16 %v1497
        %v4198 = vunpack.c.l.s8.bf16 %v1498
        %v4199 = vunpack.c.l.s8.bf16 %v1499
        %v4200 = vunpack.c.l.s8.bf16 %v1500
        %v4201 = vunpack.c.l.s8.bf16 %v1501
        %v4202 = vunpack.c.h.s8.bf16 %v1492
        %v4203 = vunpack.c.h.s8.bf16 %v1493
        %v4204 = vunpack.c.h.s8.bf16 %v1494
        %v4205 = vunpack.c.h.s8.bf16 %v1495
        %v4206 = vunpack.c.h.s8.bf16 %v1496
        %v4207 = vunpack.c.h.s8.bf16 %v1497
        %v4208 = vunpack.c.h.s8.bf16 %v1498
        %v4209 = vunpack.c.h.s8.bf16 %v1499
        %v4210 = vunpack.c.h.s8.bf16 %v1500
        %v4211 = vunpack.c.h.s8.bf16 %v1501
        %v4212 = vunpack.c.l.s8.bf16 %v1502
        %v4213 = vunpack.c.l.s8.bf16 %v1503
        %v4214 = vunpack.c.l.s8.bf16 %v1504
        %v4215 = vunpack.c.l.s8.bf16 %v1505
        %v4216 = vunpack.c.l.s8.bf16 %v1506
        %v4217 = vunpack.c.l.s8.bf16 %v1507
        %v4218 = vunpack.c.l.s8.bf16 %v1508
        %v4219 = vunpack.c.l.s8.bf16 %v1509
        %v4220 = vunpack.c.l.s8.bf16 %v1510
        %v4221 = vunpack.c.l.s8.bf16 %v1511
        %v4222 = vunpack.c.h.s8.bf16 %v1502
        %v4223 = vunpack.c.h.s8.bf16 %v1503
        %v4224 = vunpack.c.h.s8.bf16 %v1504
        %v4225 = vunpack.c.h.s8.bf16 %v1505
        %v4226 = vunpack.c.h.s8.bf16 %v1506
        %v4227 = vunpack.c.h.s8.bf16 %v1507
        %v4228 = vunpack.c.h.s8.bf16 %v1508
        %v4229 = vunpack.c.h.s8.bf16 %v1509
        %v4230 = vunpack.c.h.s8.bf16 %v1510
        %v4231 = vunpack.c.h.s8.bf16 %v1511
        %v4232 = vunpack.c.l.s8.bf16 %v1512
        %v4233 = vunpack.c.l.s8.bf16 %v1513
        %v4234 = vunpack.c.l.s8.bf16 %v1514
        %v4235 = vunpack.c.l.s8.bf16 %v1515
        %v4236 = vunpack.c.l.s8.bf16 %v1516
        %v4237 = vunpack.c.l.s8.bf16 %v1517
        %v4238 = vunpack.c.l.s8.bf16 %v1518
        %v4239 = vunpack.c.l.s8.bf16 %v1519
        %v4240 = vunpack.c.l.s8.bf16 %v1520
        %v4241 = vunpack.c.l.s8.bf16 %v1521
        %v4242 = vunpack.c.h.s8.bf16 %v1512
        %v4243 = vunpack.c.h.s8.bf16 %v1513
        %v4244 = vunpack.c.h.s8.bf16 %v1514
        %v4245 = vunpack.c.h.s8.bf16 %v1515
        %v4246 = vunpack.c.h.s8.bf16 %v1516
        %v4247 = vunpack.c.h.s8.bf16 %v1517
        %v4248 = vunpack.c.h.s8.bf16 %v1518
        %v4249 = vunpack.c.h.s8.bf16 %v1519
        %v4250 = vunpack.c.h.s8.bf16 %v1520
        %v4251 = vunpack.c.h.s8.bf16 %v1521
        %v4252 = vunpack.c.l.s8.bf16 %v1522
        %v4253 = vunpack.c.l.s8.bf16 %v1523
        %v4254 = vunpack.c.l.s8.bf16 %v1524
        %v4255 = vunpack.c.l.s8.bf16 %v1525
        %v4256 = vunpack.c.l.s8.bf16 %v1526
        %v4257 = vunpack.c.l.s8.bf16 %v1527
        %v4258 = vunpack.c.l.s8.bf16 %v1528
        %v4259 = vunpack.c.l.s8.bf16 %v1529
        %v4260 = vunpack.c.l.s8.bf16 %v1530
        %v4261 = vunpack.c.l.s8.bf16 %v1531
        %v4262 = vunpack.c.h.s8.bf16 %v1522
        %v4263 = vunpack.c.h.s8.bf16 %v1523
        %v4264 = vunpack.c.h.s8.bf16 %v1524
        %v4265 = vunpack.c.h.s8.bf16 %v1525
        %v4266 = vunpack.c.h.s8.bf16 %v1526
        %v4267 = vunpack.c.h.s8.bf16 %v1527
        %v4268 = vunpack.c.h.s8.bf16 %v1528
        %v4269 = vunpack.c.h.s8.bf16 %v1529
        %v4270 = vunpack.c.h.s8.bf16 %v1530
        %v4271 = vunpack.c.h.s8.bf16 %v1531
        %v4272 = vunpack.c.l.s8.bf16 %v1532
        %v4273 = vunpack.c.l.s8.bf16 %v1533
        %v4274 = vunpack.c.l.s8.bf16 %v1534
        %v4275 = vunpack.c.l.s8.bf16 %v1535
        %v4276 = vunpack.c.l.s8.bf16 %v1536
        %v4277 = vunpack.c.l.s8.bf16 %v1537
        %v4278 = vunpack.c.l.s8.bf16 %v1538
        %v4279 = vunpack.c.l.s8.bf16 %v1539
        %v4280 = vunpack.c.l.s8.bf16 %v1540
        %v4281 = vunpack.c.l.s8.bf16 %v1541
        %v4282 = vunpack.c.h.s8.bf16 %v1532
        %v4283 = vunpack.c.h.s8.bf16 %v1533
        %v4284 = vunpack.c.h.s8.bf16 %v1534
        %v4285 = vunpack.c.h.s8.bf16 %v1535
        %v4286 = vunpack.c.h.s8.bf16 %v1536
        %v4287 = vunpack.c.h.s8.bf16 %v1537
        %v4288 = vunpack.c.h.s8.bf16 %v1538
        %v4289 = vunpack.c.h.s8.bf16 %v1539
        %v4290 = vunpack.c.h.s8.bf16 %v1540
        %v4291 = vunpack.c.h.s8.bf16 %v1541
        %v4292 = vunpack.c.l.s8.bf16 %v1542
        %v4293 = vunpack.c.l.s8.bf16 %v1543
        %v4294 = vunpack.c.l.s8.bf16 %v1544
        %v4295 = vunpack.c.l.s8.bf16 %v1545
        %v4296 = vunpack.c.l.s8.bf16 %v1546
        %v4297 = vunpack.c.l.s8.bf16 %v1547
        %v4298 = vunpack.c.l.s8.bf16 %v1548
        %v4299 = vunpack.c.l.s8.bf16 %v1549
        %v4300 = vunpack.c.l.s8.bf16 %v1550
        %v4301 = vunpack.c.l.s8.bf16 %v1551
        %v4302 = vunpack.c.h.s8.bf16 %v1542
        %v4303 = vunpack.c.h.s8.bf16 %v1543
        %v4304 = vunpack.c.h.s8.bf16 %v1544
        %v4305 = vunpack.c.h.s8.bf16 %v1545
        %v4306 = vunpack.c.h.s8.bf16 %v1546
        %v4307 = vunpack.c.h.s8.bf16 %v1547
        %v4308 = vunpack.c.h.s8.bf16 %v1548
        %v4309 = vunpack.c.h.s8.bf16 %v1549
        %v4310 = vunpack.c.h.s8.bf16 %v1550
        %v4311 = vunpack.c.h.s8.bf16 %v1551
        %v4312 = vunpack.c.l.s8.bf16 %v1552
        %v4313 = vunpack.c.l.s8.bf16 %v1553
        %v4314 = vunpack.c.l.s8.bf16 %v1554
        %v4315 = vunpack.c.l.s8.bf16 %v1555
        %v4316 = vunpack.c.l.s8.bf16 %v1556
        %v4317 = vunpack.c.l.s8.bf16 %v1557
        %v4318 = vunpack.c.l.s8.bf16 %v1558
        %v4319 = vunpack.c.l.s8.bf16 %v1559
        %v4320 = vunpack.c.l.s8.bf16 %v1560
        %v4321 = vunpack.c.l.s8.bf16 %v1561
        %v4322 = vunpack.c.h.s8.bf16 %v1552
        %v4323 = vunpack.c.h.s8.bf16 %v1553
        %v4324 = vunpack.c.h.s8.bf16 %v1554
        %v4325 = vunpack.c.h.s8.bf16 %v1555
        %v4326 = vunpack.c.h.s8.bf16 %v1556
        %v4327 = vunpack.c.h.s8.bf16 %v1557
        %v4328 = vunpack.c.h.s8.bf16 %v1558
        %v4329 = vunpack.c.h.s8.bf16 %v1559
        %v4330 = vunpack.c.h.s8.bf16 %v1560
        %v4331 = vunpack.c.h.s8.bf16 %v1561
        %v4332 = vunpack.c.l.s8.bf16 %v1562
        %v4333 = vunpack.c.l.s8.bf16 %v1563
        %v4334 = vunpack.c.l.s8.bf16 %v1564
        %v4335 = vunpack.c.l.s8.bf16 %v1565
        %v4336 = vunpack.c.l.s8.bf16 %v1566
        %v4337 = vunpack.c.l.s8.bf16 %v1567
        %v4338 = vunpack.c.l.s8.bf16 %v1568
        %v4339 = vunpack.c.l.s8.bf16 %v1569
        %v4340 = vunpack.c.l.s8.bf16 %v1570
        %v4341 = vunpack.c.l.s8.bf16 %v1571
        %v4342 = vunpack.c.h.s8.bf16 %v1562
        %v4343 = vunpack.c.h.s8.bf16 %v1563
        %v4344 = vunpack.c.h.s8.bf16 %v1564
        %v4345 = vunpack.c.h.s8.bf16 %v1565
        %v4346 = vunpack.c.h.s8.bf16 %v1566
        %v4347 = vunpack.c.h.s8.bf16 %v1567
        %v4348 = vunpack.c.h.s8.bf16 %v1568
        %v4349 = vunpack.c.h.s8.bf16 %v1569
        %v4350 = vunpack.c.h.s8.bf16 %v1570
        %v4351 = vunpack.c.h.s8.bf16 %v1571
        %v4352 = vunpack.c.l.s8.bf16 %v1572
        %v4353 = vunpack.c.l.s8.bf16 %v1573
        %v4354 = vunpack.c.l.s8.bf16 %v1574
        %v4355 = vunpack.c.l.s8.bf16 %v1575
        %v4356 = vunpack.c.l.s8.bf16 %v1576
        %v4357 = vunpack.c.l.s8.bf16 %v1577
        %v4358 = vunpack.c.l.s8.bf16 %v1578
        %v4359 = vunpack.c.l.s8.bf16 %v1579
        %v4360 = vunpack.c.l.s8.bf16 %v1580
        %v4361 = vunpack.c.l.s8.bf16 %v1581
        %v4362 = vunpack.c.h.s8.bf16 %v1572
        %v4363 = vunpack.c.h.s8.bf16 %v1573
        %v4364 = vunpack.c.h.s8.bf16 %v1574
        %v4365 = vunpack.c.h.s8.bf16 %v1575
        %v4366 = vunpack.c.h.s8.bf16 %v1576
        %v4367 = vunpack.c.h.s8.bf16 %v1577
        %v4368 = vunpack.c.h.s8.bf16 %v1578
        %v4369 = vunpack.c.h.s8.bf16 %v1579
        %v4370 = vunpack.c.h.s8.bf16 %v1580
        %v4371 = vunpack.c.h.s8.bf16 %v1581
        %v4372 = vunpack.c.l.s8.bf16 %v1582
        %v4373 = vunpack.c.l.s8.bf16 %v1583
        %v4374 = vunpack.c.l.s8.bf16 %v1584
        %v4375 = vunpack.c.l.s8.bf16 %v1585
        %v4376 = vunpack.c.l.s8.bf16 %v1586
        %v4377 = vunpack.c.l.s8.bf16 %v1587
        %v4378 = vunpack.c.l.s8.bf16 %v1588
        %v4379 = vunpack.c.l.s8.bf16 %v1589
        %v4380 = vunpack.c.l.s8.bf16 %v1590
        %v4381 = vunpack.c.l.s8.bf16 %v1591
        %v4382 = vunpack.c.h.s8.bf16 %v1582
        %v4383 = vunpack.c.h.s8.bf16 %v1583
        %v4384 = vunpack.c.h.s8.bf16 %v1584
        %v4385 = vunpack.c.h.s8.bf16 %v1585
        %v4386 = vunpack.c.h.s8.bf16 %v1586
        %v4387 = vunpack.c.h.s8.bf16 %v1587
        %v4388 = vunpack.c.h.s8.bf16 %v1588
        %v4389 = vunpack.c.h.s8.bf16 %v1589
        %v4390 = vunpack.c.h.s8.bf16 %v1590
        %v4391 = vunpack.c.h.s8.bf16 %v1591
        %v4392 = vunpack.c.l.s8.bf16 %v1592
        %v4393 = vunpack.c.l.s8.bf16 %v1593
        %v4394 = vunpack.c.l.s8.bf16 %v1594
        %v4395 = vunpack.c.l.s8.bf16 %v1595
        %v4396 = vunpack.c.l.s8.bf16 %v1596
        %v4397 = vunpack.c.l.s8.bf16 %v1597
        %v4398 = vunpack.c.l.s8.bf16 %v1598
        %v4399 = vunpack.c.l.s8.bf16 %v1599
        %v4400 = vunpack.c.l.s8.bf16 %v1600
        %v4401 = vunpack.c.l.s8.bf16 %v1601
        %v4402 = vunpack.c.h.s8.bf16 %v1592
        %v4403 = vunpack.c.h.s8.bf16 %v1593
        %v4404 = vunpack.c.h.s8.bf16 %v1594
        %v4405 = vunpack.c.h.s8.bf16 %v1595
        %v4406 = vunpack.c.h.s8.bf16 %v1596
        %v4407 = vunpack.c.h.s8.bf16 %v1597
        %v4408 = vunpack.c.h.s8.bf16 %v1598
        %v4409 = vunpack.c.h.s8.bf16 %v1599
        %v4410 = vunpack.c.h.s8.bf16 %v1600
        %v4411 = vunpack.c.h.s8.bf16 %v1601
        %v4412 = vunpack.c.l.s8.bf16 %v1602
        %v4413 = vunpack.c.l.s8.bf16 %v1603
        %v4414 = vunpack.c.l.s8.bf16 %v1604
        %v4415 = vunpack.c.l.s8.bf16 %v1605
        %v4416 = vunpack.c.l.s8.bf16 %v1606
        %v4417 = vunpack.c.l.s8.bf16 %v1607
        %v4418 = vunpack.c.l.s8.bf16 %v1608
        %v4419 = vunpack.c.l.s8.bf16 %v1609
        %v4420 = vunpack.c.l.s8.bf16 %v1610
        %v4421 = vunpack.c.l.s8.bf16 %v1611
        %v4422 = vunpack.c.h.s8.bf16 %v1602
        %v4423 = vunpack.c.h.s8.bf16 %v1603
        %v4424 = vunpack.c.h.s8.bf16 %v1604
        %v4425 = vunpack.c.h.s8.bf16 %v1605
        %v4426 = vunpack.c.h.s8.bf16 %v1606
        %v4427 = vunpack.c.h.s8.bf16 %v1607
        %v4428 = vunpack.c.h.s8.bf16 %v1608
        %v4429 = vunpack.c.h.s8.bf16 %v1609
        %v4430 = vunpack.c.h.s8.bf16 %v1610
        %v4431 = vunpack.c.h.s8.bf16 %v1611
        %v4432 = vunpack.c.l.s8.bf16 %v1612
        %v4433 = vunpack.c.l.s8.bf16 %v1613
        %v4434 = vunpack.c.l.s8.bf16 %v1614
        %v4435 = vunpack.c.l.s8.bf16 %v1615
        %v4436 = vunpack.c.l.s8.bf16 %v1616
        %v4437 = vunpack.c.l.s8.bf16 %v1617
        %v4438 = vunpack.c.l.s8.bf16 %v1618
        %v4439 = vunpack.c.l.s8.bf16 %v1619
        %v4440 = vunpack.c.l.s8.bf16 %v1620
        %v4441 = vunpack.c.l.s8.bf16 %v1621
        %v4442 = vunpack.c.h.s8.bf16 %v1612
        %v4443 = vunpack.c.h.s8.bf16 %v1613
        %v4444 = vunpack.c.h.s8.bf16 %v1614
        %v4445 = vunpack.c.h.s8.bf16 %v1615
        %v4446 = vunpack.c.h.s8.bf16 %v1616
        %v4447 = vunpack.c.h.s8.bf16 %v1617
        %v4448 = vunpack.c.h.s8.bf16 %v1618
        %v4449 = vunpack.c.h.s8.bf16 %v1619
        %v4450 = vunpack.c.h.s8.bf16 %v1620
        %v4451 = vunpack.c.h.s8.bf16 %v1621
        %v4452 = vunpack.c.l.s8.bf16 %v1622
        %v4453 = vunpack.c.l.s8.bf16 %v1623
        %v4454 = vunpack.c.l.s8.bf16 %v1624
        %v4455 = vunpack.c.l.s8.bf16 %v1625
        %v4456 = vunpack.c.l.s8.bf16 %v1626
        %v4457 = vunpack.c.l.s8.bf16 %v1627
        %v4458 = vunpack.c.l.s8.bf16 %v1628
        %v4459 = vunpack.c.l.s8.bf16 %v1629
        %v4460 = vunpack.c.l.s8.bf16 %v1630
        %v4461 = vunpack.c.l.s8.bf16 %v1631
        %v4462 = vunpack.c.h.s8.bf16 %v1622
        %v4463 = vunpack.c.h.s8.bf16 %v1623
        %v4464 = vunpack.c.h.s8.bf16 %v1624
        %v4465 = vunpack.c.h.s8.bf16 %v1625
        %v4466 = vunpack.c.h.s8.bf16 %v1626
        %v4467 = vunpack.c.h.s8.bf16 %v1627
        %v4468 = vunpack.c.h.s8.bf16 %v1628
        %v4469 = vunpack.c.h.s8.bf16 %v1629
        %v4470 = vunpack.c.h.s8.bf16 %v1630
        %v4471 = vunpack.c.h.s8.bf16 %v1631
        %v4472 = vunpack.c.l.s8.bf16 %v1632
        %v4473 = vunpack.c.l.s8.bf16 %v1633
        %v4474 = vunpack.c.l.s8.bf16 %v1634
        %v4475 = vunpack.c.l.s8.bf16 %v1635
        %v4476 = vunpack.c.l.s8.bf16 %v1636
        %v4477 = vunpack.c.l.s8.bf16 %v1637
        %v4478 = vunpack.c.l.s8.bf16 %v1638
        %v4479 = vunpack.c.l.s8.bf16 %v1639
        %v4480 = vunpack.c.l.s8.bf16 %v1640
        %v4481 = vunpack.c.l.s8.bf16 %v1641
        %v4482 = vunpack.c.h.s8.bf16 %v1632
        %v4483 = vunpack.c.h.s8.bf16 %v1633
        %v4484 = vunpack.c.h.s8.bf16 %v1634
        %v4485 = vunpack.c.h.s8.bf16 %v1635
        %v4486 = vunpack.c.h.s8.bf16 %v1636
        %v4487 = vunpack.c.h.s8.bf16 %v1637
        %v4488 = vunpack.c.h.s8.bf16 %v1638
        %v4489 = vunpack.c.h.s8.bf16 %v1639
        %v4490 = vunpack.c.h.s8.bf16 %v1640
        %v4491 = vunpack.c.h.s8.bf16 %v1641
        %v4492 = vunpack.c.l.s8.bf16 %v1642
        %v4493 = vunpack.c.l.s8.bf16 %v1643
        %v4494 = vunpack.c.l.s8.bf16 %v1644
        %v4495 = vunpack.c.l.s8.bf16 %v1645
        %v4496 = vunpack.c.l.s8.bf16 %v1646
        %v4497 = vunpack.c.l.s8.bf16 %v1647
        %v4498 = vunpack.c.l.s8.bf16 %v1648
        %v4499 = vunpack.c.l.s8.bf16 %v1649
        %v4500 = vunpack.c.l.s8.bf16 %v1650
        %v4501 = vunpack.c.l.s8.bf16 %v1651
        %v4502 = vunpack.c.h.s8.bf16 %v1642
        %v4503 = vunpack.c.h.s8.bf16 %v1643
        %v4504 = vunpack.c.h.s8.bf16 %v1644
        %v4505 = vunpack.c.h.s8.bf16 %v1645
        %v4506 = vunpack.c.h.s8.bf16 %v1646
        %v4507 = vunpack.c.h.s8.bf16 %v1647
        %v4508 = vunpack.c.h.s8.bf16 %v1648
        %v4509 = vunpack.c.h.s8.bf16 %v1649
        %v4510 = vunpack.c.h.s8.bf16 %v1650
        %v4511 = vunpack.c.h.s8.bf16 %v1651
        %v4512 = vunpack.c.l.s8.bf16 %v1652
        %v4513 = vunpack.c.l.s8.bf16 %v1653
        %v4514 = vunpack.c.l.s8.bf16 %v1654
        %v4515 = vunpack.c.l.s8.bf16 %v1655
        %v4516 = vunpack.c.l.s8.bf16 %v1656
        %v4517 = vunpack.c.l.s8.bf16 %v1657
        %v4518 = vunpack.c.l.s8.bf16 %v1658
        %v4519 = vunpack.c.l.s8.bf16 %v1659
        %v4520 = vunpack.c.l.s8.bf16 %v1660
        %v4521 = vunpack.c.l.s8.bf16 %v1661
        %v4522 = vunpack.c.h.s8.bf16 %v1652
        %v4523 = vunpack.c.h.s8.bf16 %v1653
        %v4524 = vunpack.c.h.s8.bf16 %v1654
        %v4525 = vunpack.c.h.s8.bf16 %v1655
        %v4526 = vunpack.c.h.s8.bf16 %v1656
        %v4527 = vunpack.c.h.s8.bf16 %v1657
        %v4528 = vunpack.c.h.s8.bf16 %v1658
        %v4529 = vunpack.c.h.s8.bf16 %v1659
        %v4530 = vunpack.c.h.s8.bf16 %v1660
        %v4531 = vunpack.c.h.s8.bf16 %v1661
        %v4532 = vunpack.c.l.s8.bf16 %v1662
        %v4533 = vunpack.c.l.s8.bf16 %v1663
        %v4534 = vunpack.c.l.s8.bf16 %v1664
        %v4535 = vunpack.c.l.s8.bf16 %v1665
        %v4536 = vunpack.c.l.s8.bf16 %v1666
        %v4537 = vunpack.c.l.s8.bf16 %v1667
        %v4538 = vunpack.c.l.s8.bf16 %v1668
        %v4539 = vunpack.c.l.s8.bf16 %v1669
        %v4540 = vunpack.c.l.s8.bf16 %v1670
        %v4541 = vunpack.c.l.s8.bf16 %v1671
        %v4542 = vunpack.c.h.s8.bf16 %v1662
        %v4543 = vunpack.c.h.s8.bf16 %v1663
        %v4544 = vunpack.c.h.s8.bf16 %v1664
        %v4545 = vunpack.c.h.s8.bf16 %v1665
        %v4546 = vunpack.c.h.s8.bf16 %v1666
        %v4547 = vunpack.c.h.s8.bf16 %v1667
        %v4548 = vunpack.c.h.s8.bf16 %v1668
        %v4549 = vunpack.c.h.s8.bf16 %v1669
        %v4550 = vunpack.c.h.s8.bf16 %v1670
        %v4551 = vunpack.c.h.s8.bf16 %v1671
        %v4552 = vunpack.c.l.s8.bf16 %v1672
        %v4553 = vunpack.c.l.s8.bf16 %v1673
        %v4554 = vunpack.c.l.s8.bf16 %v1674
        %v4555 = vunpack.c.l.s8.bf16 %v1675
        %v4556 = vunpack.c.l.s8.bf16 %v1676
        %v4557 = vunpack.c.l.s8.bf16 %v1677
        %v4558 = vunpack.c.l.s8.bf16 %v1678
        %v4559 = vunpack.c.l.s8.bf16 %v1679
        %v4560 = vunpack.c.l.s8.bf16 %v1680
        %v4561 = vunpack.c.l.s8.bf16 %v1681
        %v4562 = vunpack.c.h.s8.bf16 %v1672
        %v4563 = vunpack.c.h.s8.bf16 %v1673
        %v4564 = vunpack.c.h.s8.bf16 %v1674
        %v4565 = vunpack.c.h.s8.bf16 %v1675
        %v4566 = vunpack.c.h.s8.bf16 %v1676
        %v4567 = vunpack.c.h.s8.bf16 %v1677
        %v4568 = vunpack.c.h.s8.bf16 %v1678
        %v4569 = vunpack.c.h.s8.bf16 %v1679
        %v4570 = vunpack.c.h.s8.bf16 %v1680
        %v4571 = vunpack.c.h.s8.bf16 %v1681
        %v4572 = vunpack.c.l.s8.bf16 %v1682
        %v4573 = vunpack.c.l.s8.bf16 %v1683
        %v4574 = vunpack.c.l.s8.bf16 %v1684
        %v4575 = vunpack.c.l.s8.bf16 %v1685
        %v4576 = vunpack.c.l.s8.bf16 %v1686
        %v4577 = vunpack.c.l.s8.bf16 %v1687
        %v4578 = vunpack.c.l.s8.bf16 %v1688
        %v4579 = vunpack.c.l.s8.bf16 %v1689
        %v4580 = vunpack.c.l.s8.bf16 %v1690
        %v4581 = vunpack.c.l.s8.bf16 %v1691
        %v4582 = vunpack.c.h.s8.bf16 %v1682
        %v4583 = vunpack.c.h.s8.bf16 %v1683
        %v4584 = vunpack.c.h.s8.bf16 %v1684
        %v4585 = vunpack.c.h.s8.bf16 %v1685
        %v4586 = vunpack.c.h.s8.bf16 %v1686
        %v4587 = vunpack.c.h.s8.bf16 %v1687
        %v4588 = vunpack.c.h.s8.bf16 %v1688
        %v4589 = vunpack.c.h.s8.bf16 %v1689
        %v4590 = vunpack.c.h.s8.bf16 %v1690
        %v4591 = vunpack.c.h.s8.bf16 %v1691
        %v4592 = vunpack.c.l.s8.bf16 %v1692
        %v4593 = vunpack.c.l.s8.bf16 %v1693
        %v4594 = vunpack.c.l.s8.bf16 %v1694
        %v4595 = vunpack.c.l.s8.bf16 %v1695
        %v4596 = vunpack.c.l.s8.bf16 %v1696
        %v4597 = vunpack.c.l.s8.bf16 %v1697
        %v4598 = vunpack.c.l.s8.bf16 %v1698
        %v4599 = vunpack.c.l.s8.bf16 %v1699
        %v4600 = vunpack.c.l.s8.bf16 %v1700
        %v4601 = vunpack.c.l.s8.bf16 %v1701
        %v4602 = vunpack.c.h.s8.bf16 %v1692
        %v4603 = vunpack.c.h.s8.bf16 %v1693
        %v4604 = vunpack.c.h.s8.bf16 %v1694
        %v4605 = vunpack.c.h.s8.bf16 %v1695
        %v4606 = vunpack.c.h.s8.bf16 %v1696
        %v4607 = vunpack.c.h.s8.bf16 %v1697
        %v4608 = vunpack.c.h.s8.bf16 %v1698
        %v4609 = vunpack.c.h.s8.bf16 %v1699
        %v4610 = vunpack.c.h.s8.bf16 %v1700
        %v4611 = vunpack.c.h.s8.bf16 %v1701
        %v4612 = vunpack.c.l.s8.bf16 %v1702
        %v4613 = vunpack.c.l.s8.bf16 %v1703
        %v4614 = vunpack.c.l.s8.bf16 %v1704
        %v4615 = vunpack.c.l.s8.bf16 %v1705
        %v4616 = vunpack.c.l.s8.bf16 %v1706
        %v4617 = vunpack.c.l.s8.bf16 %v1707
        %v4618 = vunpack.c.l.s8.bf16 %v1708
        %v4619 = vunpack.c.l.s8.bf16 %v1709
        %v4620 = vunpack.c.l.s8.bf16 %v1710
        %v4621 = vunpack.c.l.s8.bf16 %v1711
        %v4622 = vunpack.c.h.s8.bf16 %v1702
        %v4623 = vunpack.c.h.s8.bf16 %v1703
        %v4624 = vunpack.c.h.s8.bf16 %v1704
        %v4625 = vunpack.c.h.s8.bf16 %v1705
        %v4626 = vunpack.c.h.s8.bf16 %v1706
        %v4627 = vunpack.c.h.s8.bf16 %v1707
        %v4628 = vunpack.c.h.s8.bf16 %v1708
        %v4629 = vunpack.c.h.s8.bf16 %v1709
        %v4630 = vunpack.c.h.s8.bf16 %v1710
        %v4631 = vunpack.c.h.s8.bf16 %v1711
        %v4632 = vunpack.c.l.s8.bf16 %v1712
        %v4633 = vunpack.c.l.s8.bf16 %v1713
        %v4634 = vunpack.c.l.s8.bf16 %v1714
        %v4635 = vunpack.c.l.s8.bf16 %v1715
        %v4636 = vunpack.c.l.s8.bf16 %v1716
        %v4637 = vunpack.c.l.s8.bf16 %v1717
        %v4638 = vunpack.c.l.s8.bf16 %v1718
        %v4639 = vunpack.c.l.s8.bf16 %v1719
        %v4640 = vunpack.c.l.s8.bf16 %v1720
        %v4641 = vunpack.c.l.s8.bf16 %v1721
        %v4642 = vunpack.c.h.s8.bf16 %v1712
        %v4643 = vunpack.c.h.s8.bf16 %v1713
        %v4644 = vunpack.c.h.s8.bf16 %v1714
        %v4645 = vunpack.c.h.s8.bf16 %v1715
        %v4646 = vunpack.c.h.s8.bf16 %v1716
        %v4647 = vunpack.c.h.s8.bf16 %v1717
        %v4648 = vunpack.c.h.s8.bf16 %v1718
        %v4649 = vunpack.c.h.s8.bf16 %v1719
        %v4650 = vunpack.c.h.s8.bf16 %v1720
        %v4651 = vunpack.c.h.s8.bf16 %v1721
        %v4652 = vunpack.c.l.s8.bf16 %v1722
        %v4653 = vunpack.c.l.s8.bf16 %v1723
        %v4654 = vunpack.c.l.s8.bf16 %v1724
        %v4655 = vunpack.c.l.s8.bf16 %v1725
        %v4656 = vunpack.c.l.s8.bf16 %v1726
        %v4657 = vunpack.c.l.s8.bf16 %v1727
        %v4658 = vunpack.c.l.s8.bf16 %v1728
        %v4659 = vunpack.c.l.s8.bf16 %v1729
        %v4660 = vunpack.c.l.s8.bf16 %v1730
        %v4661 = vunpack.c.l.s8.bf16 %v1731
        %v4662 = vunpack.c.h.s8.bf16 %v1722
        %v4663 = vunpack.c.h.s8.bf16 %v1723
        %v4664 = vunpack.c.h.s8.bf16 %v1724
        %v4665 = vunpack.c.h.s8.bf16 %v1725
        %v4666 = vunpack.c.h.s8.bf16 %v1726
        %v4667 = vunpack.c.h.s8.bf16 %v1727
        %v4668 = vunpack.c.h.s8.bf16 %v1728
        %v4669 = vunpack.c.h.s8.bf16 %v1729
        %v4670 = vunpack.c.h.s8.bf16 %v1730
        %v4671 = vunpack.c.h.s8.bf16 %v1731
        %v4672 = vunpack.c.l.s8.bf16 %v1732
        %v4673 = vunpack.c.l.s8.bf16 %v1733
        %v4674 = vunpack.c.l.s8.bf16 %v1734
        %v4675 = vunpack.c.l.s8.bf16 %v1735
        %v4676 = vunpack.c.l.s8.bf16 %v1736
        %v4677 = vunpack.c.l.s8.bf16 %v1737
        %v4678 = vunpack.c.l.s8.bf16 %v1738
        %v4679 = vunpack.c.l.s8.bf16 %v1739
        %v4680 = vunpack.c.l.s8.bf16 %v1740
        %v4681 = vunpack.c.l.s8.bf16 %v1741
        %v4682 = vunpack.c.h.s8.bf16 %v1732
        %v4683 = vunpack.c.h.s8.bf16 %v1733
        %v4684 = vunpack.c.h.s8.bf16 %v1734
        %v4685 = vunpack.c.h.s8.bf16 %v1735
        %v4686 = vunpack.c.h.s8.bf16 %v1736
        %v4687 = vunpack.c.h.s8.bf16 %v1737
        %v4688 = vunpack.c.h.s8.bf16 %v1738
        %v4689 = vunpack.c.h.s8.bf16 %v1739
        %v4690 = vunpack.c.h.s8.bf16 %v1740
        %v4691 = vunpack.c.h.s8.bf16 %v1741
        %v4692 = vunpack.c.l.s8.bf16 %v1742
        %v4693 = vunpack.c.l.s8.bf16 %v1743
        %v4694 = vunpack.c.l.s8.bf16 %v1744
        %v4695 = vunpack.c.l.s8.bf16 %v1745
        %v4696 = vunpack.c.l.s8.bf16 %v1746
        %v4697 = vunpack.c.l.s8.bf16 %v1747
        %v4698 = vunpack.c.l.s8.bf16 %v1748
        %v4699 = vunpack.c.l.s8.bf16 %v1749
        %v4700 = vunpack.c.l.s8.bf16 %v1750
        %v4701 = vunpack.c.l.s8.bf16 %v1751
        %v4702 = vunpack.c.h.s8.bf16 %v1742
        %v4703 = vunpack.c.h.s8.bf16 %v1743
        %v4704 = vunpack.c.h.s8.bf16 %v1744
        %v4705 = vunpack.c.h.s8.bf16 %v1745
        %v4706 = vunpack.c.h.s8.bf16 %v1746
        %v4707 = vunpack.c.h.s8.bf16 %v1747
        %v4708 = vunpack.c.h.s8.bf16 %v1748
        %v4709 = vunpack.c.h.s8.bf16 %v1749
        %v4710 = vunpack.c.h.s8.bf16 %v1750
        %v4711 = vunpack.c.h.s8.bf16 %v1751
        %v4712 = vunpack.c.l.s8.bf16 %v1752
        %v4713 = vunpack.c.l.s8.bf16 %v1753
        %v4714 = vunpack.c.l.s8.bf16 %v1754
        %v4715 = vunpack.c.l.s8.bf16 %v1755
        %v4716 = vunpack.c.l.s8.bf16 %v1756
        %v4717 = vunpack.c.l.s8.bf16 %v1757
        %v4718 = vunpack.c.l.s8.bf16 %v1758
        %v4719 = vunpack.c.l.s8.bf16 %v1759
        %v4720 = vunpack.c.l.s8.bf16 %v1760
        %v4721 = vunpack.c.l.s8.bf16 %v1761
        %v4722 = vunpack.c.h.s8.bf16 %v1752
        %v4723 = vunpack.c.h.s8.bf16 %v1753
        %v4724 = vunpack.c.h.s8.bf16 %v1754
        %v4725 = vunpack.c.h.s8.bf16 %v1755
        %v4726 = vunpack.c.h.s8.bf16 %v1756
        %v4727 = vunpack.c.h.s8.bf16 %v1757
        %v4728 = vunpack.c.h.s8.bf16 %v1758
        %v4729 = vunpack.c.h.s8.bf16 %v1759
        %v4730 = vunpack.c.h.s8.bf16 %v1760
        %v4731 = vunpack.c.h.s8.bf16 %v1761
        %v4732 = vunpack.c.l.s8.bf16 %v1762
        %v4733 = vunpack.c.l.s8.bf16 %v1763
        %v4734 = vunpack.c.l.s8.bf16 %v1764
        %v4735 = vunpack.c.l.s8.bf16 %v1765
        %v4736 = vunpack.c.l.s8.bf16 %v1766
        %v4737 = vunpack.c.l.s8.bf16 %v1767
        %v4738 = vunpack.c.l.s8.bf16 %v1768
        %v4739 = vunpack.c.l.s8.bf16 %v1769
        %v4740 = vunpack.c.l.s8.bf16 %v1770
        %v4741 = vunpack.c.l.s8.bf16 %v1771
        %v4742 = vunpack.c.h.s8.bf16 %v1762
        %v4743 = vunpack.c.h.s8.bf16 %v1763
        %v4744 = vunpack.c.h.s8.bf16 %v1764
        %v4745 = vunpack.c.h.s8.bf16 %v1765
        %v4746 = vunpack.c.h.s8.bf16 %v1766
        %v4747 = vunpack.c.h.s8.bf16 %v1767
        %v4748 = vunpack.c.h.s8.bf16 %v1768
        %v4749 = vunpack.c.h.s8.bf16 %v1769
        %v4750 = vunpack.c.h.s8.bf16 %v1770
        %v4751 = vunpack.c.h.s8.bf16 %v1771
        %v4752 = vunpack.c.l.s8.bf16 %v1772
        %v4753 = vunpack.c.l.s8.bf16 %v1773
        %v4754 = vunpack.c.l.s8.bf16 %v1774
        %v4755 = vunpack.c.l.s8.bf16 %v1775
        %v4756 = vunpack.c.l.s8.bf16 %v1776
        %v4757 = vunpack.c.l.s8.bf16 %v1777
        %v4758 = vunpack.c.l.s8.bf16 %v1778
        %v4759 = vunpack.c.l.s8.bf16 %v1779
        %v4760 = vunpack.c.l.s8.bf16 %v1780
        %v4761 = vunpack.c.l.s8.bf16 %v1781
        %v4762 = vunpack.c.h.s8.bf16 %v1772
        %v4763 = vunpack.c.h.s8.bf16 %v1773
        %v4764 = vunpack.c.h.s8.bf16 %v1774
        %v4765 = vunpack.c.h.s8.bf16 %v1775
        %v4766 = vunpack.c.h.s8.bf16 %v1776
        %v4767 = vunpack.c.h.s8.bf16 %v1777
        %v4768 = vunpack.c.h.s8.bf16 %v1778
        %v4769 = vunpack.c.h.s8.bf16 %v1779
        %v4770 = vunpack.c.h.s8.bf16 %v1780
        %v4771 = vunpack.c.h.s8.bf16 %v1781
        %v4772 = vunpack.c.l.s8.bf16 %v1782
        %v4773 = vunpack.c.l.s8.bf16 %v1783
        %v4774 = vunpack.c.l.s8.bf16 %v1784
        %v4775 = vunpack.c.l.s8.bf16 %v1785
        %v4776 = vunpack.c.l.s8.bf16 %v1786
        %v4777 = vunpack.c.l.s8.bf16 %v1787
        %v4778 = vunpack.c.l.s8.bf16 %v1788
        %v4779 = vunpack.c.l.s8.bf16 %v1789
        %v4780 = vunpack.c.l.s8.bf16 %v1790
        %v4781 = vunpack.c.l.s8.bf16 %v1791
        %v4782 = vunpack.c.h.s8.bf16 %v1782
        %v4783 = vunpack.c.h.s8.bf16 %v1783
        %v4784 = vunpack.c.h.s8.bf16 %v1784
        %v4785 = vunpack.c.h.s8.bf16 %v1785
        %v4786 = vunpack.c.h.s8.bf16 %v1786
        %v4787 = vunpack.c.h.s8.bf16 %v1787
        %v4788 = vunpack.c.h.s8.bf16 %v1788
        %v4789 = vunpack.c.h.s8.bf16 %v1789
        %v4790 = vunpack.c.h.s8.bf16 %v1790
        %v4791 = vunpack.c.h.s8.bf16 %v1791
        %v4792 = vunpack.c.l.s8.bf16 %v1792
        %v4793 = vunpack.c.l.s8.bf16 %v1793
        %v4794 = vunpack.c.l.s8.bf16 %v1794
        %v4795 = vunpack.c.l.s8.bf16 %v1795
        %v4796 = vunpack.c.l.s8.bf16 %v1796
        %v4797 = vunpack.c.l.s8.bf16 %v1797
        %v4798 = vunpack.c.l.s8.bf16 %v1798
        %v4799 = vunpack.c.l.s8.bf16 %v1799
        %v4800 = vunpack.c.l.s8.bf16 %v1800
        %v4801 = vunpack.c.l.s8.bf16 %v1801
        %v4802 = vunpack.c.h.s8.bf16 %v1792
        %v4803 = vunpack.c.h.s8.bf16 %v1793
        %v4804 = vunpack.c.h.s8.bf16 %v1794
        %v4805 = vunpack.c.h.s8.bf16 %v1795
        %v4806 = vunpack.c.h.s8.bf16 %v1796
        %v4807 = vunpack.c.h.s8.bf16 %v1797
        %v4808 = vunpack.c.h.s8.bf16 %v1798
        %v4809 = vunpack.c.h.s8.bf16 %v1799
        %v4810 = vunpack.c.h.s8.bf16 %v1800
        %v4811 = vunpack.c.h.s8.bf16 %v1801
        %v4812 = vunpack.c.l.s8.bf16 %v1802
        %v4813 = vunpack.c.l.s8.bf16 %v1803
        %v4814 = vunpack.c.l.s8.bf16 %v1804
        %v4815 = vunpack.c.l.s8.bf16 %v1805
        %v4816 = vunpack.c.l.s8.bf16 %v1806
        %v4817 = vunpack.c.l.s8.bf16 %v1807
        %v4818 = vunpack.c.l.s8.bf16 %v1808
        %v4819 = vunpack.c.l.s8.bf16 %v1809
        %v4820 = vunpack.c.l.s8.bf16 %v1810
        %v4821 = vunpack.c.l.s8.bf16 %v1811
        %v4822 = vunpack.c.h.s8.bf16 %v1802
        %v4823 = vunpack.c.h.s8.bf16 %v1803
        %v4824 = vunpack.c.h.s8.bf16 %v1804
        %v4825 = vunpack.c.h.s8.bf16 %v1805
        %v4826 = vunpack.c.h.s8.bf16 %v1806
        %v4827 = vunpack.c.h.s8.bf16 %v1807
        %v4828 = vunpack.c.h.s8.bf16 %v1808
        %v4829 = vunpack.c.h.s8.bf16 %v1809
        %v4830 = vunpack.c.h.s8.bf16 %v1810
        %v4831 = vunpack.c.h.s8.bf16 %v1811
        %v4832 = vunpack.c.l.s8.bf16 %v1812
        %v4833 = vunpack.c.l.s8.bf16 %v1813
        %v4834 = vunpack.c.l.s8.bf16 %v1814
        %v4835 = vunpack.c.l.s8.bf16 %v1815
        %v4836 = vunpack.c.l.s8.bf16 %v1816
        %v4837 = vunpack.c.l.s8.bf16 %v1817
        %v4838 = vunpack.c.l.s8.bf16 %v1818
        %v4839 = vunpack.c.l.s8.bf16 %v1819
        %v4840 = vunpack.c.l.s8.bf16 %v1820
        %v4841 = vunpack.c.l.s8.bf16 %v1821
        %v4842 = vunpack.c.h.s8.bf16 %v1812
        %v4843 = vunpack.c.h.s8.bf16 %v1813
        %v4844 = vunpack.c.h.s8.bf16 %v1814
        %v4845 = vunpack.c.h.s8.bf16 %v1815
        %v4846 = vunpack.c.h.s8.bf16 %v1816
        %v4847 = vunpack.c.h.s8.bf16 %v1817
        %v4848 = vunpack.c.h.s8.bf16 %v1818
        %v4849 = vunpack.c.h.s8.bf16 %v1819
        %v4850 = vunpack.c.h.s8.bf16 %v1820
        %v4851 = vunpack.c.h.s8.bf16 %v1821
        %v4852 = vunpack.c.l.s8.bf16 %v1822
        %v4853 = vunpack.c.l.s8.bf16 %v1823
        %v4854 = vunpack.c.l.s8.bf16 %v1824
        %v4855 = vunpack.c.l.s8.bf16 %v1825
        %v4856 = vunpack.c.l.s8.bf16 %v1826
        %v4857 = vunpack.c.l.s8.bf16 %v1827
        %v4858 = vunpack.c.l.s8.bf16 %v1828
        %v4859 = vunpack.c.l.s8.bf16 %v1829
        %v4860 = vunpack.c.l.s8.bf16 %v1830
        %v4861 = vunpack.c.l.s8.bf16 %v1831
        %v4862 = vunpack.c.h.s8.bf16 %v1822
        %v4863 = vunpack.c.h.s8.bf16 %v1823
        %v4864 = vunpack.c.h.s8.bf16 %v1824
        %v4865 = vunpack.c.h.s8.bf16 %v1825
        %v4866 = vunpack.c.h.s8.bf16 %v1826
        %v4867 = vunpack.c.h.s8.bf16 %v1827
        %v4868 = vunpack.c.h.s8.bf16 %v1828
        %v4869 = vunpack.c.h.s8.bf16 %v1829
        %v4870 = vunpack.c.h.s8.bf16 %v1830
        %v4871 = vunpack.c.h.s8.bf16 %v1831
        %v4872 = vunpack.c.l.s8.bf16 %v1832
        %v4873 = vunpack.c.l.s8.bf16 %v1833
        %v4874 = vunpack.c.l.s8.bf16 %v1834
        %v4875 = vunpack.c.l.s8.bf16 %v1835
        %v4876 = vunpack.c.l.s8.bf16 %v1836
        %v4877 = vunpack.c.l.s8.bf16 %v1837
        %v4878 = vunpack.c.l.s8.bf16 %v1838
        %v4879 = vunpack.c.l.s8.bf16 %v1839
        %v4880 = vunpack.c.l.s8.bf16 %v1840
        %v4881 = vunpack.c.l.s8.bf16 %v1841
        %v4882 = vunpack.c.h.s8.bf16 %v1832
        %v4883 = vunpack.c.h.s8.bf16 %v1833
        %v4884 = vunpack.c.h.s8.bf16 %v1834
        %v4885 = vunpack.c.h.s8.bf16 %v1835
        %v4886 = vunpack.c.h.s8.bf16 %v1836
        %v4887 = vunpack.c.h.s8.bf16 %v1837
        %v4888 = vunpack.c.h.s8.bf16 %v1838
        %v4889 = vunpack.c.h.s8.bf16 %v1839
        %v4890 = vunpack.c.h.s8.bf16 %v1840
        %v4891 = vunpack.c.h.s8.bf16 %v1841
        %v4892 = vunpack.c.l.s8.bf16 %v1842
        %v4893 = vunpack.c.l.s8.bf16 %v1843
        %v4894 = vunpack.c.l.s8.bf16 %v1844
        %v4895 = vunpack.c.l.s8.bf16 %v1845
        %v4896 = vunpack.c.l.s8.bf16 %v1846
        %v4897 = vunpack.c.l.s8.bf16 %v1847
        %v4898 = vunpack.c.l.s8.bf16 %v1848
        %v4899 = vunpack.c.l.s8.bf16 %v1849
        %v4900 = vunpack.c.l.s8.bf16 %v1850
        %v4901 = vunpack.c.l.s8.bf16 %v1851
        %v4902 = vunpack.c.h.s8.bf16 %v1842
        %v4903 = vunpack.c.h.s8.bf16 %v1843
        %v4904 = vunpack.c.h.s8.bf16 %v1844
        %v4905 = vunpack.c.h.s8.bf16 %v1845
        %v4906 = vunpack.c.h.s8.bf16 %v1846
        %v4907 = vunpack.c.h.s8.bf16 %v1847
        %v4908 = vunpack.c.h.s8.bf16 %v1848
        %v4909 = vunpack.c.h.s8.bf16 %v1849
        %v4910 = vunpack.c.h.s8.bf16 %v1850
        %v4911 = vunpack.c.h.s8.bf16 %v1851
        %v4912 = vunpack.c.l.s8.bf16 %v1852
        %v4913 = vunpack.c.l.s8.bf16 %v1853
        %v4914 = vunpack.c.l.s8.bf16 %v1854
        %v4915 = vunpack.c.l.s8.bf16 %v1855
        %v4916 = vunpack.c.l.s8.bf16 %v1856
        %v4917 = vunpack.c.l.s8.bf16 %v1857
        %v4918 = vunpack.c.l.s8.bf16 %v1858
        %v4919 = vunpack.c.l.s8.bf16 %v1859
        %v4920 = vunpack.c.l.s8.bf16 %v1860
        %v4921 = vunpack.c.l.s8.bf16 %v1861
        %v4922 = vunpack.c.h.s8.bf16 %v1852
        %v4923 = vunpack.c.h.s8.bf16 %v1853
        %v4924 = vunpack.c.h.s8.bf16 %v1854
        %v4925 = vunpack.c.h.s8.bf16 %v1855
        %v4926 = vunpack.c.h.s8.bf16 %v1856
        %v4927 = vunpack.c.h.s8.bf16 %v1857
        %v4928 = vunpack.c.h.s8.bf16 %v1858
        %v4929 = vunpack.c.h.s8.bf16 %v1859
        %v4930 = vunpack.c.h.s8.bf16 %v1860
        %v4931 = vunpack.c.h.s8.bf16 %v1861
        %v4932 = vunpack.c.l.s8.bf16 %v1862
        %v4933 = vunpack.c.l.s8.bf16 %v1863
        %v4934 = vunpack.c.l.s8.bf16 %v1864
        %v4935 = vunpack.c.l.s8.bf16 %v1865
        %v4936 = vunpack.c.l.s8.bf16 %v1866
        %v4937 = vunpack.c.l.s8.bf16 %v1867
        %v4938 = vunpack.c.l.s8.bf16 %v1868
        %v4939 = vunpack.c.l.s8.bf16 %v1869
        %v4940 = vunpack.c.l.s8.bf16 %v1870
        %v4941 = vunpack.c.l.s8.bf16 %v1871
        %v4942 = vunpack.c.h.s8.bf16 %v1862
        %v4943 = vunpack.c.h.s8.bf16 %v1863
        %v4944 = vunpack.c.h.s8.bf16 %v1864
        %v4945 = vunpack.c.h.s8.bf16 %v1865
        %v4946 = vunpack.c.h.s8.bf16 %v1866
        %v4947 = vunpack.c.h.s8.bf16 %v1867
        %v4948 = vunpack.c.h.s8.bf16 %v1868
        %v4949 = vunpack.c.h.s8.bf16 %v1869
        %v4950 = vunpack.c.h.s8.bf16 %v1870
        %v4951 = vunpack.c.h.s8.bf16 %v1871
        %v4952 = vunpack.c.l.s8.bf16 %v1872
        %v4953 = vunpack.c.l.s8.bf16 %v1873
        %v4954 = vunpack.c.l.s8.bf16 %v1874
        %v4955 = vunpack.c.l.s8.bf16 %v1875
        %v4956 = vunpack.c.l.s8.bf16 %v1876
        %v4957 = vunpack.c.l.s8.bf16 %v1877
        %v4958 = vunpack.c.l.s8.bf16 %v1878
        %v4959 = vunpack.c.l.s8.bf16 %v1879
        %v4960 = vunpack.c.l.s8.bf16 %v1880
        %v4961 = vunpack.c.l.s8.bf16 %v1881
        %v4962 = vunpack.c.h.s8.bf16 %v1872
        %v4963 = vunpack.c.h.s8.bf16 %v1873
        %v4964 = vunpack.c.h.s8.bf16 %v1874
        %v4965 = vunpack.c.h.s8.bf16 %v1875
        %v4966 = vunpack.c.h.s8.bf16 %v1876
        %v4967 = vunpack.c.h.s8.bf16 %v1877
        %v4968 = vunpack.c.h.s8.bf16 %v1878
        %v4969 = vunpack.c.h.s8.bf16 %v1879
        %v4970 = vunpack.c.h.s8.bf16 %v1880
        %v4971 = vunpack.c.h.s8.bf16 %v1881
        %v4972 = vunpack.c.l.s8.bf16 %v1882
        %v4973 = vunpack.c.l.s8.bf16 %v1883
        %v4974 = vunpack.c.l.s8.bf16 %v1884
        %v4975 = vunpack.c.l.s8.bf16 %v1885
        %v4976 = vunpack.c.l.s8.bf16 %v1886
        %v4977 = vunpack.c.l.s8.bf16 %v1887
        %v4978 = vunpack.c.l.s8.bf16 %v1888
        %v4979 = vunpack.c.l.s8.bf16 %v1889
        %v4980 = vunpack.c.l.s8.bf16 %v1890
        %v4981 = vunpack.c.l.s8.bf16 %v1891
        %v4982 = vunpack.c.h.s8.bf16 %v1882
        %v4983 = vunpack.c.h.s8.bf16 %v1883
        %v4984 = vunpack.c.h.s8.bf16 %v1884
        %v4985 = vunpack.c.h.s8.bf16 %v1885
        %v4986 = vunpack.c.h.s8.bf16 %v1886
        %v4987 = vunpack.c.h.s8.bf16 %v1887
        %v4988 = vunpack.c.h.s8.bf16 %v1888
        %v4989 = vunpack.c.h.s8.bf16 %v1889
        %v4990 = vunpack.c.h.s8.bf16 %v1890
        %v4991 = vunpack.c.h.s8.bf16 %v1891
        %v4992 = vunpack.c.l.s8.bf16 %v1892
        %v4993 = vunpack.c.l.s8.bf16 %v1893
        %v4994 = vunpack.c.l.s8.bf16 %v1894
        %v4995 = vunpack.c.l.s8.bf16 %v1895
        %v4996 = vunpack.c.l.s8.bf16 %v1896
        %v4997 = vunpack.c.l.s8.bf16 %v1897
        %v4998 = vunpack.c.l.s8.bf16 %v1898
        %v4999 = vunpack.c.l.s8.bf16 %v1899
        %v5000 = vunpack.c.l.s8.bf16 %v1900
        %v5001 = vunpack.c.l.s8.bf16 %v1901
        %v5002 = vunpack.c.h.s8.bf16 %v1892
        %v5003 = vunpack.c.h.s8.bf16 %v1893
        %v5004 = vunpack.c.h.s8.bf16 %v1894
        %v5005 = vunpack.c.h.s8.bf16 %v1895
        %v5006 = vunpack.c.h.s8.bf16 %v1896
        %v5007 = vunpack.c.h.s8.bf16 %v1897
        %v5008 = vunpack.c.h.s8.bf16 %v1898
        %v5009 = vunpack.c.h.s8.bf16 %v1899
        %v5010 = vunpack.c.h.s8.bf16 %v1900
        %v5011 = vunpack.c.h.s8.bf16 %v1901
        %v5012 = vunpack.c.l.s8.bf16 %v1902
        %v5013 = vunpack.c.l.s8.bf16 %v1903
        %v5014 = vunpack.c.l.s8.bf16 %v1904
        %v5015 = vunpack.c.l.s8.bf16 %v1905
        %v5016 = vunpack.c.l.s8.bf16 %v1906
        %v5017 = vunpack.c.l.s8.bf16 %v1907
        %v5018 = vunpack.c.l.s8.bf16 %v1908
        %v5019 = vunpack.c.l.s8.bf16 %v1909
        %v5020 = vunpack.c.l.s8.bf16 %v1910
        %v5021 = vunpack.c.l.s8.bf16 %v1911
        %v5022 = vunpack.c.h.s8.bf16 %v1902
        %v5023 = vunpack.c.h.s8.bf16 %v1903
        %v5024 = vunpack.c.h.s8.bf16 %v1904
        %v5025 = vunpack.c.h.s8.bf16 %v1905
        %v5026 = vunpack.c.h.s8.bf16 %v1906
        %v5027 = vunpack.c.h.s8.bf16 %v1907
        %v5028 = vunpack.c.h.s8.bf16 %v1908
        %v5029 = vunpack.c.h.s8.bf16 %v1909
        %v5030 = vunpack.c.h.s8.bf16 %v1910
        %v5031 = vunpack.c.h.s8.bf16 %v1911
        %v5032 = vunpack.c.l.s8.bf16 %v1912
        %v5033 = vunpack.c.l.s8.bf16 %v1913
        %v5034 = vunpack.c.l.s8.bf16 %v1914
        %v5035 = vunpack.c.l.s8.bf16 %v1915
        %v5036 = vunpack.c.l.s8.bf16 %v1916
        %v5037 = vunpack.c.l.s8.bf16 %v1917
        %v5038 = vunpack.c.l.s8.bf16 %v1918
        %v5039 = vunpack.c.l.s8.bf16 %v1919
        %v5040 = vunpack.c.l.s8.bf16 %v1920
        %v5041 = vunpack.c.l.s8.bf16 %v1921
        %v5042 = vunpack.c.h.s8.bf16 %v1912
        %v5043 = vunpack.c.h.s8.bf16 %v1913
        %v5044 = vunpack.c.h.s8.bf16 %v1914
        %v5045 = vunpack.c.h.s8.bf16 %v1915
        %v5046 = vunpack.c.h.s8.bf16 %v1916
        %v5047 = vunpack.c.h.s8.bf16 %v1917
        %v5048 = vunpack.c.h.s8.bf16 %v1918
        %v5049 = vunpack.c.h.s8.bf16 %v1919
        %v5050 = vunpack.c.h.s8.bf16 %v1920
        %v5051 = vunpack.c.h.s8.bf16 %v1921
        %v5052 = vunpack.c.l.s8.bf16 %v1922
        %v5053 = vunpack.c.l.s8.bf16 %v1923
        %v5054 = vunpack.c.l.s8.bf16 %v1924
        %v5055 = vunpack.c.l.s8.bf16 %v1925
        %v5056 = vunpack.c.l.s8.bf16 %v1926
        %v5057 = vunpack.c.l.s8.bf16 %v1927
        %v5058 = vunpack.c.l.s8.bf16 %v1928
        %v5059 = vunpack.c.l.s8.bf16 %v1929
        %v5060 = vunpack.c.l.s8.bf16 %v1930
        %v5061 = vunpack.c.l.s8.bf16 %v1931
        %v5062 = vunpack.c.h.s8.bf16 %v1922
        %v5063 = vunpack.c.h.s8.bf16 %v1923
        %v5064 = vunpack.c.h.s8.bf16 %v1924
        %v5065 = vunpack.c.h.s8.bf16 %v1925
        %v5066 = vunpack.c.h.s8.bf16 %v1926
        %v5067 = vunpack.c.h.s8.bf16 %v1927
        %v5068 = vunpack.c.h.s8.bf16 %v1928
        %v5069 = vunpack.c.h.s8.bf16 %v1929
        %v5070 = vunpack.c.h.s8.bf16 %v1930
        %v5071 = vunpack.c.h.s8.bf16 %v1931
        %v5072 = vunpack.c.l.s8.bf16 %v1932
        %v5073 = vunpack.c.l.s8.bf16 %v1933
        %v5074 = vunpack.c.l.s8.bf16 %v1934
        %v5075 = vunpack.c.l.s8.bf16 %v1935
        %v5076 = vunpack.c.l.s8.bf16 %v1936
        %v5077 = vunpack.c.l.s8.bf16 %v1937
        %v5078 = vunpack.c.l.s8.bf16 %v1938
        %v5079 = vunpack.c.l.s8.bf16 %v1939
        %v5080 = vunpack.c.l.s8.bf16 %v1940
        %v5081 = vunpack.c.l.s8.bf16 %v1941
        %v5082 = vunpack.c.h.s8.bf16 %v1932
        %v5083 = vunpack.c.h.s8.bf16 %v1933
        %v5084 = vunpack.c.h.s8.bf16 %v1934
        %v5085 = vunpack.c.h.s8.bf16 %v1935
        %v5086 = vunpack.c.h.s8.bf16 %v1936
        %v5087 = vunpack.c.h.s8.bf16 %v1937
        %v5088 = vunpack.c.h.s8.bf16 %v1938
        %v5089 = vunpack.c.h.s8.bf16 %v1939
        %v5090 = vunpack.c.h.s8.bf16 %v1940
        %v5091 = vunpack.c.h.s8.bf16 %v1941
        %v5092 = vunpack.c.l.s8.bf16 %v1942
        %v5093 = vunpack.c.l.s8.bf16 %v1943
        %v5094 = vunpack.c.l.s8.bf16 %v1944
        %v5095 = vunpack.c.l.s8.bf16 %v1945
        %v5096 = vunpack.c.l.s8.bf16 %v1946
        %v5097 = vunpack.c.l.s8.bf16 %v1947
        %v5098 = vunpack.c.l.s8.bf16 %v1948
        %v5099 = vunpack.c.l.s8.bf16 %v1949
        %v5100 = vunpack.c.l.s8.bf16 %v1950
        %v5101 = vunpack.c.l.s8.bf16 %v1951
        %v5102 = vunpack.c.h.s8.bf16 %v1942
        %v5103 = vunpack.c.h.s8.bf16 %v1943
        %v5104 = vunpack.c.h.s8.bf16 %v1944
        %v5105 = vunpack.c.h.s8.bf16 %v1945
        %v5106 = vunpack.c.h.s8.bf16 %v1946
        %v5107 = vunpack.c.h.s8.bf16 %v1947
        %v5108 = vunpack.c.h.s8.bf16 %v1948
        %v5109 = vunpack.c.h.s8.bf16 %v1949
        %v5110 = vunpack.c.h.s8.bf16 %v1950
        %v5111 = vunpack.c.h.s8.bf16 %v1951
        %v5112 = vunpack.c.l.s8.bf16 %v1952
        %v5113 = vunpack.c.l.s8.bf16 %v1953
        %v5114 = vunpack.c.l.s8.bf16 %v1954
        %v5115 = vunpack.c.l.s8.bf16 %v1955
        %v5116 = vunpack.c.l.s8.bf16 %v1956
        %v5117 = vunpack.c.l.s8.bf16 %v1957
        %v5118 = vunpack.c.l.s8.bf16 %v1958
        %v5119 = vunpack.c.l.s8.bf16 %v1959
        %v5120 = vunpack.c.l.s8.bf16 %v1960
        %v5121 = vunpack.c.l.s8.bf16 %v1961
        %v5122 = vunpack.c.h.s8.bf16 %v1952
        %v5123 = vunpack.c.h.s8.bf16 %v1953
        %v5124 = vunpack.c.h.s8.bf16 %v1954
        %v5125 = vunpack.c.h.s8.bf16 %v1955
        %v5126 = vunpack.c.h.s8.bf16 %v1956
        %v5127 = vunpack.c.h.s8.bf16 %v1957
        %v5128 = vunpack.c.h.s8.bf16 %v1958
        %v5129 = vunpack.c.h.s8.bf16 %v1959
        %v5130 = vunpack.c.h.s8.bf16 %v1960
        %v5131 = vunpack.c.h.s8.bf16 %v1961
        %v5132 = vunpack.c.l.s8.bf16 %v1962
        %v5133 = vunpack.c.l.s8.bf16 %v1963
        %v5134 = vunpack.c.l.s8.bf16 %v1964
        %v5135 = vunpack.c.l.s8.bf16 %v1965
        %v5136 = vunpack.c.l.s8.bf16 %v1966
        %v5137 = vunpack.c.l.s8.bf16 %v1967
        %v5138 = vunpack.c.l.s8.bf16 %v1968
        %v5139 = vunpack.c.l.s8.bf16 %v1969
        %v5140 = vunpack.c.l.s8.bf16 %v1970
        %v5141 = vunpack.c.l.s8.bf16 %v1971
        %v5142 = vunpack.c.h.s8.bf16 %v1962
        %v5143 = vunpack.c.h.s8.bf16 %v1963
        %v5144 = vunpack.c.h.s8.bf16 %v1964
        %v5145 = vunpack.c.h.s8.bf16 %v1965
        %v5146 = vunpack.c.h.s8.bf16 %v1966
        %v5147 = vunpack.c.h.s8.bf16 %v1967
        %v5148 = vunpack.c.h.s8.bf16 %v1968
        %v5149 = vunpack.c.h.s8.bf16 %v1969
        %v5150 = vunpack.c.h.s8.bf16 %v1970
        %v5151 = vunpack.c.h.s8.bf16 %v1971
        %v5152 = vunpack.c.l.s8.bf16 %v1972
        %v5153 = vunpack.c.l.s8.bf16 %v1973
        %v5154 = vunpack.c.l.s8.bf16 %v1974
        %v5155 = vunpack.c.l.s8.bf16 %v1975
        %v5156 = vunpack.c.l.s8.bf16 %v1976
        %v5157 = vunpack.c.l.s8.bf16 %v1977
        %v5158 = vunpack.c.l.s8.bf16 %v1978
        %v5159 = vunpack.c.l.s8.bf16 %v1979
        %v5160 = vunpack.c.l.s8.bf16 %v1980
        %v5161 = vunpack.c.l.s8.bf16 %v1981
        %v5162 = vunpack.c.h.s8.bf16 %v1972
        %v5163 = vunpack.c.h.s8.bf16 %v1973
        %v5164 = vunpack.c.h.s8.bf16 %v1974
        %v5165 = vunpack.c.h.s8.bf16 %v1975
        %v5166 = vunpack.c.h.s8.bf16 %v1976
        %v5167 = vunpack.c.h.s8.bf16 %v1977
        %v5168 = vunpack.c.h.s8.bf16 %v1978
        %v5169 = vunpack.c.h.s8.bf16 %v1979
        %v5170 = vunpack.c.h.s8.bf16 %v1980
        %v5171 = vunpack.c.h.s8.bf16 %v1981
        %v5172 = vunpack.c.l.s8.bf16 %v1982
        %v5173 = vunpack.c.l.s8.bf16 %v1983
        %v5174 = vunpack.c.l.s8.bf16 %v1984
        %v5175 = vunpack.c.l.s8.bf16 %v1985
        %v5176 = vunpack.c.l.s8.bf16 %v1986
        %v5177 = vunpack.c.l.s8.bf16 %v1987
        %v5178 = vunpack.c.l.s8.bf16 %v1988
        %v5179 = vunpack.c.l.s8.bf16 %v1989
        %v5180 = vunpack.c.l.s8.bf16 %v1990
        %v5181 = vunpack.c.l.s8.bf16 %v1991
        %v5182 = vunpack.c.h.s8.bf16 %v1982
        %v5183 = vunpack.c.h.s8.bf16 %v1983
        %v5184 = vunpack.c.h.s8.bf16 %v1984
        %v5185 = vunpack.c.h.s8.bf16 %v1985
        %v5186 = vunpack.c.h.s8.bf16 %v1986
        %v5187 = vunpack.c.h.s8.bf16 %v1987
        %v5188 = vunpack.c.h.s8.bf16 %v1988
        %v5189 = vunpack.c.h.s8.bf16 %v1989
        %v5190 = vunpack.c.h.s8.bf16 %v1990
        %v5191 = vunpack.c.h.s8.bf16 %v1991
        %v5192 = vld [vmem:[%s0] sm:$0xff]
        %v5193 = vld [vmem:[%s0 + $0x8] sm:$0xff]
        %v5194 = vld [vmem:[%s0 + $0x10] sm:$0xff]
        %v5195 = vld [vmem:[%s0 + $0x18] sm:$0xff]
        %v5196 = vld [vmem:[%s0 + $0x20] sm:$0xff]
        %v5202 = vcombine.high %v5192, %v5192
        %v5204 = vunpack.c.l.s4 1966171168
        %v5205 = vunpack.c.0.s8 %v5204
        %v5206 = vlaneseq
        %v5207 = vshrl.u32 %v5206, 7
        %v5208 = vsub.s32 %v5205, %v5207
        %v5209 = vrot.slane %v5192, %v5208
        %v5211 = vunpack.c.l.s4 1966171168
        %v5212 = vunpack.c.0.s8 %v5211
        %v5213 = vlaneseq
        %v5214 = vshrl.u32 %v5213, 7
        %v5215 = vsub.s32 %v5212, %v5214
        %v5216 = vrot.slane %v5202, %v5215
        %v5217 = vcombine.high %v5209, %v5209
        %v5218 = vcombine.high %v5216, %v5216
        %v5220 = vunpack.c.l.s4 1966171168
        %v5221 = vunpack.c.0.s8 %v5220
        %v5222 = vlaneseq
        %v5223 = vshrl.u32 %v5222, 7
        %v5224 = vsub.s32 %v5221, %v5223
        %v5225 = vrot.slane %v5209, %v5224
        %v5227 = vunpack.c.l.s4 1966171168
        %v5228 = vunpack.c.0.s8 %v5227
        %v5229 = vlaneseq
        %v5230 = vshrl.u32 %v5229, 7
        %v5231 = vsub.s32 %v5228, %v5230
        %v5232 = vrot.slane %v5216, %v5231
        %v5234 = vunpack.c.l.s4 1966171168
        %v5235 = vunpack.c.0.s8 %v5234
        %v5236 = vlaneseq
        %v5237 = vshrl.u32 %v5236, 7
        %v5238 = vsub.s32 %v5235, %v5237
        %v5239 = vrot.slane %v5217, %v5238
        %v5241 = vunpack.c.l.s4 1966171168
        %v5242 = vunpack.c.0.s8 %v5241
        %v5243 = vlaneseq
        %v5244 = vshrl.u32 %v5243, 7
        %v5245 = vsub.s32 %v5242, %v5244
        %v5246 = vrot.slane %v5218, %v5245
        %v5247 = vcombine.high %v5225, %v5225
        %v5248 = vcombine.high %v5232, %v5232
        %v5249 = vcombine.high %v5239, %v5239
        %v5250 = vcombine.high %v5246, %v5246
        %v5251 = vcombine.high %v5193, %v5193
        %v5253 = vunpack.c.l.s4 1966171168
        %v5254 = vunpack.c.0.s8 %v5253
        %v5255 = vlaneseq
        %v5256 = vshrl.u32 %v5255, 7
        %v5257 = vsub.s32 %v5254, %v5256
        %v5258 = vrot.slane %v5193, %v5257
        %v5260 = vunpack.c.l.s4 1966171168
        %v5261 = vunpack.c.0.s8 %v5260
        %v5262 = vlaneseq
        %v5263 = vshrl.u32 %v5262, 7
        %v5264 = vsub.s32 %v5261, %v5263
        %v5265 = vrot.slane %v5251, %v5264
        %v5266 = vcombine.high %v5258, %v5258
        %v5267 = vcombine.high %v5265, %v5265
        %v5269 = vunpack.c.l.s4 1966171168
        %v5270 = vunpack.c.0.s8 %v5269
        %v5271 = vlaneseq
        %v5272 = vshrl.u32 %v5271, 7
        %v5273 = vsub.s32 %v5270, %v5272
        %v5274 = vrot.slane %v5258, %v5273
        %v5276 = vunpack.c.l.s4 1966171168
        %v5277 = vunpack.c.0.s8 %v5276
        %v5278 = vlaneseq
        %v5279 = vshrl.u32 %v5278, 7
        %v5280 = vsub.s32 %v5277, %v5279
        %v5281 = vrot.slane %v5265, %v5280
        %v5283 = vunpack.c.l.s4 1966171168
        %v5284 = vunpack.c.0.s8 %v5283
        %v5285 = vlaneseq
        %v5286 = vshrl.u32 %v5285, 7
        %v5287 = vsub.s32 %v5284, %v5286
        %v5288 = vrot.slane %v5266, %v5287
        %v5290 = vunpack.c.l.s4 1966171168
        %v5291 = vunpack.c.0.s8 %v5290
        %v5292 = vlaneseq
        %v5293 = vshrl.u32 %v5292, 7
        %v5294 = vsub.s32 %v5291, %v5293
        %v5295 = vrot.slane %v5267, %v5294
        %v5296 = vcombine.high %v5274, %v5274
        %v5297 = vcombine.high %v5281, %v5281
        %v5298 = vcombine.high %v5288, %v5288
        %v5299 = vcombine.high %v5295, %v5295
        %v5300 = vcombine.high %v5194, %v5194
        %v5302 = vunpack.c.l.s4 1966171168
        %v5303 = vunpack.c.0.s8 %v5302
        %v5304 = vlaneseq
        %v5305 = vshrl.u32 %v5304, 7
        %v5306 = vsub.s32 %v5303, %v5305
        %v5307 = vrot.slane %v5194, %v5306
        %v5309 = vunpack.c.l.s4 1966171168
        %v5310 = vunpack.c.0.s8 %v5309
        %v5311 = vlaneseq
        %v5312 = vshrl.u32 %v5311, 7
        %v5313 = vsub.s32 %v5310, %v5312
        %v5314 = vrot.slane %v5300, %v5313
        %v5315 = vcombine.high %v5307, %v5307
        %v5316 = vcombine.high %v5314, %v5314
        %v5318 = vunpack.c.l.s4 1966171168
        %v5319 = vunpack.c.0.s8 %v5318
        %v5320 = vlaneseq
        %v5321 = vshrl.u32 %v5320, 7
        %v5322 = vsub.s32 %v5319, %v5321
        %v5323 = vrot.slane %v5307, %v5322
        %v5325 = vunpack.c.l.s4 1966171168
        %v5326 = vunpack.c.0.s8 %v5325
        %v5327 = vlaneseq
        %v5328 = vshrl.u32 %v5327, 7
        %v5329 = vsub.s32 %v5326, %v5328
        %v5330 = vrot.slane %v5314, %v5329
        %v5332 = vunpack.c.l.s4 1966171168
        %v5333 = vunpack.c.0.s8 %v5332
        %v5334 = vlaneseq
        %v5335 = vshrl.u32 %v5334, 7
        %v5336 = vsub.s32 %v5333, %v5335
        %v5337 = vrot.slane %v5315, %v5336
        %v5339 = vunpack.c.l.s4 1966171168
        %v5340 = vunpack.c.0.s8 %v5339
        %v5341 = vlaneseq
        %v5342 = vshrl.u32 %v5341, 7
        %v5343 = vsub.s32 %v5340, %v5342
        %v5344 = vrot.slane %v5316, %v5343
        %v5345 = vcombine.high %v5323, %v5323
        %v5346 = vcombine.high %v5330, %v5330
        %v5347 = vcombine.high %v5337, %v5337
        %v5348 = vcombine.high %v5344, %v5344
        %v5349 = vcombine.high %v5195, %v5195
        %v5351 = vunpack.c.l.s4 1966171168
        %v5352 = vunpack.c.0.s8 %v5351
        %v5353 = vlaneseq
        %v5354 = vshrl.u32 %v5353, 7
        %v5355 = vsub.s32 %v5352, %v5354
        %v5356 = vrot.slane %v5195, %v5355
        %v5358 = vunpack.c.l.s4 1966171168
        %v5359 = vunpack.c.0.s8 %v5358
        %v5360 = vlaneseq
        %v5361 = vshrl.u32 %v5360, 7
        %v5362 = vsub.s32 %v5359, %v5361
        %v5363 = vrot.slane %v5349, %v5362
        %v5364 = vcombine.high %v5356, %v5356
        %v5365 = vcombine.high %v5363, %v5363
        %v5367 = vunpack.c.l.s4 1966171168
        %v5368 = vunpack.c.0.s8 %v5367
        %v5369 = vlaneseq
        %v5370 = vshrl.u32 %v5369, 7
        %v5371 = vsub.s32 %v5368, %v5370
        %v5372 = vrot.slane %v5356, %v5371
        %v5374 = vunpack.c.l.s4 1966171168
        %v5375 = vunpack.c.0.s8 %v5374
        %v5376 = vlaneseq
        %v5377 = vshrl.u32 %v5376, 7
        %v5378 = vsub.s32 %v5375, %v5377
        %v5379 = vrot.slane %v5363, %v5378
        %v5381 = vunpack.c.l.s4 1966171168
        %v5382 = vunpack.c.0.s8 %v5381
        %v5383 = vlaneseq
        %v5384 = vshrl.u32 %v5383, 7
        %v5385 = vsub.s32 %v5382, %v5384
        %v5386 = vrot.slane %v5364, %v5385
        %v5388 = vunpack.c.l.s4 1966171168
        %v5389 = vunpack.c.0.s8 %v5388
        %v5390 = vlaneseq
        %v5391 = vshrl.u32 %v5390, 7
        %v5392 = vsub.s32 %v5389, %v5391
        %v5393 = vrot.slane %v5365, %v5392
        %v5394 = vcombine.high %v5372, %v5372
        %v5395 = vcombine.high %v5379, %v5379
        %v5396 = vcombine.high %v5386, %v5386
        %v5397 = vcombine.high %v5393, %v5393
        %v5398 = vcombine.high %v5196, %v5196
        %v5400 = vunpack.c.l.s4 1966171168
        %v5401 = vunpack.c.0.s8 %v5400
        %v5402 = vlaneseq
        %v5403 = vshrl.u32 %v5402, 7
        %v5404 = vsub.s32 %v5401, %v5403
        %v5405 = vrot.slane %v5196, %v5404
        %v5407 = vunpack.c.l.s4 1966171168
        %v5408 = vunpack.c.0.s8 %v5407
        %v5409 = vlaneseq
        %v5410 = vshrl.u32 %v5409, 7
        %v5411 = vsub.s32 %v5408, %v5410
        %v5412 = vrot.slane %v5398, %v5411
        %v5413 = vcombine.high %v5405, %v5405
        %v5414 = vcombine.high %v5412, %v5412
        %v5416 = vunpack.c.l.s4 1966171168
        %v5417 = vunpack.c.0.s8 %v5416
        %v5418 = vlaneseq
        %v5419 = vshrl.u32 %v5418, 7
        %v5420 = vsub.s32 %v5417, %v5419
        %v5421 = vrot.slane %v5405, %v5420
        %v5423 = vunpack.c.l.s4 1966171168
        %v5424 = vunpack.c.0.s8 %v5423
        %v5425 = vlaneseq
        %v5426 = vshrl.u32 %v5425, 7
        %v5427 = vsub.s32 %v5424, %v5426
        %v5428 = vrot.slane %v5412, %v5427
        %v5430 = vunpack.c.l.s4 1966171168
        %v5431 = vunpack.c.0.s8 %v5430
        %v5432 = vlaneseq
        %v5433 = vshrl.u32 %v5432, 7
        %v5434 = vsub.s32 %v5431, %v5433
        %v5435 = vrot.slane %v5413, %v5434
        %v5437 = vunpack.c.l.s4 1966171168
        %v5438 = vunpack.c.0.s8 %v5437
        %v5439 = vlaneseq
        %v5440 = vshrl.u32 %v5439, 7
        %v5441 = vsub.s32 %v5438, %v5440
        %v5442 = vrot.slane %v5414, %v5441
        %v5443 = vcombine.high %v5421, %v5421
        %v5444 = vcombine.high %v5428, %v5428
        %v5445 = vcombine.high %v5435, %v5435
        %v5446 = vcombine.high %v5442, %v5442
        %5487 = vmatprep.subr.bf16.mxu0 %v1993
        %5488 = vmatpush1.bf16.msra.mxu0 %v1992
        %5489 = vmatprep.subr.bf16.mxu0 %v2003
        %5490 = vmatpush1.bf16.msra.mxu0 %v2002
        %5491 = vmatprep.subr.bf16.mxu0 %v2013
        %5492 = vmatpush1.bf16.msra.mxu0 %v2012
        %5493 = vmatprep.subr.bf16.mxu0 %v2023
        %5494 = vmatpush1.bf16.msra.mxu0 %v2022
        %5495 = vmatprep.subr.bf16.mxu0 %v2033
        %5496 = vmatpush1.bf16.msra.mxu0 %v2032
        %5497 = vmatprep.subr.bf16.mxu0 %v2043
        %5498 = vmatpush1.bf16.msra.mxu0 %v2042
        %5499 = vmatprep.subr.bf16.mxu0 %v2053
        %5500 = vmatpush1.bf16.msra.mxu0 %v2052
        %5501 = vmatprep.subr.bf16.mxu0 %v2063
        %5502 = vmatpush1.bf16.msra.mxu0 %v2062
        %5503 = vmatprep.subr.bf16.mxu0 %v2073
        %5504 = vmatpush1.bf16.msra.mxu0 %v2072
        %5505 = vmatprep.subr.bf16.mxu0 %v2083
        %5506 = vmatpush1.bf16.msra.mxu0 %v2082
        %5507 = vmatprep.subr.bf16.mxu0 %v2093
        %5508 = vmatpush1.bf16.msra.mxu0 %v2092
        %5509 = vmatprep.subr.bf16.mxu0 %v2103
        %5510 = vmatpush1.bf16.msra.mxu0 %v2102
        %5511 = vmatprep.subr.bf16.mxu0 %v2113
        %5512 = vmatpush1.bf16.msra.mxu0 %v2112
        %5513 = vmatprep.subr.bf16.mxu0 %v2123
        %5514 = vmatpush1.bf16.msra.mxu0 %v2122
        %5515 = vmatprep.subr.bf16.mxu0 %v2133
        %5516 = vmatpush1.bf16.msra.mxu0 %v2132
        %5517 = vmatprep.subr.bf16.mxu0 %v2143
        %5518 = vmatpush1.bf16.msra.mxu0 %v2142
        %5519 = vmatprep.mubr.bf16.mxu0 %v5239
        %5520 = vmatmul.mubr.bf16.gmra.mrb[0].mxu0 %v5225
        %v5521 = vpop.f32.mrb[0].mxu0
        %v5522 = vadd.f32 0.0, %v5521
        %v5523 = vpop.f32.mrb[0].mxu0
        %v5524 = vadd.f32 0.0, %v5523
        %v5525 = vpop.f32.mrb[0].mxu0
        %v5526 = vpop.f32.mrb[0].mxu0
        %5527 = vdwg.mxu0
        %5528 = vmatprep.subr.bf16.mxu0 %v2153
        %5529 = vmatpush1.bf16.msra.mxu0 %v2152
        %5530 = vmatprep.subr.bf16.mxu0 %v2163
        %5531 = vmatpush1.bf16.msra.mxu0 %v2162
        %5532 = vmatprep.subr.bf16.mxu0 %v2173
        %5533 = vmatpush1.bf16.msra.mxu0 %v2172
        %5534 = vmatprep.subr.bf16.mxu0 %v2183
        %5535 = vmatpush1.bf16.msra.mxu0 %v2182
        %5536 = vmatprep.subr.bf16.mxu0 %v2193
        %5537 = vmatpush1.bf16.msra.mxu0 %v2192
        %5538 = vmatprep.subr.bf16.mxu0 %v2203
        %5539 = vmatpush1.bf16.msra.mxu0 %v2202
        %5540 = vmatprep.subr.bf16.mxu0 %v2213
        %5541 = vmatpush1.bf16.msra.mxu0 %v2212
        %5542 = vmatprep.subr.bf16.mxu0 %v2223
        %5543 = vmatpush1.bf16.msra.mxu0 %v2222
        %5544 = vmatprep.subr.bf16.mxu0 %v2233
        %5545 = vmatpush1.bf16.msra.mxu0 %v2232
        %5546 = vmatprep.subr.bf16.mxu0 %v2243
        %5547 = vmatpush1.bf16.msra.mxu0 %v2242
        %5548 = vmatprep.subr.bf16.mxu0 %v2253
        %5549 = vmatpush1.bf16.msra.mxu0 %v2252
        %5550 = vmatprep.subr.bf16.mxu0 %v2263
        %5551 = vmatpush1.bf16.msra.mxu0 %v2262
        %5552 = vmatprep.subr.bf16.mxu0 %v2273
        %5553 = vmatpush1.bf16.msra.mxu0 %v2272
        %5554 = vmatprep.subr.bf16.mxu0 %v2283
        %5555 = vmatpush1.bf16.msra.mxu0 %v2282
        %5556 = vmatprep.subr.bf16.mxu0 %v2293
        %5557 = vmatpush1.bf16.msra.mxu0 %v2292
        %5558 = vmatprep.subr.bf16.mxu0 %v2303
        %5559 = vmatpush1.bf16.msra.mxu0 %v2302
        %5560 = vmatprep.mubr.bf16.mxu0 %v5249
        %5561 = vmatmul.mubr.bf16.gmra.mrb[0].mxu0 %v5247
        %v5562 = vpop.f32.mrb[0].mxu0
        %v5563 = vadd.f32 %v5522, %v5562
        %v5564 = vpop.f32.mrb[0].mxu0
        %v5565 = vadd.f32 %v5524, %v5564
        %v5566 = vpop.f32.mrb[0].mxu0
        %v5567 = vpop.f32.mrb[0].mxu0
        %5568 = vdwg.mxu0
        %5569 = vmatprep.subr.bf16.mxu0 %v2313
        %5570 = vmatpush1.bf16.msra.mxu0 %v2312
        %5571 = vmatprep.subr.bf16.mxu0 %v2323
        %5572 = vmatpush1.bf16.msra.mxu0 %v2322
        %5573 = vmatprep.subr.bf16.mxu0 %v2333
        %5574 = vmatpush1.bf16.msra.mxu0 %v2332
        %5575 = vmatprep.subr.bf16.mxu0 %v2343
        %5576 = vmatpush1.bf16.msra.mxu0 %v2342
        %5577 = vmatprep.subr.bf16.mxu0 %v2353
        %5578 = vmatpush1.bf16.msra.mxu0 %v2352
        %5579 = vmatprep.subr.bf16.mxu0 %v2363
        %5580 = vmatpush1.bf16.msra.mxu0 %v2362
        %5581 = vmatprep.subr.bf16.mxu0 %v2373
        %5582 = vmatpush1.bf16.msra.mxu0 %v2372
        %5583 = vmatprep.subr.bf16.mxu0 %v2383
        %5584 = vmatpush1.bf16.msra.mxu0 %v2382
        %5585 = vmatprep.subr.bf16.mxu0 %v2393
        %5586 = vmatpush1.bf16.msra.mxu0 %v2392
        %5587 = vmatprep.subr.bf16.mxu0 %v2403
        %5588 = vmatpush1.bf16.msra.mxu0 %v2402
        %5589 = vmatprep.subr.bf16.mxu0 %v2413
        %5590 = vmatpush1.bf16.msra.mxu0 %v2412
        %5591 = vmatprep.subr.bf16.mxu0 %v2423
        %5592 = vmatpush1.bf16.msra.mxu0 %v2422
        %5593 = vmatprep.subr.bf16.mxu0 %v2433
        %5594 = vmatpush1.bf16.msra.mxu0 %v2432
        %5595 = vmatprep.subr.bf16.mxu0 %v2443
        %5596 = vmatpush1.bf16.msra.mxu0 %v2442
        %5597 = vmatprep.subr.bf16.mxu0 %v2453
        %5598 = vmatpush1.bf16.msra.mxu0 %v2452
        %5599 = vmatprep.subr.bf16.mxu0 %v2463
        %5600 = vmatpush1.bf16.msra.mxu0 %v2462
        %5601 = vmatprep.mubr.bf16.mxu0 %v5246
        %5602 = vmatmul.mubr.bf16.gmra.mrb[0].mxu0 %v5232
        %v5603 = vpop.f32.mrb[0].mxu0
        %v5604 = vadd.f32 %v5563, %v5603
        %v5605 = vpop.f32.mrb[0].mxu0
        %v5606 = vadd.f32 %v5565, %v5605
        %v5607 = vpop.f32.mrb[0].mxu0
        %v5608 = vpop.f32.mrb[0].mxu0
        %5609 = vdwg.mxu0
        %5610 = vmatprep.subr.bf16.mxu0 %v2473
        %5611 = vmatpush1.bf16.msra.mxu0 %v2472
        %5612 = vmatprep.subr.bf16.mxu0 %v2483
        %5613 = vmatpush1.bf16.msra.mxu0 %v2482
        %5614 = vmatprep.subr.bf16.mxu0 %v2493
        %5615 = vmatpush1.bf16.msra.mxu0 %v2492
        %5616 = vmatprep.subr.bf16.mxu0 %v2503
        %5617 = vmatpush1.bf16.msra.mxu0 %v2502
        %5618 = vmatprep.subr.bf16.mxu0 %v2513
        %5619 = vmatpush1.bf16.msra.mxu0 %v2512
        %5620 = vmatprep.subr.bf16.mxu0 %v2523
        %5621 = vmatpush1.bf16.msra.mxu0 %v2522
        %5622 = vmatprep.subr.bf16.mxu0 %v2533
        %5623 = vmatpush1.bf16.msra.mxu0 %v2532
        %5624 = vmatprep.subr.bf16.mxu0 %v2543
        %5625 = vmatpush1.bf16.msra.mxu0 %v2542
        %5626 = vmatprep.subr.bf16.mxu0 %v2553
        %5627 = vmatpush1.bf16.msra.mxu0 %v2552
        %5628 = vmatprep.subr.bf16.mxu0 %v2563
        %5629 = vmatpush1.bf16.msra.mxu0 %v2562
        %5630 = vmatprep.subr.bf16.mxu0 %v2573
        %5631 = vmatpush1.bf16.msra.mxu0 %v2572
        %5632 = vmatprep.subr.bf16.mxu0 %v2583
        %5633 = vmatpush1.bf16.msra.mxu0 %v2582
        %5634 = vmatprep.subr.bf16.mxu0 %v2593
        %5635 = vmatpush1.bf16.msra.mxu0 %v2592
        %5636 = vmatprep.subr.bf16.mxu0 %v2603
        %5637 = vmatpush1.bf16.msra.mxu0 %v2602
        %5638 = vmatprep.subr.bf16.mxu0 %v2613
        %5639 = vmatpush1.bf16.msra.mxu0 %v2612
        %5640 = vmatprep.subr.bf16.mxu0 %v2623
        %5641 = vmatpush1.bf16.msra.mxu0 %v2622
        %5642 = vmatprep.mubr.bf16.mxu0 %v5250
        %5643 = vmatmul.mubr.bf16.gmra.mrb[0].mxu0 %v5248
        %v5644 = vpop.f32.mrb[0].mxu0
        %v5645 = vadd.f32 %v5604, %v5644
        %v5646 = vpop.f32.mrb[0].mxu0
        %v5647 = vadd.f32 %v5606, %v5646
        %v5648 = vpop.f32.mrb[0].mxu0
        %v5649 = vpop.f32.mrb[0].mxu0
        %5650 = vdwg.mxu0
        %5651 = vmatprep.subr.bf16.mxu0 %v2633
        %5652 = vmatpush1.bf16.msra.mxu0 %v2632
        %5653 = vmatprep.subr.bf16.mxu0 %v2643
        %5654 = vmatpush1.bf16.msra.mxu0 %v2642
        %5655 = vmatprep.subr.bf16.mxu0 %v2653
        %5656 = vmatpush1.bf16.msra.mxu0 %v2652
        %5657 = vmatprep.subr.bf16.mxu0 %v2663
        %5658 = vmatpush1.bf16.msra.mxu0 %v2662
        %5659 = vmatprep.subr.bf16.mxu0 %v2673
        %5660 = vmatpush1.bf16.msra.mxu0 %v2672
        %5661 = vmatprep.subr.bf16.mxu0 %v2683
        %5662 = vmatpush1.bf16.msra.mxu0 %v2682
        %5663 = vmatprep.subr.bf16.mxu0 %v2693
        %5664 = vmatpush1.bf16.msra.mxu0 %v2692
        %5665 = vmatprep.subr.bf16.mxu0 %v2703
        %5666 = vmatpush1.bf16.msra.mxu0 %v2702
        %5667 = vmatprep.subr.bf16.mxu0 %v2713
        %5668 = vmatpush1.bf16.msra.mxu0 %v2712
        %5669 = vmatprep.subr.bf16.mxu0 %v2723
        %5670 = vmatpush1.bf16.msra.mxu0 %v2722
        %5671 = vmatprep.subr.bf16.mxu0 %v2733
        %5672 = vmatpush1.bf16.msra.mxu0 %v2732
        %5673 = vmatprep.subr.bf16.mxu0 %v2743
        %5674 = vmatpush1.bf16.msra.mxu0 %v2742
        %5675 = vmatprep.subr.bf16.mxu0 %v2753
        %5676 = vmatpush1.bf16.msra.mxu0 %v2752
        %5677 = vmatprep.subr.bf16.mxu0 %v2763
        %5678 = vmatpush1.bf16.msra.mxu0 %v2762
        %5679 = vmatprep.subr.bf16.mxu0 %v2773
        %5680 = vmatpush1.bf16.msra.mxu0 %v2772
        %5681 = vmatprep.subr.bf16.mxu0 %v2783
        %5682 = vmatpush1.bf16.msra.mxu0 %v2782
        %5683 = vmatprep.mubr.bf16.mxu0 %v5288
        %5684 = vmatmul.mubr.bf16.gmra.mrb[0].mxu0 %v5274
        %v5685 = vpop.f32.mrb[0].mxu0
        %v5686 = vadd.f32 %v5645, %v5685
        %v5687 = vpop.f32.mrb[0].mxu0
        %v5688 = vadd.f32 %v5647, %v5687
        %v5689 = vpop.f32.mrb[0].mxu0
        %v5690 = vpop.f32.mrb[0].mxu0
        %5691 = vdwg.mxu0
        %5692 = vmatprep.subr.bf16.mxu0 %v2793
        %5693 = vmatpush1.bf16.msra.mxu0 %v2792
        %5694 = vmatprep.subr.bf16.mxu0 %v2803
        %5695 = vmatpush1.bf16.msra.mxu0 %v2802
        %5696 = vmatprep.subr.bf16.mxu0 %v2813
        %5697 = vmatpush1.bf16.msra.mxu0 %v2812
        %5698 = vmatprep.subr.bf16.mxu0 %v2823
        %5699 = vmatpush1.bf16.msra.mxu0 %v2822
        %5700 = vmatprep.subr.bf16.mxu0 %v2833
        %5701 = vmatpush1.bf16.msra.mxu0 %v2832
        %5702 = vmatprep.subr.bf16.mxu0 %v2843
        %5703 = vmatpush1.bf16.msra.mxu0 %v2842
        %5704 = vmatprep.subr.bf16.mxu0 %v2853
        %5705 = vmatpush1.bf16.msra.mxu0 %v2852
        %5706 = vmatprep.subr.bf16.mxu0 %v2863
        %5707 = vmatpush1.bf16.msra.mxu0 %v2862
        %5708 = vmatprep.subr.bf16.mxu0 %v2873
        %5709 = vmatpush1.bf16.msra.mxu0 %v2872
        %5710 = vmatprep.subr.bf16.mxu0 %v2883
        %5711 = vmatpush1.bf16.msra.mxu0 %v2882
        %5712 = vmatprep.subr.bf16.mxu0 %v2893
        %5713 = vmatpush1.bf16.msra.mxu0 %v2892
        %5714 = vmatprep.subr.bf16.mxu0 %v2903
        %5715 = vmatpush1.bf16.msra.mxu0 %v2902
        %5716 = vmatprep.subr.bf16.mxu0 %v2913
        %5717 = vmatpush1.bf16.msra.mxu0 %v2912
        %5718 = vmatprep.subr.bf16.mxu0 %v2923
        %5719 = vmatpush1.bf16.msra.mxu0 %v2922
        %5720 = vmatprep.subr.bf16.mxu0 %v2933
        %5721 = vmatpush1.bf16.msra.mxu0 %v2932
        %5722 = vmatprep.subr.bf16.mxu0 %v2943
        %5723 = vmatpush1.bf16.msra.mxu0 %v2942
        %5724 = vmatprep.mubr.bf16.mxu0 %v5298
        %5725 = vmatmul.mubr.bf16.gmra.mrb[0].mxu0 %v5296
        %v5726 = vpop.f32.mrb[0].mxu0
        %v5727 = vadd.f32 %v5686, %v5726
        %v5728 = vpop.f32.mrb[0].mxu0
        %v5729 = vadd.f32 %v5688, %v5728
        %v5730 = vpop.f32.mrb[0].mxu0
        %v5731 = vpop.f32.mrb[0].mxu0
        %5732 = vdwg.mxu0
        %5733 = vmatprep.subr.bf16.mxu0 %v2953
        %5734 = vmatpush1.bf16.msra.mxu0 %v2952
        %5735 = vmatprep.subr.bf16.mxu0 %v2963
        %5736 = vmatpush1.bf16.msra.mxu0 %v2962
        %5737 = vmatprep.subr.bf16.mxu0 %v2973
        %5738 = vmatpush1.bf16.msra.mxu0 %v2972
        %5739 = vmatprep.subr.bf16.mxu0 %v2983
        %5740 = vmatpush1.bf16.msra.mxu0 %v2982
        %5741 = vmatprep.subr.bf16.mxu0 %v2993
        %5742 = vmatpush1.bf16.msra.mxu0 %v2992
        %5743 = vmatprep.subr.bf16.mxu0 %v3003
        %5744 = vmatpush1.bf16.msra.mxu0 %v3002
        %5745 = vmatprep.subr.bf16.mxu0 %v3013
        %5746 = vmatpush1.bf16.msra.mxu0 %v3012
        %5747 = vmatprep.subr.bf16.mxu0 %v3023
        %5748 = vmatpush1.bf16.msra.mxu0 %v3022
        %5749 = vmatprep.subr.bf16.mxu0 %v3033
        %5750 = vmatpush1.bf16.msra.mxu0 %v3032
        %5751 = vmatprep.subr.bf16.mxu0 %v3043
        %5752 = vmatpush1.bf16.msra.mxu0 %v3042
        %5753 = vmatprep.subr.bf16.mxu0 %v3053
        %5754 = vmatpush1.bf16.msra.mxu0 %v3052
        %5755 = vmatprep.subr.bf16.mxu0 %v3063
        %5756 = vmatpush1.bf16.msra.mxu0 %v3062
        %5757 = vmatprep.subr.bf16.mxu0 %v3073
        %5758 = vmatpush1.bf16.msra.mxu0 %v3072
        %5759 = vmatprep.subr.bf16.mxu0 %v3083
        %5760 = vmatpush1.bf16.msra.mxu0 %v3082
        %5761 = vmatprep.subr.bf16.mxu0 %v3093
        %5762 = vmatpush1.bf16.msra.mxu0 %v3092
        %5763 = vmatprep.subr.bf16.mxu0 %v3103
        %5764 = vmatpush1.bf16.msra.mxu0 %v3102
        %5765 = vmatprep.mubr.bf16.mxu0 %v5295
        %5766 = vmatmul.mubr.bf16.gmra.mrb[0].mxu0 %v5281
        %v5767 = vpop.f32.mrb[0].mxu0
        %v5768 = vadd.f32 %v5727, %v5767
        %v5769 = vpop.f32.mrb[0].mxu0
        %v5770 = vadd.f32 %v5729, %v5769
        %v5771 = vpop.f32.mrb[0].mxu0
        %v5772 = vpop.f32.mrb[0].mxu0
        %5773 = vdwg.mxu0
        %5774 = vmatprep.subr.bf16.mxu0 %v3113
        %5775 = vmatpush1.bf16.msra.mxu0 %v3112
        %5776 = vmatprep.subr.bf16.mxu0 %v3123
        %5777 = vmatpush1.bf16.msra.mxu0 %v3122
        %5778 = vmatprep.subr.bf16.mxu0 %v3133
        %5779 = vmatpush1.bf16.msra.mxu0 %v3132
        %5780 = vmatprep.subr.bf16.mxu0 %v3143
        %5781 = vmatpush1.bf16.msra.mxu0 %v3142
        %5782 = vmatprep.subr.bf16.mxu0 %v3153
        %5783 = vmatpush1.bf16.msra.mxu0 %v3152
        %5784 = vmatprep.subr.bf16.mxu0 %v3163
        %5785 = vmatpush1.bf16.msra.mxu0 %v3162
        %5786 = vmatprep.subr.bf16.mxu0 %v3173
        %5787 = vmatpush1.bf16.msra.mxu0 %v3172
        %5788 = vmatprep.subr.bf16.mxu0 %v3183
        %5789 = vmatpush1.bf16.msra.mxu0 %v3182
        %5790 = vmatprep.subr.bf16.mxu0 %v3193
        %5791 = vmatpush1.bf16.msra.mxu0 %v3192
        %5792 = vmatprep.subr.bf16.mxu0 %v3203
        %5793 = vmatpush1.bf16.msra.mxu0 %v3202
        %5794 = vmatprep.subr.bf16.mxu0 %v3213
        %5795 = vmatpush1.bf16.msra.mxu0 %v3212
        %5796 = vmatprep.subr.bf16.mxu0 %v3223
        %5797 = vmatpush1.bf16.msra.mxu0 %v3222
        %5798 = vmatprep.subr.bf16.mxu0 %v3233
        %5799 = vmatpush1.bf16.msra.mxu0 %v3232
        %5800 = vmatprep.subr.bf16.mxu0 %v3243
        %5801 = vmatpush1.bf16.msra.mxu0 %v3242
        %5802 = vmatprep.subr.bf16.mxu0 %v3253
        %5803 = vmatpush1.bf16.msra.mxu0 %v3252
        %5804 = vmatprep.subr.bf16.mxu0 %v3263
        %5805 = vmatpush1.bf16.msra.mxu0 %v3262
        %5806 = vmatprep.mubr.bf16.mxu0 %v5299
        %5807 = vmatmul.mubr.bf16.gmra.mrb[0].mxu0 %v5297
        %v5808 = vpop.f32.mrb[0].mxu0
        %v5809 = vadd.f32 %v5768, %v5808
        %v5810 = vpop.f32.mrb[0].mxu0
        %v5811 = vadd.f32 %v5770, %v5810
        %v5812 = vpop.f32.mrb[0].mxu0
        %v5813 = vpop.f32.mrb[0].mxu0
        %5814 = vdwg.mxu0
        %5815 = vmatprep.subr.bf16.mxu0 %v3273
        %5816 = vmatpush1.bf16.msra.mxu0 %v3272
        %5817 = vmatprep.subr.bf16.mxu0 %v3283
        %5818 = vmatpush1.bf16.msra.mxu0 %v3282
        %5819 = vmatprep.subr.bf16.mxu0 %v3293
        %5820 = vmatpush1.bf16.msra.mxu0 %v3292
        %5821 = vmatprep.subr.bf16.mxu0 %v3303
        %5822 = vmatpush1.bf16.msra.mxu0 %v3302
        %5823 = vmatprep.subr.bf16.mxu0 %v3313
        %5824 = vmatpush1.bf16.msra.mxu0 %v3312
        %5825 = vmatprep.subr.bf16.mxu0 %v3323
        %5826 = vmatpush1.bf16.msra.mxu0 %v3322
        %5827 = vmatprep.subr.bf16.mxu0 %v3333
        %5828 = vmatpush1.bf16.msra.mxu0 %v3332
        %5829 = vmatprep.subr.bf16.mxu0 %v3343
        %5830 = vmatpush1.bf16.msra.mxu0 %v3342
        %5831 = vmatprep.subr.bf16.mxu0 %v3353
        %5832 = vmatpush1.bf16.msra.mxu0 %v3352
        %5833 = vmatprep.subr.bf16.mxu0 %v3363
        %5834 = vmatpush1.bf16.msra.mxu0 %v3362
        %5835 = vmatprep.subr.bf16.mxu0 %v3373
        %5836 = vmatpush1.bf16.msra.mxu0 %v3372
        %5837 = vmatprep.subr.bf16.mxu0 %v3383
        %5838 = vmatpush1.bf16.msra.mxu0 %v3382
        %5839 = vmatprep.subr.bf16.mxu0 %v3393
        %5840 = vmatpush1.bf16.msra.mxu0 %v3392
        %5841 = vmatprep.subr.bf16.mxu0 %v3403
        %5842 = vmatpush1.bf16.msra.mxu0 %v3402
        %5843 = vmatprep.subr.bf16.mxu0 %v3413
        %5844 = vmatpush1.bf16.msra.mxu0 %v3412
        %5845 = vmatprep.subr.bf16.mxu0 %v3423
        %5846 = vmatpush1.bf16.msra.mxu0 %v3422
        %5847 = vmatprep.mubr.bf16.mxu0 %v5337
        %5848 = vmatmul.mubr.bf16.gmra.mrb[0].mxu0 %v5323
        %v5849 = vpop.f32.mrb[0].mxu0
        %v5850 = vadd.f32 %v5809, %v5849
        %v5851 = vpop.f32.mrb[0].mxu0
        %v5852 = vadd.f32 %v5811, %v5851
        %v5853 = vpop.f32.mrb[0].mxu0
        %v5854 = vpop.f32.mrb[0].mxu0
        %5855 = vdwg.mxu0
        %5856 = vmatprep.subr.bf16.mxu0 %v3433
        %5857 = vmatpush1.bf16.msra.mxu0 %v3432
        %5858 = vmatprep.subr.bf16.mxu0 %v3443
        %5859 = vmatpush1.bf16.msra.mxu0 %v3442
        %5860 = vmatprep.subr.bf16.mxu0 %v3453
        %5861 = vmatpush1.bf16.msra.mxu0 %v3452
        %5862 = vmatprep.subr.bf16.mxu0 %v3463
        %5863 = vmatpush1.bf16.msra.mxu0 %v3462
        %5864 = vmatprep.subr.bf16.mxu0 %v3473
        %5865 = vmatpush1.bf16.msra.mxu0 %v3472
        %5866 = vmatprep.subr.bf16.mxu0 %v3483
        %5867 = vmatpush1.bf16.msra.mxu0 %v3482
        %5868 = vmatprep.subr.bf16.mxu0 %v3493
        %5869 = vmatpush1.bf16.msra.mxu0 %v3492
        %5870 = vmatprep.subr.bf16.mxu0 %v3503
        %5871 = vmatpush1.bf16.msra.mxu0 %v3502
        %5872 = vmatprep.subr.bf16.mxu0 %v3513
        %5873 = vmatpush1.bf16.msra.mxu0 %v3512
        %5874 = vmatprep.subr.bf16.mxu0 %v3523
        %5875 = vmatpush1.bf16.msra.mxu0 %v3522
        %5876 = vmatprep.subr.bf16.mxu0 %v3533
        %5877 = vmatpush1.bf16.msra.mxu0 %v3532
        %5878 = vmatprep.subr.bf16.mxu0 %v3543
        %5879 = vmatpush1.bf16.msra.mxu0 %v3542
        %5880 = vmatprep.subr.bf16.mxu0 %v3553
        %5881 = vmatpush1.bf16.msra.mxu0 %v3552
        %5882 = vmatprep.subr.bf16.mxu0 %v3563
        %5883 = vmatpush1.bf16.msra.mxu0 %v3562
        %5884 = vmatprep.subr.bf16.mxu0 %v3573
        %5885 = vmatpush1.bf16.msra.mxu0 %v3572
        %5886 = vmatprep.subr.bf16.mxu0 %v3583
        %5887 = vmatpush1.bf16.msra.mxu0 %v3582
        %5888 = vmatprep.mubr.bf16.mxu0 %v5347
        %5889 = vmatmul.mubr.bf16.gmra.mrb[0].mxu0 %v5345
        %v5890 = vpop.f32.mrb[0].mxu0
        %v5891 = vadd.f32 %v5850, %v5890
        %v5892 = vpop.f32.mrb[0].mxu0
        %v5893 = vadd.f32 %v5852, %v5892
        %v5894 = vpop.f32.mrb[0].mxu0
        %v5895 = vpop.f32.mrb[0].mxu0
        %5896 = vdwg.mxu0
        %5897 = vmatprep.subr.bf16.mxu0 %v3593
        %5898 = vmatpush1.bf16.msra.mxu0 %v3592
        %5899 = vmatprep.subr.bf16.mxu0 %v3603
        %5900 = vmatpush1.bf16.msra.mxu0 %v3602
        %5901 = vmatprep.subr.bf16.mxu0 %v3613
        %5902 = vmatpush1.bf16.msra.mxu0 %v3612
        %5903 = vmatprep.subr.bf16.mxu0 %v3623
        %5904 = vmatpush1.bf16.msra.mxu0 %v3622
        %5905 = vmatprep.subr.bf16.mxu0 %v3633
        %5906 = vmatpush1.bf16.msra.mxu0 %v3632
        %5907 = vmatprep.subr.bf16.mxu0 %v3643
        %5908 = vmatpush1.bf16.msra.mxu0 %v3642
        %5909 = vmatprep.subr.bf16.mxu0 %v3653
        %5910 = vmatpush1.bf16.msra.mxu0 %v3652
        %5911 = vmatprep.subr.bf16.mxu0 %v3663
        %5912 = vmatpush1.bf16.msra.mxu0 %v3662
        %5913 = vmatprep.subr.bf16.mxu0 %v3673
        %5914 = vmatpush1.bf16.msra.mxu0 %v3672
        %5915 = vmatprep.subr.bf16.mxu0 %v3683
        %5916 = vmatpush1.bf16.msra.mxu0 %v3682
        %5917 = vmatprep.subr.bf16.mxu0 %v3693
        %5918 = vmatpush1.bf16.msra.mxu0 %v3692
        %5919 = vmatprep.subr.bf16.mxu0 %v3703
        %5920 = vmatpush1.bf16.msra.mxu0 %v3702
        %5921 = vmatprep.subr.bf16.mxu0 %v3713
        %5922 = vmatpush1.bf16.msra.mxu0 %v3712
        %5923 = vmatprep.subr.bf16.mxu0 %v3723
        %5924 = vmatpush1.bf16.msra.mxu0 %v3722
        %5925 = vmatprep.subr.bf16.mxu0 %v3733
        %5926 = vmatpush1.bf16.msra.mxu0 %v3732
        %5927 = vmatprep.subr.bf16.mxu0 %v3743
        %5928 = vmatpush1.bf16.msra.mxu0 %v3742
        %5929 = vmatprep.mubr.bf16.mxu0 %v5344
        %5930 = vmatmul.mubr.bf16.gmra.mrb[0].mxu0 %v5330
        %v5931 = vpop.f32.mrb[0].mxu0
        %v5932 = vadd.f32 %v5891, %v5931
        %v5933 = vpop.f32.mrb[0].mxu0
        %v5934 = vadd.f32 %v5893, %v5933
        %v5935 = vpop.f32.mrb[0].mxu0
        %v5936 = vpop.f32.mrb[0].mxu0
        %5937 = vdwg.mxu0
        %5938 = vmatprep.subr.bf16.mxu0 %v3753
        %5939 = vmatpush1.bf16.msra.mxu0 %v3752
        %5940 = vmatprep.subr.bf16.mxu0 %v3763
        %5941 = vmatpush1.bf16.msra.mxu0 %v3762
        %5942 = vmatprep.subr.bf16.mxu0 %v3773
        %5943 = vmatpush1.bf16.msra.mxu0 %v3772
        %5944 = vmatprep.subr.bf16.mxu0 %v3783
        %5945 = vmatpush1.bf16.msra.mxu0 %v3782
        %5946 = vmatprep.subr.bf16.mxu0 %v3793
        %5947 = vmatpush1.bf16.msra.mxu0 %v3792
        %5948 = vmatprep.subr.bf16.mxu0 %v3803
        %5949 = vmatpush1.bf16.msra.mxu0 %v3802
        %5950 = vmatprep.subr.bf16.mxu0 %v3813
        %5951 = vmatpush1.bf16.msra.mxu0 %v3812
        %5952 = vmatprep.subr.bf16.mxu0 %v3823
        %5953 = vmatpush1.bf16.msra.mxu0 %v3822
        %5954 = vmatprep.subr.bf16.mxu0 %v3833
        %5955 = vmatpush1.bf16.msra.mxu0 %v3832
        %5956 = vmatprep.subr.bf16.mxu0 %v3843
        %5957 = vmatpush1.bf16.msra.mxu0 %v3842
        %5958 = vmatprep.subr.bf16.mxu0 %v3853
        %5959 = vmatpush1.bf16.msra.mxu0 %v3852
        %5960 = vmatprep.subr.bf16.mxu0 %v3863
        %5961 = vmatpush1.bf16.msra.mxu0 %v3862
        %5962 = vmatprep.subr.bf16.mxu0 %v3873
        %5963 = vmatpush1.bf16.msra.mxu0 %v3872
        %5964 = vmatprep.subr.bf16.mxu0 %v3883
        %5965 = vmatpush1.bf16.msra.mxu0 %v3882
        %5966 = vmatprep.subr.bf16.mxu0 %v3893
        %5967 = vmatpush1.bf16.msra.mxu0 %v3892
        %5968 = vmatprep.subr.bf16.mxu0 %v3903
        %5969 = vmatpush1.bf16.msra.mxu0 %v3902
        %5970 = vmatprep.mubr.bf16.mxu0 %v5348
        %5971 = vmatmul.mubr.bf16.gmra.mrb[0].mxu0 %v5346
        %v5972 = vpop.f32.mrb[0].mxu0
        %v5973 = vadd.f32 %v5932, %v5972
        %v5974 = vpop.f32.mrb[0].mxu0
        %v5975 = vadd.f32 %v5934, %v5974
        %v5976 = vpop.f32.mrb[0].mxu0
        %v5977 = vpop.f32.mrb[0].mxu0
        %5978 = vdwg.mxu0
        %5979 = vmatprep.subr.bf16.mxu0 %v3913
        %5980 = vmatpush1.bf16.msra.mxu0 %v3912
        %5981 = vmatprep.subr.bf16.mxu0 %v3923
        %5982 = vmatpush1.bf16.msra.mxu0 %v3922
        %5983 = vmatprep.subr.bf16.mxu0 %v3933
        %5984 = vmatpush1.bf16.msra.mxu0 %v3932
        %5985 = vmatprep.subr.bf16.mxu0 %v3943
        %5986 = vmatpush1.bf16.msra.mxu0 %v3942
        %5987 = vmatprep.subr.bf16.mxu0 %v3953
        %5988 = vmatpush1.bf16.msra.mxu0 %v3952
        %5989 = vmatprep.subr.bf16.mxu0 %v3963
        %5990 = vmatpush1.bf16.msra.mxu0 %v3962
        %5991 = vmatprep.subr.bf16.mxu0 %v3973
        %5992 = vmatpush1.bf16.msra.mxu0 %v3972
        %5993 = vmatprep.subr.bf16.mxu0 %v3983
        %5994 = vmatpush1.bf16.msra.mxu0 %v3982
        %5995 = vmatprep.subr.bf16.mxu0 %v3993
        %5996 = vmatpush1.bf16.msra.mxu0 %v3992
        %5997 = vmatprep.subr.bf16.mxu0 %v4003
        %5998 = vmatpush1.bf16.msra.mxu0 %v4002
        %5999 = vmatprep.subr.bf16.mxu0 %v4013
        %6000 = vmatpush1.bf16.msra.mxu0 %v4012
        %6001 = vmatprep.subr.bf16.mxu0 %v4023
        %6002 = vmatpush1.bf16.msra.mxu0 %v4022
        %6003 = vmatprep.subr.bf16.mxu0 %v4033
        %6004 = vmatpush1.bf16.msra.mxu0 %v4032
        %6005 = vmatprep.subr.bf16.mxu0 %v4043
        %6006 = vmatpush1.bf16.msra.mxu0 %v4042
        %6007 = vmatprep.subr.bf16.mxu0 %v4053
        %6008 = vmatpush1.bf16.msra.mxu0 %v4052
        %6009 = vmatprep.subr.bf16.mxu0 %v4063
        %6010 = vmatpush1.bf16.msra.mxu0 %v4062
        %6011 = vmatprep.mubr.bf16.mxu0 %v5386
        %6012 = vmatmul.mubr.bf16.gmra.mrb[0].mxu0 %v5372
        %v6013 = vpop.f32.mrb[0].mxu0
        %v6014 = vadd.f32 %v5973, %v6013
        %v6015 = vpop.f32.mrb[0].mxu0
        %v6016 = vadd.f32 %v5975, %v6015
        %v6017 = vpop.f32.mrb[0].mxu0
        %v6018 = vpop.f32.mrb[0].mxu0
        %6019 = vdwg.mxu0
        %6020 = vmatprep.subr.bf16.mxu0 %v4073
        %6021 = vmatpush1.bf16.msra.mxu0 %v4072
        %6022 = vmatprep.subr.bf16.mxu0 %v4083
        %6023 = vmatpush1.bf16.msra.mxu0 %v4082
        %6024 = vmatprep.subr.bf16.mxu0 %v4093
        %6025 = vmatpush1.bf16.msra.mxu0 %v4092
        %6026 = vmatprep.subr.bf16.mxu0 %v4103
        %6027 = vmatpush1.bf16.msra.mxu0 %v4102
        %6028 = vmatprep.subr.bf16.mxu0 %v4113
        %6029 = vmatpush1.bf16.msra.mxu0 %v4112
        %6030 = vmatprep.subr.bf16.mxu0 %v4123
        %6031 = vmatpush1.bf16.msra.mxu0 %v4122
        %6032 = vmatprep.subr.bf16.mxu0 %v4133
        %6033 = vmatpush1.bf16.msra.mxu0 %v4132
        %6034 = vmatprep.subr.bf16.mxu0 %v4143
        %6035 = vmatpush1.bf16.msra.mxu0 %v4142
        %6036 = vmatprep.subr.bf16.mxu0 %v4153
        %6037 = vmatpush1.bf16.msra.mxu0 %v4152
        %6038 = vmatprep.subr.bf16.mxu0 %v4163
        %6039 = vmatpush1.bf16.msra.mxu0 %v4162
        %6040 = vmatprep.subr.bf16.mxu0 %v4173
        %6041 = vmatpush1.bf16.msra.mxu0 %v4172
        %6042 = vmatprep.subr.bf16.mxu0 %v4183
        %6043 = vmatpush1.bf16.msra.mxu0 %v4182
        %6044 = vmatprep.subr.bf16.mxu0 %v4193
        %6045 = vmatpush1.bf16.msra.mxu0 %v4192
        %6046 = vmatprep.subr.bf16.mxu0 %v4203
        %6047 = vmatpush1.bf16.msra.mxu0 %v4202
        %6048 = vmatprep.subr.bf16.mxu0 %v4213
        %6049 = vmatpush1.bf16.msra.mxu0 %v4212
        %6050 = vmatprep.subr.bf16.mxu0 %v4223
        %6051 = vmatpush1.bf16.msra.mxu0 %v4222
        %6052 = vmatprep.mubr.bf16.mxu0 %v5396
        %6053 = vmatmul.mubr.bf16.gmra.mrb[0].mxu0 %v5394
        %v6054 = vpop.f32.mrb[0].mxu0
        %v6055 = vadd.f32 %v6014, %v6054
        %v6056 = vpop.f32.mrb[0].mxu0
        %v6057 = vadd.f32 %v6016, %v6056
        %v6058 = vpop.f32.mrb[0].mxu0
        %v6059 = vpop.f32.mrb[0].mxu0
        %6060 = vdwg.mxu0
        %6061 = vmatprep.subr.bf16.mxu0 %v4233
        %6062 = vmatpush1.bf16.msra.mxu0 %v4232
        %6063 = vmatprep.subr.bf16.mxu0 %v4243
        %6064 = vmatpush1.bf16.msra.mxu0 %v4242
        %6065 = vmatprep.subr.bf16.mxu0 %v4253
        %6066 = vmatpush1.bf16.msra.mxu0 %v4252
        %6067 = vmatprep.subr.bf16.mxu0 %v4263
        %6068 = vmatpush1.bf16.msra.mxu0 %v4262
        %6069 = vmatprep.subr.bf16.mxu0 %v4273
        %6070 = vmatpush1.bf16.msra.mxu0 %v4272
        %6071 = vmatprep.subr.bf16.mxu0 %v4283
        %6072 = vmatpush1.bf16.msra.mxu0 %v4282
        %6073 = vmatprep.subr.bf16.mxu0 %v4293
        %6074 = vmatpush1.bf16.msra.mxu0 %v4292
        %6075 = vmatprep.subr.bf16.mxu0 %v4303
        %6076 = vmatpush1.bf16.msra.mxu0 %v4302
        %6077 = vmatprep.subr.bf16.mxu0 %v4313
        %6078 = vmatpush1.bf16.msra.mxu0 %v4312
        %6079 = vmatprep.subr.bf16.mxu0 %v4323
        %6080 = vmatpush1.bf16.msra.mxu0 %v4322
        %6081 = vmatprep.subr.bf16.mxu0 %v4333
        %6082 = vmatpush1.bf16.msra.mxu0 %v4332
        %6083 = vmatprep.subr.bf16.mxu0 %v4343
        %6084 = vmatpush1.bf16.msra.mxu0 %v4342
        %6085 = vmatprep.subr.bf16.mxu0 %v4353
        %6086 = vmatpush1.bf16.msra.mxu0 %v4352
        %6087 = vmatprep.subr.bf16.mxu0 %v4363
        %6088 = vmatpush1.bf16.msra.mxu0 %v4362
        %6089 = vmatprep.subr.bf16.mxu0 %v4373
        %6090 = vmatpush1.bf16.msra.mxu0 %v4372
        %6091 = vmatprep.subr.bf16.mxu0 %v4383
        %6092 = vmatpush1.bf16.msra.mxu0 %v4382
        %6093 = vmatprep.mubr.bf16.mxu0 %v5393
        %6094 = vmatmul.mubr.bf16.gmra.mrb[0].mxu0 %v5379
        %v6095 = vpop.f32.mrb[0].mxu0
        %v6096 = vadd.f32 %v6055, %v6095
        %v6097 = vpop.f32.mrb[0].mxu0
        %v6098 = vadd.f32 %v6057, %v6097
        %v6099 = vpop.f32.mrb[0].mxu0
        %v6100 = vpop.f32.mrb[0].mxu0
        %6101 = vdwg.mxu0
        %6102 = vmatprep.subr.bf16.mxu0 %v4393
        %6103 = vmatpush1.bf16.msra.mxu0 %v4392
        %6104 = vmatprep.subr.bf16.mxu0 %v4403
        %6105 = vmatpush1.bf16.msra.mxu0 %v4402
        %6106 = vmatprep.subr.bf16.mxu0 %v4413
        %6107 = vmatpush1.bf16.msra.mxu0 %v4412
        %6108 = vmatprep.subr.bf16.mxu0 %v4423
        %6109 = vmatpush1.bf16.msra.mxu0 %v4422
        %6110 = vmatprep.subr.bf16.mxu0 %v4433
        %6111 = vmatpush1.bf16.msra.mxu0 %v4432
        %6112 = vmatprep.subr.bf16.mxu0 %v4443
        %6113 = vmatpush1.bf16.msra.mxu0 %v4442
        %6114 = vmatprep.subr.bf16.mxu0 %v4453
        %6115 = vmatpush1.bf16.msra.mxu0 %v4452
        %6116 = vmatprep.subr.bf16.mxu0 %v4463
        %6117 = vmatpush1.bf16.msra.mxu0 %v4462
        %6118 = vmatprep.subr.bf16.mxu0 %v4473
        %6119 = vmatpush1.bf16.msra.mxu0 %v4472
        %6120 = vmatprep.subr.bf16.mxu0 %v4483
        %6121 = vmatpush1.bf16.msra.mxu0 %v4482
        %6122 = vmatprep.subr.bf16.mxu0 %v4493
        %6123 = vmatpush1.bf16.msra.mxu0 %v4492
        %6124 = vmatprep.subr.bf16.mxu0 %v4503
        %6125 = vmatpush1.bf16.msra.mxu0 %v4502
        %6126 = vmatprep.subr.bf16.mxu0 %v4513
        %6127 = vmatpush1.bf16.msra.mxu0 %v4512
        %6128 = vmatprep.subr.bf16.mxu0 %v4523
        %6129 = vmatpush1.bf16.msra.mxu0 %v4522
        %6130 = vmatprep.subr.bf16.mxu0 %v4533
        %6131 = vmatpush1.bf16.msra.mxu0 %v4532
        %6132 = vmatprep.subr.bf16.mxu0 %v4543
        %6133 = vmatpush1.bf16.msra.mxu0 %v4542
        %6134 = vmatprep.mubr.bf16.mxu0 %v5397
        %6135 = vmatmul.mubr.bf16.gmra.mrb[0].mxu0 %v5395
        %v6136 = vpop.f32.mrb[0].mxu0
        %v6137 = vadd.f32 %v6096, %v6136
        %v6138 = vpop.f32.mrb[0].mxu0
        %v6139 = vadd.f32 %v6098, %v6138
        %v6140 = vpop.f32.mrb[0].mxu0
        %v6141 = vpop.f32.mrb[0].mxu0
        %6142 = vdwg.mxu0
        %6143 = vmatprep.subr.bf16.mxu0 %v4553
        %6144 = vmatpush1.bf16.msra.mxu0 %v4552
        %6145 = vmatprep.subr.bf16.mxu0 %v4563
        %6146 = vmatpush1.bf16.msra.mxu0 %v4562
        %6147 = vmatprep.subr.bf16.mxu0 %v4573
        %6148 = vmatpush1.bf16.msra.mxu0 %v4572
        %6149 = vmatprep.subr.bf16.mxu0 %v4583
        %6150 = vmatpush1.bf16.msra.mxu0 %v4582
        %6151 = vmatprep.subr.bf16.mxu0 %v4593
        %6152 = vmatpush1.bf16.msra.mxu0 %v4592
        %6153 = vmatprep.subr.bf16.mxu0 %v4603
        %6154 = vmatpush1.bf16.msra.mxu0 %v4602
        %6155 = vmatprep.subr.bf16.mxu0 %v4613
        %6156 = vmatpush1.bf16.msra.mxu0 %v4612
        %6157 = vmatprep.subr.bf16.mxu0 %v4623
        %6158 = vmatpush1.bf16.msra.mxu0 %v4622
        %6159 = vmatprep.subr.bf16.mxu0 %v4633
        %6160 = vmatpush1.bf16.msra.mxu0 %v4632
        %6161 = vmatprep.subr.bf16.mxu0 %v4643
        %6162 = vmatpush1.bf16.msra.mxu0 %v4642
        %6163 = vmatprep.subr.bf16.mxu0 %v4653
        %6164 = vmatpush1.bf16.msra.mxu0 %v4652
        %6165 = vmatprep.subr.bf16.mxu0 %v4663
        %6166 = vmatpush1.bf16.msra.mxu0 %v4662
        %6167 = vmatprep.subr.bf16.mxu0 %v4673
        %6168 = vmatpush1.bf16.msra.mxu0 %v4672
        %6169 = vmatprep.subr.bf16.mxu0 %v4683
        %6170 = vmatpush1.bf16.msra.mxu0 %v4682
        %6171 = vmatprep.subr.bf16.mxu0 %v4693
        %6172 = vmatpush1.bf16.msra.mxu0 %v4692
        %6173 = vmatprep.subr.bf16.mxu0 %v4703
        %6174 = vmatpush1.bf16.msra.mxu0 %v4702
        %6175 = vmatprep.mubr.bf16.mxu0 %v5435
        %6176 = vmatmul.mubr.bf16.gmra.mrb[0].mxu0 %v5421
        %v6177 = vpop.f32.mrb[0].mxu0
        %v6178 = vadd.f32 %v6137, %v6177
        %v6179 = vpop.f32.mrb[0].mxu0
        %v6180 = vadd.f32 %v6139, %v6179
        %v6181 = vpop.f32.mrb[0].mxu0
        %v6182 = vpop.f32.mrb[0].mxu0
        %6183 = vdwg.mxu0
        %6184 = vmatprep.subr.bf16.mxu0 %v4713
        %6185 = vmatpush1.bf16.msra.mxu0 %v4712
        %6186 = vmatprep.subr.bf16.mxu0 %v4723
        %6187 = vmatpush1.bf16.msra.mxu0 %v4722
        %6188 = vmatprep.subr.bf16.mxu0 %v4733
        %6189 = vmatpush1.bf16.msra.mxu0 %v4732
        %6190 = vmatprep.subr.bf16.mxu0 %v4743
        %6191 = vmatpush1.bf16.msra.mxu0 %v4742
        %6192 = vmatprep.subr.bf16.mxu0 %v4753
        %6193 = vmatpush1.bf16.msra.mxu0 %v4752
        %6194 = vmatprep.subr.bf16.mxu0 %v4763
        %6195 = vmatpush1.bf16.msra.mxu0 %v4762
        %6196 = vmatprep.subr.bf16.mxu0 %v4773
        %6197 = vmatpush1.bf16.msra.mxu0 %v4772
        %6198 = vmatprep.subr.bf16.mxu0 %v4783
        %6199 = vmatpush1.bf16.msra.mxu0 %v4782
        %6200 = vmatprep.subr.bf16.mxu0 %v4793
        %6201 = vmatpush1.bf16.msra.mxu0 %v4792
        %6202 = vmatprep.subr.bf16.mxu0 %v4803
        %6203 = vmatpush1.bf16.msra.mxu0 %v4802
        %6204 = vmatprep.subr.bf16.mxu0 %v4813
        %6205 = vmatpush1.bf16.msra.mxu0 %v4812
        %6206 = vmatprep.subr.bf16.mxu0 %v4823
        %6207 = vmatpush1.bf16.msra.mxu0 %v4822
        %6208 = vmatprep.subr.bf16.mxu0 %v4833
        %6209 = vmatpush1.bf16.msra.mxu0 %v4832
        %6210 = vmatprep.subr.bf16.mxu0 %v4843
        %6211 = vmatpush1.bf16.msra.mxu0 %v4842
        %6212 = vmatprep.subr.bf16.mxu0 %v4853
        %6213 = vmatpush1.bf16.msra.mxu0 %v4852
        %6214 = vmatprep.subr.bf16.mxu0 %v4863
        %6215 = vmatpush1.bf16.msra.mxu0 %v4862
        %6216 = vmatprep.mubr.bf16.mxu0 %v5445
        %6217 = vmatmul.mubr.bf16.gmra.mrb[0].mxu0 %v5443
        %v6218 = vpop.f32.mrb[0].mxu0
        %v6219 = vadd.f32 %v6178, %v6218
        %v6220 = vpop.f32.mrb[0].mxu0
        %v6221 = vadd.f32 %v6180, %v6220
        %v6222 = vpop.f32.mrb[0].mxu0
        %v6223 = vpop.f32.mrb[0].mxu0
        %6224 = vdwg.mxu0
        %6225 = vmatprep.subr.bf16.mxu0 %v4873
        %6226 = vmatpush1.bf16.msra.mxu0 %v4872
        %6227 = vmatprep.subr.bf16.mxu0 %v4883
        %6228 = vmatpush1.bf16.msra.mxu0 %v4882
        %6229 = vmatprep.subr.bf16.mxu0 %v4893
        %6230 = vmatpush1.bf16.msra.mxu0 %v4892
        %6231 = vmatprep.subr.bf16.mxu0 %v4903
        %6232 = vmatpush1.bf16.msra.mxu0 %v4902
        %6233 = vmatprep.subr.bf16.mxu0 %v4913
        %6234 = vmatpush1.bf16.msra.mxu0 %v4912
        %6235 = vmatprep.subr.bf16.mxu0 %v4923
        %6236 = vmatpush1.bf16.msra.mxu0 %v4922
        %6237 = vmatprep.subr.bf16.mxu0 %v4933
        %6238 = vmatpush1.bf16.msra.mxu0 %v4932
        %6239 = vmatprep.subr.bf16.mxu0 %v4943
        %6240 = vmatpush1.bf16.msra.mxu0 %v4942
        %6241 = vmatprep.subr.bf16.mxu0 %v4953
        %6242 = vmatpush1.bf16.msra.mxu0 %v4952
        %6243 = vmatprep.subr.bf16.mxu0 %v4963
        %6244 = vmatpush1.bf16.msra.mxu0 %v4962
        %6245 = vmatprep.subr.bf16.mxu0 %v4973
        %6246 = vmatpush1.bf16.msra.mxu0 %v4972
        %6247 = vmatprep.subr.bf16.mxu0 %v4983
        %6248 = vmatpush1.bf16.msra.mxu0 %v4982
        %6249 = vmatprep.subr.bf16.mxu0 %v4993
        %6250 = vmatpush1.bf16.msra.mxu0 %v4992
        %6251 = vmatprep.subr.bf16.mxu0 %v5003
        %6252 = vmatpush1.bf16.msra.mxu0 %v5002
        %6253 = vmatprep.subr.bf16.mxu0 %v5013
        %6254 = vmatpush1.bf16.msra.mxu0 %v5012
        %6255 = vmatprep.subr.bf16.mxu0 %v5023
        %6256 = vmatpush1.bf16.msra.mxu0 %v5022
        %6257 = vmatprep.mubr.bf16.mxu0 %v5442
        %6258 = vmatmul.mubr.bf16.gmra.mrb[0].mxu0 %v5428
        %v6259 = vpop.f32.mrb[0].mxu0
        %v6260 = vadd.f32 %v6219, %v6259
        %v6261 = vpop.f32.mrb[0].mxu0
        %v6262 = vadd.f32 %v6221, %v6261
        %v6263 = vpop.f32.mrb[0].mxu0
        %v6264 = vpop.f32.mrb[0].mxu0
        %6265 = vdwg.mxu0
        %6266 = vmatprep.subr.bf16.mxu0 %v5033
        %6267 = vmatpush1.bf16.msra.mxu0 %v5032
        %6268 = vmatprep.subr.bf16.mxu0 %v5043
        %6269 = vmatpush1.bf16.msra.mxu0 %v5042
        %6270 = vmatprep.subr.bf16.mxu0 %v5053
        %6271 = vmatpush1.bf16.msra.mxu0 %v5052
        %6272 = vmatprep.subr.bf16.mxu0 %v5063
        %6273 = vmatpush1.bf16.msra.mxu0 %v5062
        %6274 = vmatprep.subr.bf16.mxu0 %v5073
        %6275 = vmatpush1.bf16.msra.mxu0 %v5072
        %6276 = vmatprep.subr.bf16.mxu0 %v5083
        %6277 = vmatpush1.bf16.msra.mxu0 %v5082
        %6278 = vmatprep.subr.bf16.mxu0 %v5093
        %6279 = vmatpush1.bf16.msra.mxu0 %v5092
        %6280 = vmatprep.subr.bf16.mxu0 %v5103
        %6281 = vmatpush1.bf16.msra.mxu0 %v5102
        %6282 = vmatprep.subr.bf16.mxu0 %v5113
        %6283 = vmatpush1.bf16.msra.mxu0 %v5112
        %6284 = vmatprep.subr.bf16.mxu0 %v5123
        %6285 = vmatpush1.bf16.msra.mxu0 %v5122
        %6286 = vmatprep.subr.bf16.mxu0 %v5133
        %6287 = vmatpush1.bf16.msra.mxu0 %v5132
        %6288 = vmatprep.subr.bf16.mxu0 %v5143
        %6289 = vmatpush1.bf16.msra.mxu0 %v5142
        %6290 = vmatprep.subr.bf16.mxu0 %v5153
        %6291 = vmatpush1.bf16.msra.mxu0 %v5152
        %6292 = vmatprep.subr.bf16.mxu0 %v5163
        %6293 = vmatpush1.bf16.msra.mxu0 %v5162
        %6294 = vmatprep.subr.bf16.mxu0 %v5173
        %6295 = vmatpush1.bf16.msra.mxu0 %v5172
        %6296 = vmatprep.subr.bf16.mxu0 %v5183
        %6297 = vmatpush1.bf16.msra.mxu0 %v5182
        %6298 = vmatprep.mubr.bf16.mxu0 %v5446
        %6299 = vmatmul.mubr.bf16.gmra.mrb[0].mxu0 %v5444
        %v6300 = vpop.f32.mrb[0].mxu0
        %v6301 = vadd.f32 %v6260, %v6300
        %v6302 = vpop.f32.mrb[0].mxu0
        %v6303 = vadd.f32 %v6262, %v6302
        %v6304 = vpop.f32.mrb[0].mxu0
        %v6305 = vpop.f32.mrb[0].mxu0
        %6306 = vdwg.mxu0
        %6307 = vmatprep.subr.bf16.mxu0 %v1995
        %6308 = vmatpush1.bf16.msra.mxu0 %v1994
        %6309 = vmatprep.subr.bf16.mxu0 %v2005
        %6310 = vmatpush1.bf16.msra.mxu0 %v2004
        %6311 = vmatprep.subr.bf16.mxu0 %v2015
        %6312 = vmatpush1.bf16.msra.mxu0 %v2014
        %6313 = vmatprep.subr.bf16.mxu0 %v2025
        %6314 = vmatpush1.bf16.msra.mxu0 %v2024
        %6315 = vmatprep.subr.bf16.mxu0 %v2035
        %6316 = vmatpush1.bf16.msra.mxu0 %v2034
        %6317 = vmatprep.subr.bf16.mxu0 %v2045
        %6318 = vmatpush1.bf16.msra.mxu0 %v2044
        %6319 = vmatprep.subr.bf16.mxu0 %v2055
        %6320 = vmatpush1.bf16.msra.mxu0 %v2054
        %6321 = vmatprep.subr.bf16.mxu0 %v2065
        %6322 = vmatpush1.bf16.msra.mxu0 %v2064
        %6323 = vmatprep.subr.bf16.mxu0 %v2075
        %6324 = vmatpush1.bf16.msra.mxu0 %v2074
        %6325 = vmatprep.subr.bf16.mxu0 %v2085
        %6326 = vmatpush1.bf16.msra.mxu0 %v2084
        %6327 = vmatprep.subr.bf16.mxu0 %v2095
        %6328 = vmatpush1.bf16.msra.mxu0 %v2094
        %6329 = vmatprep.subr.bf16.mxu0 %v2105
        %6330 = vmatpush1.bf16.msra.mxu0 %v2104
        %6331 = vmatprep.subr.bf16.mxu0 %v2115
        %6332 = vmatpush1.bf16.msra.mxu0 %v2114
        %6333 = vmatprep.subr.bf16.mxu0 %v2125
        %6334 = vmatpush1.bf16.msra.mxu0 %v2124
        %6335 = vmatprep.subr.bf16.mxu0 %v2135
        %6336 = vmatpush1.bf16.msra.mxu0 %v2134
        %6337 = vmatprep.subr.bf16.mxu0 %v2145
        %6338 = vmatpush1.bf16.msra.mxu0 %v2144
        %6339 = vmatprep.mubr.bf16.mxu0 %v5239
        %6340 = vmatmul.mubr.bf16.gmra.mrb[0].mxu0 %v5225
        %v6341 = vpop.f32.mrb[0].mxu0
        %v6342 = vadd.f32 0.0, %v6341
        %v6343 = vpop.f32.mrb[0].mxu0
        %v6344 = vadd.f32 0.0, %v6343
        %v6345 = vpop.f32.mrb[0].mxu0
        %v6346 = vpop.f32.mrb[0].mxu0
        %6347 = vdwg.mxu0
        %6348 = vmatprep.subr.bf16.mxu0 %v2155
        %6349 = vmatpush1.bf16.msra.mxu0 %v2154
        %6350 = vmatprep.subr.bf16.mxu0 %v2165
        %6351 = vmatpush1.bf16.msra.mxu0 %v2164
        %6352 = vmatprep.subr.bf16.mxu0 %v2175
        %6353 = vmatpush1.bf16.msra.mxu0 %v2174
        %6354 = vmatprep.subr.bf16.mxu0 %v2185
        %6355 = vmatpush1.bf16.msra.mxu0 %v2184
        %6356 = vmatprep.subr.bf16.mxu0 %v2195
        %6357 = vmatpush1.bf16.msra.mxu0 %v2194
        %6358 = vmatprep.subr.bf16.mxu0 %v2205
        %6359 = vmatpush1.bf16.msra.mxu0 %v2204
        %6360 = vmatprep.subr.bf16.mxu0 %v2215
        %6361 = vmatpush1.bf16.msra.mxu0 %v2214
        %6362 = vmatprep.subr.bf16.mxu0 %v2225
        %6363 = vmatpush1.bf16.msra.mxu0 %v2224
        %6364 = vmatprep.subr.bf16.mxu0 %v2235
        %6365 = vmatpush1.bf16.msra.mxu0 %v2234
        %6366 = vmatprep.subr.bf16.mxu0 %v2245
        %6367 = vmatpush1.bf16.msra.mxu0 %v2244
        %6368 = vmatprep.subr.bf16.mxu0 %v2255
        %6369 = vmatpush1.bf16.msra.mxu0 %v2254
        %6370 = vmatprep.subr.bf16.mxu0 %v2265
        %6371 = vmatpush1.bf16.msra.mxu0 %v2264
        %6372 = vmatprep.subr.bf16.mxu0 %v2275
        %6373 = vmatpush1.bf16.msra.mxu0 %v2274
        %6374 = vmatprep.subr.bf16.mxu0 %v2285
        %6375 = vmatpush1.bf16.msra.mxu0 %v2284
        %6376 = vmatprep.subr.bf16.mxu0 %v2295
        %6377 = vmatpush1.bf16.msra.mxu0 %v2294
        %6378 = vmatprep.subr.bf16.mxu0 %v2305
        %6379 = vmatpush1.bf16.msra.mxu0 %v2304
        %6380 = vmatprep.mubr.bf16.mxu0 %v5249
        %6381 = vmatmul.mubr.bf16.gmra.mrb[0].mxu0 %v5247
        %v6382 = vpop.f32.mrb[0].mxu0
        %v6383 = vadd.f32 %v6342, %v6382
        %v6384 = vpop.f32.mrb[0].mxu0
        %v6385 = vadd.f32 %v6344, %v6384
        %v6386 = vpop.f32.mrb[0].mxu0
        %v6387 = vpop.f32.mrb[0].mxu0
        %6388 = vdwg.mxu0
        %6389 = vmatprep.subr.bf16.mxu0 %v2315
        %6390 = vmatpush1.bf16.msra.mxu0 %v2314
        %6391 = vmatprep.subr.bf16.mxu0 %v2325
        %6392 = vmatpush1.bf16.msra.mxu0 %v2324
        %6393 = vmatprep.subr.bf16.mxu0 %v2335
        %6394 = vmatpush1.bf16.msra.mxu0 %v2334
        %6395 = vmatprep.subr.bf16.mxu0 %v2345
        %6396 = vmatpush1.bf16.msra.mxu0 %v2344
        %6397 = vmatprep.subr.bf16.mxu0 %v2355
        %6398 = vmatpush1.bf16.msra.mxu0 %v2354
        %6399 = vmatprep.subr.bf16.mxu0 %v2365
        %6400 = vmatpush1.bf16.msra.mxu0 %v2364
        %6401 = vmatprep.subr.bf16.mxu0 %v2375
        %6402 = vmatpush1.bf16.msra.mxu0 %v2374
        %6403 = vmatprep.subr.bf16.mxu0 %v2385
        %6404 = vmatpush1.bf16.msra.mxu0 %v2384
        %6405 = vmatprep.subr.bf16.mxu0 %v2395
        %6406 = vmatpush1.bf16.msra.mxu0 %v2394
        %6407 = vmatprep.subr.bf16.mxu0 %v2405
        %6408 = vmatpush1.bf16.msra.mxu0 %v2404
        %6409 = vmatprep.subr.bf16.mxu0 %v2415
        %6410 = vmatpush1.bf16.msra.mxu0 %v2414
        %6411 = vmatprep.subr.bf16.mxu0 %v2425
        %6412 = vmatpush1.bf16.msra.mxu0 %v2424
        %6413 = vmatprep.subr.bf16.mxu0 %v2435
        %6414 = vmatpush1.bf16.msra.mxu0 %v2434
        %6415 = vmatprep.subr.bf16.mxu0 %v2445
        %6416 = vmatpush1.bf16.msra.mxu0 %v2444
        %6417 = vmatprep.subr.bf16.mxu0 %v2455
        %6418 = vmatpush1.bf16.msra.mxu0 %v2454
        %6419 = vmatprep.subr.bf16.mxu0 %v2465
        %6420 = vmatpush1.bf16.msra.mxu0 %v2464
        %6421 = vmatprep.mubr.bf16.mxu0 %v5246
        %6422 = vmatmul.mubr.bf16.gmra.mrb[0].mxu0 %v5232
        %v6423 = vpop.f32.mrb[0].mxu0
        %v6424 = vadd.f32 %v6383, %v6423
        %v6425 = vpop.f32.mrb[0].mxu0
        %v6426 = vadd.f32 %v6385, %v6425
        %v6427 = vpop.f32.mrb[0].mxu0
        %v6428 = vpop.f32.mrb[0].mxu0
        %6429 = vdwg.mxu0
        %6430 = vmatprep.subr.bf16.mxu0 %v2475
        %6431 = vmatpush1.bf16.msra.mxu0 %v2474
        %6432 = vmatprep.subr.bf16.mxu0 %v2485
        %6433 = vmatpush1.bf16.msra.mxu0 %v2484
        %6434 = vmatprep.subr.bf16.mxu0 %v2495
        %6435 = vmatpush1.bf16.msra.mxu0 %v2494
        %6436 = vmatprep.subr.bf16.mxu0 %v2505
        %6437 = vmatpush1.bf16.msra.mxu0 %v2504
        %6438 = vmatprep.subr.bf16.mxu0 %v2515
        %6439 = vmatpush1.bf16.msra.mxu0 %v2514
        %6440 = vmatprep.subr.bf16.mxu0 %v2525
        %6441 = vmatpush1.bf16.msra.mxu0 %v2524
        %6442 = vmatprep.subr.bf16.mxu0 %v2535
        %6443 = vmatpush1.bf16.msra.mxu0 %v2534
        %6444 = vmatprep.subr.bf16.mxu0 %v2545
        %6445 = vmatpush1.bf16.msra.mxu0 %v2544
        %6446 = vmatprep.subr.bf16.mxu0 %v2555
        %6447 = vmatpush1.bf16.msra.mxu0 %v2554
        %6448 = vmatprep.subr.bf16.mxu0 %v2565
        %6449 = vmatpush1.bf16.msra.mxu0 %v2564
        %6450 = vmatprep.subr.bf16.mxu0 %v2575
        %6451 = vmatpush1.bf16.msra.mxu0 %v2574
        %6452 = vmatprep.subr.bf16.mxu0 %v2585
        %6453 = vmatpush1.bf16.msra.mxu0 %v2584
        %6454 = vmatprep.subr.bf16.mxu0 %v2595
        %6455 = vmatpush1.bf16.msra.mxu0 %v2594
        %6456 = vmatprep.subr.bf16.mxu0 %v2605
        %6457 = vmatpush1.bf16.msra.mxu0 %v2604
        %6458 = vmatprep.subr.bf16.mxu0 %v2615
        %6459 = vmatpush1.bf16.msra.mxu0 %v2614
        %6460 = vmatprep.subr.bf16.mxu0 %v2625
        %6461 = vmatpush1.bf16.msra.mxu0 %v2624
        %6462 = vmatprep.mubr.bf16.mxu0 %v5250
        %6463 = vmatmul.mubr.bf16.gmra.mrb[0].mxu0 %v5248
        %v6464 = vpop.f32.mrb[0].mxu0
        %v6465 = vadd.f32 %v6424, %v6464
        %v6466 = vpop.f32.mrb[0].mxu0
        %v6467 = vadd.f32 %v6426, %v6466
        %v6468 = vpop.f32.mrb[0].mxu0
        %v6469 = vpop.f32.mrb[0].mxu0
        %6470 = vdwg.mxu0
        %6471 = vmatprep.subr.bf16.mxu0 %v2635
        %6472 = vmatpush1.bf16.msra.mxu0 %v2634
        %6473 = vmatprep.subr.bf16.mxu0 %v2645
        %6474 = vmatpush1.bf16.msra.mxu0 %v2644
        %6475 = vmatprep.subr.bf16.mxu0 %v2655
        %6476 = vmatpush1.bf16.msra.mxu0 %v2654
        %6477 = vmatprep.subr.bf16.mxu0 %v2665
        %6478 = vmatpush1.bf16.msra.mxu0 %v2664
        %6479 = vmatprep.subr.bf16.mxu0 %v2675
        %6480 = vmatpush1.bf16.msra.mxu0 %v2674
        %6481 = vmatprep.subr.bf16.mxu0 %v2685
        %6482 = vmatpush1.bf16.msra.mxu0 %v2684
        %6483 = vmatprep.subr.bf16.mxu0 %v2695
        %6484 = vmatpush1.bf16.msra.mxu0 %v2694
        %6485 = vmatprep.subr.bf16.mxu0 %v2705
        %6486 = vmatpush1.bf16.msra.mxu0 %v2704
        %6487 = vmatprep.subr.bf16.mxu0 %v2715
        %6488 = vmatpush1.bf16.msra.mxu0 %v2714
        %6489 = vmatprep.subr.bf16.mxu0 %v2725
        %6490 = vmatpush1.bf16.msra.mxu0 %v2724
        %6491 = vmatprep.subr.bf16.mxu0 %v2735
        %6492 = vmatpush1.bf16.msra.mxu0 %v2734
        %6493 = vmatprep.subr.bf16.mxu0 %v2745
        %6494 = vmatpush1.bf16.msra.mxu0 %v2744
        %6495 = vmatprep.subr.bf16.mxu0 %v2755
        %6496 = vmatpush1.bf16.msra.mxu0 %v2754
        %6497 = vmatprep.subr.bf16.mxu0 %v2765
        %6498 = vmatpush1.bf16.msra.mxu0 %v2764
        %6499 = vmatprep.subr.bf16.mxu0 %v2775
        %6500 = vmatpush1.bf16.msra.mxu0 %v2774
        %6501 = vmatprep.subr.bf16.mxu0 %v2785
        %6502 = vmatpush1.bf16.msra.mxu0 %v2784
        %6503 = vmatprep.mubr.bf16.mxu0 %v5288
        %6504 = vmatmul.mubr.bf16.gmra.mrb[0].mxu0 %v5274
        %v6505 = vpop.f32.mrb[0].mxu0
        %v6506 = vadd.f32 %v6465, %v6505
        %v6507 = vpop.f32.mrb[0].mxu0
        %v6508 = vadd.f32 %v6467, %v6507
        %v6509 = vpop.f32.mrb[0].mxu0
        %v6510 = vpop.f32.mrb[0].mxu0
        %6511 = vdwg.mxu0
        %6512 = vmatprep.subr.bf16.mxu0 %v2795
        %6513 = vmatpush1.bf16.msra.mxu0 %v2794
        %6514 = vmatprep.subr.bf16.mxu0 %v2805
        %6515 = vmatpush1.bf16.msra.mxu0 %v2804
        %6516 = vmatprep.subr.bf16.mxu0 %v2815
        %6517 = vmatpush1.bf16.msra.mxu0 %v2814
        %6518 = vmatprep.subr.bf16.mxu0 %v2825
        %6519 = vmatpush1.bf16.msra.mxu0 %v2824
        %6520 = vmatprep.subr.bf16.mxu0 %v2835
        %6521 = vmatpush1.bf16.msra.mxu0 %v2834
        %6522 = vmatprep.subr.bf16.mxu0 %v2845
        %6523 = vmatpush1.bf16.msra.mxu0 %v2844
        %6524 = vmatprep.subr.bf16.mxu0 %v2855
        %6525 = vmatpush1.bf16.msra.mxu0 %v2854
        %6526 = vmatprep.subr.bf16.mxu0 %v2865
        %6527 = vmatpush1.bf16.msra.mxu0 %v2864
        %6528 = vmatprep.subr.bf16.mxu0 %v2875
        %6529 = vmatpush1.bf16.msra.mxu0 %v2874
        %6530 = vmatprep.subr.bf16.mxu0 %v2885
        %6531 = vmatpush1.bf16.msra.mxu0 %v2884
        %6532 = vmatprep.subr.bf16.mxu0 %v2895
        %6533 = vmatpush1.bf16.msra.mxu0 %v2894
        %6534 = vmatprep.subr.bf16.mxu0 %v2905
        %6535 = vmatpush1.bf16.msra.mxu0 %v2904
        %6536 = vmatprep.subr.bf16.mxu0 %v2915
        %6537 = vmatpush1.bf16.msra.mxu0 %v2914
        %6538 = vmatprep.subr.bf16.mxu0 %v2925
        %6539 = vmatpush1.bf16.msra.mxu0 %v2924
        %6540 = vmatprep.subr.bf16.mxu0 %v2935
        %6541 = vmatpush1.bf16.msra.mxu0 %v2934
        %6542 = vmatprep.subr.bf16.mxu0 %v2945
        %6543 = vmatpush1.bf16.msra.mxu0 %v2944
        %6544 = vmatprep.mubr.bf16.mxu0 %v5298
        %6545 = vmatmul.mubr.bf16.gmra.mrb[0].mxu0 %v5296
        %v6546 = vpop.f32.mrb[0].mxu0
        %v6547 = vadd.f32 %v6506, %v6546
        %v6548 = vpop.f32.mrb[0].mxu0
        %v6549 = vadd.f32 %v6508, %v6548
        %v6550 = vpop.f32.mrb[0].mxu0
        %v6551 = vpop.f32.mrb[0].mxu0
        %6552 = vdwg.mxu0
        %6553 = vmatprep.subr.bf16.mxu0 %v2955
        %6554 = vmatpush1.bf16.msra.mxu0 %v2954
        %6555 = vmatprep.subr.bf16.mxu0 %v2965
        %6556 = vmatpush1.bf16.msra.mxu0 %v2964
        %6557 = vmatprep.subr.bf16.mxu0 %v2975
        %6558 = vmatpush1.bf16.msra.mxu0 %v2974
        %6559 = vmatprep.subr.bf16.mxu0 %v2985
        %6560 = vmatpush1.bf16.msra.mxu0 %v2984
        %6561 = vmatprep.subr.bf16.mxu0 %v2995
        %6562 = vmatpush1.bf16.msra.mxu0 %v2994
        %6563 = vmatprep.subr.bf16.mxu0 %v3005
        %6564 = vmatpush1.bf16.msra.mxu0 %v3004
        %6565 = vmatprep.subr.bf16.mxu0 %v3015
        %6566 = vmatpush1.bf16.msra.mxu0 %v3014
        %6567 = vmatprep.subr.bf16.mxu0 %v3025
        %6568 = vmatpush1.bf16.msra.mxu0 %v3024
        %6569 = vmatprep.subr.bf16.mxu0 %v3035
        %6570 = vmatpush1.bf16.msra.mxu0 %v3034
        %6571 = vmatprep.subr.bf16.mxu0 %v3045
        %6572 = vmatpush1.bf16.msra.mxu0 %v3044
        %6573 = vmatprep.subr.bf16.mxu0 %v3055
        %6574 = vmatpush1.bf16.msra.mxu0 %v3054
        %6575 = vmatprep.subr.bf16.mxu0 %v3065
        %6576 = vmatpush1.bf16.msra.mxu0 %v3064
        %6577 = vmatprep.subr.bf16.mxu0 %v3075
        %6578 = vmatpush1.bf16.msra.mxu0 %v3074
        %6579 = vmatprep.subr.bf16.mxu0 %v3085
        %6580 = vmatpush1.bf16.msra.mxu0 %v3084
        %6581 = vmatprep.subr.bf16.mxu0 %v3095
        %6582 = vmatpush1.bf16.msra.mxu0 %v3094
        %6583 = vmatprep.subr.bf16.mxu0 %v3105
        %6584 = vmatpush1.bf16.msra.mxu0 %v3104
        %6585 = vmatprep.mubr.bf16.mxu0 %v5295
        %6586 = vmatmul.mubr.bf16.gmra.mrb[0].mxu0 %v5281
        %v6587 = vpop.f32.mrb[0].mxu0
        %v6588 = vadd.f32 %v6547, %v6587
        %v6589 = vpop.f32.mrb[0].mxu0
        %v6590 = vadd.f32 %v6549, %v6589
        %v6591 = vpop.f32.mrb[0].mxu0
        %v6592 = vpop.f32.mrb[0].mxu0
        %6593 = vdwg.mxu0
        %6594 = vmatprep.subr.bf16.mxu0 %v3115
        %6595 = vmatpush1.bf16.msra.mxu0 %v3114
        %6596 = vmatprep.subr.bf16.mxu0 %v3125
        %6597 = vmatpush1.bf16.msra.mxu0 %v3124
        %6598 = vmatprep.subr.bf16.mxu0 %v3135
        %6599 = vmatpush1.bf16.msra.mxu0 %v3134
        %6600 = vmatprep.subr.bf16.mxu0 %v3145
        %6601 = vmatpush1.bf16.msra.mxu0 %v3144
        %6602 = vmatprep.subr.bf16.mxu0 %v3155
        %6603 = vmatpush1.bf16.msra.mxu0 %v3154
        %6604 = vmatprep.subr.bf16.mxu0 %v3165
        %6605 = vmatpush1.bf16.msra.mxu0 %v3164
        %6606 = vmatprep.subr.bf16.mxu0 %v3175
        %6607 = vmatpush1.bf16.msra.mxu0 %v3174
        %6608 = vmatprep.subr.bf16.mxu0 %v3185
        %6609 = vmatpush1.bf16.msra.mxu0 %v3184
        %6610 = vmatprep.subr.bf16.mxu0 %v3195
        %6611 = vmatpush1.bf16.msra.mxu0 %v3194
        %6612 = vmatprep.subr.bf16.mxu0 %v3205
        %6613 = vmatpush1.bf16.msra.mxu0 %v3204
        %6614 = vmatprep.subr.bf16.mxu0 %v3215
        %6615 = vmatpush1.bf16.msra.mxu0 %v3214
        %6616 = vmatprep.subr.bf16.mxu0 %v3225
        %6617 = vmatpush1.bf16.msra.mxu0 %v3224
        %6618 = vmatprep.subr.bf16.mxu0 %v3235
        %6619 = vmatpush1.bf16.msra.mxu0 %v3234
        %6620 = vmatprep.subr.bf16.mxu0 %v3245
        %6621 = vmatpush1.bf16.msra.mxu0 %v3244
        %6622 = vmatprep.subr.bf16.mxu0 %v3255
        %6623 = vmatpush1.bf16.msra.mxu0 %v3254
        %6624 = vmatprep.subr.bf16.mxu0 %v3265
        %6625 = vmatpush1.bf16.msra.mxu0 %v3264
        %6626 = vmatprep.mubr.bf16.mxu0 %v5299
        %6627 = vmatmul.mubr.bf16.gmra.mrb[0].mxu0 %v5297
        %v6628 = vpop.f32.mrb[0].mxu0
        %v6629 = vadd.f32 %v6588, %v6628
        %v6630 = vpop.f32.mrb[0].mxu0
        %v6631 = vadd.f32 %v6590, %v6630
        %v6632 = vpop.f32.mrb[0].mxu0
        %v6633 = vpop.f32.mrb[0].mxu0
        %6634 = vdwg.mxu0
        %6635 = vmatprep.subr.bf16.mxu0 %v3275
        %6636 = vmatpush1.bf16.msra.mxu0 %v3274
        %6637 = vmatprep.subr.bf16.mxu0 %v3285
        %6638 = vmatpush1.bf16.msra.mxu0 %v3284
        %6639 = vmatprep.subr.bf16.mxu0 %v3295
        %6640 = vmatpush1.bf16.msra.mxu0 %v3294
        %6641 = vmatprep.subr.bf16.mxu0 %v3305
        %6642 = vmatpush1.bf16.msra.mxu0 %v3304
        %6643 = vmatprep.subr.bf16.mxu0 %v3315
        %6644 = vmatpush1.bf16.msra.mxu0 %v3314
        %6645 = vmatprep.subr.bf16.mxu0 %v3325
        %6646 = vmatpush1.bf16.msra.mxu0 %v3324
        %6647 = vmatprep.subr.bf16.mxu0 %v3335
        %6648 = vmatpush1.bf16.msra.mxu0 %v3334
        %6649 = vmatprep.subr.bf16.mxu0 %v3345
        %6650 = vmatpush1.bf16.msra.mxu0 %v3344
        %6651 = vmatprep.subr.bf16.mxu0 %v3355
        %6652 = vmatpush1.bf16.msra.mxu0 %v3354
        %6653 = vmatprep.subr.bf16.mxu0 %v3365
        %6654 = vmatpush1.bf16.msra.mxu0 %v3364
        %6655 = vmatprep.subr.bf16.mxu0 %v3375
        %6656 = vmatpush1.bf16.msra.mxu0 %v3374
        %6657 = vmatprep.subr.bf16.mxu0 %v3385
        %6658 = vmatpush1.bf16.msra.mxu0 %v3384
        %6659 = vmatprep.subr.bf16.mxu0 %v3395
        %6660 = vmatpush1.bf16.msra.mxu0 %v3394
        %6661 = vmatprep.subr.bf16.mxu0 %v3405
        %6662 = vmatpush1.bf16.msra.mxu0 %v3404
        %6663 = vmatprep.subr.bf16.mxu0 %v3415
        %6664 = vmatpush1.bf16.msra.mxu0 %v3414
        %6665 = vmatprep.subr.bf16.mxu0 %v3425
        %6666 = vmatpush1.bf16.msra.mxu0 %v3424
        %6667 = vmatprep.mubr.bf16.mxu0 %v5337
        %6668 = vmatmul.mubr.bf16.gmra.mrb[0].mxu0 %v5323
        %v6669 = vpop.f32.mrb[0].mxu0
        %v6670 = vadd.f32 %v6629, %v6669
        %v6671 = vpop.f32.mrb[0].mxu0
        %v6672 = vadd.f32 %v6631, %v6671
        %v6673 = vpop.f32.mrb[0].mxu0
        %v6674 = vpop.f32.mrb[0].mxu0
        %6675 = vdwg.mxu0
        %6676 = vmatprep.subr.bf16.mxu0 %v3435
        %6677 = vmatpush1.bf16.msra.mxu0 %v3434
        %6678 = vmatprep.subr.bf16.mxu0 %v3445
        %6679 = vmatpush1.bf16.msra.mxu0 %v3444
        %6680 = vmatprep.subr.bf16.mxu0 %v3455
        %6681 = vmatpush1.bf16.msra.mxu0 %v3454
        %6682 = vmatprep.subr.bf16.mxu0 %v3465
        %6683 = vmatpush1.bf16.msra.mxu0 %v3464
        %6684 = vmatprep.subr.bf16.mxu0 %v3475
        %6685 = vmatpush1.bf16.msra.mxu0 %v3474
        %6686 = vmatprep.subr.bf16.mxu0 %v3485
        %6687 = vmatpush1.bf16.msra.mxu0 %v3484
        %6688 = vmatprep.subr.bf16.mxu0 %v3495
        %6689 = vmatpush1.bf16.msra.mxu0 %v3494
        %6690 = vmatprep.subr.bf16.mxu0 %v3505
        %6691 = vmatpush1.bf16.msra.mxu0 %v3504
        %6692 = vmatprep.subr.bf16.mxu0 %v3515
        %6693 = vmatpush1.bf16.msra.mxu0 %v3514
        %6694 = vmatprep.subr.bf16.mxu0 %v3525
        %6695 = vmatpush1.bf16.msra.mxu0 %v3524
        %6696 = vmatprep.subr.bf16.mxu0 %v3535
        %6697 = vmatpush1.bf16.msra.mxu0 %v3534
        %6698 = vmatprep.subr.bf16.mxu0 %v3545
        %6699 = vmatpush1.bf16.msra.mxu0 %v3544
        %6700 = vmatprep.subr.bf16.mxu0 %v3555
        %6701 = vmatpush1.bf16.msra.mxu0 %v3554
        %6702 = vmatprep.subr.bf16.mxu0 %v3565
        %6703 = vmatpush1.bf16.msra.mxu0 %v3564
        %6704 = vmatprep.subr.bf16.mxu0 %v3575
        %6705 = vmatpush1.bf16.msra.mxu0 %v3574
        %6706 = vmatprep.subr.bf16.mxu0 %v3585
        %6707 = vmatpush1.bf16.msra.mxu0 %v3584
        %6708 = vmatprep.mubr.bf16.mxu0 %v5347
        %6709 = vmatmul.mubr.bf16.gmra.mrb[0].mxu0 %v5345
        %v6710 = vpop.f32.mrb[0].mxu0
        %v6711 = vadd.f32 %v6670, %v6710
        %v6712 = vpop.f32.mrb[0].mxu0
        %v6713 = vadd.f32 %v6672, %v6712
        %v6714 = vpop.f32.mrb[0].mxu0
        %v6715 = vpop.f32.mrb[0].mxu0
        %6716 = vdwg.mxu0
        %6717 = vmatprep.subr.bf16.mxu0 %v3595
        %6718 = vmatpush1.bf16.msra.mxu0 %v3594
        %6719 = vmatprep.subr.bf16.mxu0 %v3605
        %6720 = vmatpush1.bf16.msra.mxu0 %v3604
        %6721 = vmatprep.subr.bf16.mxu0 %v3615
        %6722 = vmatpush1.bf16.msra.mxu0 %v3614
        %6723 = vmatprep.subr.bf16.mxu0 %v3625
        %6724 = vmatpush1.bf16.msra.mxu0 %v3624
        %6725 = vmatprep.subr.bf16.mxu0 %v3635
        %6726 = vmatpush1.bf16.msra.mxu0 %v3634
        %6727 = vmatprep.subr.bf16.mxu0 %v3645
        %6728 = vmatpush1.bf16.msra.mxu0 %v3644
        %6729 = vmatprep.subr.bf16.mxu0 %v3655
        %6730 = vmatpush1.bf16.msra.mxu0 %v3654
        %6731 = vmatprep.subr.bf16.mxu0 %v3665
        %6732 = vmatpush1.bf16.msra.mxu0 %v3664
        %6733 = vmatprep.subr.bf16.mxu0 %v3675
        %6734 = vmatpush1.bf16.msra.mxu0 %v3674
        %6735 = vmatprep.subr.bf16.mxu0 %v3685
        %6736 = vmatpush1.bf16.msra.mxu0 %v3684
        %6737 = vmatprep.subr.bf16.mxu0 %v3695
        %6738 = vmatpush1.bf16.msra.mxu0 %v3694
        %6739 = vmatprep.subr.bf16.mxu0 %v3705
        %6740 = vmatpush1.bf16.msra.mxu0 %v3704
        %6741 = vmatprep.subr.bf16.mxu0 %v3715
        %6742 = vmatpush1.bf16.msra.mxu0 %v3714
        %6743 = vmatprep.subr.bf16.mxu0 %v3725
        %6744 = vmatpush1.bf16.msra.mxu0 %v3724
        %6745 = vmatprep.subr.bf16.mxu0 %v3735
        %6746 = vmatpush1.bf16.msra.mxu0 %v3734
        %6747 = vmatprep.subr.bf16.mxu0 %v3745
        %6748 = vmatpush1.bf16.msra.mxu0 %v3744
        %6749 = vmatprep.mubr.bf16.mxu0 %v5344
        %6750 = vmatmul.mubr.bf16.gmra.mrb[0].mxu0 %v5330
        %v6751 = vpop.f32.mrb[0].mxu0
        %v6752 = vadd.f32 %v6711, %v6751
        %v6753 = vpop.f32.mrb[0].mxu0
        %v6754 = vadd.f32 %v6713, %v6753
        %v6755 = vpop.f32.mrb[0].mxu0
        %v6756 = vpop.f32.mrb[0].mxu0
        %6757 = vdwg.mxu0
        %6758 = vmatprep.subr.bf16.mxu0 %v3755
        %6759 = vmatpush1.bf16.msra.mxu0 %v3754
        %6760 = vmatprep.subr.bf16.mxu0 %v3765
        %6761 = vmatpush1.bf16.msra.mxu0 %v3764
        %6762 = vmatprep.subr.bf16.mxu0 %v3775
        %6763 = vmatpush1.bf16.msra.mxu0 %v3774
        %6764 = vmatprep.subr.bf16.mxu0 %v3785
        %6765 = vmatpush1.bf16.msra.mxu0 %v3784
        %6766 = vmatprep.subr.bf16.mxu0 %v3795
        %6767 = vmatpush1.bf16.msra.mxu0 %v3794
        %6768 = vmatprep.subr.bf16.mxu0 %v3805
        %6769 = vmatpush1.bf16.msra.mxu0 %v3804
        %6770 = vmatprep.subr.bf16.mxu0 %v3815
        %6771 = vmatpush1.bf16.msra.mxu0 %v3814
        %6772 = vmatprep.subr.bf16.mxu0 %v3825
        %6773 = vmatpush1.bf16.msra.mxu0 %v3824
        %6774 = vmatprep.subr.bf16.mxu0 %v3835
        %6775 = vmatpush1.bf16.msra.mxu0 %v3834
        %6776 = vmatprep.subr.bf16.mxu0 %v3845
        %6777 = vmatpush1.bf16.msra.mxu0 %v3844
        %6778 = vmatprep.subr.bf16.mxu0 %v3855
        %6779 = vmatpush1.bf16.msra.mxu0 %v3854
        %6780 = vmatprep.subr.bf16.mxu0 %v3865
        %6781 = vmatpush1.bf16.msra.mxu0 %v3864
        %6782 = vmatprep.subr.bf16.mxu0 %v3875
        %6783 = vmatpush1.bf16.msra.mxu0 %v3874
        %6784 = vmatprep.subr.bf16.mxu0 %v3885
        %6785 = vmatpush1.bf16.msra.mxu0 %v3884
        %6786 = vmatprep.subr.bf16.mxu0 %v3895
        %6787 = vmatpush1.bf16.msra.mxu0 %v3894
        %6788 = vmatprep.subr.bf16.mxu0 %v3905
        %6789 = vmatpush1.bf16.msra.mxu0 %v3904
        %6790 = vmatprep.mubr.bf16.mxu0 %v5348
        %6791 = vmatmul.mubr.bf16.gmra.mrb[0].mxu0 %v5346
        %v6792 = vpop.f32.mrb[0].mxu0
        %v6793 = vadd.f32 %v6752, %v6792
        %v6794 = vpop.f32.mrb[0].mxu0
        %v6795 = vadd.f32 %v6754, %v6794
        %v6796 = vpop.f32.mrb[0].mxu0
        %v6797 = vpop.f32.mrb[0].mxu0
        %6798 = vdwg.mxu0
        %6799 = vmatprep.subr.bf16.mxu0 %v3915
        %6800 = vmatpush1.bf16.msra.mxu0 %v3914
        %6801 = vmatprep.subr.bf16.mxu0 %v3925
        %6802 = vmatpush1.bf16.msra.mxu0 %v3924
        %6803 = vmatprep.subr.bf16.mxu0 %v3935
        %6804 = vmatpush1.bf16.msra.mxu0 %v3934
        %6805 = vmatprep.subr.bf16.mxu0 %v3945
        %6806 = vmatpush1.bf16.msra.mxu0 %v3944
        %6807 = vmatprep.subr.bf16.mxu0 %v3955
        %6808 = vmatpush1.bf16.msra.mxu0 %v3954
        %6809 = vmatprep.subr.bf16.mxu0 %v3965
        %6810 = vmatpush1.bf16.msra.mxu0 %v3964
        %6811 = vmatprep.subr.bf16.mxu0 %v3975
        %6812 = vmatpush1.bf16.msra.mxu0 %v3974
        %6813 = vmatprep.subr.bf16.mxu0 %v3985
        %6814 = vmatpush1.bf16.msra.mxu0 %v3984
        %6815 = vmatprep.subr.bf16.mxu0 %v3995
        %6816 = vmatpush1.bf16.msra.mxu0 %v3994
        %6817 = vmatprep.subr.bf16.mxu0 %v4005
        %6818 = vmatpush1.bf16.msra.mxu0 %v4004
        %6819 = vmatprep.subr.bf16.mxu0 %v4015
        %6820 = vmatpush1.bf16.msra.mxu0 %v4014
        %6821 = vmatprep.subr.bf16.mxu0 %v4025
        %6822 = vmatpush1.bf16.msra.mxu0 %v4024
        %6823 = vmatprep.subr.bf16.mxu0 %v4035
        %6824 = vmatpush1.bf16.msra.mxu0 %v4034
        %6825 = vmatprep.subr.bf16.mxu0 %v4045
        %6826 = vmatpush1.bf16.msra.mxu0 %v4044
        %6827 = vmatprep.subr.bf16.mxu0 %v4055
        %6828 = vmatpush1.bf16.msra.mxu0 %v4054
        %6829 = vmatprep.subr.bf16.mxu0 %v4065
        %6830 = vmatpush1.bf16.msra.mxu0 %v4064
        %6831 = vmatprep.mubr.bf16.mxu0 %v5386
        %6832 = vmatmul.mubr.bf16.gmra.mrb[0].mxu0 %v5372
        %v6833 = vpop.f32.mrb[0].mxu0
        %v6834 = vadd.f32 %v6793, %v6833
        %v6835 = vpop.f32.mrb[0].mxu0
        %v6836 = vadd.f32 %v6795, %v6835
        %v6837 = vpop.f32.mrb[0].mxu0
        %v6838 = vpop.f32.mrb[0].mxu0
        %6839 = vdwg.mxu0
        %6840 = vmatprep.subr.bf16.mxu0 %v4075
        %6841 = vmatpush1.bf16.msra.mxu0 %v4074
        %6842 = vmatprep.subr.bf16.mxu0 %v4085
        %6843 = vmatpush1.bf16.msra.mxu0 %v4084
        %6844 = vmatprep.subr.bf16.mxu0 %v4095
        %6845 = vmatpush1.bf16.msra.mxu0 %v4094
        %6846 = vmatprep.subr.bf16.mxu0 %v4105
        %6847 = vmatpush1.bf16.msra.mxu0 %v4104
        %6848 = vmatprep.subr.bf16.mxu0 %v4115
        %6849 = vmatpush1.bf16.msra.mxu0 %v4114
        %6850 = vmatprep.subr.bf16.mxu0 %v4125
        %6851 = vmatpush1.bf16.msra.mxu0 %v4124
        %6852 = vmatprep.subr.bf16.mxu0 %v4135
        %6853 = vmatpush1.bf16.msra.mxu0 %v4134
        %6854 = vmatprep.subr.bf16.mxu0 %v4145
        %6855 = vmatpush1.bf16.msra.mxu0 %v4144
        %6856 = vmatprep.subr.bf16.mxu0 %v4155
        %6857 = vmatpush1.bf16.msra.mxu0 %v4154
        %6858 = vmatprep.subr.bf16.mxu0 %v4165
        %6859 = vmatpush1.bf16.msra.mxu0 %v4164
        %6860 = vmatprep.subr.bf16.mxu0 %v4175
        %6861 = vmatpush1.bf16.msra.mxu0 %v4174
        %6862 = vmatprep.subr.bf16.mxu0 %v4185
        %6863 = vmatpush1.bf16.msra.mxu0 %v4184
        %6864 = vmatprep.subr.bf16.mxu0 %v4195
        %6865 = vmatpush1.bf16.msra.mxu0 %v4194
        %6866 = vmatprep.subr.bf16.mxu0 %v4205
        %6867 = vmatpush1.bf16.msra.mxu0 %v4204
        %6868 = vmatprep.subr.bf16.mxu0 %v4215
        %6869 = vmatpush1.bf16.msra.mxu0 %v4214
        %6870 = vmatprep.subr.bf16.mxu0 %v4225
        %6871 = vmatpush1.bf16.msra.mxu0 %v4224
        %6872 = vmatprep.mubr.bf16.mxu0 %v5396
        %6873 = vmatmul.mubr.bf16.gmra.mrb[0].mxu0 %v5394
        %v6874 = vpop.f32.mrb[0].mxu0
        %v6875 = vadd.f32 %v6834, %v6874
        %v6876 = vpop.f32.mrb[0].mxu0
        %v6877 = vadd.f32 %v6836, %v6876
        %v6878 = vpop.f32.mrb[0].mxu0
        %v6879 = vpop.f32.mrb[0].mxu0
        %6880 = vdwg.mxu0
        %6881 = vmatprep.subr.bf16.mxu0 %v4235
        %6882 = vmatpush1.bf16.msra.mxu0 %v4234
        %6883 = vmatprep.subr.bf16.mxu0 %v4245
        %6884 = vmatpush1.bf16.msra.mxu0 %v4244
        %6885 = vmatprep.subr.bf16.mxu0 %v4255
        %6886 = vmatpush1.bf16.msra.mxu0 %v4254
        %6887 = vmatprep.subr.bf16.mxu0 %v4265
        %6888 = vmatpush1.bf16.msra.mxu0 %v4264
        %6889 = vmatprep.subr.bf16.mxu0 %v4275
        %6890 = vmatpush1.bf16.msra.mxu0 %v4274
        %6891 = vmatprep.subr.bf16.mxu0 %v4285
        %6892 = vmatpush1.bf16.msra.mxu0 %v4284
        %6893 = vmatprep.subr.bf16.mxu0 %v4295
        %6894 = vmatpush1.bf16.msra.mxu0 %v4294
        %6895 = vmatprep.subr.bf16.mxu0 %v4305
        %6896 = vmatpush1.bf16.msra.mxu0 %v4304
        %6897 = vmatprep.subr.bf16.mxu0 %v4315
        %6898 = vmatpush1.bf16.msra.mxu0 %v4314
        %6899 = vmatprep.subr.bf16.mxu0 %v4325
        %6900 = vmatpush1.bf16.msra.mxu0 %v4324
        %6901 = vmatprep.subr.bf16.mxu0 %v4335
        %6902 = vmatpush1.bf16.msra.mxu0 %v4334
        %6903 = vmatprep.subr.bf16.mxu0 %v4345
        %6904 = vmatpush1.bf16.msra.mxu0 %v4344
        %6905 = vmatprep.subr.bf16.mxu0 %v4355
        %6906 = vmatpush1.bf16.msra.mxu0 %v4354
        %6907 = vmatprep.subr.bf16.mxu0 %v4365
        %6908 = vmatpush1.bf16.msra.mxu0 %v4364
        %6909 = vmatprep.subr.bf16.mxu0 %v4375
        %6910 = vmatpush1.bf16.msra.mxu0 %v4374
        %6911 = vmatprep.subr.bf16.mxu0 %v4385
        %6912 = vmatpush1.bf16.msra.mxu0 %v4384
        %6913 = vmatprep.mubr.bf16.mxu0 %v5393
        %6914 = vmatmul.mubr.bf16.gmra.mrb[0].mxu0 %v5379
        %v6915 = vpop.f32.mrb[0].mxu0
        %v6916 = vadd.f32 %v6875, %v6915
        %v6917 = vpop.f32.mrb[0].mxu0
        %v6918 = vadd.f32 %v6877, %v6917
        %v6919 = vpop.f32.mrb[0].mxu0
        %v6920 = vpop.f32.mrb[0].mxu0
        %6921 = vdwg.mxu0
        %6922 = vmatprep.subr.bf16.mxu0 %v4395
        %6923 = vmatpush1.bf16.msra.mxu0 %v4394
        %6924 = vmatprep.subr.bf16.mxu0 %v4405
        %6925 = vmatpush1.bf16.msra.mxu0 %v4404
        %6926 = vmatprep.subr.bf16.mxu0 %v4415
        %6927 = vmatpush1.bf16.msra.mxu0 %v4414
        %6928 = vmatprep.subr.bf16.mxu0 %v4425
        %6929 = vmatpush1.bf16.msra.mxu0 %v4424
        %6930 = vmatprep.subr.bf16.mxu0 %v4435
        %6931 = vmatpush1.bf16.msra.mxu0 %v4434
        %6932 = vmatprep.subr.bf16.mxu0 %v4445
        %6933 = vmatpush1.bf16.msra.mxu0 %v4444
        %6934 = vmatprep.subr.bf16.mxu0 %v4455
        %6935 = vmatpush1.bf16.msra.mxu0 %v4454
        %6936 = vmatprep.subr.bf16.mxu0 %v4465
        %6937 = vmatpush1.bf16.msra.mxu0 %v4464
        %6938 = vmatprep.subr.bf16.mxu0 %v4475
        %6939 = vmatpush1.bf16.msra.mxu0 %v4474
        %6940 = vmatprep.subr.bf16.mxu0 %v4485
        %6941 = vmatpush1.bf16.msra.mxu0 %v4484
        %6942 = vmatprep.subr.bf16.mxu0 %v4495
        %6943 = vmatpush1.bf16.msra.mxu0 %v4494
        %6944 = vmatprep.subr.bf16.mxu0 %v4505
        %6945 = vmatpush1.bf16.msra.mxu0 %v4504
        %6946 = vmatprep.subr.bf16.mxu0 %v4515
        %6947 = vmatpush1.bf16.msra.mxu0 %v4514
        %6948 = vmatprep.subr.bf16.mxu0 %v4525
        %6949 = vmatpush1.bf16.msra.mxu0 %v4524
        %6950 = vmatprep.subr.bf16.mxu0 %v4535
        %6951 = vmatpush1.bf16.msra.mxu0 %v4534
        %6952 = vmatprep.subr.bf16.mxu0 %v4545
        %6953 = vmatpush1.bf16.msra.mxu0 %v4544
        %6954 = vmatprep.mubr.bf16.mxu0 %v5397
        %6955 = vmatmul.mubr.bf16.gmra.mrb[0].mxu0 %v5395
        %v6956 = vpop.f32.mrb[0].mxu0
        %v6957 = vadd.f32 %v6916, %v6956
        %v6958 = vpop.f32.mrb[0].mxu0
        %v6959 = vadd.f32 %v6918, %v6958
        %v6960 = vpop.f32.mrb[0].mxu0
        %v6961 = vpop.f32.mrb[0].mxu0
        %6962 = vdwg.mxu0
        %6963 = vmatprep.subr.bf16.mxu0 %v4555
        %6964 = vmatpush1.bf16.msra.mxu0 %v4554
        %6965 = vmatprep.subr.bf16.mxu0 %v4565
        %6966 = vmatpush1.bf16.msra.mxu0 %v4564
        %6967 = vmatprep.subr.bf16.mxu0 %v4575
        %6968 = vmatpush1.bf16.msra.mxu0 %v4574
        %6969 = vmatprep.subr.bf16.mxu0 %v4585
        %6970 = vmatpush1.bf16.msra.mxu0 %v4584
        %6971 = vmatprep.subr.bf16.mxu0 %v4595
        %6972 = vmatpush1.bf16.msra.mxu0 %v4594
        %6973 = vmatprep.subr.bf16.mxu0 %v4605
        %6974 = vmatpush1.bf16.msra.mxu0 %v4604
        %6975 = vmatprep.subr.bf16.mxu0 %v4615
        %6976 = vmatpush1.bf16.msra.mxu0 %v4614
        %6977 = vmatprep.subr.bf16.mxu0 %v4625
        %6978 = vmatpush1.bf16.msra.mxu0 %v4624
        %6979 = vmatprep.subr.bf16.mxu0 %v4635
        %6980 = vmatpush1.bf16.msra.mxu0 %v4634
        %6981 = vmatprep.subr.bf16.mxu0 %v4645
        %6982 = vmatpush1.bf16.msra.mxu0 %v4644
        %6983 = vmatprep.subr.bf16.mxu0 %v4655
        %6984 = vmatpush1.bf16.msra.mxu0 %v4654
        %6985 = vmatprep.subr.bf16.mxu0 %v4665
        %6986 = vmatpush1.bf16.msra.mxu0 %v4664
        %6987 = vmatprep.subr.bf16.mxu0 %v4675
        %6988 = vmatpush1.bf16.msra.mxu0 %v4674
        %6989 = vmatprep.subr.bf16.mxu0 %v4685
        %6990 = vmatpush1.bf16.msra.mxu0 %v4684
        %6991 = vmatprep.subr.bf16.mxu0 %v4695
        %6992 = vmatpush1.bf16.msra.mxu0 %v4694
        %6993 = vmatprep.subr.bf16.mxu0 %v4705
        %6994 = vmatpush1.bf16.msra.mxu0 %v4704
        %6995 = vmatprep.mubr.bf16.mxu0 %v5435
        %6996 = vmatmul.mubr.bf16.gmra.mrb[0].mxu0 %v5421
        %v6997 = vpop.f32.mrb[0].mxu0
        %v6998 = vadd.f32 %v6957, %v6997
        %v6999 = vpop.f32.mrb[0].mxu0
        %v7000 = vadd.f32 %v6959, %v6999
        %v7001 = vpop.f32.mrb[0].mxu0
        %v7002 = vpop.f32.mrb[0].mxu0
        %7003 = vdwg.mxu0
        %7004 = vmatprep.subr.bf16.mxu0 %v4715
        %7005 = vmatpush1.bf16.msra.mxu0 %v4714
        %7006 = vmatprep.subr.bf16.mxu0 %v4725
        %7007 = vmatpush1.bf16.msra.mxu0 %v4724
        %7008 = vmatprep.subr.bf16.mxu0 %v4735
        %7009 = vmatpush1.bf16.msra.mxu0 %v4734
        %7010 = vmatprep.subr.bf16.mxu0 %v4745
        %7011 = vmatpush1.bf16.msra.mxu0 %v4744
        %7012 = vmatprep.subr.bf16.mxu0 %v4755
        %7013 = vmatpush1.bf16.msra.mxu0 %v4754
        %7014 = vmatprep.subr.bf16.mxu0 %v4765
        %7015 = vmatpush1.bf16.msra.mxu0 %v4764
        %7016 = vmatprep.subr.bf16.mxu0 %v4775
        %7017 = vmatpush1.bf16.msra.mxu0 %v4774
        %7018 = vmatprep.subr.bf16.mxu0 %v4785
        %7019 = vmatpush1.bf16.msra.mxu0 %v4784
        %7020 = vmatprep.subr.bf16.mxu0 %v4795
        %7021 = vmatpush1.bf16.msra.mxu0 %v4794
        %7022 = vmatprep.subr.bf16.mxu0 %v4805
        %7023 = vmatpush1.bf16.msra.mxu0 %v4804
        %7024 = vmatprep.subr.bf16.mxu0 %v4815
        %7025 = vmatpush1.bf16.msra.mxu0 %v4814
        %7026 = vmatprep.subr.bf16.mxu0 %v4825
        %7027 = vmatpush1.bf16.msra.mxu0 %v4824
        %7028 = vmatprep.subr.bf16.mxu0 %v4835
        %7029 = vmatpush1.bf16.msra.mxu0 %v4834
        %7030 = vmatprep.subr.bf16.mxu0 %v4845
        %7031 = vmatpush1.bf16.msra.mxu0 %v4844
        %7032 = vmatprep.subr.bf16.mxu0 %v4855
        %7033 = vmatpush1.bf16.msra.mxu0 %v4854
        %7034 = vmatprep.subr.bf16.mxu0 %v4865
        %7035 = vmatpush1.bf16.msra.mxu0 %v4864
        %7036 = vmatprep.mubr.bf16.mxu0 %v5445
        %7037 = vmatmul.mubr.bf16.gmra.mrb[0].mxu0 %v5443
        %v7038 = vpop.f32.mrb[0].mxu0
        %v7039 = vadd.f32 %v6998, %v7038
        %v7040 = vpop.f32.mrb[0].mxu0
        %v7041 = vadd.f32 %v7000, %v7040
        %v7042 = vpop.f32.mrb[0].mxu0
        %v7043 = vpop.f32.mrb[0].mxu0
        %7044 = vdwg.mxu0
        %7045 = vmatprep.subr.bf16.mxu0 %v4875
        %7046 = vmatpush1.bf16.msra.mxu0 %v4874
        %7047 = vmatprep.subr.bf16.mxu0 %v4885
        %7048 = vmatpush1.bf16.msra.mxu0 %v4884
        %7049 = vmatprep.subr.bf16.mxu0 %v4895
        %7050 = vmatpush1.bf16.msra.mxu0 %v4894
        %7051 = vmatprep.subr.bf16.mxu0 %v4905
        %7052 = vmatpush1.bf16.msra.mxu0 %v4904
        %7053 = vmatprep.subr.bf16.mxu0 %v4915
        %7054 = vmatpush1.bf16.msra.mxu0 %v4914
        %7055 = vmatprep.subr.bf16.mxu0 %v4925
        %7056 = vmatpush1.bf16.msra.mxu0 %v4924
        %7057 = vmatprep.subr.bf16.mxu0 %v4935
        %7058 = vmatpush1.bf16.msra.mxu0 %v4934
        %7059 = vmatprep.subr.bf16.mxu0 %v4945
        %7060 = vmatpush1.bf16.msra.mxu0 %v4944
        %7061 = vmatprep.subr.bf16.mxu0 %v4955
        %7062 = vmatpush1.bf16.msra.mxu0 %v4954
        %7063 = vmatprep.subr.bf16.mxu0 %v4965
        %7064 = vmatpush1.bf16.msra.mxu0 %v4964
        %7065 = vmatprep.subr.bf16.mxu0 %v4975
        %7066 = vmatpush1.bf16.msra.mxu0 %v4974
        %7067 = vmatprep.subr.bf16.mxu0 %v4985
        %7068 = vmatpush1.bf16.msra.mxu0 %v4984
        %7069 = vmatprep.subr.bf16.mxu0 %v4995
        %7070 = vmatpush1.bf16.msra.mxu0 %v4994
        %7071 = vmatprep.subr.bf16.mxu0 %v5005
        %7072 = vmatpush1.bf16.msra.mxu0 %v5004
        %7073 = vmatprep.subr.bf16.mxu0 %v5015
        %7074 = vmatpush1.bf16.msra.mxu0 %v5014
        %7075 = vmatprep.subr.bf16.mxu0 %v5025
        %7076 = vmatpush1.bf16.msra.mxu0 %v5024
        %7077 = vmatprep.mubr.bf16.mxu0 %v5442
        %7078 = vmatmul.mubr.bf16.gmra.mrb[0].mxu0 %v5428
        %v7079 = vpop.f32.mrb[0].mxu0
        %v7080 = vadd.f32 %v7039, %v7079
        %v7081 = vpop.f32.mrb[0].mxu0
        %v7082 = vadd.f32 %v7041, %v7081
        %v7083 = vpop.f32.mrb[0].mxu0
        %v7084 = vpop.f32.mrb[0].mxu0
        %7085 = vdwg.mxu0
        %7086 = vmatprep.subr.bf16.mxu0 %v5035
        %7087 = vmatpush1.bf16.msra.mxu0 %v5034
        %7088 = vmatprep.subr.bf16.mxu0 %v5045
        %7089 = vmatpush1.bf16.msra.mxu0 %v5044
        %7090 = vmatprep.subr.bf16.mxu0 %v5055
        %7091 = vmatpush1.bf16.msra.mxu0 %v5054
        %7092 = vmatprep.subr.bf16.mxu0 %v5065
        %7093 = vmatpush1.bf16.msra.mxu0 %v5064
        %7094 = vmatprep.subr.bf16.mxu0 %v5075
        %7095 = vmatpush1.bf16.msra.mxu0 %v5074
        %7096 = vmatprep.subr.bf16.mxu0 %v5085
        %7097 = vmatpush1.bf16.msra.mxu0 %v5084
        %7098 = vmatprep.subr.bf16.mxu0 %v5095
        %7099 = vmatpush1.bf16.msra.mxu0 %v5094
        %7100 = vmatprep.subr.bf16.mxu0 %v5105
        %7101 = vmatpush1.bf16.msra.mxu0 %v5104
        %7102 = vmatprep.subr.bf16.mxu0 %v5115
        %7103 = vmatpush1.bf16.msra.mxu0 %v5114
        %7104 = vmatprep.subr.bf16.mxu0 %v5125
        %7105 = vmatpush1.bf16.msra.mxu0 %v5124
        %7106 = vmatprep.subr.bf16.mxu0 %v5135
        %7107 = vmatpush1.bf16.msra.mxu0 %v5134
        %7108 = vmatprep.subr.bf16.mxu0 %v5145
        %7109 = vmatpush1.bf16.msra.mxu0 %v5144
        %7110 = vmatprep.subr.bf16.mxu0 %v5155
        %7111 = vmatpush1.bf16.msra.mxu0 %v5154
        %7112 = vmatprep.subr.bf16.mxu0 %v5165
        %7113 = vmatpush1.bf16.msra.mxu0 %v5164
        %7114 = vmatprep.subr.bf16.mxu0 %v5175
        %7115 = vmatpush1.bf16.msra.mxu0 %v5174
        %7116 = vmatprep.subr.bf16.mxu0 %v5185
        %7117 = vmatpush1.bf16.msra.mxu0 %v5184
        %7118 = vmatprep.mubr.bf16.mxu0 %v5446
        %7119 = vmatmul.mubr.bf16.gmra.mrb[0].mxu0 %v5444
        %v7120 = vpop.f32.mrb[0].mxu0
        %v7121 = vadd.f32 %v7080, %v7120
        %v7122 = vpop.f32.mrb[0].mxu0
        %v7123 = vadd.f32 %v7082, %v7122
        %v7124 = vpop.f32.mrb[0].mxu0
        %v7125 = vpop.f32.mrb[0].mxu0
        %7126 = vdwg.mxu0
        %7127 = vmatprep.subr.bf16.mxu0 %v1997
        %7128 = vmatpush1.bf16.msra.mxu0 %v1996
        %7129 = vmatprep.subr.bf16.mxu0 %v2007
        %7130 = vmatpush1.bf16.msra.mxu0 %v2006
        %7131 = vmatprep.subr.bf16.mxu0 %v2017
        %7132 = vmatpush1.bf16.msra.mxu0 %v2016
        %7133 = vmatprep.subr.bf16.mxu0 %v2027
        %7134 = vmatpush1.bf16.msra.mxu0 %v2026
        %7135 = vmatprep.subr.bf16.mxu0 %v2037
        %7136 = vmatpush1.bf16.msra.mxu0 %v2036
        %7137 = vmatprep.subr.bf16.mxu0 %v2047
        %7138 = vmatpush1.bf16.msra.mxu0 %v2046
        %7139 = vmatprep.subr.bf16.mxu0 %v2057
        %7140 = vmatpush1.bf16.msra.mxu0 %v2056
        %7141 = vmatprep.subr.bf16.mxu0 %v2067
        %7142 = vmatpush1.bf16.msra.mxu0 %v2066
        %7143 = vmatprep.subr.bf16.mxu0 %v2077
        %7144 = vmatpush1.bf16.msra.mxu0 %v2076
        %7145 = vmatprep.subr.bf16.mxu0 %v2087
        %7146 = vmatpush1.bf16.msra.mxu0 %v2086
        %7147 = vmatprep.subr.bf16.mxu0 %v2097
        %7148 = vmatpush1.bf16.msra.mxu0 %v2096
        %7149 = vmatprep.subr.bf16.mxu0 %v2107
        %7150 = vmatpush1.bf16.msra.mxu0 %v2106
        %7151 = vmatprep.subr.bf16.mxu0 %v2117
        %7152 = vmatpush1.bf16.msra.mxu0 %v2116
        %7153 = vmatprep.subr.bf16.mxu0 %v2127
        %7154 = vmatpush1.bf16.msra.mxu0 %v2126
        %7155 = vmatprep.subr.bf16.mxu0 %v2137
        %7156 = vmatpush1.bf16.msra.mxu0 %v2136
        %7157 = vmatprep.subr.bf16.mxu0 %v2147
        %7158 = vmatpush1.bf16.msra.mxu0 %v2146
        %7159 = vmatprep.mubr.bf16.mxu0 %v5239
        %7160 = vmatmul.mubr.bf16.gmra.mrb[0].mxu0 %v5225
        %v7161 = vpop.f32.mrb[0].mxu0
        %v7162 = vadd.f32 0.0, %v7161
        %v7163 = vpop.f32.mrb[0].mxu0
        %v7164 = vadd.f32 0.0, %v7163
        %v7165 = vpop.f32.mrb[0].mxu0
        %v7166 = vpop.f32.mrb[0].mxu0
        %7167 = vdwg.mxu0
        %7168 = vmatprep.subr.bf16.mxu0 %v2157
        %7169 = vmatpush1.bf16.msra.mxu0 %v2156
        %7170 = vmatprep.subr.bf16.mxu0 %v2167
        %7171 = vmatpush1.bf16.msra.mxu0 %v2166
        %7172 = vmatprep.subr.bf16.mxu0 %v2177
        %7173 = vmatpush1.bf16.msra.mxu0 %v2176
        %7174 = vmatprep.subr.bf16.mxu0 %v2187
        %7175 = vmatpush1.bf16.msra.mxu0 %v2186
        %7176 = vmatprep.subr.bf16.mxu0 %v2197
        %7177 = vmatpush1.bf16.msra.mxu0 %v2196
        %7178 = vmatprep.subr.bf16.mxu0 %v2207
        %7179 = vmatpush1.bf16.msra.mxu0 %v2206
        %7180 = vmatprep.subr.bf16.mxu0 %v2217
        %7181 = vmatpush1.bf16.msra.mxu0 %v2216
        %7182 = vmatprep.subr.bf16.mxu0 %v2227
        %7183 = vmatpush1.bf16.msra.mxu0 %v2226
        %7184 = vmatprep.subr.bf16.mxu0 %v2237
        %7185 = vmatpush1.bf16.msra.mxu0 %v2236
        %7186 = vmatprep.subr.bf16.mxu0 %v2247
        %7187 = vmatpush1.bf16.msra.mxu0 %v2246
        %7188 = vmatprep.subr.bf16.mxu0 %v2257
        %7189 = vmatpush1.bf16.msra.mxu0 %v2256
        %7190 = vmatprep.subr.bf16.mxu0 %v2267
        %7191 = vmatpush1.bf16.msra.mxu0 %v2266
        %7192 = vmatprep.subr.bf16.mxu0 %v2277
        %7193 = vmatpush1.bf16.msra.mxu0 %v2276
        %7194 = vmatprep.subr.bf16.mxu0 %v2287
        %7195 = vmatpush1.bf16.msra.mxu0 %v2286
        %7196 = vmatprep.subr.bf16.mxu0 %v2297
        %7197 = vmatpush1.bf16.msra.mxu0 %v2296
        %7198 = vmatprep.subr.bf16.mxu0 %v2307
        %7199 = vmatpush1.bf16.msra.mxu0 %v2306
        %7200 = vmatprep.mubr.bf16.mxu0 %v5249
        %7201 = vmatmul.mubr.bf16.gmra.mrb[0].mxu0 %v5247
        %v7202 = vpop.f32.mrb[0].mxu0
        %v7203 = vadd.f32 %v7162, %v7202
        %v7204 = vpop.f32.mrb[0].mxu0
        %v7205 = vadd.f32 %v7164, %v7204
        %v7206 = vpop.f32.mrb[0].mxu0
        %v7207 = vpop.f32.mrb[0].mxu0
        %7208 = vdwg.mxu0
        %7209 = vmatprep.subr.bf16.mxu0 %v2317
        %7210 = vmatpush1.bf16.msra.mxu0 %v2316
        %7211 = vmatprep.subr.bf16.mxu0 %v2327
        %7212 = vmatpush1.bf16.msra.mxu0 %v2326
        %7213 = vmatprep.subr.bf16.mxu0 %v2337
        %7214 = vmatpush1.bf16.msra.mxu0 %v2336
        %7215 = vmatprep.subr.bf16.mxu0 %v2347
        %7216 = vmatpush1.bf16.msra.mxu0 %v2346
        %7217 = vmatprep.subr.bf16.mxu0 %v2357
        %7218 = vmatpush1.bf16.msra.mxu0 %v2356
        %7219 = vmatprep.subr.bf16.mxu0 %v2367
        %7220 = vmatpush1.bf16.msra.mxu0 %v2366
        %7221 = vmatprep.subr.bf16.mxu0 %v2377
        %7222 = vmatpush1.bf16.msra.mxu0 %v2376
        %7223 = vmatprep.subr.bf16.mxu0 %v2387
        %7224 = vmatpush1.bf16.msra.mxu0 %v2386
        %7225 = vmatprep.subr.bf16.mxu0 %v2397
        %7226 = vmatpush1.bf16.msra.mxu0 %v2396
        %7227 = vmatprep.subr.bf16.mxu0 %v2407
        %7228 = vmatpush1.bf16.msra.mxu0 %v2406
        %7229 = vmatprep.subr.bf16.mxu0 %v2417
        %7230 = vmatpush1.bf16.msra.mxu0 %v2416
        %7231 = vmatprep.subr.bf16.mxu0 %v2427
        %7232 = vmatpush1.bf16.msra.mxu0 %v2426
        %7233 = vmatprep.subr.bf16.mxu0 %v2437
        %7234 = vmatpush1.bf16.msra.mxu0 %v2436
        %7235 = vmatprep.subr.bf16.mxu0 %v2447
        %7236 = vmatpush1.bf16.msra.mxu0 %v2446
        %7237 = vmatprep.subr.bf16.mxu0 %v2457
        %7238 = vmatpush1.bf16.msra.mxu0 %v2456
        %7239 = vmatprep.subr.bf16.mxu0 %v2467
        %7240 = vmatpush1.bf16.msra.mxu0 %v2466
        %7241 = vmatprep.mubr.bf16.mxu0 %v5246
        %7242 = vmatmul.mubr.bf16.gmra.mrb[0].mxu0 %v5232
        %v7243 = vpop.f32.mrb[0].mxu0
        %v7244 = vadd.f32 %v7203, %v7243
        %v7245 = vpop.f32.mrb[0].mxu0
        %v7246 = vadd.f32 %v7205, %v7245
        %v7247 = vpop.f32.mrb[0].mxu0
        %v7248 = vpop.f32.mrb[0].mxu0
        %7249 = vdwg.mxu0
        %7250 = vmatprep.subr.bf16.mxu0 %v2477
        %7251 = vmatpush1.bf16.msra.mxu0 %v2476
        %7252 = vmatprep.subr.bf16.mxu0 %v2487
        %7253 = vmatpush1.bf16.msra.mxu0 %v2486
        %7254 = vmatprep.subr.bf16.mxu0 %v2497
        %7255 = vmatpush1.bf16.msra.mxu0 %v2496
        %7256 = vmatprep.subr.bf16.mxu0 %v2507
        %7257 = vmatpush1.bf16.msra.mxu0 %v2506
        %7258 = vmatprep.subr.bf16.mxu0 %v2517
        %7259 = vmatpush1.bf16.msra.mxu0 %v2516
        %7260 = vmatprep.subr.bf16.mxu0 %v2527
        %7261 = vmatpush1.bf16.msra.mxu0 %v2526
        %7262 = vmatprep.subr.bf16.mxu0 %v2537
        %7263 = vmatpush1.bf16.msra.mxu0 %v2536
        %7264 = vmatprep.subr.bf16.mxu0 %v2547
        %7265 = vmatpush1.bf16.msra.mxu0 %v2546
        %7266 = vmatprep.subr.bf16.mxu0 %v2557
        %7267 = vmatpush1.bf16.msra.mxu0 %v2556
        %7268 = vmatprep.subr.bf16.mxu0 %v2567
        %7269 = vmatpush1.bf16.msra.mxu0 %v2566
        %7270 = vmatprep.subr.bf16.mxu0 %v2577
        %7271 = vmatpush1.bf16.msra.mxu0 %v2576
        %7272 = vmatprep.subr.bf16.mxu0 %v2587
        %7273 = vmatpush1.bf16.msra.mxu0 %v2586
        %7274 = vmatprep.subr.bf16.mxu0 %v2597
        %7275 = vmatpush1.bf16.msra.mxu0 %v2596
        %7276 = vmatprep.subr.bf16.mxu0 %v2607
        %7277 = vmatpush1.bf16.msra.mxu0 %v2606
        %7278 = vmatprep.subr.bf16.mxu0 %v2617
        %7279 = vmatpush1.bf16.msra.mxu0 %v2616
        %7280 = vmatprep.subr.bf16.mxu0 %v2627
        %7281 = vmatpush1.bf16.msra.mxu0 %v2626
        %7282 = vmatprep.mubr.bf16.mxu0 %v5250
        %7283 = vmatmul.mubr.bf16.gmra.mrb[0].mxu0 %v5248
        %v7284 = vpop.f32.mrb[0].mxu0
        %v7285 = vadd.f32 %v7244, %v7284
        %v7286 = vpop.f32.mrb[0].mxu0
        %v7287 = vadd.f32 %v7246, %v7286
        %v7288 = vpop.f32.mrb[0].mxu0
        %v7289 = vpop.f32.mrb[0].mxu0
        %7290 = vdwg.mxu0
        %7291 = vmatprep.subr.bf16.mxu0 %v2637
        %7292 = vmatpush1.bf16.msra.mxu0 %v2636
        %7293 = vmatprep.subr.bf16.mxu0 %v2647
        %7294 = vmatpush1.bf16.msra.mxu0 %v2646
        %7295 = vmatprep.subr.bf16.mxu0 %v2657
        %7296 = vmatpush1.bf16.msra.mxu0 %v2656
        %7297 = vmatprep.subr.bf16.mxu0 %v2667
        %7298 = vmatpush1.bf16.msra.mxu0 %v2666
        %7299 = vmatprep.subr.bf16.mxu0 %v2677
        %7300 = vmatpush1.bf16.msra.mxu0 %v2676
        %7301 = vmatprep.subr.bf16.mxu0 %v2687
        %7302 = vmatpush1.bf16.msra.mxu0 %v2686
        %7303 = vmatprep.subr.bf16.mxu0 %v2697
        %7304 = vmatpush1.bf16.msra.mxu0 %v2696
        %7305 = vmatprep.subr.bf16.mxu0 %v2707
        %7306 = vmatpush1.bf16.msra.mxu0 %v2706
        %7307 = vmatprep.subr.bf16.mxu0 %v2717
        %7308 = vmatpush1.bf16.msra.mxu0 %v2716
        %7309 = vmatprep.subr.bf16.mxu0 %v2727
        %7310 = vmatpush1.bf16.msra.mxu0 %v2726
        %7311 = vmatprep.subr.bf16.mxu0 %v2737
        %7312 = vmatpush1.bf16.msra.mxu0 %v2736
        %7313 = vmatprep.subr.bf16.mxu0 %v2747
        %7314 = vmatpush1.bf16.msra.mxu0 %v2746
        %7315 = vmatprep.subr.bf16.mxu0 %v2757
        %7316 = vmatpush1.bf16.msra.mxu0 %v2756
        %7317 = vmatprep.subr.bf16.mxu0 %v2767
        %7318 = vmatpush1.bf16.msra.mxu0 %v2766
        %7319 = vmatprep.subr.bf16.mxu0 %v2777
        %7320 = vmatpush1.bf16.msra.mxu0 %v2776
        %7321 = vmatprep.subr.bf16.mxu0 %v2787
        %7322 = vmatpush1.bf16.msra.mxu0 %v2786
        %7323 = vmatprep.mubr.bf16.mxu0 %v5288
        %7324 = vmatmul.mubr.bf16.gmra.mrb[0].mxu0 %v5274
        %v7325 = vpop.f32.mrb[0].mxu0
        %v7326 = vadd.f32 %v7285, %v7325
        %v7327 = vpop.f32.mrb[0].mxu0
        %v7328 = vadd.f32 %v7287, %v7327
        %v7329 = vpop.f32.mrb[0].mxu0
        %v7330 = vpop.f32.mrb[0].mxu0
        %7331 = vdwg.mxu0
        %7332 = vmatprep.subr.bf16.mxu0 %v2797
        %7333 = vmatpush1.bf16.msra.mxu0 %v2796
        %7334 = vmatprep.subr.bf16.mxu0 %v2807
        %7335 = vmatpush1.bf16.msra.mxu0 %v2806
        %7336 = vmatprep.subr.bf16.mxu0 %v2817
        %7337 = vmatpush1.bf16.msra.mxu0 %v2816
        %7338 = vmatprep.subr.bf16.mxu0 %v2827
        %7339 = vmatpush1.bf16.msra.mxu0 %v2826
        %7340 = vmatprep.subr.bf16.mxu0 %v2837
        %7341 = vmatpush1.bf16.msra.mxu0 %v2836
        %7342 = vmatprep.subr.bf16.mxu0 %v2847
        %7343 = vmatpush1.bf16.msra.mxu0 %v2846
        %7344 = vmatprep.subr.bf16.mxu0 %v2857
        %7345 = vmatpush1.bf16.msra.mxu0 %v2856
        %7346 = vmatprep.subr.bf16.mxu0 %v2867
        %7347 = vmatpush1.bf16.msra.mxu0 %v2866
        %7348 = vmatprep.subr.bf16.mxu0 %v2877
        %7349 = vmatpush1.bf16.msra.mxu0 %v2876
        %7350 = vmatprep.subr.bf16.mxu0 %v2887
        %7351 = vmatpush1.bf16.msra.mxu0 %v2886
        %7352 = vmatprep.subr.bf16.mxu0 %v2897
        %7353 = vmatpush1.bf16.msra.mxu0 %v2896
        %7354 = vmatprep.subr.bf16.mxu0 %v2907
        %7355 = vmatpush1.bf16.msra.mxu0 %v2906
        %7356 = vmatprep.subr.bf16.mxu0 %v2917
        %7357 = vmatpush1.bf16.msra.mxu0 %v2916
        %7358 = vmatprep.subr.bf16.mxu0 %v2927
        %7359 = vmatpush1.bf16.msra.mxu0 %v2926
        %7360 = vmatprep.subr.bf16.mxu0 %v2937
        %7361 = vmatpush1.bf16.msra.mxu0 %v2936
        %7362 = vmatprep.subr.bf16.mxu0 %v2947
        %7363 = vmatpush1.bf16.msra.mxu0 %v2946
        %7364 = vmatprep.mubr.bf16.mxu0 %v5298
        %7365 = vmatmul.mubr.bf16.gmra.mrb[0].mxu0 %v5296
        %v7366 = vpop.f32.mrb[0].mxu0
        %v7367 = vadd.f32 %v7326, %v7366
        %v7368 = vpop.f32.mrb[0].mxu0
        %v7369 = vadd.f32 %v7328, %v7368
        %v7370 = vpop.f32.mrb[0].mxu0
        %v7371 = vpop.f32.mrb[0].mxu0
        %7372 = vdwg.mxu0
        %7373 = vmatprep.subr.bf16.mxu0 %v2957
        %7374 = vmatpush1.bf16.msra.mxu0 %v2956
        %7375 = vmatprep.subr.bf16.mxu0 %v2967
        %7376 = vmatpush1.bf16.msra.mxu0 %v2966
        %7377 = vmatprep.subr.bf16.mxu0 %v2977
        %7378 = vmatpush1.bf16.msra.mxu0 %v2976
        %7379 = vmatprep.subr.bf16.mxu0 %v2987
        %7380 = vmatpush1.bf16.msra.mxu0 %v2986
        %7381 = vmatprep.subr.bf16.mxu0 %v2997
        %7382 = vmatpush1.bf16.msra.mxu0 %v2996
        %7383 = vmatprep.subr.bf16.mxu0 %v3007
        %7384 = vmatpush1.bf16.msra.mxu0 %v3006
        %7385 = vmatprep.subr.bf16.mxu0 %v3017
        %7386 = vmatpush1.bf16.msra.mxu0 %v3016
        %7387 = vmatprep.subr.bf16.mxu0 %v3027
        %7388 = vmatpush1.bf16.msra.mxu0 %v3026
        %7389 = vmatprep.subr.bf16.mxu0 %v3037
        %7390 = vmatpush1.bf16.msra.mxu0 %v3036
        %7391 = vmatprep.subr.bf16.mxu0 %v3047
        %7392 = vmatpush1.bf16.msra.mxu0 %v3046
        %7393 = vmatprep.subr.bf16.mxu0 %v3057
        %7394 = vmatpush1.bf16.msra.mxu0 %v3056
        %7395 = vmatprep.subr.bf16.mxu0 %v3067
        %7396 = vmatpush1.bf16.msra.mxu0 %v3066
        %7397 = vmatprep.subr.bf16.mxu0 %v3077
        %7398 = vmatpush1.bf16.msra.mxu0 %v3076
        %7399 = vmatprep.subr.bf16.mxu0 %v3087
        %7400 = vmatpush1.bf16.msra.mxu0 %v3086
        %7401 = vmatprep.subr.bf16.mxu0 %v3097
        %7402 = vmatpush1.bf16.msra.mxu0 %v3096
        %7403 = vmatprep.subr.bf16.mxu0 %v3107
        %7404 = vmatpush1.bf16.msra.mxu0 %v3106
        %7405 = vmatprep.mubr.bf16.mxu0 %v5295
        %7406 = vmatmul.mubr.bf16.gmra.mrb[0].mxu0 %v5281
        %v7407 = vpop.f32.mrb[0].mxu0
        %v7408 = vadd.f32 %v7367, %v7407
        %v7409 = vpop.f32.mrb[0].mxu0
        %v7410 = vadd.f32 %v7369, %v7409
        %v7411 = vpop.f32.mrb[0].mxu0
        %v7412 = vpop.f32.mrb[0].mxu0
        %7413 = vdwg.mxu0
        %7414 = vmatprep.subr.bf16.mxu0 %v3117
        %7415 = vmatpush1.bf16.msra.mxu0 %v3116
        %7416 = vmatprep.subr.bf16.mxu0 %v3127
        %7417 = vmatpush1.bf16.msra.mxu0 %v3126
        %7418 = vmatprep.subr.bf16.mxu0 %v3137
        %7419 = vmatpush1.bf16.msra.mxu0 %v3136
        %7420 = vmatprep.subr.bf16.mxu0 %v3147
        %7421 = vmatpush1.bf16.msra.mxu0 %v3146
        %7422 = vmatprep.subr.bf16.mxu0 %v3157
        %7423 = vmatpush1.bf16.msra.mxu0 %v3156
        %7424 = vmatprep.subr.bf16.mxu0 %v3167
        %7425 = vmatpush1.bf16.msra.mxu0 %v3166
        %7426 = vmatprep.subr.bf16.mxu0 %v3177
        %7427 = vmatpush1.bf16.msra.mxu0 %v3176
        %7428 = vmatprep.subr.bf16.mxu0 %v3187
        %7429 = vmatpush1.bf16.msra.mxu0 %v3186
        %7430 = vmatprep.subr.bf16.mxu0 %v3197
        %7431 = vmatpush1.bf16.msra.mxu0 %v3196
        %7432 = vmatprep.subr.bf16.mxu0 %v3207
        %7433 = vmatpush1.bf16.msra.mxu0 %v3206
        %7434 = vmatprep.subr.bf16.mxu0 %v3217
        %7435 = vmatpush1.bf16.msra.mxu0 %v3216
        %7436 = vmatprep.subr.bf16.mxu0 %v3227
        %7437 = vmatpush1.bf16.msra.mxu0 %v3226
        %7438 = vmatprep.subr.bf16.mxu0 %v3237
        %7439 = vmatpush1.bf16.msra.mxu0 %v3236
        %7440 = vmatprep.subr.bf16.mxu0 %v3247
        %7441 = vmatpush1.bf16.msra.mxu0 %v3246
        %7442 = vmatprep.subr.bf16.mxu0 %v3257
        %7443 = vmatpush1.bf16.msra.mxu0 %v3256
        %7444 = vmatprep.subr.bf16.mxu0 %v3267
        %7445 = vmatpush1.bf16.msra.mxu0 %v3266
        %7446 = vmatprep.mubr.bf16.mxu0 %v5299
        %7447 = vmatmul.mubr.bf16.gmra.mrb[0].mxu0 %v5297
        %v7448 = vpop.f32.mrb[0].mxu0
        %v7449 = vadd.f32 %v7408, %v7448
        %v7450 = vpop.f32.mrb[0].mxu0
        %v7451 = vadd.f32 %v7410, %v7450
        %v7452 = vpop.f32.mrb[0].mxu0
        %v7453 = vpop.f32.mrb[0].mxu0
        %7454 = vdwg.mxu0
        %7455 = vmatprep.subr.bf16.mxu0 %v3277
        %7456 = vmatpush1.bf16.msra.mxu0 %v3276
        %7457 = vmatprep.subr.bf16.mxu0 %v3287
        %7458 = vmatpush1.bf16.msra.mxu0 %v3286
        %7459 = vmatprep.subr.bf16.mxu0 %v3297
        %7460 = vmatpush1.bf16.msra.mxu0 %v3296
        %7461 = vmatprep.subr.bf16.mxu0 %v3307
        %7462 = vmatpush1.bf16.msra.mxu0 %v3306
        %7463 = vmatprep.subr.bf16.mxu0 %v3317
        %7464 = vmatpush1.bf16.msra.mxu0 %v3316
        %7465 = vmatprep.subr.bf16.mxu0 %v3327
        %7466 = vmatpush1.bf16.msra.mxu0 %v3326
        %7467 = vmatprep.subr.bf16.mxu0 %v3337
        %7468 = vmatpush1.bf16.msra.mxu0 %v3336
        %7469 = vmatprep.subr.bf16.mxu0 %v3347
        %7470 = vmatpush1.bf16.msra.mxu0 %v3346
        %7471 = vmatprep.subr.bf16.mxu0 %v3357
        %7472 = vmatpush1.bf16.msra.mxu0 %v3356
        %7473 = vmatprep.subr.bf16.mxu0 %v3367
        %7474 = vmatpush1.bf16.msra.mxu0 %v3366
        %7475 = vmatprep.subr.bf16.mxu0 %v3377
        %7476 = vmatpush1.bf16.msra.mxu0 %v3376
        %7477 = vmatprep.subr.bf16.mxu0 %v3387
        %7478 = vmatpush1.bf16.msra.mxu0 %v3386
        %7479 = vmatprep.subr.bf16.mxu0 %v3397
        %7480 = vmatpush1.bf16.msra.mxu0 %v3396
        %7481 = vmatprep.subr.bf16.mxu0 %v3407
        %7482 = vmatpush1.bf16.msra.mxu0 %v3406
        %7483 = vmatprep.subr.bf16.mxu0 %v3417
        %7484 = vmatpush1.bf16.msra.mxu0 %v3416
        %7485 = vmatprep.subr.bf16.mxu0 %v3427
        %7486 = vmatpush1.bf16.msra.mxu0 %v3426
        %7487 = vmatprep.mubr.bf16.mxu0 %v5337
        %7488 = vmatmul.mubr.bf16.gmra.mrb[0].mxu0 %v5323
        %v7489 = vpop.f32.mrb[0].mxu0
        %v7490 = vadd.f32 %v7449, %v7489
        %v7491 = vpop.f32.mrb[0].mxu0
        %v7492 = vadd.f32 %v7451, %v7491
        %v7493 = vpop.f32.mrb[0].mxu0
        %v7494 = vpop.f32.mrb[0].mxu0
        %7495 = vdwg.mxu0
        %7496 = vmatprep.subr.bf16.mxu0 %v3437
        %7497 = vmatpush1.bf16.msra.mxu0 %v3436
        %7498 = vmatprep.subr.bf16.mxu0 %v3447
        %7499 = vmatpush1.bf16.msra.mxu0 %v3446
        %7500 = vmatprep.subr.bf16.mxu0 %v3457
        %7501 = vmatpush1.bf16.msra.mxu0 %v3456
        %7502 = vmatprep.subr.bf16.mxu0 %v3467
        %7503 = vmatpush1.bf16.msra.mxu0 %v3466
        %7504 = vmatprep.subr.bf16.mxu0 %v3477
        %7505 = vmatpush1.bf16.msra.mxu0 %v3476
        %7506 = vmatprep.subr.bf16.mxu0 %v3487
        %7507 = vmatpush1.bf16.msra.mxu0 %v3486
        %7508 = vmatprep.subr.bf16.mxu0 %v3497
        %7509 = vmatpush1.bf16.msra.mxu0 %v3496
        %7510 = vmatprep.subr.bf16.mxu0 %v3507
        %7511 = vmatpush1.bf16.msra.mxu0 %v3506
        %7512 = vmatprep.subr.bf16.mxu0 %v3517
        %7513 = vmatpush1.bf16.msra.mxu0 %v3516
        %7514 = vmatprep.subr.bf16.mxu0 %v3527
        %7515 = vmatpush1.bf16.msra.mxu0 %v3526
        %7516 = vmatprep.subr.bf16.mxu0 %v3537
        %7517 = vmatpush1.bf16.msra.mxu0 %v3536
        %7518 = vmatprep.subr.bf16.mxu0 %v3547
        %7519 = vmatpush1.bf16.msra.mxu0 %v3546
        %7520 = vmatprep.subr.bf16.mxu0 %v3557
        %7521 = vmatpush1.bf16.msra.mxu0 %v3556
        %7522 = vmatprep.subr.bf16.mxu0 %v3567
        %7523 = vmatpush1.bf16.msra.mxu0 %v3566
        %7524 = vmatprep.subr.bf16.mxu0 %v3577
        %7525 = vmatpush1.bf16.msra.mxu0 %v3576
        %7526 = vmatprep.subr.bf16.mxu0 %v3587
        %7527 = vmatpush1.bf16.msra.mxu0 %v3586
        %7528 = vmatprep.mubr.bf16.mxu0 %v5347
        %7529 = vmatmul.mubr.bf16.gmra.mrb[0].mxu0 %v5345
        %v7530 = vpop.f32.mrb[0].mxu0
        %v7531 = vadd.f32 %v7490, %v7530
        %v7532 = vpop.f32.mrb[0].mxu0
        %v7533 = vadd.f32 %v7492, %v7532
        %v7534 = vpop.f32.mrb[0].mxu0
        %v7535 = vpop.f32.mrb[0].mxu0
        %7536 = vdwg.mxu0
        %7537 = vmatprep.subr.bf16.mxu0 %v3597
        %7538 = vmatpush1.bf16.msra.mxu0 %v3596
        %7539 = vmatprep.subr.bf16.mxu0 %v3607
        %7540 = vmatpush1.bf16.msra.mxu0 %v3606
        %7541 = vmatprep.subr.bf16.mxu0 %v3617
        %7542 = vmatpush1.bf16.msra.mxu0 %v3616
        %7543 = vmatprep.subr.bf16.mxu0 %v3627
        %7544 = vmatpush1.bf16.msra.mxu0 %v3626
        %7545 = vmatprep.subr.bf16.mxu0 %v3637
        %7546 = vmatpush1.bf16.msra.mxu0 %v3636
        %7547 = vmatprep.subr.bf16.mxu0 %v3647
        %7548 = vmatpush1.bf16.msra.mxu0 %v3646
        %7549 = vmatprep.subr.bf16.mxu0 %v3657
        %7550 = vmatpush1.bf16.msra.mxu0 %v3656
        %7551 = vmatprep.subr.bf16.mxu0 %v3667
        %7552 = vmatpush1.bf16.msra.mxu0 %v3666
        %7553 = vmatprep.subr.bf16.mxu0 %v3677
        %7554 = vmatpush1.bf16.msra.mxu0 %v3676
        %7555 = vmatprep.subr.bf16.mxu0 %v3687
        %7556 = vmatpush1.bf16.msra.mxu0 %v3686
        %7557 = vmatprep.subr.bf16.mxu0 %v3697
        %7558 = vmatpush1.bf16.msra.mxu0 %v3696
        %7559 = vmatprep.subr.bf16.mxu0 %v3707
        %7560 = vmatpush1.bf16.msra.mxu0 %v3706
        %7561 = vmatprep.subr.bf16.mxu0 %v3717
        %7562 = vmatpush1.bf16.msra.mxu0 %v3716
        %7563 = vmatprep.subr.bf16.mxu0 %v3727
        %7564 = vmatpush1.bf16.msra.mxu0 %v3726
        %7565 = vmatprep.subr.bf16.mxu0 %v3737
        %7566 = vmatpush1.bf16.msra.mxu0 %v3736
        %7567 = vmatprep.subr.bf16.mxu0 %v3747
        %7568 = vmatpush1.bf16.msra.mxu0 %v3746
        %7569 = vmatprep.mubr.bf16.mxu0 %v5344
        %7570 = vmatmul.mubr.bf16.gmra.mrb[0].mxu0 %v5330
        %v7571 = vpop.f32.mrb[0].mxu0
        %v7572 = vadd.f32 %v7531, %v7571
        %v7573 = vpop.f32.mrb[0].mxu0
        %v7574 = vadd.f32 %v7533, %v7573
        %v7575 = vpop.f32.mrb[0].mxu0
        %v7576 = vpop.f32.mrb[0].mxu0
        %7577 = vdwg.mxu0
        %7578 = vmatprep.subr.bf16.mxu0 %v3757
        %7579 = vmatpush1.bf16.msra.mxu0 %v3756
        %7580 = vmatprep.subr.bf16.mxu0 %v3767
        %7581 = vmatpush1.bf16.msra.mxu0 %v3766
        %7582 = vmatprep.subr.bf16.mxu0 %v3777
        %7583 = vmatpush1.bf16.msra.mxu0 %v3776
        %7584 = vmatprep.subr.bf16.mxu0 %v3787
        %7585 = vmatpush1.bf16.msra.mxu0 %v3786
        %7586 = vmatprep.subr.bf16.mxu0 %v3797
        %7587 = vmatpush1.bf16.msra.mxu0 %v3796
        %7588 = vmatprep.subr.bf16.mxu0 %v3807
        %7589 = vmatpush1.bf16.msra.mxu0 %v3806
        %7590 = vmatprep.subr.bf16.mxu0 %v3817
        %7591 = vmatpush1.bf16.msra.mxu0 %v3816
        %7592 = vmatprep.subr.bf16.mxu0 %v3827
        %7593 = vmatpush1.bf16.msra.mxu0 %v3826
        %7594 = vmatprep.subr.bf16.mxu0 %v3837
        %7595 = vmatpush1.bf16.msra.mxu0 %v3836
        %7596 = vmatprep.subr.bf16.mxu0 %v3847
        %7597 = vmatpush1.bf16.msra.mxu0 %v3846
        %7598 = vmatprep.subr.bf16.mxu0 %v3857
        %7599 = vmatpush1.bf16.msra.mxu0 %v3856
        %7600 = vmatprep.subr.bf16.mxu0 %v3867
        %7601 = vmatpush1.bf16.msra.mxu0 %v3866
        %7602 = vmatprep.subr.bf16.mxu0 %v3877
        %7603 = vmatpush1.bf16.msra.mxu0 %v3876
        %7604 = vmatprep.subr.bf16.mxu0 %v3887
        %7605 = vmatpush1.bf16.msra.mxu0 %v3886
        %7606 = vmatprep.subr.bf16.mxu0 %v3897
        %7607 = vmatpush1.bf16.msra.mxu0 %v3896
        %7608 = vmatprep.subr.bf16.mxu0 %v3907
        %7609 = vmatpush1.bf16.msra.mxu0 %v3906
        %7610 = vmatprep.mubr.bf16.mxu0 %v5348
        %7611 = vmatmul.mubr.bf16.gmra.mrb[0].mxu0 %v5346
        %v7612 = vpop.f32.mrb[0].mxu0
        %v7613 = vadd.f32 %v7572, %v7612
        %v7614 = vpop.f32.mrb[0].mxu0
        %v7615 = vadd.f32 %v7574, %v7614
        %v7616 = vpop.f32.mrb[0].mxu0
        %v7617 = vpop.f32.mrb[0].mxu0
        %7618 = vdwg.mxu0
        %7619 = vmatprep.subr.bf16.mxu0 %v3917
        %7620 = vmatpush1.bf16.msra.mxu0 %v3916
        %7621 = vmatprep.subr.bf16.mxu0 %v3927
        %7622 = vmatpush1.bf16.msra.mxu0 %v3926
        %7623 = vmatprep.subr.bf16.mxu0 %v3937
        %7624 = vmatpush1.bf16.msra.mxu0 %v3936
        %7625 = vmatprep.subr.bf16.mxu0 %v3947
        %7626 = vmatpush1.bf16.msra.mxu0 %v3946
        %7627 = vmatprep.subr.bf16.mxu0 %v3957
        %7628 = vmatpush1.bf16.msra.mxu0 %v3956
        %7629 = vmatprep.subr.bf16.mxu0 %v3967
        %7630 = vmatpush1.bf16.msra.mxu0 %v3966
        %7631 = vmatprep.subr.bf16.mxu0 %v3977
        %7632 = vmatpush1.bf16.msra.mxu0 %v3976
        %7633 = vmatprep.subr.bf16.mxu0 %v3987
        %7634 = vmatpush1.bf16.msra.mxu0 %v3986
        %7635 = vmatprep.subr.bf16.mxu0 %v3997
        %7636 = vmatpush1.bf16.msra.mxu0 %v3996
        %7637 = vmatprep.subr.bf16.mxu0 %v4007
        %7638 = vmatpush1.bf16.msra.mxu0 %v4006
        %7639 = vmatprep.subr.bf16.mxu0 %v4017
        %7640 = vmatpush1.bf16.msra.mxu0 %v4016
        %7641 = vmatprep.subr.bf16.mxu0 %v4027
        %7642 = vmatpush1.bf16.msra.mxu0 %v4026
        %7643 = vmatprep.subr.bf16.mxu0 %v4037
        %7644 = vmatpush1.bf16.msra.mxu0 %v4036
        %7645 = vmatprep.subr.bf16.mxu0 %v4047
        %7646 = vmatpush1.bf16.msra.mxu0 %v4046
        %7647 = vmatprep.subr.bf16.mxu0 %v4057
        %7648 = vmatpush1.bf16.msra.mxu0 %v4056
        %7649 = vmatprep.subr.bf16.mxu0 %v4067
        %7650 = vmatpush1.bf16.msra.mxu0 %v4066
        %7651 = vmatprep.mubr.bf16.mxu0 %v5386
        %7652 = vmatmul.mubr.bf16.gmra.mrb[0].mxu0 %v5372
        %v7653 = vpop.f32.mrb[0].mxu0
        %v7654 = vadd.f32 %v7613, %v7653
        %v7655 = vpop.f32.mrb[0].mxu0
        %v7656 = vadd.f32 %v7615, %v7655
        %v7657 = vpop.f32.mrb[0].mxu0
        %v7658 = vpop.f32.mrb[0].mxu0
        %7659 = vdwg.mxu0
        %7660 = vmatprep.subr.bf16.mxu0 %v4077
        %7661 = vmatpush1.bf16.msra.mxu0 %v4076
        %7662 = vmatprep.subr.bf16.mxu0 %v4087
        %7663 = vmatpush1.bf16.msra.mxu0 %v4086
        %7664 = vmatprep.subr.bf16.mxu0 %v4097
        %7665 = vmatpush1.bf16.msra.mxu0 %v4096
        %7666 = vmatprep.subr.bf16.mxu0 %v4107
        %7667 = vmatpush1.bf16.msra.mxu0 %v4106
        %7668 = vmatprep.subr.bf16.mxu0 %v4117
        %7669 = vmatpush1.bf16.msra.mxu0 %v4116
        %7670 = vmatprep.subr.bf16.mxu0 %v4127
        %7671 = vmatpush1.bf16.msra.mxu0 %v4126
        %7672 = vmatprep.subr.bf16.mxu0 %v4137
        %7673 = vmatpush1.bf16.msra.mxu0 %v4136
        %7674 = vmatprep.subr.bf16.mxu0 %v4147
        %7675 = vmatpush1.bf16.msra.mxu0 %v4146
        %7676 = vmatprep.subr.bf16.mxu0 %v4157
        %7677 = vmatpush1.bf16.msra.mxu0 %v4156
        %7678 = vmatprep.subr.bf16.mxu0 %v4167
        %7679 = vmatpush1.bf16.msra.mxu0 %v4166
        %7680 = vmatprep.subr.bf16.mxu0 %v4177
        %7681 = vmatpush1.bf16.msra.mxu0 %v4176
        %7682 = vmatprep.subr.bf16.mxu0 %v4187
        %7683 = vmatpush1.bf16.msra.mxu0 %v4186
        %7684 = vmatprep.subr.bf16.mxu0 %v4197
        %7685 = vmatpush1.bf16.msra.mxu0 %v4196
        %7686 = vmatprep.subr.bf16.mxu0 %v4207
        %7687 = vmatpush1.bf16.msra.mxu0 %v4206
        %7688 = vmatprep.subr.bf16.mxu0 %v4217
        %7689 = vmatpush1.bf16.msra.mxu0 %v4216
        %7690 = vmatprep.subr.bf16.mxu0 %v4227
        %7691 = vmatpush1.bf16.msra.mxu0 %v4226
        %7692 = vmatprep.mubr.bf16.mxu0 %v5396
        %7693 = vmatmul.mubr.bf16.gmra.mrb[0].mxu0 %v5394
        %v7694 = vpop.f32.mrb[0].mxu0
        %v7695 = vadd.f32 %v7654, %v7694
        %v7696 = vpop.f32.mrb[0].mxu0
        %v7697 = vadd.f32 %v7656, %v7696
        %v7698 = vpop.f32.mrb[0].mxu0
        %v7699 = vpop.f32.mrb[0].mxu0
        %7700 = vdwg.mxu0
        %7701 = vmatprep.subr.bf16.mxu0 %v4237
        %7702 = vmatpush1.bf16.msra.mxu0 %v4236
        %7703 = vmatprep.subr.bf16.mxu0 %v4247
        %7704 = vmatpush1.bf16.msra.mxu0 %v4246
        %7705 = vmatprep.subr.bf16.mxu0 %v4257
        %7706 = vmatpush1.bf16.msra.mxu0 %v4256
        %7707 = vmatprep.subr.bf16.mxu0 %v4267
        %7708 = vmatpush1.bf16.msra.mxu0 %v4266
        %7709 = vmatprep.subr.bf16.mxu0 %v4277
        %7710 = vmatpush1.bf16.msra.mxu0 %v4276
        %7711 = vmatprep.subr.bf16.mxu0 %v4287
        %7712 = vmatpush1.bf16.msra.mxu0 %v4286
        %7713 = vmatprep.subr.bf16.mxu0 %v4297
        %7714 = vmatpush1.bf16.msra.mxu0 %v4296
        %7715 = vmatprep.subr.bf16.mxu0 %v4307
        %7716 = vmatpush1.bf16.msra.mxu0 %v4306
        %7717 = vmatprep.subr.bf16.mxu0 %v4317
        %7718 = vmatpush1.bf16.msra.mxu0 %v4316
        %7719 = vmatprep.subr.bf16.mxu0 %v4327
        %7720 = vmatpush1.bf16.msra.mxu0 %v4326
        %7721 = vmatprep.subr.bf16.mxu0 %v4337
        %7722 = vmatpush1.bf16.msra.mxu0 %v4336
        %7723 = vmatprep.subr.bf16.mxu0 %v4347
        %7724 = vmatpush1.bf16.msra.mxu0 %v4346
        %7725 = vmatprep.subr.bf16.mxu0 %v4357
        %7726 = vmatpush1.bf16.msra.mxu0 %v4356
        %7727 = vmatprep.subr.bf16.mxu0 %v4367
        %7728 = vmatpush1.bf16.msra.mxu0 %v4366
        %7729 = vmatprep.subr.bf16.mxu0 %v4377
        %7730 = vmatpush1.bf16.msra.mxu0 %v4376
        %7731 = vmatprep.subr.bf16.mxu0 %v4387
        %7732 = vmatpush1.bf16.msra.mxu0 %v4386
        %7733 = vmatprep.mubr.bf16.mxu0 %v5393
        %7734 = vmatmul.mubr.bf16.gmra.mrb[0].mxu0 %v5379
        %v7735 = vpop.f32.mrb[0].mxu0
        %v7736 = vadd.f32 %v7695, %v7735
        %v7737 = vpop.f32.mrb[0].mxu0
        %v7738 = vadd.f32 %v7697, %v7737
        %v7739 = vpop.f32.mrb[0].mxu0
        %v7740 = vpop.f32.mrb[0].mxu0
        %7741 = vdwg.mxu0
        %7742 = vmatprep.subr.bf16.mxu0 %v4397
        %7743 = vmatpush1.bf16.msra.mxu0 %v4396
        %7744 = vmatprep.subr.bf16.mxu0 %v4407
        %7745 = vmatpush1.bf16.msra.mxu0 %v4406
        %7746 = vmatprep.subr.bf16.mxu0 %v4417
        %7747 = vmatpush1.bf16.msra.mxu0 %v4416
        %7748 = vmatprep.subr.bf16.mxu0 %v4427
        %7749 = vmatpush1.bf16.msra.mxu0 %v4426
        %7750 = vmatprep.subr.bf16.mxu0 %v4437
        %7751 = vmatpush1.bf16.msra.mxu0 %v4436
        %7752 = vmatprep.subr.bf16.mxu0 %v4447
        %7753 = vmatpush1.bf16.msra.mxu0 %v4446
        %7754 = vmatprep.subr.bf16.mxu0 %v4457
        %7755 = vmatpush1.bf16.msra.mxu0 %v4456
        %7756 = vmatprep.subr.bf16.mxu0 %v4467
        %7757 = vmatpush1.bf16.msra.mxu0 %v4466
        %7758 = vmatprep.subr.bf16.mxu0 %v4477
        %7759 = vmatpush1.bf16.msra.mxu0 %v4476
        %7760 = vmatprep.subr.bf16.mxu0 %v4487
        %7761 = vmatpush1.bf16.msra.mxu0 %v4486
        %7762 = vmatprep.subr.bf16.mxu0 %v4497
        %7763 = vmatpush1.bf16.msra.mxu0 %v4496
        %7764 = vmatprep.subr.bf16.mxu0 %v4507
        %7765 = vmatpush1.bf16.msra.mxu0 %v4506
        %7766 = vmatprep.subr.bf16.mxu0 %v4517
        %7767 = vmatpush1.bf16.msra.mxu0 %v4516
        %7768 = vmatprep.subr.bf16.mxu0 %v4527
        %7769 = vmatpush1.bf16.msra.mxu0 %v4526
        %7770 = vmatprep.subr.bf16.mxu0 %v4537
        %7771 = vmatpush1.bf16.msra.mxu0 %v4536
        %7772 = vmatprep.subr.bf16.mxu0 %v4547
        %7773 = vmatpush1.bf16.msra.mxu0 %v4546
        %7774 = vmatprep.mubr.bf16.mxu0 %v5397
        %7775 = vmatmul.mubr.bf16.gmra.mrb[0].mxu0 %v5395
        %v7776 = vpop.f32.mrb[0].mxu0
        %v7777 = vadd.f32 %v7736, %v7776
        %v7778 = vpop.f32.mrb[0].mxu0
        %v7779 = vadd.f32 %v7738, %v7778
        %v7780 = vpop.f32.mrb[0].mxu0
        %v7781 = vpop.f32.mrb[0].mxu0
        %7782 = vdwg.mxu0
        %7783 = vmatprep.subr.bf16.mxu0 %v4557
        %7784 = vmatpush1.bf16.msra.mxu0 %v4556
        %7785 = vmatprep.subr.bf16.mxu0 %v4567
        %7786 = vmatpush1.bf16.msra.mxu0 %v4566
        %7787 = vmatprep.subr.bf16.mxu0 %v4577
        %7788 = vmatpush1.bf16.msra.mxu0 %v4576
        %7789 = vmatprep.subr.bf16.mxu0 %v4587
        %7790 = vmatpush1.bf16.msra.mxu0 %v4586
        %7791 = vmatprep.subr.bf16.mxu0 %v4597
        %7792 = vmatpush1.bf16.msra.mxu0 %v4596
        %7793 = vmatprep.subr.bf16.mxu0 %v4607
        %7794 = vmatpush1.bf16.msra.mxu0 %v4606
        %7795 = vmatprep.subr.bf16.mxu0 %v4617
        %7796 = vmatpush1.bf16.msra.mxu0 %v4616
        %7797 = vmatprep.subr.bf16.mxu0 %v4627
        %7798 = vmatpush1.bf16.msra.mxu0 %v4626
        %7799 = vmatprep.subr.bf16.mxu0 %v4637
        %7800 = vmatpush1.bf16.msra.mxu0 %v4636
        %7801 = vmatprep.subr.bf16.mxu0 %v4647
        %7802 = vmatpush1.bf16.msra.mxu0 %v4646
        %7803 = vmatprep.subr.bf16.mxu0 %v4657
        %7804 = vmatpush1.bf16.msra.mxu0 %v4656
        %7805 = vmatprep.subr.bf16.mxu0 %v4667
        %7806 = vmatpush1.bf16.msra.mxu0 %v4666
        %7807 = vmatprep.subr.bf16.mxu0 %v4677
        %7808 = vmatpush1.bf16.msra.mxu0 %v4676
        %7809 = vmatprep.subr.bf16.mxu0 %v4687
        %7810 = vmatpush1.bf16.msra.mxu0 %v4686
        %7811 = vmatprep.subr.bf16.mxu0 %v4697
        %7812 = vmatpush1.bf16.msra.mxu0 %v4696
        %7813 = vmatprep.subr.bf16.mxu0 %v4707
        %7814 = vmatpush1.bf16.msra.mxu0 %v4706
        %7815 = vmatprep.mubr.bf16.mxu0 %v5435
        %7816 = vmatmul.mubr.bf16.gmra.mrb[0].mxu0 %v5421
        %v7817 = vpop.f32.mrb[0].mxu0
        %v7818 = vadd.f32 %v7777, %v7817
        %v7819 = vpop.f32.mrb[0].mxu0
        %v7820 = vadd.f32 %v7779, %v7819
        %v7821 = vpop.f32.mrb[0].mxu0
        %v7822 = vpop.f32.mrb[0].mxu0
        %7823 = vdwg.mxu0
        %7824 = vmatprep.subr.bf16.mxu0 %v4717
        %7825 = vmatpush1.bf16.msra.mxu0 %v4716
        %7826 = vmatprep.subr.bf16.mxu0 %v4727
        %7827 = vmatpush1.bf16.msra.mxu0 %v4726
        %7828 = vmatprep.subr.bf16.mxu0 %v4737
        %7829 = vmatpush1.bf16.msra.mxu0 %v4736
        %7830 = vmatprep.subr.bf16.mxu0 %v4747
        %7831 = vmatpush1.bf16.msra.mxu0 %v4746
        %7832 = vmatprep.subr.bf16.mxu0 %v4757
        %7833 = vmatpush1.bf16.msra.mxu0 %v4756
        %7834 = vmatprep.subr.bf16.mxu0 %v4767
        %7835 = vmatpush1.bf16.msra.mxu0 %v4766
        %7836 = vmatprep.subr.bf16.mxu0 %v4777
        %7837 = vmatpush1.bf16.msra.mxu0 %v4776
        %7838 = vmatprep.subr.bf16.mxu0 %v4787
        %7839 = vmatpush1.bf16.msra.mxu0 %v4786
        %7840 = vmatprep.subr.bf16.mxu0 %v4797
        %7841 = vmatpush1.bf16.msra.mxu0 %v4796
        %7842 = vmatprep.subr.bf16.mxu0 %v4807
        %7843 = vmatpush1.bf16.msra.mxu0 %v4806
        %7844 = vmatprep.subr.bf16.mxu0 %v4817
        %7845 = vmatpush1.bf16.msra.mxu0 %v4816
        %7846 = vmatprep.subr.bf16.mxu0 %v4827
        %7847 = vmatpush1.bf16.msra.mxu0 %v4826
        %7848 = vmatprep.subr.bf16.mxu0 %v4837
        %7849 = vmatpush1.bf16.msra.mxu0 %v4836
        %7850 = vmatprep.subr.bf16.mxu0 %v4847
        %7851 = vmatpush1.bf16.msra.mxu0 %v4846
        %7852 = vmatprep.subr.bf16.mxu0 %v4857
        %7853 = vmatpush1.bf16.msra.mxu0 %v4856
        %7854 = vmatprep.subr.bf16.mxu0 %v4867
        %7855 = vmatpush1.bf16.msra.mxu0 %v4866
        %7856 = vmatprep.mubr.bf16.mxu0 %v5445
        %7857 = vmatmul.mubr.bf16.gmra.mrb[0].mxu0 %v5443
        %v7858 = vpop.f32.mrb[0].mxu0
        %v7859 = vadd.f32 %v7818, %v7858
        %v7860 = vpop.f32.mrb[0].mxu0
        %v7861 = vadd.f32 %v7820, %v7860
        %v7862 = vpop.f32.mrb[0].mxu0
        %v7863 = vpop.f32.mrb[0].mxu0
        %7864 = vdwg.mxu0
        %7865 = vmatprep.subr.bf16.mxu0 %v4877
        %7866 = vmatpush1.bf16.msra.mxu0 %v4876
        %7867 = vmatprep.subr.bf16.mxu0 %v4887
        %7868 = vmatpush1.bf16.msra.mxu0 %v4886
        %7869 = vmatprep.subr.bf16.mxu0 %v4897
        %7870 = vmatpush1.bf16.msra.mxu0 %v4896
        %7871 = vmatprep.subr.bf16.mxu0 %v4907
        %7872 = vmatpush1.bf16.msra.mxu0 %v4906
        %7873 = vmatprep.subr.bf16.mxu0 %v4917
        %7874 = vmatpush1.bf16.msra.mxu0 %v4916
        %7875 = vmatprep.subr.bf16.mxu0 %v4927
        %7876 = vmatpush1.bf16.msra.mxu0 %v4926
        %7877 = vmatprep.subr.bf16.mxu0 %v4937
        %7878 = vmatpush1.bf16.msra.mxu0 %v4936
        %7879 = vmatprep.subr.bf16.mxu0 %v4947
        %7880 = vmatpush1.bf16.msra.mxu0 %v4946
        %7881 = vmatprep.subr.bf16.mxu0 %v4957
        %7882 = vmatpush1.bf16.msra.mxu0 %v4956
        %7883 = vmatprep.subr.bf16.mxu0 %v4967
        %7884 = vmatpush1.bf16.msra.mxu0 %v4966
        %7885 = vmatprep.subr.bf16.mxu0 %v4977
        %7886 = vmatpush1.bf16.msra.mxu0 %v4976
        %7887 = vmatprep.subr.bf16.mxu0 %v4987
        %7888 = vmatpush1.bf16.msra.mxu0 %v4986
        %7889 = vmatprep.subr.bf16.mxu0 %v4997
        %7890 = vmatpush1.bf16.msra.mxu0 %v4996
        %7891 = vmatprep.subr.bf16.mxu0 %v5007
        %7892 = vmatpush1.bf16.msra.mxu0 %v5006
        %7893 = vmatprep.subr.bf16.mxu0 %v5017
        %7894 = vmatpush1.bf16.msra.mxu0 %v5016
        %7895 = vmatprep.subr.bf16.mxu0 %v5027
        %7896 = vmatpush1.bf16.msra.mxu0 %v5026
        %7897 = vmatprep.mubr.bf16.mxu0 %v5442
        %7898 = vmatmul.mubr.bf16.gmra.mrb[0].mxu0 %v5428
        %v7899 = vpop.f32.mrb[0].mxu0
        %v7900 = vadd.f32 %v7859, %v7899
        %v7901 = vpop.f32.mrb[0].mxu0
        %v7902 = vadd.f32 %v7861, %v7901
        %v7903 = vpop.f32.mrb[0].mxu0
        %v7904 = vpop.f32.mrb[0].mxu0
        %7905 = vdwg.mxu0
        %7906 = vmatprep.subr.bf16.mxu0 %v5037
        %7907 = vmatpush1.bf16.msra.mxu0 %v5036
        %7908 = vmatprep.subr.bf16.mxu0 %v5047
        %7909 = vmatpush1.bf16.msra.mxu0 %v5046
        %7910 = vmatprep.subr.bf16.mxu0 %v5057
        %7911 = vmatpush1.bf16.msra.mxu0 %v5056
        %7912 = vmatprep.subr.bf16.mxu0 %v5067
        %7913 = vmatpush1.bf16.msra.mxu0 %v5066
        %7914 = vmatprep.subr.bf16.mxu0 %v5077
        %7915 = vmatpush1.bf16.msra.mxu0 %v5076
        %7916 = vmatprep.subr.bf16.mxu0 %v5087
        %7917 = vmatpush1.bf16.msra.mxu0 %v5086
        %7918 = vmatprep.subr.bf16.mxu0 %v5097
        %7919 = vmatpush1.bf16.msra.mxu0 %v5096
        %7920 = vmatprep.subr.bf16.mxu0 %v5107
        %7921 = vmatpush1.bf16.msra.mxu0 %v5106
        %7922 = vmatprep.subr.bf16.mxu0 %v5117
        %7923 = vmatpush1.bf16.msra.mxu0 %v5116
        %7924 = vmatprep.subr.bf16.mxu0 %v5127
        %7925 = vmatpush1.bf16.msra.mxu0 %v5126
        %7926 = vmatprep.subr.bf16.mxu0 %v5137
        %7927 = vmatpush1.bf16.msra.mxu0 %v5136
        %7928 = vmatprep.subr.bf16.mxu0 %v5147
        %7929 = vmatpush1.bf16.msra.mxu0 %v5146
        %7930 = vmatprep.subr.bf16.mxu0 %v5157
        %7931 = vmatpush1.bf16.msra.mxu0 %v5156
        %7932 = vmatprep.subr.bf16.mxu0 %v5167
        %7933 = vmatpush1.bf16.msra.mxu0 %v5166
        %7934 = vmatprep.subr.bf16.mxu0 %v5177
        %7935 = vmatpush1.bf16.msra.mxu0 %v5176
        %7936 = vmatprep.subr.bf16.mxu0 %v5187
        %7937 = vmatpush1.bf16.msra.mxu0 %v5186
        %7938 = vmatprep.mubr.bf16.mxu0 %v5446
        %7939 = vmatmul.mubr.bf16.gmra.mrb[0].mxu0 %v5444
        %v7940 = vpop.f32.mrb[0].mxu0
        %v7941 = vadd.f32 %v7900, %v7940
        %v7942 = vpop.f32.mrb[0].mxu0
        %v7943 = vadd.f32 %v7902, %v7942
        %v7944 = vpop.f32.mrb[0].mxu0
        %v7945 = vpop.f32.mrb[0].mxu0
        %7946 = vdwg.mxu0
        %7947 = vmatprep.subr.bf16.mxu0 %v1999
        %7948 = vmatpush1.bf16.msra.mxu0 %v1998
        %7949 = vmatprep.subr.bf16.mxu0 %v2009
        %7950 = vmatpush1.bf16.msra.mxu0 %v2008
        %7951 = vmatprep.subr.bf16.mxu0 %v2019
        %7952 = vmatpush1.bf16.msra.mxu0 %v2018
        %7953 = vmatprep.subr.bf16.mxu0 %v2029
        %7954 = vmatpush1.bf16.msra.mxu0 %v2028
        %7955 = vmatprep.subr.bf16.mxu0 %v2039
        %7956 = vmatpush1.bf16.msra.mxu0 %v2038
        %7957 = vmatprep.subr.bf16.mxu0 %v2049
        %7958 = vmatpush1.bf16.msra.mxu0 %v2048
        %7959 = vmatprep.subr.bf16.mxu0 %v2059
        %7960 = vmatpush1.bf16.msra.mxu0 %v2058
        %7961 = vmatprep.subr.bf16.mxu0 %v2069
        %7962 = vmatpush1.bf16.msra.mxu0 %v2068
        %7963 = vmatprep.subr.bf16.mxu0 %v2079
        %7964 = vmatpush1.bf16.msra.mxu0 %v2078
        %7965 = vmatprep.subr.bf16.mxu0 %v2089
        %7966 = vmatpush1.bf16.msra.mxu0 %v2088
        %7967 = vmatprep.subr.bf16.mxu0 %v2099
        %7968 = vmatpush1.bf16.msra.mxu0 %v2098
        %7969 = vmatprep.subr.bf16.mxu0 %v2109
        %7970 = vmatpush1.bf16.msra.mxu0 %v2108
        %7971 = vmatprep.subr.bf16.mxu0 %v2119
        %7972 = vmatpush1.bf16.msra.mxu0 %v2118
        %7973 = vmatprep.subr.bf16.mxu0 %v2129
        %7974 = vmatpush1.bf16.msra.mxu0 %v2128
        %7975 = vmatprep.subr.bf16.mxu0 %v2139
        %7976 = vmatpush1.bf16.msra.mxu0 %v2138
        %7977 = vmatprep.subr.bf16.mxu0 %v2149
        %7978 = vmatpush1.bf16.msra.mxu0 %v2148
        %7979 = vmatprep.mubr.bf16.mxu0 %v5239
        %7980 = vmatmul.mubr.bf16.gmra.mrb[0].mxu0 %v5225
        %v7981 = vpop.f32.mrb[0].mxu0
        %v7982 = vadd.f32 0.0, %v7981
        %v7983 = vpop.f32.mrb[0].mxu0
        %v7984 = vadd.f32 0.0, %v7983
        %v7985 = vpop.f32.mrb[0].mxu0
        %v7986 = vpop.f32.mrb[0].mxu0
        %7987 = vdwg.mxu0
        %7988 = vmatprep.subr.bf16.mxu0 %v2159
        %7989 = vmatpush1.bf16.msra.mxu0 %v2158
        %7990 = vmatprep.subr.bf16.mxu0 %v2169
        %7991 = vmatpush1.bf16.msra.mxu0 %v2168
        %7992 = vmatprep.subr.bf16.mxu0 %v2179
        %7993 = vmatpush1.bf16.msra.mxu0 %v2178
        %7994 = vmatprep.subr.bf16.mxu0 %v2189
        %7995 = vmatpush1.bf16.msra.mxu0 %v2188
        %7996 = vmatprep.subr.bf16.mxu0 %v2199
        %7997 = vmatpush1.bf16.msra.mxu0 %v2198
        %7998 = vmatprep.subr.bf16.mxu0 %v2209
        %7999 = vmatpush1.bf16.msra.mxu0 %v2208
        %8000 = vmatprep.subr.bf16.mxu0 %v2219
        %8001 = vmatpush1.bf16.msra.mxu0 %v2218
        %8002 = vmatprep.subr.bf16.mxu0 %v2229
        %8003 = vmatpush1.bf16.msra.mxu0 %v2228
        %8004 = vmatprep.subr.bf16.mxu0 %v2239
        %8005 = vmatpush1.bf16.msra.mxu0 %v2238
        %8006 = vmatprep.subr.bf16.mxu0 %v2249
        %8007 = vmatpush1.bf16.msra.mxu0 %v2248
        %8008 = vmatprep.subr.bf16.mxu0 %v2259
        %8009 = vmatpush1.bf16.msra.mxu0 %v2258
        %8010 = vmatprep.subr.bf16.mxu0 %v2269
        %8011 = vmatpush1.bf16.msra.mxu0 %v2268
        %8012 = vmatprep.subr.bf16.mxu0 %v2279
        %8013 = vmatpush1.bf16.msra.mxu0 %v2278
        %8014 = vmatprep.subr.bf16.mxu0 %v2289
        %8015 = vmatpush1.bf16.msra.mxu0 %v2288
        %8016 = vmatprep.subr.bf16.mxu0 %v2299
        %8017 = vmatpush1.bf16.msra.mxu0 %v2298
        %8018 = vmatprep.subr.bf16.mxu0 %v2309
        %8019 = vmatpush1.bf16.msra.mxu0 %v2308
        %8020 = vmatprep.mubr.bf16.mxu0 %v5249
        %8021 = vmatmul.mubr.bf16.gmra.mrb[0].mxu0 %v5247
        %v8022 = vpop.f32.mrb[0].mxu0
        %v8023 = vadd.f32 %v7982, %v8022
        %v8024 = vpop.f32.mrb[0].mxu0
        %v8025 = vadd.f32 %v7984, %v8024
        %v8026 = vpop.f32.mrb[0].mxu0
        %v8027 = vpop.f32.mrb[0].mxu0
        %8028 = vdwg.mxu0
        %8029 = vmatprep.subr.bf16.mxu0 %v2319
        %8030 = vmatpush1.bf16.msra.mxu0 %v2318
        %8031 = vmatprep.subr.bf16.mxu0 %v2329
        %8032 = vmatpush1.bf16.msra.mxu0 %v2328
        %8033 = vmatprep.subr.bf16.mxu0 %v2339
        %8034 = vmatpush1.bf16.msra.mxu0 %v2338
        %8035 = vmatprep.subr.bf16.mxu0 %v2349
        %8036 = vmatpush1.bf16.msra.mxu0 %v2348
        %8037 = vmatprep.subr.bf16.mxu0 %v2359
        %8038 = vmatpush1.bf16.msra.mxu0 %v2358
        %8039 = vmatprep.subr.bf16.mxu0 %v2369
        %8040 = vmatpush1.bf16.msra.mxu0 %v2368
        %8041 = vmatprep.subr.bf16.mxu0 %v2379
        %8042 = vmatpush1.bf16.msra.mxu0 %v2378
        %8043 = vmatprep.subr.bf16.mxu0 %v2389
        %8044 = vmatpush1.bf16.msra.mxu0 %v2388
        %8045 = vmatprep.subr.bf16.mxu0 %v2399
        %8046 = vmatpush1.bf16.msra.mxu0 %v2398
        %8047 = vmatprep.subr.bf16.mxu0 %v2409
        %8048 = vmatpush1.bf16.msra.mxu0 %v2408
        %8049 = vmatprep.subr.bf16.mxu0 %v2419
        %8050 = vmatpush1.bf16.msra.mxu0 %v2418
        %8051 = vmatprep.subr.bf16.mxu0 %v2429
        %8052 = vmatpush1.bf16.msra.mxu0 %v2428
        %8053 = vmatprep.subr.bf16.mxu0 %v2439
        %8054 = vmatpush1.bf16.msra.mxu0 %v2438
        %8055 = vmatprep.subr.bf16.mxu0 %v2449
        %8056 = vmatpush1.bf16.msra.mxu0 %v2448
        %8057 = vmatprep.subr.bf16.mxu0 %v2459
        %8058 = vmatpush1.bf16.msra.mxu0 %v2458
        %8059 = vmatprep.subr.bf16.mxu0 %v2469
        %8060 = vmatpush1.bf16.msra.mxu0 %v2468
        %8061 = vmatprep.mubr.bf16.mxu0 %v5246
        %8062 = vmatmul.mubr.bf16.gmra.mrb[0].mxu0 %v5232
        %v8063 = vpop.f32.mrb[0].mxu0
        %v8064 = vadd.f32 %v8023, %v8063
        %v8065 = vpop.f32.mrb[0].mxu0
        %v8066 = vadd.f32 %v8025, %v8065
        %v8067 = vpop.f32.mrb[0].mxu0
        %v8068 = vpop.f32.mrb[0].mxu0
        %8069 = vdwg.mxu0
        %8070 = vmatprep.subr.bf16.mxu0 %v2479
        %8071 = vmatpush1.bf16.msra.mxu0 %v2478
        %8072 = vmatprep.subr.bf16.mxu0 %v2489
        %8073 = vmatpush1.bf16.msra.mxu0 %v2488
        %8074 = vmatprep.subr.bf16.mxu0 %v2499
        %8075 = vmatpush1.bf16.msra.mxu0 %v2498
        %8076 = vmatprep.subr.bf16.mxu0 %v2509
        %8077 = vmatpush1.bf16.msra.mxu0 %v2508
        %8078 = vmatprep.subr.bf16.mxu0 %v2519
        %8079 = vmatpush1.bf16.msra.mxu0 %v2518
        %8080 = vmatprep.subr.bf16.mxu0 %v2529
        %8081 = vmatpush1.bf16.msra.mxu0 %v2528
        %8082 = vmatprep.subr.bf16.mxu0 %v2539
        %8083 = vmatpush1.bf16.msra.mxu0 %v2538
        %8084 = vmatprep.subr.bf16.mxu0 %v2549
        %8085 = vmatpush1.bf16.msra.mxu0 %v2548
        %8086 = vmatprep.subr.bf16.mxu0 %v2559
        %8087 = vmatpush1.bf16.msra.mxu0 %v2558
        %8088 = vmatprep.subr.bf16.mxu0 %v2569
        %8089 = vmatpush1.bf16.msra.mxu0 %v2568
        %8090 = vmatprep.subr.bf16.mxu0 %v2579
        %8091 = vmatpush1.bf16.msra.mxu0 %v2578
        %8092 = vmatprep.subr.bf16.mxu0 %v2589
        %8093 = vmatpush1.bf16.msra.mxu0 %v2588
        %8094 = vmatprep.subr.bf16.mxu0 %v2599
        %8095 = vmatpush1.bf16.msra.mxu0 %v2598
        %8096 = vmatprep.subr.bf16.mxu0 %v2609
        %8097 = vmatpush1.bf16.msra.mxu0 %v2608
        %8098 = vmatprep.subr.bf16.mxu0 %v2619
        %8099 = vmatpush1.bf16.msra.mxu0 %v2618
        %8100 = vmatprep.subr.bf16.mxu0 %v2629
        %8101 = vmatpush1.bf16.msra.mxu0 %v2628
        %8102 = vmatprep.mubr.bf16.mxu0 %v5250
        %8103 = vmatmul.mubr.bf16.gmra.mrb[0].mxu0 %v5248
        %v8104 = vpop.f32.mrb[0].mxu0
        %v8105 = vadd.f32 %v8064, %v8104
        %v8106 = vpop.f32.mrb[0].mxu0
        %v8107 = vadd.f32 %v8066, %v8106
        %v8108 = vpop.f32.mrb[0].mxu0
        %v8109 = vpop.f32.mrb[0].mxu0
        %8110 = vdwg.mxu0
        %8111 = vmatprep.subr.bf16.mxu0 %v2639
        %8112 = vmatpush1.bf16.msra.mxu0 %v2638
        %8113 = vmatprep.subr.bf16.mxu0 %v2649
        %8114 = vmatpush1.bf16.msra.mxu0 %v2648
        %8115 = vmatprep.subr.bf16.mxu0 %v2659
        %8116 = vmatpush1.bf16.msra.mxu0 %v2658
        %8117 = vmatprep.subr.bf16.mxu0 %v2669
        %8118 = vmatpush1.bf16.msra.mxu0 %v2668
        %8119 = vmatprep.subr.bf16.mxu0 %v2679
        %8120 = vmatpush1.bf16.msra.mxu0 %v2678
        %8121 = vmatprep.subr.bf16.mxu0 %v2689
        %8122 = vmatpush1.bf16.msra.mxu0 %v2688
        %8123 = vmatprep.subr.bf16.mxu0 %v2699
        %8124 = vmatpush1.bf16.msra.mxu0 %v2698
        %8125 = vmatprep.subr.bf16.mxu0 %v2709
        %8126 = vmatpush1.bf16.msra.mxu0 %v2708
        %8127 = vmatprep.subr.bf16.mxu0 %v2719
        %8128 = vmatpush1.bf16.msra.mxu0 %v2718
        %8129 = vmatprep.subr.bf16.mxu0 %v2729
        %8130 = vmatpush1.bf16.msra.mxu0 %v2728
        %8131 = vmatprep.subr.bf16.mxu0 %v2739
        %8132 = vmatpush1.bf16.msra.mxu0 %v2738
        %8133 = vmatprep.subr.bf16.mxu0 %v2749
        %8134 = vmatpush1.bf16.msra.mxu0 %v2748
        %8135 = vmatprep.subr.bf16.mxu0 %v2759
        %8136 = vmatpush1.bf16.msra.mxu0 %v2758
        %8137 = vmatprep.subr.bf16.mxu0 %v2769
        %8138 = vmatpush1.bf16.msra.mxu0 %v2768
        %8139 = vmatprep.subr.bf16.mxu0 %v2779
        %8140 = vmatpush1.bf16.msra.mxu0 %v2778
        %8141 = vmatprep.subr.bf16.mxu0 %v2789
        %8142 = vmatpush1.bf16.msra.mxu0 %v2788
        %8143 = vmatprep.mubr.bf16.mxu0 %v5288
        %8144 = vmatmul.mubr.bf16.gmra.mrb[0].mxu0 %v5274
        %v8145 = vpop.f32.mrb[0].mxu0
        %v8146 = vadd.f32 %v8105, %v8145
        %v8147 = vpop.f32.mrb[0].mxu0
        %v8148 = vadd.f32 %v8107, %v8147
        %v8149 = vpop.f32.mrb[0].mxu0
        %v8150 = vpop.f32.mrb[0].mxu0
        %8151 = vdwg.mxu0
        %8152 = vmatprep.subr.bf16.mxu0 %v2799
        %8153 = vmatpush1.bf16.msra.mxu0 %v2798
        %8154 = vmatprep.subr.bf16.mxu0 %v2809
        %8155 = vmatpush1.bf16.msra.mxu0 %v2808
        %8156 = vmatprep.subr.bf16.mxu0 %v2819
        %8157 = vmatpush1.bf16.msra.mxu0 %v2818
        %8158 = vmatprep.subr.bf16.mxu0 %v2829
        %8159 = vmatpush1.bf16.msra.mxu0 %v2828
        %8160 = vmatprep.subr.bf16.mxu0 %v2839
        %8161 = vmatpush1.bf16.msra.mxu0 %v2838
        %8162 = vmatprep.subr.bf16.mxu0 %v2849
        %8163 = vmatpush1.bf16.msra.mxu0 %v2848
        %8164 = vmatprep.subr.bf16.mxu0 %v2859
        %8165 = vmatpush1.bf16.msra.mxu0 %v2858
        %8166 = vmatprep.subr.bf16.mxu0 %v2869
        %8167 = vmatpush1.bf16.msra.mxu0 %v2868
        %8168 = vmatprep.subr.bf16.mxu0 %v2879
        %8169 = vmatpush1.bf16.msra.mxu0 %v2878
        %8170 = vmatprep.subr.bf16.mxu0 %v2889
        %8171 = vmatpush1.bf16.msra.mxu0 %v2888
        %8172 = vmatprep.subr.bf16.mxu0 %v2899
        %8173 = vmatpush1.bf16.msra.mxu0 %v2898
        %8174 = vmatprep.subr.bf16.mxu0 %v2909
        %8175 = vmatpush1.bf16.msra.mxu0 %v2908
        %8176 = vmatprep.subr.bf16.mxu0 %v2919
        %8177 = vmatpush1.bf16.msra.mxu0 %v2918
        %8178 = vmatprep.subr.bf16.mxu0 %v2929
        %8179 = vmatpush1.bf16.msra.mxu0 %v2928
        %8180 = vmatprep.subr.bf16.mxu0 %v2939
        %8181 = vmatpush1.bf16.msra.mxu0 %v2938
        %8182 = vmatprep.subr.bf16.mxu0 %v2949
        %8183 = vmatpush1.bf16.msra.mxu0 %v2948
        %8184 = vmatprep.mubr.bf16.mxu0 %v5298
        %8185 = vmatmul.mubr.bf16.gmra.mrb[0].mxu0 %v5296
        %v8186 = vpop.f32.mrb[0].mxu0
        %v8187 = vadd.f32 %v8146, %v8186
        %v8188 = vpop.f32.mrb[0].mxu0
        %v8189 = vadd.f32 %v8148, %v8188
        %v8190 = vpop.f32.mrb[0].mxu0
        %v8191 = vpop.f32.mrb[0].mxu0
        %8192 = vdwg.mxu0
        %8193 = vmatprep.subr.bf16.mxu0 %v2959
        %8194 = vmatpush1.bf16.msra.mxu0 %v2958
        %8195 = vmatprep.subr.bf16.mxu0 %v2969
        %8196 = vmatpush1.bf16.msra.mxu0 %v2968
        %8197 = vmatprep.subr.bf16.mxu0 %v2979
        %8198 = vmatpush1.bf16.msra.mxu0 %v2978
        %8199 = vmatprep.subr.bf16.mxu0 %v2989
        %8200 = vmatpush1.bf16.msra.mxu0 %v2988
        %8201 = vmatprep.subr.bf16.mxu0 %v2999
        %8202 = vmatpush1.bf16.msra.mxu0 %v2998
        %8203 = vmatprep.subr.bf16.mxu0 %v3009
        %8204 = vmatpush1.bf16.msra.mxu0 %v3008
        %8205 = vmatprep.subr.bf16.mxu0 %v3019
        %8206 = vmatpush1.bf16.msra.mxu0 %v3018
        %8207 = vmatprep.subr.bf16.mxu0 %v3029
        %8208 = vmatpush1.bf16.msra.mxu0 %v3028
        %8209 = vmatprep.subr.bf16.mxu0 %v3039
        %8210 = vmatpush1.bf16.msra.mxu0 %v3038
        %8211 = vmatprep.subr.bf16.mxu0 %v3049
        %8212 = vmatpush1.bf16.msra.mxu0 %v3048
        %8213 = vmatprep.subr.bf16.mxu0 %v3059
        %8214 = vmatpush1.bf16.msra.mxu0 %v3058
        %8215 = vmatprep.subr.bf16.mxu0 %v3069
        %8216 = vmatpush1.bf16.msra.mxu0 %v3068
        %8217 = vmatprep.subr.bf16.mxu0 %v3079
        %8218 = vmatpush1.bf16.msra.mxu0 %v3078
        %8219 = vmatprep.subr.bf16.mxu0 %v3089
        %8220 = vmatpush1.bf16.msra.mxu0 %v3088
        %8221 = vmatprep.subr.bf16.mxu0 %v3099
        %8222 = vmatpush1.bf16.msra.mxu0 %v3098
        %8223 = vmatprep.subr.bf16.mxu0 %v3109
        %8224 = vmatpush1.bf16.msra.mxu0 %v3108
        %8225 = vmatprep.mubr.bf16.mxu0 %v5295
        %8226 = vmatmul.mubr.bf16.gmra.mrb[0].mxu0 %v5281
        %v8227 = vpop.f32.mrb[0].mxu0
        %v8228 = vadd.f32 %v8187, %v8227
        %v8229 = vpop.f32.mrb[0].mxu0
        %v8230 = vadd.f32 %v8189, %v8229
        %v8231 = vpop.f32.mrb[0].mxu0
        %v8232 = vpop.f32.mrb[0].mxu0
        %8233 = vdwg.mxu0
        %8234 = vmatprep.subr.bf16.mxu0 %v3119
        %8235 = vmatpush1.bf16.msra.mxu0 %v3118
        %8236 = vmatprep.subr.bf16.mxu0 %v3129
        %8237 = vmatpush1.bf16.msra.mxu0 %v3128
        %8238 = vmatprep.subr.bf16.mxu0 %v3139
        %8239 = vmatpush1.bf16.msra.mxu0 %v3138
        %8240 = vmatprep.subr.bf16.mxu0 %v3149
        %8241 = vmatpush1.bf16.msra.mxu0 %v3148
        %8242 = vmatprep.subr.bf16.mxu0 %v3159
        %8243 = vmatpush1.bf16.msra.mxu0 %v3158
        %8244 = vmatprep.subr.bf16.mxu0 %v3169
        %8245 = vmatpush1.bf16.msra.mxu0 %v3168
        %8246 = vmatprep.subr.bf16.mxu0 %v3179
        %8247 = vmatpush1.bf16.msra.mxu0 %v3178
        %8248 = vmatprep.subr.bf16.mxu0 %v3189
        %8249 = vmatpush1.bf16.msra.mxu0 %v3188
        %8250 = vmatprep.subr.bf16.mxu0 %v3199
        %8251 = vmatpush1.bf16.msra.mxu0 %v3198
        %8252 = vmatprep.subr.bf16.mxu0 %v3209
        %8253 = vmatpush1.bf16.msra.mxu0 %v3208
        %8254 = vmatprep.subr.bf16.mxu0 %v3219
        %8255 = vmatpush1.bf16.msra.mxu0 %v3218
        %8256 = vmatprep.subr.bf16.mxu0 %v3229
        %8257 = vmatpush1.bf16.msra.mxu0 %v3228
        %8258 = vmatprep.subr.bf16.mxu0 %v3239
        %8259 = vmatpush1.bf16.msra.mxu0 %v3238
        %8260 = vmatprep.subr.bf16.mxu0 %v3249
        %8261 = vmatpush1.bf16.msra.mxu0 %v3248
        %8262 = vmatprep.subr.bf16.mxu0 %v3259
        %8263 = vmatpush1.bf16.msra.mxu0 %v3258
        %8264 = vmatprep.subr.bf16.mxu0 %v3269
        %8265 = vmatpush1.bf16.msra.mxu0 %v3268
        %8266 = vmatprep.mubr.bf16.mxu0 %v5299
        %8267 = vmatmul.mubr.bf16.gmra.mrb[0].mxu0 %v5297
        %v8268 = vpop.f32.mrb[0].mxu0
        %v8269 = vadd.f32 %v8228, %v8268
        %v8270 = vpop.f32.mrb[0].mxu0
        %v8271 = vadd.f32 %v8230, %v8270
        %v8272 = vpop.f32.mrb[0].mxu0
        %v8273 = vpop.f32.mrb[0].mxu0
        %8274 = vdwg.mxu0
        %8275 = vmatprep.subr.bf16.mxu0 %v3279
        %8276 = vmatpush1.bf16.msra.mxu0 %v3278
        %8277 = vmatprep.subr.bf16.mxu0 %v3289
        %8278 = vmatpush1.bf16.msra.mxu0 %v3288
        %8279 = vmatprep.subr.bf16.mxu0 %v3299
        %8280 = vmatpush1.bf16.msra.mxu0 %v3298
        %8281 = vmatprep.subr.bf16.mxu0 %v3309
        %8282 = vmatpush1.bf16.msra.mxu0 %v3308
        %8283 = vmatprep.subr.bf16.mxu0 %v3319
        %8284 = vmatpush1.bf16.msra.mxu0 %v3318
        %8285 = vmatprep.subr.bf16.mxu0 %v3329
        %8286 = vmatpush1.bf16.msra.mxu0 %v3328
        %8287 = vmatprep.subr.bf16.mxu0 %v3339
        %8288 = vmatpush1.bf16.msra.mxu0 %v3338
        %8289 = vmatprep.subr.bf16.mxu0 %v3349
        %8290 = vmatpush1.bf16.msra.mxu0 %v3348
        %8291 = vmatprep.subr.bf16.mxu0 %v3359
        %8292 = vmatpush1.bf16.msra.mxu0 %v3358
        %8293 = vmatprep.subr.bf16.mxu0 %v3369
        %8294 = vmatpush1.bf16.msra.mxu0 %v3368
        %8295 = vmatprep.subr.bf16.mxu0 %v3379
        %8296 = vmatpush1.bf16.msra.mxu0 %v3378
        %8297 = vmatprep.subr.bf16.mxu0 %v3389
        %8298 = vmatpush1.bf16.msra.mxu0 %v3388
        %8299 = vmatprep.subr.bf16.mxu0 %v3399
        %8300 = vmatpush1.bf16.msra.mxu0 %v3398
        %8301 = vmatprep.subr.bf16.mxu0 %v3409
        %8302 = vmatpush1.bf16.msra.mxu0 %v3408
        %8303 = vmatprep.subr.bf16.mxu0 %v3419
        %8304 = vmatpush1.bf16.msra.mxu0 %v3418
        %8305 = vmatprep.subr.bf16.mxu0 %v3429
        %8306 = vmatpush1.bf16.msra.mxu0 %v3428
        %8307 = vmatprep.mubr.bf16.mxu0 %v5337
        %8308 = vmatmul.mubr.bf16.gmra.mrb[0].mxu0 %v5323
        %v8309 = vpop.f32.mrb[0].mxu0
        %v8310 = vadd.f32 %v8269, %v8309
        %v8311 = vpop.f32.mrb[0].mxu0
        %v8312 = vadd.f32 %v8271, %v8311
        %v8313 = vpop.f32.mrb[0].mxu0
        %v8314 = vpop.f32.mrb[0].mxu0
        %8315 = vdwg.mxu0
        %8316 = vmatprep.subr.bf16.mxu0 %v3439
        %8317 = vmatpush1.bf16.msra.mxu0 %v3438
        %8318 = vmatprep.subr.bf16.mxu0 %v3449
        %8319 = vmatpush1.bf16.msra.mxu0 %v3448
        %8320 = vmatprep.subr.bf16.mxu0 %v3459
        %8321 = vmatpush1.bf16.msra.mxu0 %v3458
        %8322 = vmatprep.subr.bf16.mxu0 %v3469
        %8323 = vmatpush1.bf16.msra.mxu0 %v3468
        %8324 = vmatprep.subr.bf16.mxu0 %v3479
        %8325 = vmatpush1.bf16.msra.mxu0 %v3478
        %8326 = vmatprep.subr.bf16.mxu0 %v3489
        %8327 = vmatpush1.bf16.msra.mxu0 %v3488
        %8328 = vmatprep.subr.bf16.mxu0 %v3499
        %8329 = vmatpush1.bf16.msra.mxu0 %v3498
        %8330 = vmatprep.subr.bf16.mxu0 %v3509
        %8331 = vmatpush1.bf16.msra.mxu0 %v3508
        %8332 = vmatprep.subr.bf16.mxu0 %v3519
        %8333 = vmatpush1.bf16.msra.mxu0 %v3518
        %8334 = vmatprep.subr.bf16.mxu0 %v3529
        %8335 = vmatpush1.bf16.msra.mxu0 %v3528
        %8336 = vmatprep.subr.bf16.mxu0 %v3539
        %8337 = vmatpush1.bf16.msra.mxu0 %v3538
        %8338 = vmatprep.subr.bf16.mxu0 %v3549
        %8339 = vmatpush1.bf16.msra.mxu0 %v3548
        %8340 = vmatprep.subr.bf16.mxu0 %v3559
        %8341 = vmatpush1.bf16.msra.mxu0 %v3558
        %8342 = vmatprep.subr.bf16.mxu0 %v3569
        %8343 = vmatpush1.bf16.msra.mxu0 %v3568
        %8344 = vmatprep.subr.bf16.mxu0 %v3579
        %8345 = vmatpush1.bf16.msra.mxu0 %v3578
        %8346 = vmatprep.subr.bf16.mxu0 %v3589
        %8347 = vmatpush1.bf16.msra.mxu0 %v3588
        %8348 = vmatprep.mubr.bf16.mxu0 %v5347
        %8349 = vmatmul.mubr.bf16.gmra.mrb[0].mxu0 %v5345
        %v8350 = vpop.f32.mrb[0].mxu0
        %v8351 = vadd.f32 %v8310, %v8350
        %v8352 = vpop.f32.mrb[0].mxu0
        %v8353 = vadd.f32 %v8312, %v8352
        %v8354 = vpop.f32.mrb[0].mxu0
        %v8355 = vpop.f32.mrb[0].mxu0
        %8356 = vdwg.mxu0
        %8357 = vmatprep.subr.bf16.mxu0 %v3599
        %8358 = vmatpush1.bf16.msra.mxu0 %v3598
        %8359 = vmatprep.subr.bf16.mxu0 %v3609
        %8360 = vmatpush1.bf16.msra.mxu0 %v3608
        %8361 = vmatprep.subr.bf16.mxu0 %v3619
        %8362 = vmatpush1.bf16.msra.mxu0 %v3618
        %8363 = vmatprep.subr.bf16.mxu0 %v3629
        %8364 = vmatpush1.bf16.msra.mxu0 %v3628
        %8365 = vmatprep.subr.bf16.mxu0 %v3639
        %8366 = vmatpush1.bf16.msra.mxu0 %v3638
        %8367 = vmatprep.subr.bf16.mxu0 %v3649
        %8368 = vmatpush1.bf16.msra.mxu0 %v3648
        %8369 = vmatprep.subr.bf16.mxu0 %v3659
        %8370 = vmatpush1.bf16.msra.mxu0 %v3658
        %8371 = vmatprep.subr.bf16.mxu0 %v3669
        %8372 = vmatpush1.bf16.msra.mxu0 %v3668
        %8373 = vmatprep.subr.bf16.mxu0 %v3679
        %8374 = vmatpush1.bf16.msra.mxu0 %v3678
        %8375 = vmatprep.subr.bf16.mxu0 %v3689
        %8376 = vmatpush1.bf16.msra.mxu0 %v3688
        %8377 = vmatprep.subr.bf16.mxu0 %v3699
        %8378 = vmatpush1.bf16.msra.mxu0 %v3698
        %8379 = vmatprep.subr.bf16.mxu0 %v3709
        %8380 = vmatpush1.bf16.msra.mxu0 %v3708
        %8381 = vmatprep.subr.bf16.mxu0 %v3719
        %8382 = vmatpush1.bf16.msra.mxu0 %v3718
        %8383 = vmatprep.subr.bf16.mxu0 %v3729
        %8384 = vmatpush1.bf16.msra.mxu0 %v3728
        %8385 = vmatprep.subr.bf16.mxu0 %v3739
        %8386 = vmatpush1.bf16.msra.mxu0 %v3738
        %8387 = vmatprep.subr.bf16.mxu0 %v3749
        %8388 = vmatpush1.bf16.msra.mxu0 %v3748
        %8389 = vmatprep.mubr.bf16.mxu0 %v5344
        %8390 = vmatmul.mubr.bf16.gmra.mrb[0].mxu0 %v5330
        %v8391 = vpop.f32.mrb[0].mxu0
        %v8392 = vadd.f32 %v8351, %v8391
        %v8393 = vpop.f32.mrb[0].mxu0
        %v8394 = vadd.f32 %v8353, %v8393
        %v8395 = vpop.f32.mrb[0].mxu0
        %v8396 = vpop.f32.mrb[0].mxu0
        %8397 = vdwg.mxu0
        %8398 = vmatprep.subr.bf16.mxu0 %v3759
        %8399 = vmatpush1.bf16.msra.mxu0 %v3758
        %8400 = vmatprep.subr.bf16.mxu0 %v3769
        %8401 = vmatpush1.bf16.msra.mxu0 %v3768
        %8402 = vmatprep.subr.bf16.mxu0 %v3779
        %8403 = vmatpush1.bf16.msra.mxu0 %v3778
        %8404 = vmatprep.subr.bf16.mxu0 %v3789
        %8405 = vmatpush1.bf16.msra.mxu0 %v3788
        %8406 = vmatprep.subr.bf16.mxu0 %v3799
        %8407 = vmatpush1.bf16.msra.mxu0 %v3798
        %8408 = vmatprep.subr.bf16.mxu0 %v3809
        %8409 = vmatpush1.bf16.msra.mxu0 %v3808
        %8410 = vmatprep.subr.bf16.mxu0 %v3819
        %8411 = vmatpush1.bf16.msra.mxu0 %v3818
        %8412 = vmatprep.subr.bf16.mxu0 %v3829
        %8413 = vmatpush1.bf16.msra.mxu0 %v3828
        %8414 = vmatprep.subr.bf16.mxu0 %v3839
        %8415 = vmatpush1.bf16.msra.mxu0 %v3838
        %8416 = vmatprep.subr.bf16.mxu0 %v3849
        %8417 = vmatpush1.bf16.msra.mxu0 %v3848
        %8418 = vmatprep.subr.bf16.mxu0 %v3859
        %8419 = vmatpush1.bf16.msra.mxu0 %v3858
        %8420 = vmatprep.subr.bf16.mxu0 %v3869
        %8421 = vmatpush1.bf16.msra.mxu0 %v3868
        %8422 = vmatprep.subr.bf16.mxu0 %v3879
        %8423 = vmatpush1.bf16.msra.mxu0 %v3878
        %8424 = vmatprep.subr.bf16.mxu0 %v3889
        %8425 = vmatpush1.bf16.msra.mxu0 %v3888
        %8426 = vmatprep.subr.bf16.mxu0 %v3899
        %8427 = vmatpush1.bf16.msra.mxu0 %v3898
        %8428 = vmatprep.subr.bf16.mxu0 %v3909
        %8429 = vmatpush1.bf16.msra.mxu0 %v3908
        %8430 = vmatprep.mubr.bf16.mxu0 %v5348
        %8431 = vmatmul.mubr.bf16.gmra.mrb[0].mxu0 %v5346
        %v8432 = vpop.f32.mrb[0].mxu0
        %v8433 = vadd.f32 %v8392, %v8432
        %v8434 = vpop.f32.mrb[0].mxu0
        %v8435 = vadd.f32 %v8394, %v8434
        %v8436 = vpop.f32.mrb[0].mxu0
        %v8437 = vpop.f32.mrb[0].mxu0
        %8438 = vdwg.mxu0
        %8439 = vmatprep.subr.bf16.mxu0 %v3919
        %8440 = vmatpush1.bf16.msra.mxu0 %v3918
        %8441 = vmatprep.subr.bf16.mxu0 %v3929
        %8442 = vmatpush1.bf16.msra.mxu0 %v3928
        %8443 = vmatprep.subr.bf16.mxu0 %v3939
        %8444 = vmatpush1.bf16.msra.mxu0 %v3938
        %8445 = vmatprep.subr.bf16.mxu0 %v3949
        %8446 = vmatpush1.bf16.msra.mxu0 %v3948
        %8447 = vmatprep.subr.bf16.mxu0 %v3959
        %8448 = vmatpush1.bf16.msra.mxu0 %v3958
        %8449 = vmatprep.subr.bf16.mxu0 %v3969
        %8450 = vmatpush1.bf16.msra.mxu0 %v3968
        %8451 = vmatprep.subr.bf16.mxu0 %v3979
        %8452 = vmatpush1.bf16.msra.mxu0 %v3978
        %8453 = vmatprep.subr.bf16.mxu0 %v3989
        %8454 = vmatpush1.bf16.msra.mxu0 %v3988
        %8455 = vmatprep.subr.bf16.mxu0 %v3999
        %8456 = vmatpush1.bf16.msra.mxu0 %v3998
        %8457 = vmatprep.subr.bf16.mxu0 %v4009
        %8458 = vmatpush1.bf16.msra.mxu0 %v4008
        %8459 = vmatprep.subr.bf16.mxu0 %v4019
        %8460 = vmatpush1.bf16.msra.mxu0 %v4018
        %8461 = vmatprep.subr.bf16.mxu0 %v4029
        %8462 = vmatpush1.bf16.msra.mxu0 %v4028
        %8463 = vmatprep.subr.bf16.mxu0 %v4039
        %8464 = vmatpush1.bf16.msra.mxu0 %v4038
        %8465 = vmatprep.subr.bf16.mxu0 %v4049
        %8466 = vmatpush1.bf16.msra.mxu0 %v4048
        %8467 = vmatprep.subr.bf16.mxu0 %v4059
        %8468 = vmatpush1.bf16.msra.mxu0 %v4058
        %8469 = vmatprep.subr.bf16.mxu0 %v4069
        %8470 = vmatpush1.bf16.msra.mxu0 %v4068
        %8471 = vmatprep.mubr.bf16.mxu0 %v5386
        %8472 = vmatmul.mubr.bf16.gmra.mrb[0].mxu0 %v5372
        %v8473 = vpop.f32.mrb[0].mxu0
        %v8474 = vadd.f32 %v8433, %v8473
        %v8475 = vpop.f32.mrb[0].mxu0
        %v8476 = vadd.f32 %v8435, %v8475
        %v8477 = vpop.f32.mrb[0].mxu0
        %v8478 = vpop.f32.mrb[0].mxu0
        %8479 = vdwg.mxu0
        %8480 = vmatprep.subr.bf16.mxu0 %v4079
        %8481 = vmatpush1.bf16.msra.mxu0 %v4078
        %8482 = vmatprep.subr.bf16.mxu0 %v4089
        %8483 = vmatpush1.bf16.msra.mxu0 %v4088
        %8484 = vmatprep.subr.bf16.mxu0 %v4099
        %8485 = vmatpush1.bf16.msra.mxu0 %v4098
        %8486 = vmatprep.subr.bf16.mxu0 %v4109
        %8487 = vmatpush1.bf16.msra.mxu0 %v4108
        %8488 = vmatprep.subr.bf16.mxu0 %v4119
        %8489 = vmatpush1.bf16.msra.mxu0 %v4118
        %8490 = vmatprep.subr.bf16.mxu0 %v4129
        %8491 = vmatpush1.bf16.msra.mxu0 %v4128
        %8492 = vmatprep.subr.bf16.mxu0 %v4139
        %8493 = vmatpush1.bf16.msra.mxu0 %v4138
        %8494 = vmatprep.subr.bf16.mxu0 %v4149
        %8495 = vmatpush1.bf16.msra.mxu0 %v4148
        %8496 = vmatprep.subr.bf16.mxu0 %v4159
        %8497 = vmatpush1.bf16.msra.mxu0 %v4158
        %8498 = vmatprep.subr.bf16.mxu0 %v4169
        %8499 = vmatpush1.bf16.msra.mxu0 %v4168
        %8500 = vmatprep.subr.bf16.mxu0 %v4179
        %8501 = vmatpush1.bf16.msra.mxu0 %v4178
        %8502 = vmatprep.subr.bf16.mxu0 %v4189
        %8503 = vmatpush1.bf16.msra.mxu0 %v4188
        %8504 = vmatprep.subr.bf16.mxu0 %v4199
        %8505 = vmatpush1.bf16.msra.mxu0 %v4198
        %8506 = vmatprep.subr.bf16.mxu0 %v4209
        %8507 = vmatpush1.bf16.msra.mxu0 %v4208
        %8508 = vmatprep.subr.bf16.mxu0 %v4219
        %8509 = vmatpush1.bf16.msra.mxu0 %v4218
        %8510 = vmatprep.subr.bf16.mxu0 %v4229
        %8511 = vmatpush1.bf16.msra.mxu0 %v4228
        %8512 = vmatprep.mubr.bf16.mxu0 %v5396
        %8513 = vmatmul.mubr.bf16.gmra.mrb[0].mxu0 %v5394
        %v8514 = vpop.f32.mrb[0].mxu0
        %v8515 = vadd.f32 %v8474, %v8514
        %v8516 = vpop.f32.mrb[0].mxu0
        %v8517 = vadd.f32 %v8476, %v8516
        %v8518 = vpop.f32.mrb[0].mxu0
        %v8519 = vpop.f32.mrb[0].mxu0
        %8520 = vdwg.mxu0
        %8521 = vmatprep.subr.bf16.mxu0 %v4239
        %8522 = vmatpush1.bf16.msra.mxu0 %v4238
        %8523 = vmatprep.subr.bf16.mxu0 %v4249
        %8524 = vmatpush1.bf16.msra.mxu0 %v4248
        %8525 = vmatprep.subr.bf16.mxu0 %v4259
        %8526 = vmatpush1.bf16.msra.mxu0 %v4258
        %8527 = vmatprep.subr.bf16.mxu0 %v4269
        %8528 = vmatpush1.bf16.msra.mxu0 %v4268
        %8529 = vmatprep.subr.bf16.mxu0 %v4279
        %8530 = vmatpush1.bf16.msra.mxu0 %v4278
        %8531 = vmatprep.subr.bf16.mxu0 %v4289
        %8532 = vmatpush1.bf16.msra.mxu0 %v4288
        %8533 = vmatprep.subr.bf16.mxu0 %v4299
        %8534 = vmatpush1.bf16.msra.mxu0 %v4298
        %8535 = vmatprep.subr.bf16.mxu0 %v4309
        %8536 = vmatpush1.bf16.msra.mxu0 %v4308
        %8537 = vmatprep.subr.bf16.mxu0 %v4319
        %8538 = vmatpush1.bf16.msra.mxu0 %v4318
        %8539 = vmatprep.subr.bf16.mxu0 %v4329
        %8540 = vmatpush1.bf16.msra.mxu0 %v4328
        %8541 = vmatprep.subr.bf16.mxu0 %v4339
        %8542 = vmatpush1.bf16.msra.mxu0 %v4338
        %8543 = vmatprep.subr.bf16.mxu0 %v4349
        %8544 = vmatpush1.bf16.msra.mxu0 %v4348
        %8545 = vmatprep.subr.bf16.mxu0 %v4359
        %8546 = vmatpush1.bf16.msra.mxu0 %v4358
        %8547 = vmatprep.subr.bf16.mxu0 %v4369
        %8548 = vmatpush1.bf16.msra.mxu0 %v4368
        %8549 = vmatprep.subr.bf16.mxu0 %v4379
        %8550 = vmatpush1.bf16.msra.mxu0 %v4378
        %8551 = vmatprep.subr.bf16.mxu0 %v4389
        %8552 = vmatpush1.bf16.msra.mxu0 %v4388
        %8553 = vmatprep.mubr.bf16.mxu0 %v5393
        %8554 = vmatmul.mubr.bf16.gmra.mrb[0].mxu0 %v5379
        %v8555 = vpop.f32.mrb[0].mxu0
        %v8556 = vadd.f32 %v8515, %v8555
        %v8557 = vpop.f32.mrb[0].mxu0
        %v8558 = vadd.f32 %v8517, %v8557
        %v8559 = vpop.f32.mrb[0].mxu0
        %v8560 = vpop.f32.mrb[0].mxu0
        %8561 = vdwg.mxu0
        %8562 = vmatprep.subr.bf16.mxu0 %v4399
        %8563 = vmatpush1.bf16.msra.mxu0 %v4398
        %8564 = vmatprep.subr.bf16.mxu0 %v4409
        %8565 = vmatpush1.bf16.msra.mxu0 %v4408
        %8566 = vmatprep.subr.bf16.mxu0 %v4419
        %8567 = vmatpush1.bf16.msra.mxu0 %v4418
        %8568 = vmatprep.subr.bf16.mxu0 %v4429
        %8569 = vmatpush1.bf16.msra.mxu0 %v4428
        %8570 = vmatprep.subr.bf16.mxu0 %v4439
        %8571 = vmatpush1.bf16.msra.mxu0 %v4438
        %8572 = vmatprep.subr.bf16.mxu0 %v4449
        %8573 = vmatpush1.bf16.msra.mxu0 %v4448
        %8574 = vmatprep.subr.bf16.mxu0 %v4459
        %8575 = vmatpush1.bf16.msra.mxu0 %v4458
        %8576 = vmatprep.subr.bf16.mxu0 %v4469
        %8577 = vmatpush1.bf16.msra.mxu0 %v4468
        %8578 = vmatprep.subr.bf16.mxu0 %v4479
        %8579 = vmatpush1.bf16.msra.mxu0 %v4478
        %8580 = vmatprep.subr.bf16.mxu0 %v4489
        %8581 = vmatpush1.bf16.msra.mxu0 %v4488
        %8582 = vmatprep.subr.bf16.mxu0 %v4499
        %8583 = vmatpush1.bf16.msra.mxu0 %v4498
        %8584 = vmatprep.subr.bf16.mxu0 %v4509
        %8585 = vmatpush1.bf16.msra.mxu0 %v4508
        %8586 = vmatprep.subr.bf16.mxu0 %v4519
        %8587 = vmatpush1.bf16.msra.mxu0 %v4518
        %8588 = vmatprep.subr.bf16.mxu0 %v4529
        %8589 = vmatpush1.bf16.msra.mxu0 %v4528
        %8590 = vmatprep.subr.bf16.mxu0 %v4539
        %8591 = vmatpush1.bf16.msra.mxu0 %v4538
        %8592 = vmatprep.subr.bf16.mxu0 %v4549
        %8593 = vmatpush1.bf16.msra.mxu0 %v4548
        %8594 = vmatprep.mubr.bf16.mxu0 %v5397
        %8595 = vmatmul.mubr.bf16.gmra.mrb[0].mxu0 %v5395
        %v8596 = vpop.f32.mrb[0].mxu0
        %v8597 = vadd.f32 %v8556, %v8596
        %v8598 = vpop.f32.mrb[0].mxu0
        %v8599 = vadd.f32 %v8558, %v8598
        %v8600 = vpop.f32.mrb[0].mxu0
        %v8601 = vpop.f32.mrb[0].mxu0
        %8602 = vdwg.mxu0
        %8603 = vmatprep.subr.bf16.mxu0 %v4559
        %8604 = vmatpush1.bf16.msra.mxu0 %v4558
        %8605 = vmatprep.subr.bf16.mxu0 %v4569
        %8606 = vmatpush1.bf16.msra.mxu0 %v4568
        %8607 = vmatprep.subr.bf16.mxu0 %v4579
        %8608 = vmatpush1.bf16.msra.mxu0 %v4578
        %8609 = vmatprep.subr.bf16.mxu0 %v4589
        %8610 = vmatpush1.bf16.msra.mxu0 %v4588
        %8611 = vmatprep.subr.bf16.mxu0 %v4599
        %8612 = vmatpush1.bf16.msra.mxu0 %v4598
        %8613 = vmatprep.subr.bf16.mxu0 %v4609
        %8614 = vmatpush1.bf16.msra.mxu0 %v4608
        %8615 = vmatprep.subr.bf16.mxu0 %v4619
        %8616 = vmatpush1.bf16.msra.mxu0 %v4618
        %8617 = vmatprep.subr.bf16.mxu0 %v4629
        %8618 = vmatpush1.bf16.msra.mxu0 %v4628
        %8619 = vmatprep.subr.bf16.mxu0 %v4639
        %8620 = vmatpush1.bf16.msra.mxu0 %v4638
        %8621 = vmatprep.subr.bf16.mxu0 %v4649
        %8622 = vmatpush1.bf16.msra.mxu0 %v4648
        %8623 = vmatprep.subr.bf16.mxu0 %v4659
        %8624 = vmatpush1.bf16.msra.mxu0 %v4658
        %8625 = vmatprep.subr.bf16.mxu0 %v4669
        %8626 = vmatpush1.bf16.msra.mxu0 %v4668
        %8627 = vmatprep.subr.bf16.mxu0 %v4679
        %8628 = vmatpush1.bf16.msra.mxu0 %v4678
        %8629 = vmatprep.subr.bf16.mxu0 %v4689
        %8630 = vmatpush1.bf16.msra.mxu0 %v4688
        %8631 = vmatprep.subr.bf16.mxu0 %v4699
        %8632 = vmatpush1.bf16.msra.mxu0 %v4698
        %8633 = vmatprep.subr.bf16.mxu0 %v4709
        %8634 = vmatpush1.bf16.msra.mxu0 %v4708
        %8635 = vmatprep.mubr.bf16.mxu0 %v5435
        %8636 = vmatmul.mubr.bf16.gmra.mrb[0].mxu0 %v5421
        %v8637 = vpop.f32.mrb[0].mxu0
        %v8638 = vadd.f32 %v8597, %v8637
        %v8639 = vpop.f32.mrb[0].mxu0
        %v8640 = vadd.f32 %v8599, %v8639
        %v8641 = vpop.f32.mrb[0].mxu0
        %v8642 = vpop.f32.mrb[0].mxu0
        %8643 = vdwg.mxu0
        %8644 = vmatprep.subr.bf16.mxu0 %v4719
        %8645 = vmatpush1.bf16.msra.mxu0 %v4718
        %8646 = vmatprep.subr.bf16.mxu0 %v4729
        %8647 = vmatpush1.bf16.msra.mxu0 %v4728
        %8648 = vmatprep.subr.bf16.mxu0 %v4739
        %8649 = vmatpush1.bf16.msra.mxu0 %v4738
        %8650 = vmatprep.subr.bf16.mxu0 %v4749
        %8651 = vmatpush1.bf16.msra.mxu0 %v4748
        %8652 = vmatprep.subr.bf16.mxu0 %v4759
        %8653 = vmatpush1.bf16.msra.mxu0 %v4758
        %8654 = vmatprep.subr.bf16.mxu0 %v4769
        %8655 = vmatpush1.bf16.msra.mxu0 %v4768
        %8656 = vmatprep.subr.bf16.mxu0 %v4779
        %8657 = vmatpush1.bf16.msra.mxu0 %v4778
        %8658 = vmatprep.subr.bf16.mxu0 %v4789
        %8659 = vmatpush1.bf16.msra.mxu0 %v4788
        %8660 = vmatprep.subr.bf16.mxu0 %v4799
        %8661 = vmatpush1.bf16.msra.mxu0 %v4798
        %8662 = vmatprep.subr.bf16.mxu0 %v4809
        %8663 = vmatpush1.bf16.msra.mxu0 %v4808
        %8664 = vmatprep.subr.bf16.mxu0 %v4819
        %8665 = vmatpush1.bf16.msra.mxu0 %v4818
        %8666 = vmatprep.subr.bf16.mxu0 %v4829
        %8667 = vmatpush1.bf16.msra.mxu0 %v4828
        %8668 = vmatprep.subr.bf16.mxu0 %v4839
        %8669 = vmatpush1.bf16.msra.mxu0 %v4838
        %8670 = vmatprep.subr.bf16.mxu0 %v4849
        %8671 = vmatpush1.bf16.msra.mxu0 %v4848
        %8672 = vmatprep.subr.bf16.mxu0 %v4859
        %8673 = vmatpush1.bf16.msra.mxu0 %v4858
        %8674 = vmatprep.subr.bf16.mxu0 %v4869
        %8675 = vmatpush1.bf16.msra.mxu0 %v4868
        %8676 = vmatprep.mubr.bf16.mxu0 %v5445
        %8677 = vmatmul.mubr.bf16.gmra.mrb[0].mxu0 %v5443
        %v8678 = vpop.f32.mrb[0].mxu0
        %v8679 = vadd.f32 %v8638, %v8678
        %v8680 = vpop.f32.mrb[0].mxu0
        %v8681 = vadd.f32 %v8640, %v8680
        %v8682 = vpop.f32.mrb[0].mxu0
        %v8683 = vpop.f32.mrb[0].mxu0
        %8684 = vdwg.mxu0
        %8685 = vmatprep.subr.bf16.mxu0 %v4879
        %8686 = vmatpush1.bf16.msra.mxu0 %v4878
        %8687 = vmatprep.subr.bf16.mxu0 %v4889
        %8688 = vmatpush1.bf16.msra.mxu0 %v4888
        %8689 = vmatprep.subr.bf16.mxu0 %v4899
        %8690 = vmatpush1.bf16.msra.mxu0 %v4898
        %8691 = vmatprep.subr.bf16.mxu0 %v4909
        %8692 = vmatpush1.bf16.msra.mxu0 %v4908
        %8693 = vmatprep.subr.bf16.mxu0 %v4919
        %8694 = vmatpush1.bf16.msra.mxu0 %v4918
        %8695 = vmatprep.subr.bf16.mxu0 %v4929
        %8696 = vmatpush1.bf16.msra.mxu0 %v4928
        %8697 = vmatprep.subr.bf16.mxu0 %v4939
        %8698 = vmatpush1.bf16.msra.mxu0 %v4938
        %8699 = vmatprep.subr.bf16.mxu0 %v4949
        %8700 = vmatpush1.bf16.msra.mxu0 %v4948
        %8701 = vmatprep.subr.bf16.mxu0 %v4959
        %8702 = vmatpush1.bf16.msra.mxu0 %v4958
        %8703 = vmatprep.subr.bf16.mxu0 %v4969
        %8704 = vmatpush1.bf16.msra.mxu0 %v4968
        %8705 = vmatprep.subr.bf16.mxu0 %v4979
        %8706 = vmatpush1.bf16.msra.mxu0 %v4978
        %8707 = vmatprep.subr.bf16.mxu0 %v4989
        %8708 = vmatpush1.bf16.msra.mxu0 %v4988
        %8709 = vmatprep.subr.bf16.mxu0 %v4999
        %8710 = vmatpush1.bf16.msra.mxu0 %v4998
        %8711 = vmatprep.subr.bf16.mxu0 %v5009
        %8712 = vmatpush1.bf16.msra.mxu0 %v5008
        %8713 = vmatprep.subr.bf16.mxu0 %v5019
        %8714 = vmatpush1.bf16.msra.mxu0 %v5018
        %8715 = vmatprep.subr.bf16.mxu0 %v5029
        %8716 = vmatpush1.bf16.msra.mxu0 %v5028
        %8717 = vmatprep.mubr.bf16.mxu0 %v5442
        %8718 = vmatmul.mubr.bf16.gmra.mrb[0].mxu0 %v5428
        %v8719 = vpop.f32.mrb[0].mxu0
        %v8720 = vadd.f32 %v8679, %v8719
        %v8721 = vpop.f32.mrb[0].mxu0
        %v8722 = vadd.f32 %v8681, %v8721
        %v8723 = vpop.f32.mrb[0].mxu0
        %v8724 = vpop.f32.mrb[0].mxu0
        %8725 = vdwg.mxu0
        %8726 = vmatprep.subr.bf16.mxu0 %v5039
        %8727 = vmatpush1.bf16.msra.mxu0 %v5038
        %8728 = vmatprep.subr.bf16.mxu0 %v5049
        %8729 = vmatpush1.bf16.msra.mxu0 %v5048
        %8730 = vmatprep.subr.bf16.mxu0 %v5059
        %8731 = vmatpush1.bf16.msra.mxu0 %v5058
        %8732 = vmatprep.subr.bf16.mxu0 %v5069
        %8733 = vmatpush1.bf16.msra.mxu0 %v5068
        %8734 = vmatprep.subr.bf16.mxu0 %v5079
        %8735 = vmatpush1.bf16.msra.mxu0 %v5078
        %8736 = vmatprep.subr.bf16.mxu0 %v5089
        %8737 = vmatpush1.bf16.msra.mxu0 %v5088
        %8738 = vmatprep.subr.bf16.mxu0 %v5099
        %8739 = vmatpush1.bf16.msra.mxu0 %v5098
        %8740 = vmatprep.subr.bf16.mxu0 %v5109
        %8741 = vmatpush1.bf16.msra.mxu0 %v5108
        %8742 = vmatprep.subr.bf16.mxu0 %v5119
        %8743 = vmatpush1.bf16.msra.mxu0 %v5118
        %8744 = vmatprep.subr.bf16.mxu0 %v5129
        %8745 = vmatpush1.bf16.msra.mxu0 %v5128
        %8746 = vmatprep.subr.bf16.mxu0 %v5139
        %8747 = vmatpush1.bf16.msra.mxu0 %v5138
        %8748 = vmatprep.subr.bf16.mxu0 %v5149
        %8749 = vmatpush1.bf16.msra.mxu0 %v5148
        %8750 = vmatprep.subr.bf16.mxu0 %v5159
        %8751 = vmatpush1.bf16.msra.mxu0 %v5158
        %8752 = vmatprep.subr.bf16.mxu0 %v5169
        %8753 = vmatpush1.bf16.msra.mxu0 %v5168
        %8754 = vmatprep.subr.bf16.mxu0 %v5179
        %8755 = vmatpush1.bf16.msra.mxu0 %v5178
        %8756 = vmatprep.subr.bf16.mxu0 %v5189
        %8757 = vmatpush1.bf16.msra.mxu0 %v5188
        %8758 = vmatprep.mubr.bf16.mxu0 %v5446
        %8759 = vmatmul.mubr.bf16.gmra.mrb[0].mxu0 %v5444
        %v8760 = vpop.f32.mrb[0].mxu0
        %v8761 = vadd.f32 %v8720, %v8760
        %v8762 = vpop.f32.mrb[0].mxu0
        %v8763 = vadd.f32 %v8722, %v8762
        %v8764 = vpop.f32.mrb[0].mxu0
        %v8765 = vpop.f32.mrb[0].mxu0
        %8766 = vdwg.mxu0
        %8767 = vmatprep.subr.bf16.mxu0 %v2001
        %8768 = vmatpush1.bf16.msra.mxu0 %v2000
        %8769 = vmatprep.subr.bf16.mxu0 %v2011
        %8770 = vmatpush1.bf16.msra.mxu0 %v2010
        %8771 = vmatprep.subr.bf16.mxu0 %v2021
        %8772 = vmatpush1.bf16.msra.mxu0 %v2020
        %8773 = vmatprep.subr.bf16.mxu0 %v2031
        %8774 = vmatpush1.bf16.msra.mxu0 %v2030
        %8775 = vmatprep.subr.bf16.mxu0 %v2041
        %8776 = vmatpush1.bf16.msra.mxu0 %v2040
        %8777 = vmatprep.subr.bf16.mxu0 %v2051
        %8778 = vmatpush1.bf16.msra.mxu0 %v2050
        %8779 = vmatprep.subr.bf16.mxu0 %v2061
        %8780 = vmatpush1.bf16.msra.mxu0 %v2060
        %8781 = vmatprep.subr.bf16.mxu0 %v2071
        %8782 = vmatpush1.bf16.msra.mxu0 %v2070
        %8783 = vmatprep.subr.bf16.mxu0 %v2081
        %8784 = vmatpush1.bf16.msra.mxu0 %v2080
        %8785 = vmatprep.subr.bf16.mxu0 %v2091
        %8786 = vmatpush1.bf16.msra.mxu0 %v2090
        %8787 = vmatprep.subr.bf16.mxu0 %v2101
        %8788 = vmatpush1.bf16.msra.mxu0 %v2100
        %8789 = vmatprep.subr.bf16.mxu0 %v2111
        %8790 = vmatpush1.bf16.msra.mxu0 %v2110
        %8791 = vmatprep.subr.bf16.mxu0 %v2121
        %8792 = vmatpush1.bf16.msra.mxu0 %v2120
        %8793 = vmatprep.subr.bf16.mxu0 %v2131
        %8794 = vmatpush1.bf16.msra.mxu0 %v2130
        %8795 = vmatprep.subr.bf16.mxu0 %v2141
        %8796 = vmatpush1.bf16.msra.mxu0 %v2140
        %8797 = vmatprep.subr.bf16.mxu0 %v2151
        %8798 = vmatpush1.bf16.msra.mxu0 %v2150
        %8799 = vmatprep.mubr.bf16.mxu0 %v5239
        %8800 = vmatmul.mubr.bf16.gmra.mrb[0].mxu0 %v5225
        %v8801 = vpop.f32.mrb[0].mxu0
        %v8802 = vadd.f32 0.0, %v8801
        %v8803 = vpop.f32.mrb[0].mxu0
        %v8804 = vadd.f32 0.0, %v8803
        %v8805 = vpop.f32.mrb[0].mxu0
        %v8806 = vpop.f32.mrb[0].mxu0
        %8807 = vdwg.mxu0
        %8808 = vmatprep.subr.bf16.mxu0 %v2161
        %8809 = vmatpush1.bf16.msra.mxu0 %v2160
        %8810 = vmatprep.subr.bf16.mxu0 %v2171
        %8811 = vmatpush1.bf16.msra.mxu0 %v2170
        %8812 = vmatprep.subr.bf16.mxu0 %v2181
        %8813 = vmatpush1.bf16.msra.mxu0 %v2180
        %8814 = vmatprep.subr.bf16.mxu0 %v2191
        %8815 = vmatpush1.bf16.msra.mxu0 %v2190
        %8816 = vmatprep.subr.bf16.mxu0 %v2201
        %8817 = vmatpush1.bf16.msra.mxu0 %v2200
        %8818 = vmatprep.subr.bf16.mxu0 %v2211
        %8819 = vmatpush1.bf16.msra.mxu0 %v2210
        %8820 = vmatprep.subr.bf16.mxu0 %v2221
        %8821 = vmatpush1.bf16.msra.mxu0 %v2220
        %8822 = vmatprep.subr.bf16.mxu0 %v2231
        %8823 = vmatpush1.bf16.msra.mxu0 %v2230
        %8824 = vmatprep.subr.bf16.mxu0 %v2241
        %8825 = vmatpush1.bf16.msra.mxu0 %v2240
        %8826 = vmatprep.subr.bf16.mxu0 %v2251
        %8827 = vmatpush1.bf16.msra.mxu0 %v2250
        %8828 = vmatprep.subr.bf16.mxu0 %v2261
        %8829 = vmatpush1.bf16.msra.mxu0 %v2260
        %8830 = vmatprep.subr.bf16.mxu0 %v2271
        %8831 = vmatpush1.bf16.msra.mxu0 %v2270
        %8832 = vmatprep.subr.bf16.mxu0 %v2281
        %8833 = vmatpush1.bf16.msra.mxu0 %v2280
        %8834 = vmatprep.subr.bf16.mxu0 %v2291
        %8835 = vmatpush1.bf16.msra.mxu0 %v2290
        %8836 = vmatprep.subr.bf16.mxu0 %v2301
        %8837 = vmatpush1.bf16.msra.mxu0 %v2300
        %8838 = vmatprep.subr.bf16.mxu0 %v2311
        %8839 = vmatpush1.bf16.msra.mxu0 %v2310
        %8840 = vmatprep.mubr.bf16.mxu0 %v5249
        %8841 = vmatmul.mubr.bf16.gmra.mrb[0].mxu0 %v5247
        %v8842 = vpop.f32.mrb[0].mxu0
        %v8843 = vadd.f32 %v8802, %v8842
        %v8844 = vpop.f32.mrb[0].mxu0
        %v8845 = vadd.f32 %v8804, %v8844
        %v8846 = vpop.f32.mrb[0].mxu0
        %v8847 = vpop.f32.mrb[0].mxu0
        %8848 = vdwg.mxu0
        %8849 = vmatprep.subr.bf16.mxu0 %v2321
        %8850 = vmatpush1.bf16.msra.mxu0 %v2320
        %8851 = vmatprep.subr.bf16.mxu0 %v2331
        %8852 = vmatpush1.bf16.msra.mxu0 %v2330
        %8853 = vmatprep.subr.bf16.mxu0 %v2341
        %8854 = vmatpush1.bf16.msra.mxu0 %v2340
        %8855 = vmatprep.subr.bf16.mxu0 %v2351
        %8856 = vmatpush1.bf16.msra.mxu0 %v2350
        %8857 = vmatprep.subr.bf16.mxu0 %v2361
        %8858 = vmatpush1.bf16.msra.mxu0 %v2360
        %8859 = vmatprep.subr.bf16.mxu0 %v2371
        %8860 = vmatpush1.bf16.msra.mxu0 %v2370
        %8861 = vmatprep.subr.bf16.mxu0 %v2381
        %8862 = vmatpush1.bf16.msra.mxu0 %v2380
        %8863 = vmatprep.subr.bf16.mxu0 %v2391
        %8864 = vmatpush1.bf16.msra.mxu0 %v2390
        %8865 = vmatprep.subr.bf16.mxu0 %v2401
        %8866 = vmatpush1.bf16.msra.mxu0 %v2400
        %8867 = vmatprep.subr.bf16.mxu0 %v2411
        %8868 = vmatpush1.bf16.msra.mxu0 %v2410
        %8869 = vmatprep.subr.bf16.mxu0 %v2421
        %8870 = vmatpush1.bf16.msra.mxu0 %v2420
        %8871 = vmatprep.subr.bf16.mxu0 %v2431
        %8872 = vmatpush1.bf16.msra.mxu0 %v2430
        %8873 = vmatprep.subr.bf16.mxu0 %v2441
        %8874 = vmatpush1.bf16.msra.mxu0 %v2440
        %8875 = vmatprep.subr.bf16.mxu0 %v2451
        %8876 = vmatpush1.bf16.msra.mxu0 %v2450
        %8877 = vmatprep.subr.bf16.mxu0 %v2461
        %8878 = vmatpush1.bf16.msra.mxu0 %v2460
        %8879 = vmatprep.subr.bf16.mxu0 %v2471
        %8880 = vmatpush1.bf16.msra.mxu0 %v2470
        %8881 = vmatprep.mubr.bf16.mxu0 %v5246
        %8882 = vmatmul.mubr.bf16.gmra.mrb[0].mxu0 %v5232
        %v8883 = vpop.f32.mrb[0].mxu0
        %v8884 = vadd.f32 %v8843, %v8883
        %v8885 = vpop.f32.mrb[0].mxu0
        %v8886 = vadd.f32 %v8845, %v8885
        %v8887 = vpop.f32.mrb[0].mxu0
        %v8888 = vpop.f32.mrb[0].mxu0
        %8889 = vdwg.mxu0
        %8890 = vmatprep.subr.bf16.mxu0 %v2481
        %8891 = vmatpush1.bf16.msra.mxu0 %v2480
        %8892 = vmatprep.subr.bf16.mxu0 %v2491
        %8893 = vmatpush1.bf16.msra.mxu0 %v2490
        %8894 = vmatprep.subr.bf16.mxu0 %v2501
        %8895 = vmatpush1.bf16.msra.mxu0 %v2500
        %8896 = vmatprep.subr.bf16.mxu0 %v2511
        %8897 = vmatpush1.bf16.msra.mxu0 %v2510
        %8898 = vmatprep.subr.bf16.mxu0 %v2521
        %8899 = vmatpush1.bf16.msra.mxu0 %v2520
        %8900 = vmatprep.subr.bf16.mxu0 %v2531
        %8901 = vmatpush1.bf16.msra.mxu0 %v2530
        %8902 = vmatprep.subr.bf16.mxu0 %v2541
        %8903 = vmatpush1.bf16.msra.mxu0 %v2540
        %8904 = vmatprep.subr.bf16.mxu0 %v2551
        %8905 = vmatpush1.bf16.msra.mxu0 %v2550
        %8906 = vmatprep.subr.bf16.mxu0 %v2561
        %8907 = vmatpush1.bf16.msra.mxu0 %v2560
        %8908 = vmatprep.subr.bf16.mxu0 %v2571
        %8909 = vmatpush1.bf16.msra.mxu0 %v2570
        %8910 = vmatprep.subr.bf16.mxu0 %v2581
        %8911 = vmatpush1.bf16.msra.mxu0 %v2580
        %8912 = vmatprep.subr.bf16.mxu0 %v2591
        %8913 = vmatpush1.bf16.msra.mxu0 %v2590
        %8914 = vmatprep.subr.bf16.mxu0 %v2601
        %8915 = vmatpush1.bf16.msra.mxu0 %v2600
        %8916 = vmatprep.subr.bf16.mxu0 %v2611
        %8917 = vmatpush1.bf16.msra.mxu0 %v2610
        %8918 = vmatprep.subr.bf16.mxu0 %v2621
        %8919 = vmatpush1.bf16.msra.mxu0 %v2620
        %8920 = vmatprep.subr.bf16.mxu0 %v2631
        %8921 = vmatpush1.bf16.msra.mxu0 %v2630
        %8922 = vmatprep.mubr.bf16.mxu0 %v5250
        %8923 = vmatmul.mubr.bf16.gmra.mrb[0].mxu0 %v5248
        %v8924 = vpop.f32.mrb[0].mxu0
        %v8925 = vadd.f32 %v8884, %v8924
        %v8926 = vpop.f32.mrb[0].mxu0
        %v8927 = vadd.f32 %v8886, %v8926
        %v8928 = vpop.f32.mrb[0].mxu0
        %v8929 = vpop.f32.mrb[0].mxu0
        %8930 = vdwg.mxu0
        %8931 = vmatprep.subr.bf16.mxu0 %v2641
        %8932 = vmatpush1.bf16.msra.mxu0 %v2640
        %8933 = vmatprep.subr.bf16.mxu0 %v2651
        %8934 = vmatpush1.bf16.msra.mxu0 %v2650
        %8935 = vmatprep.subr.bf16.mxu0 %v2661
        %8936 = vmatpush1.bf16.msra.mxu0 %v2660
        %8937 = vmatprep.subr.bf16.mxu0 %v2671
        %8938 = vmatpush1.bf16.msra.mxu0 %v2670
        %8939 = vmatprep.subr.bf16.mxu0 %v2681
        %8940 = vmatpush1.bf16.msra.mxu0 %v2680
        %8941 = vmatprep.subr.bf16.mxu0 %v2691
        %8942 = vmatpush1.bf16.msra.mxu0 %v2690
        %8943 = vmatprep.subr.bf16.mxu0 %v2701
        %8944 = vmatpush1.bf16.msra.mxu0 %v2700
        %8945 = vmatprep.subr.bf16.mxu0 %v2711
        %8946 = vmatpush1.bf16.msra.mxu0 %v2710
        %8947 = vmatprep.subr.bf16.mxu0 %v2721
        %8948 = vmatpush1.bf16.msra.mxu0 %v2720
        %8949 = vmatprep.subr.bf16.mxu0 %v2731
        %8950 = vmatpush1.bf16.msra.mxu0 %v2730
        %8951 = vmatprep.subr.bf16.mxu0 %v2741
        %8952 = vmatpush1.bf16.msra.mxu0 %v2740
        %8953 = vmatprep.subr.bf16.mxu0 %v2751
        %8954 = vmatpush1.bf16.msra.mxu0 %v2750
        %8955 = vmatprep.subr.bf16.mxu0 %v2761
        %8956 = vmatpush1.bf16.msra.mxu0 %v2760
        %8957 = vmatprep.subr.bf16.mxu0 %v2771
        %8958 = vmatpush1.bf16.msra.mxu0 %v2770
        %8959 = vmatprep.subr.bf16.mxu0 %v2781
        %8960 = vmatpush1.bf16.msra.mxu0 %v2780
        %8961 = vmatprep.subr.bf16.mxu0 %v2791
        %8962 = vmatpush1.bf16.msra.mxu0 %v2790
        %8963 = vmatprep.mubr.bf16.mxu0 %v5288
        %8964 = vmatmul.mubr.bf16.gmra.mrb[0].mxu0 %v5274
        %v8965 = vpop.f32.mrb[0].mxu0
        %v8966 = vadd.f32 %v8925, %v8965
        %v8967 = vpop.f32.mrb[0].mxu0
        %v8968 = vadd.f32 %v8927, %v8967
        %v8969 = vpop.f32.mrb[0].mxu0
        %v8970 = vpop.f32.mrb[0].mxu0
        %8971 = vdwg.mxu0
        %8972 = vmatprep.subr.bf16.mxu0 %v2801
        %8973 = vmatpush1.bf16.msra.mxu0 %v2800
        %8974 = vmatprep.subr.bf16.mxu0 %v2811
        %8975 = vmatpush1.bf16.msra.mxu0 %v2810
        %8976 = vmatprep.subr.bf16.mxu0 %v2821
        %8977 = vmatpush1.bf16.msra.mxu0 %v2820
        %8978 = vmatprep.subr.bf16.mxu0 %v2831
        %8979 = vmatpush1.bf16.msra.mxu0 %v2830
        %8980 = vmatprep.subr.bf16.mxu0 %v2841
        %8981 = vmatpush1.bf16.msra.mxu0 %v2840
        %8982 = vmatprep.subr.bf16.mxu0 %v2851
        %8983 = vmatpush1.bf16.msra.mxu0 %v2850
        %8984 = vmatprep.subr.bf16.mxu0 %v2861
        %8985 = vmatpush1.bf16.msra.mxu0 %v2860
        %8986 = vmatprep.subr.bf16.mxu0 %v2871
        %8987 = vmatpush1.bf16.msra.mxu0 %v2870
        %8988 = vmatprep.subr.bf16.mxu0 %v2881
        %8989 = vmatpush1.bf16.msra.mxu0 %v2880
        %8990 = vmatprep.subr.bf16.mxu0 %v2891
        %8991 = vmatpush1.bf16.msra.mxu0 %v2890
        %8992 = vmatprep.subr.bf16.mxu0 %v2901
        %8993 = vmatpush1.bf16.msra.mxu0 %v2900
        %8994 = vmatprep.subr.bf16.mxu0 %v2911
        %8995 = vmatpush1.bf16.msra.mxu0 %v2910
        %8996 = vmatprep.subr.bf16.mxu0 %v2921
        %8997 = vmatpush1.bf16.msra.mxu0 %v2920
        %8998 = vmatprep.subr.bf16.mxu0 %v2931
        %8999 = vmatpush1.bf16.msra.mxu0 %v2930
        %9000 = vmatprep.subr.bf16.mxu0 %v2941
        %9001 = vmatpush1.bf16.msra.mxu0 %v2940
        %9002 = vmatprep.subr.bf16.mxu0 %v2951
        %9003 = vmatpush1.bf16.msra.mxu0 %v2950
        %9004 = vmatprep.mubr.bf16.mxu0 %v5298
        %9005 = vmatmul.mubr.bf16.gmra.mrb[0].mxu0 %v5296
        %v9006 = vpop.f32.mrb[0].mxu0
        %v9007 = vadd.f32 %v8966, %v9006
        %v9008 = vpop.f32.mrb[0].mxu0
        %v9009 = vadd.f32 %v8968, %v9008
        %v9010 = vpop.f32.mrb[0].mxu0
        %v9011 = vpop.f32.mrb[0].mxu0
        %9012 = vdwg.mxu0
        %9013 = vmatprep.subr.bf16.mxu0 %v2961
        %9014 = vmatpush1.bf16.msra.mxu0 %v2960
        %9015 = vmatprep.subr.bf16.mxu0 %v2971
        %9016 = vmatpush1.bf16.msra.mxu0 %v2970
        %9017 = vmatprep.subr.bf16.mxu0 %v2981
        %9018 = vmatpush1.bf16.msra.mxu0 %v2980
        %9019 = vmatprep.subr.bf16.mxu0 %v2991
        %9020 = vmatpush1.bf16.msra.mxu0 %v2990
        %9021 = vmatprep.subr.bf16.mxu0 %v3001
        %9022 = vmatpush1.bf16.msra.mxu0 %v3000
        %9023 = vmatprep.subr.bf16.mxu0 %v3011
        %9024 = vmatpush1.bf16.msra.mxu0 %v3010
        %9025 = vmatprep.subr.bf16.mxu0 %v3021
        %9026 = vmatpush1.bf16.msra.mxu0 %v3020
        %9027 = vmatprep.subr.bf16.mxu0 %v3031
        %9028 = vmatpush1.bf16.msra.mxu0 %v3030
        %9029 = vmatprep.subr.bf16.mxu0 %v3041
        %9030 = vmatpush1.bf16.msra.mxu0 %v3040
        %9031 = vmatprep.subr.bf16.mxu0 %v3051
        %9032 = vmatpush1.bf16.msra.mxu0 %v3050
        %9033 = vmatprep.subr.bf16.mxu0 %v3061
        %9034 = vmatpush1.bf16.msra.mxu0 %v3060
        %9035 = vmatprep.subr.bf16.mxu0 %v3071
        %9036 = vmatpush1.bf16.msra.mxu0 %v3070
        %9037 = vmatprep.subr.bf16.mxu0 %v3081
        %9038 = vmatpush1.bf16.msra.mxu0 %v3080
        %9039 = vmatprep.subr.bf16.mxu0 %v3091
        %9040 = vmatpush1.bf16.msra.mxu0 %v3090
        %9041 = vmatprep.subr.bf16.mxu0 %v3101
        %9042 = vmatpush1.bf16.msra.mxu0 %v3100
        %9043 = vmatprep.subr.bf16.mxu0 %v3111
        %9044 = vmatpush1.bf16.msra.mxu0 %v3110
        %9045 = vmatprep.mubr.bf16.mxu0 %v5295
        %9046 = vmatmul.mubr.bf16.gmra.mrb[0].mxu0 %v5281
        %v9047 = vpop.f32.mrb[0].mxu0
        %v9048 = vadd.f32 %v9007, %v9047
        %v9049 = vpop.f32.mrb[0].mxu0
        %v9050 = vadd.f32 %v9009, %v9049
        %v9051 = vpop.f32.mrb[0].mxu0
        %v9052 = vpop.f32.mrb[0].mxu0
        %9053 = vdwg.mxu0
        %9054 = vmatprep.subr.bf16.mxu0 %v3121
        %9055 = vmatpush1.bf16.msra.mxu0 %v3120
        %9056 = vmatprep.subr.bf16.mxu0 %v3131
        %9057 = vmatpush1.bf16.msra.mxu0 %v3130
        %9058 = vmatprep.subr.bf16.mxu0 %v3141
        %9059 = vmatpush1.bf16.msra.mxu0 %v3140
        %9060 = vmatprep.subr.bf16.mxu0 %v3151
        %9061 = vmatpush1.bf16.msra.mxu0 %v3150
        %9062 = vmatprep.subr.bf16.mxu0 %v3161
        %9063 = vmatpush1.bf16.msra.mxu0 %v3160
        %9064 = vmatprep.subr.bf16.mxu0 %v3171
        %9065 = vmatpush1.bf16.msra.mxu0 %v3170
        %9066 = vmatprep.subr.bf16.mxu0 %v3181
        %9067 = vmatpush1.bf16.msra.mxu0 %v3180
        %9068 = vmatprep.subr.bf16.mxu0 %v3191
        %9069 = vmatpush1.bf16.msra.mxu0 %v3190
        %9070 = vmatprep.subr.bf16.mxu0 %v3201
        %9071 = vmatpush1.bf16.msra.mxu0 %v3200
        %9072 = vmatprep.subr.bf16.mxu0 %v3211
        %9073 = vmatpush1.bf16.msra.mxu0 %v3210
        %9074 = vmatprep.subr.bf16.mxu0 %v3221
        %9075 = vmatpush1.bf16.msra.mxu0 %v3220
        %9076 = vmatprep.subr.bf16.mxu0 %v3231
        %9077 = vmatpush1.bf16.msra.mxu0 %v3230
        %9078 = vmatprep.subr.bf16.mxu0 %v3241
        %9079 = vmatpush1.bf16.msra.mxu0 %v3240
        %9080 = vmatprep.subr.bf16.mxu0 %v3251
        %9081 = vmatpush1.bf16.msra.mxu0 %v3250
        %9082 = vmatprep.subr.bf16.mxu0 %v3261
        %9083 = vmatpush1.bf16.msra.mxu0 %v3260
        %9084 = vmatprep.subr.bf16.mxu0 %v3271
        %9085 = vmatpush1.bf16.msra.mxu0 %v3270
        %9086 = vmatprep.mubr.bf16.mxu0 %v5299
        %9087 = vmatmul.mubr.bf16.gmra.mrb[0].mxu0 %v5297
        %v9088 = vpop.f32.mrb[0].mxu0
        %v9089 = vadd.f32 %v9048, %v9088
        %v9090 = vpop.f32.mrb[0].mxu0
        %v9091 = vadd.f32 %v9050, %v9090
        %v9092 = vpop.f32.mrb[0].mxu0
        %v9093 = vpop.f32.mrb[0].mxu0
        %9094 = vdwg.mxu0
        %9095 = vmatprep.subr.bf16.mxu0 %v3281
        %9096 = vmatpush1.bf16.msra.mxu0 %v3280
        %9097 = vmatprep.subr.bf16.mxu0 %v3291
        %9098 = vmatpush1.bf16.msra.mxu0 %v3290
        %9099 = vmatprep.subr.bf16.mxu0 %v3301
        %9100 = vmatpush1.bf16.msra.mxu0 %v3300
        %9101 = vmatprep.subr.bf16.mxu0 %v3311
        %9102 = vmatpush1.bf16.msra.mxu0 %v3310
        %9103 = vmatprep.subr.bf16.mxu0 %v3321
        %9104 = vmatpush1.bf16.msra.mxu0 %v3320
        %9105 = vmatprep.subr.bf16.mxu0 %v3331
        %9106 = vmatpush1.bf16.msra.mxu0 %v3330
        %9107 = vmatprep.subr.bf16.mxu0 %v3341
        %9108 = vmatpush1.bf16.msra.mxu0 %v3340
        %9109 = vmatprep.subr.bf16.mxu0 %v3351
        %9110 = vmatpush1.bf16.msra.mxu0 %v3350
        %9111 = vmatprep.subr.bf16.mxu0 %v3361
        %9112 = vmatpush1.bf16.msra.mxu0 %v3360
        %9113 = vmatprep.subr.bf16.mxu0 %v3371
        %9114 = vmatpush1.bf16.msra.mxu0 %v3370
        %9115 = vmatprep.subr.bf16.mxu0 %v3381
        %9116 = vmatpush1.bf16.msra.mxu0 %v3380
        %9117 = vmatprep.subr.bf16.mxu0 %v3391
        %9118 = vmatpush1.bf16.msra.mxu0 %v3390
        %9119 = vmatprep.subr.bf16.mxu0 %v3401
        %9120 = vmatpush1.bf16.msra.mxu0 %v3400
        %9121 = vmatprep.subr.bf16.mxu0 %v3411
        %9122 = vmatpush1.bf16.msra.mxu0 %v3410
        %9123 = vmatprep.subr.bf16.mxu0 %v3421
        %9124 = vmatpush1.bf16.msra.mxu0 %v3420
        %9125 = vmatprep.subr.bf16.mxu0 %v3431
        %9126 = vmatpush1.bf16.msra.mxu0 %v3430
        %9127 = vmatprep.mubr.bf16.mxu0 %v5337
        %9128 = vmatmul.mubr.bf16.gmra.mrb[0].mxu0 %v5323
        %v9129 = vpop.f32.mrb[0].mxu0
        %v9130 = vadd.f32 %v9089, %v9129
        %v9131 = vpop.f32.mrb[0].mxu0
        %v9132 = vadd.f32 %v9091, %v9131
        %v9133 = vpop.f32.mrb[0].mxu0
        %v9134 = vpop.f32.mrb[0].mxu0
        %9135 = vdwg.mxu0
        %9136 = vmatprep.subr.bf16.mxu0 %v3441
        %9137 = vmatpush1.bf16.msra.mxu0 %v3440
        %9138 = vmatprep.subr.bf16.mxu0 %v3451
        %9139 = vmatpush1.bf16.msra.mxu0 %v3450
        %9140 = vmatprep.subr.bf16.mxu0 %v3461
        %9141 = vmatpush1.bf16.msra.mxu0 %v3460
        %9142 = vmatprep.subr.bf16.mxu0 %v3471
        %9143 = vmatpush1.bf16.msra.mxu0 %v3470
        %9144 = vmatprep.subr.bf16.mxu0 %v3481
        %9145 = vmatpush1.bf16.msra.mxu0 %v3480
        %9146 = vmatprep.subr.bf16.mxu0 %v3491
        %9147 = vmatpush1.bf16.msra.mxu0 %v3490
        %9148 = vmatprep.subr.bf16.mxu0 %v3501
        %9149 = vmatpush1.bf16.msra.mxu0 %v3500
        %9150 = vmatprep.subr.bf16.mxu0 %v3511
        %9151 = vmatpush1.bf16.msra.mxu0 %v3510
        %9152 = vmatprep.subr.bf16.mxu0 %v3521
        %9153 = vmatpush1.bf16.msra.mxu0 %v3520
        %9154 = vmatprep.subr.bf16.mxu0 %v3531
        %9155 = vmatpush1.bf16.msra.mxu0 %v3530
        %9156 = vmatprep.subr.bf16.mxu0 %v3541
        %9157 = vmatpush1.bf16.msra.mxu0 %v3540
        %9158 = vmatprep.subr.bf16.mxu0 %v3551
        %9159 = vmatpush1.bf16.msra.mxu0 %v3550
        %9160 = vmatprep.subr.bf16.mxu0 %v3561
        %9161 = vmatpush1.bf16.msra.mxu0 %v3560
        %9162 = vmatprep.subr.bf16.mxu0 %v3571
        %9163 = vmatpush1.bf16.msra.mxu0 %v3570
        %9164 = vmatprep.subr.bf16.mxu0 %v3581
        %9165 = vmatpush1.bf16.msra.mxu0 %v3580
        %9166 = vmatprep.subr.bf16.mxu0 %v3591
        %9167 = vmatpush1.bf16.msra.mxu0 %v3590
        %9168 = vmatprep.mubr.bf16.mxu0 %v5347
        %9169 = vmatmul.mubr.bf16.gmra.mrb[0].mxu0 %v5345
        %v9170 = vpop.f32.mrb[0].mxu0
        %v9171 = vadd.f32 %v9130, %v9170
        %v9172 = vpop.f32.mrb[0].mxu0
        %v9173 = vadd.f32 %v9132, %v9172
        %v9174 = vpop.f32.mrb[0].mxu0
        %v9175 = vpop.f32.mrb[0].mxu0
        %9176 = vdwg.mxu0
        %9177 = vmatprep.subr.bf16.mxu0 %v3601
        %9178 = vmatpush1.bf16.msra.mxu0 %v3600
        %9179 = vmatprep.subr.bf16.mxu0 %v3611
        %9180 = vmatpush1.bf16.msra.mxu0 %v3610
        %9181 = vmatprep.subr.bf16.mxu0 %v3621
        %9182 = vmatpush1.bf16.msra.mxu0 %v3620
        %9183 = vmatprep.subr.bf16.mxu0 %v3631
        %9184 = vmatpush1.bf16.msra.mxu0 %v3630
        %9185 = vmatprep.subr.bf16.mxu0 %v3641
        %9186 = vmatpush1.bf16.msra.mxu0 %v3640
        %9187 = vmatprep.subr.bf16.mxu0 %v3651
        %9188 = vmatpush1.bf16.msra.mxu0 %v3650
        %9189 = vmatprep.subr.bf16.mxu0 %v3661
        %9190 = vmatpush1.bf16.msra.mxu0 %v3660
        %9191 = vmatprep.subr.bf16.mxu0 %v3671
        %9192 = vmatpush1.bf16.msra.mxu0 %v3670
        %9193 = vmatprep.subr.bf16.mxu0 %v3681
        %9194 = vmatpush1.bf16.msra.mxu0 %v3680
        %9195 = vmatprep.subr.bf16.mxu0 %v3691
        %9196 = vmatpush1.bf16.msra.mxu0 %v3690
        %9197 = vmatprep.subr.bf16.mxu0 %v3701
        %9198 = vmatpush1.bf16.msra.mxu0 %v3700
        %9199 = vmatprep.subr.bf16.mxu0 %v3711
        %9200 = vmatpush1.bf16.msra.mxu0 %v3710
        %9201 = vmatprep.subr.bf16.mxu0 %v3721
        %9202 = vmatpush1.bf16.msra.mxu0 %v3720
        %9203 = vmatprep.subr.bf16.mxu0 %v3731
        %9204 = vmatpush1.bf16.msra.mxu0 %v3730
        %9205 = vmatprep.subr.bf16.mxu0 %v3741
        %9206 = vmatpush1.bf16.msra.mxu0 %v3740
        %9207 = vmatprep.subr.bf16.mxu0 %v3751
        %9208 = vmatpush1.bf16.msra.mxu0 %v3750
        %9209 = vmatprep.mubr.bf16.mxu0 %v5344
        %9210 = vmatmul.mubr.bf16.gmra.mrb[0].mxu0 %v5330
        %v9211 = vpop.f32.mrb[0].mxu0
        %v9212 = vadd.f32 %v9171, %v9211
        %v9213 = vpop.f32.mrb[0].mxu0
        %v9214 = vadd.f32 %v9173, %v9213
        %v9215 = vpop.f32.mrb[0].mxu0
        %v9216 = vpop.f32.mrb[0].mxu0
        %9217 = vdwg.mxu0
        %9218 = vmatprep.subr.bf16.mxu0 %v3761
        %9219 = vmatpush1.bf16.msra.mxu0 %v3760
        %9220 = vmatprep.subr.bf16.mxu0 %v3771
        %9221 = vmatpush1.bf16.msra.mxu0 %v3770
        %9222 = vmatprep.subr.bf16.mxu0 %v3781
        %9223 = vmatpush1.bf16.msra.mxu0 %v3780
        %9224 = vmatprep.subr.bf16.mxu0 %v3791
        %9225 = vmatpush1.bf16.msra.mxu0 %v3790
        %9226 = vmatprep.subr.bf16.mxu0 %v3801
        %9227 = vmatpush1.bf16.msra.mxu0 %v3800
        %9228 = vmatprep.subr.bf16.mxu0 %v3811
        %9229 = vmatpush1.bf16.msra.mxu0 %v3810
        %9230 = vmatprep.subr.bf16.mxu0 %v3821
        %9231 = vmatpush1.bf16.msra.mxu0 %v3820
        %9232 = vmatprep.subr.bf16.mxu0 %v3831
        %9233 = vmatpush1.bf16.msra.mxu0 %v3830
        %9234 = vmatprep.subr.bf16.mxu0 %v3841
        %9235 = vmatpush1.bf16.msra.mxu0 %v3840
        %9236 = vmatprep.subr.bf16.mxu0 %v3851
        %9237 = vmatpush1.bf16.msra.mxu0 %v3850
        %9238 = vmatprep.subr.bf16.mxu0 %v3861
        %9239 = vmatpush1.bf16.msra.mxu0 %v3860
        %9240 = vmatprep.subr.bf16.mxu0 %v3871
        %9241 = vmatpush1.bf16.msra.mxu0 %v3870
        %9242 = vmatprep.subr.bf16.mxu0 %v3881
        %9243 = vmatpush1.bf16.msra.mxu0 %v3880
        %9244 = vmatprep.subr.bf16.mxu0 %v3891
        %9245 = vmatpush1.bf16.msra.mxu0 %v3890
        %9246 = vmatprep.subr.bf16.mxu0 %v3901
        %9247 = vmatpush1.bf16.msra.mxu0 %v3900
        %9248 = vmatprep.subr.bf16.mxu0 %v3911
        %9249 = vmatpush1.bf16.msra.mxu0 %v3910
        %9250 = vmatprep.mubr.bf16.mxu0 %v5348
        %9251 = vmatmul.mubr.bf16.gmra.mrb[0].mxu0 %v5346
        %v9252 = vpop.f32.mrb[0].mxu0
        %v9253 = vadd.f32 %v9212, %v9252
        %v9254 = vpop.f32.mrb[0].mxu0
        %v9255 = vadd.f32 %v9214, %v9254
        %v9256 = vpop.f32.mrb[0].mxu0
        %v9257 = vpop.f32.mrb[0].mxu0
        %9258 = vdwg.mxu0
        %9259 = vmatprep.subr.bf16.mxu0 %v3921
        %9260 = vmatpush1.bf16.msra.mxu0 %v3920
        %9261 = vmatprep.subr.bf16.mxu0 %v3931
        %9262 = vmatpush1.bf16.msra.mxu0 %v3930
        %9263 = vmatprep.subr.bf16.mxu0 %v3941
        %9264 = vmatpush1.bf16.msra.mxu0 %v3940
        %9265 = vmatprep.subr.bf16.mxu0 %v3951
        %9266 = vmatpush1.bf16.msra.mxu0 %v3950
        %9267 = vmatprep.subr.bf16.mxu0 %v3961
        %9268 = vmatpush1.bf16.msra.mxu0 %v3960
        %9269 = vmatprep.subr.bf16.mxu0 %v3971
        %9270 = vmatpush1.bf16.msra.mxu0 %v3970
        %9271 = vmatprep.subr.bf16.mxu0 %v3981
        %9272 = vmatpush1.bf16.msra.mxu0 %v3980
        %9273 = vmatprep.subr.bf16.mxu0 %v3991
        %9274 = vmatpush1.bf16.msra.mxu0 %v3990
        %9275 = vmatprep.subr.bf16.mxu0 %v4001
        %9276 = vmatpush1.bf16.msra.mxu0 %v4000
        %9277 = vmatprep.subr.bf16.mxu0 %v4011
        %9278 = vmatpush1.bf16.msra.mxu0 %v4010
        %9279 = vmatprep.subr.bf16.mxu0 %v4021
        %9280 = vmatpush1.bf16.msra.mxu0 %v4020
        %9281 = vmatprep.subr.bf16.mxu0 %v4031
        %9282 = vmatpush1.bf16.msra.mxu0 %v4030
        %9283 = vmatprep.subr.bf16.mxu0 %v4041
        %9284 = vmatpush1.bf16.msra.mxu0 %v4040
        %9285 = vmatprep.subr.bf16.mxu0 %v4051
        %9286 = vmatpush1.bf16.msra.mxu0 %v4050
        %9287 = vmatprep.subr.bf16.mxu0 %v4061
        %9288 = vmatpush1.bf16.msra.mxu0 %v4060
        %9289 = vmatprep.subr.bf16.mxu0 %v4071
        %9290 = vmatpush1.bf16.msra.mxu0 %v4070
        %9291 = vmatprep.mubr.bf16.mxu0 %v5386
        %9292 = vmatmul.mubr.bf16.gmra.mrb[0].mxu0 %v5372
        %v9293 = vpop.f32.mrb[0].mxu0
        %v9294 = vadd.f32 %v9253, %v9293
        %v9295 = vpop.f32.mrb[0].mxu0
        %v9296 = vadd.f32 %v9255, %v9295
        %v9297 = vpop.f32.mrb[0].mxu0
        %v9298 = vpop.f32.mrb[0].mxu0
        %9299 = vdwg.mxu0
        %9300 = vmatprep.subr.bf16.mxu0 %v4081
        %9301 = vmatpush1.bf16.msra.mxu0 %v4080
        %9302 = vmatprep.subr.bf16.mxu0 %v4091
        %9303 = vmatpush1.bf16.msra.mxu0 %v4090
        %9304 = vmatprep.subr.bf16.mxu0 %v4101
        %9305 = vmatpush1.bf16.msra.mxu0 %v4100
        %9306 = vmatprep.subr.bf16.mxu0 %v4111
        %9307 = vmatpush1.bf16.msra.mxu0 %v4110
        %9308 = vmatprep.subr.bf16.mxu0 %v4121
        %9309 = vmatpush1.bf16.msra.mxu0 %v4120
        %9310 = vmatprep.subr.bf16.mxu0 %v4131
        %9311 = vmatpush1.bf16.msra.mxu0 %v4130
        %9312 = vmatprep.subr.bf16.mxu0 %v4141
        %9313 = vmatpush1.bf16.msra.mxu0 %v4140
        %9314 = vmatprep.subr.bf16.mxu0 %v4151
        %9315 = vmatpush1.bf16.msra.mxu0 %v4150
        %9316 = vmatprep.subr.bf16.mxu0 %v4161
        %9317 = vmatpush1.bf16.msra.mxu0 %v4160
        %9318 = vmatprep.subr.bf16.mxu0 %v4171
        %9319 = vmatpush1.bf16.msra.mxu0 %v4170
        %9320 = vmatprep.subr.bf16.mxu0 %v4181
        %9321 = vmatpush1.bf16.msra.mxu0 %v4180
        %9322 = vmatprep.subr.bf16.mxu0 %v4191
        %9323 = vmatpush1.bf16.msra.mxu0 %v4190
        %9324 = vmatprep.subr.bf16.mxu0 %v4201
        %9325 = vmatpush1.bf16.msra.mxu0 %v4200
        %9326 = vmatprep.subr.bf16.mxu0 %v4211
        %9327 = vmatpush1.bf16.msra.mxu0 %v4210
        %9328 = vmatprep.subr.bf16.mxu0 %v4221
        %9329 = vmatpush1.bf16.msra.mxu0 %v4220
        %9330 = vmatprep.subr.bf16.mxu0 %v4231
        %9331 = vmatpush1.bf16.msra.mxu0 %v4230
        %9332 = vmatprep.mubr.bf16.mxu0 %v5396
        %9333 = vmatmul.mubr.bf16.gmra.mrb[0].mxu0 %v5394
        %v9334 = vpop.f32.mrb[0].mxu0
        %v9335 = vadd.f32 %v9294, %v9334
        %v9336 = vpop.f32.mrb[0].mxu0
        %v9337 = vadd.f32 %v9296, %v9336
        %v9338 = vpop.f32.mrb[0].mxu0
        %v9339 = vpop.f32.mrb[0].mxu0
        %9340 = vdwg.mxu0
        %9341 = vmatprep.subr.bf16.mxu0 %v4241
        %9342 = vmatpush1.bf16.msra.mxu0 %v4240
        %9343 = vmatprep.subr.bf16.mxu0 %v4251
        %9344 = vmatpush1.bf16.msra.mxu0 %v4250
        %9345 = vmatprep.subr.bf16.mxu0 %v4261
        %9346 = vmatpush1.bf16.msra.mxu0 %v4260
        %9347 = vmatprep.subr.bf16.mxu0 %v4271
        %9348 = vmatpush1.bf16.msra.mxu0 %v4270
        %9349 = vmatprep.subr.bf16.mxu0 %v4281
        %9350 = vmatpush1.bf16.msra.mxu0 %v4280
        %9351 = vmatprep.subr.bf16.mxu0 %v4291
        %9352 = vmatpush1.bf16.msra.mxu0 %v4290
        %9353 = vmatprep.subr.bf16.mxu0 %v4301
        %9354 = vmatpush1.bf16.msra.mxu0 %v4300
        %9355 = vmatprep.subr.bf16.mxu0 %v4311
        %9356 = vmatpush1.bf16.msra.mxu0 %v4310
        %9357 = vmatprep.subr.bf16.mxu0 %v4321
        %9358 = vmatpush1.bf16.msra.mxu0 %v4320
        %9359 = vmatprep.subr.bf16.mxu0 %v4331
        %9360 = vmatpush1.bf16.msra.mxu0 %v4330
        %9361 = vmatprep.subr.bf16.mxu0 %v4341
        %9362 = vmatpush1.bf16.msra.mxu0 %v4340
        %9363 = vmatprep.subr.bf16.mxu0 %v4351
        %9364 = vmatpush1.bf16.msra.mxu0 %v4350
        %9365 = vmatprep.subr.bf16.mxu0 %v4361
        %9366 = vmatpush1.bf16.msra.mxu0 %v4360
        %9367 = vmatprep.subr.bf16.mxu0 %v4371
        %9368 = vmatpush1.bf16.msra.mxu0 %v4370
        %9369 = vmatprep.subr.bf16.mxu0 %v4381
        %9370 = vmatpush1.bf16.msra.mxu0 %v4380
        %9371 = vmatprep.subr.bf16.mxu0 %v4391
        %9372 = vmatpush1.bf16.msra.mxu0 %v4390
        %9373 = vmatprep.mubr.bf16.mxu0 %v5393
        %9374 = vmatmul.mubr.bf16.gmra.mrb[0].mxu0 %v5379
        %v9375 = vpop.f32.mrb[0].mxu0
        %v9376 = vadd.f32 %v9335, %v9375
        %v9377 = vpop.f32.mrb[0].mxu0
        %v9378 = vadd.f32 %v9337, %v9377
        %v9379 = vpop.f32.mrb[0].mxu0
        %v9380 = vpop.f32.mrb[0].mxu0
        %9381 = vdwg.mxu0
        %9382 = vmatprep.subr.bf16.mxu0 %v4401
        %9383 = vmatpush1.bf16.msra.mxu0 %v4400
        %9384 = vmatprep.subr.bf16.mxu0 %v4411
        %9385 = vmatpush1.bf16.msra.mxu0 %v4410
        %9386 = vmatprep.subr.bf16.mxu0 %v4421
        %9387 = vmatpush1.bf16.msra.mxu0 %v4420
        %9388 = vmatprep.subr.bf16.mxu0 %v4431
        %9389 = vmatpush1.bf16.msra.mxu0 %v4430
        %9390 = vmatprep.subr.bf16.mxu0 %v4441
        %9391 = vmatpush1.bf16.msra.mxu0 %v4440
        %9392 = vmatprep.subr.bf16.mxu0 %v4451
        %9393 = vmatpush1.bf16.msra.mxu0 %v4450
        %9394 = vmatprep.subr.bf16.mxu0 %v4461
        %9395 = vmatpush1.bf16.msra.mxu0 %v4460
        %9396 = vmatprep.subr.bf16.mxu0 %v4471
        %9397 = vmatpush1.bf16.msra.mxu0 %v4470
        %9398 = vmatprep.subr.bf16.mxu0 %v4481
        %9399 = vmatpush1.bf16.msra.mxu0 %v4480
        %9400 = vmatprep.subr.bf16.mxu0 %v4491
        %9401 = vmatpush1.bf16.msra.mxu0 %v4490
        %9402 = vmatprep.subr.bf16.mxu0 %v4501
        %9403 = vmatpush1.bf16.msra.mxu0 %v4500
        %9404 = vmatprep.subr.bf16.mxu0 %v4511
        %9405 = vmatpush1.bf16.msra.mxu0 %v4510
        %9406 = vmatprep.subr.bf16.mxu0 %v4521
        %9407 = vmatpush1.bf16.msra.mxu0 %v4520
        %9408 = vmatprep.subr.bf16.mxu0 %v4531
        %9409 = vmatpush1.bf16.msra.mxu0 %v4530
        %9410 = vmatprep.subr.bf16.mxu0 %v4541
        %9411 = vmatpush1.bf16.msra.mxu0 %v4540
        %9412 = vmatprep.subr.bf16.mxu0 %v4551
        %9413 = vmatpush1.bf16.msra.mxu0 %v4550
        %9414 = vmatprep.mubr.bf16.mxu0 %v5397
        %9415 = vmatmul.mubr.bf16.gmra.mrb[0].mxu0 %v5395
        %v9416 = vpop.f32.mrb[0].mxu0
        %v9417 = vadd.f32 %v9376, %v9416
        %v9418 = vpop.f32.mrb[0].mxu0
        %v9419 = vadd.f32 %v9378, %v9418
        %v9420 = vpop.f32.mrb[0].mxu0
        %v9421 = vpop.f32.mrb[0].mxu0
        %9422 = vdwg.mxu0
        %9423 = vmatprep.subr.bf16.mxu0 %v4561
        %9424 = vmatpush1.bf16.msra.mxu0 %v4560
        %9425 = vmatprep.subr.bf16.mxu0 %v4571
        %9426 = vmatpush1.bf16.msra.mxu0 %v4570
        %9427 = vmatprep.subr.bf16.mxu0 %v4581
        %9428 = vmatpush1.bf16.msra.mxu0 %v4580
        %9429 = vmatprep.subr.bf16.mxu0 %v4591
        %9430 = vmatpush1.bf16.msra.mxu0 %v4590
        %9431 = vmatprep.subr.bf16.mxu0 %v4601
        %9432 = vmatpush1.bf16.msra.mxu0 %v4600
        %9433 = vmatprep.subr.bf16.mxu0 %v4611
        %9434 = vmatpush1.bf16.msra.mxu0 %v4610
        %9435 = vmatprep.subr.bf16.mxu0 %v4621
        %9436 = vmatpush1.bf16.msra.mxu0 %v4620
        %9437 = vmatprep.subr.bf16.mxu0 %v4631
        %9438 = vmatpush1.bf16.msra.mxu0 %v4630
        %9439 = vmatprep.subr.bf16.mxu0 %v4641
        %9440 = vmatpush1.bf16.msra.mxu0 %v4640
        %9441 = vmatprep.subr.bf16.mxu0 %v4651
        %9442 = vmatpush1.bf16.msra.mxu0 %v4650
        %9443 = vmatprep.subr.bf16.mxu0 %v4661
        %9444 = vmatpush1.bf16.msra.mxu0 %v4660
        %9445 = vmatprep.subr.bf16.mxu0 %v4671
        %9446 = vmatpush1.bf16.msra.mxu0 %v4670
        %9447 = vmatprep.subr.bf16.mxu0 %v4681
        %9448 = vmatpush1.bf16.msra.mxu0 %v4680
        %9449 = vmatprep.subr.bf16.mxu0 %v4691
        %9450 = vmatpush1.bf16.msra.mxu0 %v4690
        %9451 = vmatprep.subr.bf16.mxu0 %v4701
        %9452 = vmatpush1.bf16.msra.mxu0 %v4700
        %9453 = vmatprep.subr.bf16.mxu0 %v4711
        %9454 = vmatpush1.bf16.msra.mxu0 %v4710
        %9455 = vmatprep.mubr.bf16.mxu0 %v5435
        %9456 = vmatmul.mubr.bf16.gmra.mrb[0].mxu0 %v5421
        %v9457 = vpop.f32.mrb[0].mxu0
        %v9458 = vadd.f32 %v9417, %v9457
        %v9459 = vpop.f32.mrb[0].mxu0
        %v9460 = vadd.f32 %v9419, %v9459
        %v9461 = vpop.f32.mrb[0].mxu0
        %v9462 = vpop.f32.mrb[0].mxu0
        %9463 = vdwg.mxu0
        %9464 = vmatprep.subr.bf16.mxu0 %v4721
        %9465 = vmatpush1.bf16.msra.mxu0 %v4720
        %9466 = vmatprep.subr.bf16.mxu0 %v4731
        %9467 = vmatpush1.bf16.msra.mxu0 %v4730
        %9468 = vmatprep.subr.bf16.mxu0 %v4741
        %9469 = vmatpush1.bf16.msra.mxu0 %v4740
        %9470 = vmatprep.subr.bf16.mxu0 %v4751
        %9471 = vmatpush1.bf16.msra.mxu0 %v4750
        %9472 = vmatprep.subr.bf16.mxu0 %v4761
        %9473 = vmatpush1.bf16.msra.mxu0 %v4760
        %9474 = vmatprep.subr.bf16.mxu0 %v4771
        %9475 = vmatpush1.bf16.msra.mxu0 %v4770
        %9476 = vmatprep.subr.bf16.mxu0 %v4781
        %9477 = vmatpush1.bf16.msra.mxu0 %v4780
        %9478 = vmatprep.subr.bf16.mxu0 %v4791
        %9479 = vmatpush1.bf16.msra.mxu0 %v4790
        %9480 = vmatprep.subr.bf16.mxu0 %v4801
        %9481 = vmatpush1.bf16.msra.mxu0 %v4800
        %9482 = vmatprep.subr.bf16.mxu0 %v4811
        %9483 = vmatpush1.bf16.msra.mxu0 %v4810
        %9484 = vmatprep.subr.bf16.mxu0 %v4821
        %9485 = vmatpush1.bf16.msra.mxu0 %v4820
        %9486 = vmatprep.subr.bf16.mxu0 %v4831
        %9487 = vmatpush1.bf16.msra.mxu0 %v4830
        %9488 = vmatprep.subr.bf16.mxu0 %v4841
        %9489 = vmatpush1.bf16.msra.mxu0 %v4840
        %9490 = vmatprep.subr.bf16.mxu0 %v4851
        %9491 = vmatpush1.bf16.msra.mxu0 %v4850
        %9492 = vmatprep.subr.bf16.mxu0 %v4861
        %9493 = vmatpush1.bf16.msra.mxu0 %v4860
        %9494 = vmatprep.subr.bf16.mxu0 %v4871
        %9495 = vmatpush1.bf16.msra.mxu0 %v4870
        %9496 = vmatprep.mubr.bf16.mxu0 %v5445
        %9497 = vmatmul.mubr.bf16.gmra.mrb[0].mxu0 %v5443
        %v9498 = vpop.f32.mrb[0].mxu0
        %v9499 = vadd.f32 %v9458, %v9498
        %v9500 = vpop.f32.mrb[0].mxu0
        %v9501 = vadd.f32 %v9460, %v9500
        %v9502 = vpop.f32.mrb[0].mxu0
        %v9503 = vpop.f32.mrb[0].mxu0
        %9504 = vdwg.mxu0
        %9505 = vmatprep.subr.bf16.mxu0 %v4881
        %9506 = vmatpush1.bf16.msra.mxu0 %v4880
        %9507 = vmatprep.subr.bf16.mxu0 %v4891
        %9508 = vmatpush1.bf16.msra.mxu0 %v4890
        %9509 = vmatprep.subr.bf16.mxu0 %v4901
        %9510 = vmatpush1.bf16.msra.mxu0 %v4900
        %9511 = vmatprep.subr.bf16.mxu0 %v4911
        %9512 = vmatpush1.bf16.msra.mxu0 %v4910
        %9513 = vmatprep.subr.bf16.mxu0 %v4921
        %9514 = vmatpush1.bf16.msra.mxu0 %v4920
        %9515 = vmatprep.subr.bf16.mxu0 %v4931
        %9516 = vmatpush1.bf16.msra.mxu0 %v4930
        %9517 = vmatprep.subr.bf16.mxu0 %v4941
        %9518 = vmatpush1.bf16.msra.mxu0 %v4940
        %9519 = vmatprep.subr.bf16.mxu0 %v4951
        %9520 = vmatpush1.bf16.msra.mxu0 %v4950
        %9521 = vmatprep.subr.bf16.mxu0 %v4961
        %9522 = vmatpush1.bf16.msra.mxu0 %v4960
        %9523 = vmatprep.subr.bf16.mxu0 %v4971
        %9524 = vmatpush1.bf16.msra.mxu0 %v4970
        %9525 = vmatprep.subr.bf16.mxu0 %v4981
        %9526 = vmatpush1.bf16.msra.mxu0 %v4980
        %9527 = vmatprep.subr.bf16.mxu0 %v4991
        %9528 = vmatpush1.bf16.msra.mxu0 %v4990
        %9529 = vmatprep.subr.bf16.mxu0 %v5001
        %9530 = vmatpush1.bf16.msra.mxu0 %v5000
        %9531 = vmatprep.subr.bf16.mxu0 %v5011
        %9532 = vmatpush1.bf16.msra.mxu0 %v5010
        %9533 = vmatprep.subr.bf16.mxu0 %v5021
        %9534 = vmatpush1.bf16.msra.mxu0 %v5020
        %9535 = vmatprep.subr.bf16.mxu0 %v5031
        %9536 = vmatpush1.bf16.msra.mxu0 %v5030
        %9537 = vmatprep.mubr.bf16.mxu0 %v5442
        %9538 = vmatmul.mubr.bf16.gmra.mrb[0].mxu0 %v5428
        %v9539 = vpop.f32.mrb[0].mxu0
        %v9540 = vadd.f32 %v9499, %v9539
        %v9541 = vpop.f32.mrb[0].mxu0
        %v9542 = vadd.f32 %v9501, %v9541
        %v9543 = vpop.f32.mrb[0].mxu0
        %v9544 = vpop.f32.mrb[0].mxu0
        %9545 = vdwg.mxu0
        %9546 = vmatprep.subr.bf16.mxu0 %v5041
        %9547 = vmatpush1.bf16.msra.mxu0 %v5040
        %9548 = vmatprep.subr.bf16.mxu0 %v5051
        %9549 = vmatpush1.bf16.msra.mxu0 %v5050
        %9550 = vmatprep.subr.bf16.mxu0 %v5061
        %9551 = vmatpush1.bf16.msra.mxu0 %v5060
        %9552 = vmatprep.subr.bf16.mxu0 %v5071
        %9553 = vmatpush1.bf16.msra.mxu0 %v5070
        %9554 = vmatprep.subr.bf16.mxu0 %v5081
        %9555 = vmatpush1.bf16.msra.mxu0 %v5080
        %9556 = vmatprep.subr.bf16.mxu0 %v5091
        %9557 = vmatpush1.bf16.msra.mxu0 %v5090
        %9558 = vmatprep.subr.bf16.mxu0 %v5101
        %9559 = vmatpush1.bf16.msra.mxu0 %v5100
        %9560 = vmatprep.subr.bf16.mxu0 %v5111
        %9561 = vmatpush1.bf16.msra.mxu0 %v5110
        %9562 = vmatprep.subr.bf16.mxu0 %v5121
        %9563 = vmatpush1.bf16.msra.mxu0 %v5120
        %9564 = vmatprep.subr.bf16.mxu0 %v5131
        %9565 = vmatpush1.bf16.msra.mxu0 %v5130
        %9566 = vmatprep.subr.bf16.mxu0 %v5141
        %9567 = vmatpush1.bf16.msra.mxu0 %v5140
        %9568 = vmatprep.subr.bf16.mxu0 %v5151
        %9569 = vmatpush1.bf16.msra.mxu0 %v5150
        %9570 = vmatprep.subr.bf16.mxu0 %v5161
        %9571 = vmatpush1.bf16.msra.mxu0 %v5160
        %9572 = vmatprep.subr.bf16.mxu0 %v5171
        %9573 = vmatpush1.bf16.msra.mxu0 %v5170
        %9574 = vmatprep.subr.bf16.mxu0 %v5181
        %9575 = vmatpush1.bf16.msra.mxu0 %v5180
        %9576 = vmatprep.subr.bf16.mxu0 %v5191
        %9577 = vmatpush1.bf16.msra.mxu0 %v5190
        %9578 = vmatprep.mubr.bf16.mxu0 %v5446
        %9579 = vmatmul.mubr.bf16.gmra.mrb[0].mxu0 %v5444
        %v9580 = vpop.f32.mrb[0].mxu0
        %v9581 = vadd.f32 %v9540, %v9580
        %v9582 = vpop.f32.mrb[0].mxu0
        %v9583 = vadd.f32 %v9542, %v9582
        %v9584 = vpop.f32.mrb[0].mxu0
        %v9585 = vpop.f32.mrb[0].mxu0
        %9586 = vdwg.mxu0
        %v9587 = vld [vmem:[%s322] sm:$0xff]
        %v9588 = vld [vmem:[%s322 + $0x8] sm:$0x3]
        %v9591 = vlaneseq
        %v9592 = vshrl.u32 %v9591, 7
        %v9593 = vsub.s32 0, %v9592
        %v9594 = vrot.slane %v9587, %v9593
        %v9595 = vlaneseq
        %v9596 = vshrl.u32 %v9595, 7
        %v9597 = vsub.s32 1, %v9596
        %v9598 = vrot.slane %v9587, %v9597
        %v9599 = vlaneseq
        %v9600 = vshrl.u32 %v9599, 7
        %v9601 = vsub.s32 2, %v9600
        %v9602 = vrot.slane %v9587, %v9601
        %v9603 = vlaneseq
        %v9604 = vshrl.u32 %v9603, 7
        %v9605 = vsub.s32 3, %v9604
        %v9606 = vrot.slane %v9587, %v9605
        %v9607 = vlaneseq
        %v9608 = vshrl.u32 %v9607, 7
        %v9609 = vsub.s32 4, %v9608
        %v9610 = vrot.slane %v9587, %v9609
        %v9611 = vlaneseq
        %v9612 = vshrl.u32 %v9611, 7
        %v9613 = vsub.s32 5, %v9612
        %v9614 = vrot.slane %v9587, %v9613
        %v9615 = vlaneseq
        %v9616 = vshrl.u32 %v9615, 7
        %v9617 = vsub.s32 6, %v9616
        %v9618 = vrot.slane %v9587, %v9617
        %v9619 = vlaneseq
        %v9620 = vshrl.u32 %v9619, 7
        %v9621 = vsub.s32 7, %v9620
        %v9622 = vrot.slane %v9587, %v9621
        %v9623 = vlaneseq
        %v9624 = vshrl.u32 %v9623, 7
        %v9625 = vsub.s32 0, %v9624
        %v9626 = vrot.slane %v9588, %v9625
        %v9627 = vlaneseq
        %v9628 = vshrl.u32 %v9627, 7
        %v9629 = vsub.s32 1, %v9628
        %v9630 = vrot.slane %v9588, %v9629
        %v9641 = vmul.f32 %v6301, %v9594
        %v9642 = vmul.f32 %v6303, %v9598
        %v9643 = vmul.f32 %v7121, %v9602
        %v9644 = vmul.f32 %v7123, %v9606
        %v9645 = vmul.f32 %v7941, %v9610
        %v9646 = vmul.f32 %v7943, %v9614
        %v9647 = vmul.f32 %v8761, %v9618
        %v9648 = vmul.f32 %v8763, %v9622
        %v9649 = vmul.f32 %v9581, %v9626
        %v9650 = vmul.f32 %v9583, %v9630
        %v9651 = vld [vmem:[%s331] sm:$0xff]
        %v9652 = vld [vmem:[%s331 + $0x8] sm:$0x3]
        %v9655 = vlaneseq
        %v9656 = vshrl.u32 %v9655, 7
        %v9657 = vsub.s32 0, %v9656
        %v9658 = vrot.slane %v9651, %v9657
        %v9659 = vlaneseq
        %v9660 = vshrl.u32 %v9659, 7
        %v9661 = vsub.s32 1, %v9660
        %v9662 = vrot.slane %v9651, %v9661
        %v9663 = vlaneseq
        %v9664 = vshrl.u32 %v9663, 7
        %v9665 = vsub.s32 2, %v9664
        %v9666 = vrot.slane %v9651, %v9665
        %v9667 = vlaneseq
        %v9668 = vshrl.u32 %v9667, 7
        %v9669 = vsub.s32 3, %v9668
        %v9670 = vrot.slane %v9651, %v9669
        %v9671 = vlaneseq
        %v9672 = vshrl.u32 %v9671, 7
        %v9673 = vsub.s32 4, %v9672
        %v9674 = vrot.slane %v9651, %v9673
        %v9675 = vlaneseq
        %v9676 = vshrl.u32 %v9675, 7
        %v9677 = vsub.s32 5, %v9676
        %v9678 = vrot.slane %v9651, %v9677
        %v9679 = vlaneseq
        %v9680 = vshrl.u32 %v9679, 7
        %v9681 = vsub.s32 6, %v9680
        %v9682 = vrot.slane %v9651, %v9681
        %v9683 = vlaneseq
        %v9684 = vshrl.u32 %v9683, 7
        %v9685 = vsub.s32 7, %v9684
        %v9686 = vrot.slane %v9651, %v9685
        %v9687 = vlaneseq
        %v9688 = vshrl.u32 %v9687, 7
        %v9689 = vsub.s32 0, %v9688
        %v9690 = vrot.slane %v9652, %v9689
        %v9691 = vlaneseq
        %v9692 = vshrl.u32 %v9691, 7
        %v9693 = vsub.s32 1, %v9692
        %v9694 = vrot.slane %v9652, %v9693
        %v9705 = vadd.f32 %v9641, %v9658
        %v9706 = vadd.f32 %v9642, %v9662
        %v9707 = vadd.f32 %v9643, %v9666
        %v9708 = vadd.f32 %v9644, %v9670
        %v9709 = vadd.f32 %v9645, %v9674
        %v9710 = vadd.f32 %v9646, %v9678
        %v9711 = vadd.f32 %v9647, %v9682
        %v9712 = vadd.f32 %v9648, %v9686
        %v9713 = vadd.f32 %v9649, %v9690
        %v9714 = vadd.f32 %v9650, %v9694
        %v9715 = vmax.f32 %v9705, 0.0
        %v9716 = vmax.f32 %v9706, 0.0
        %v9717 = vmax.f32 %v9707, 0.0
        %v9718 = vmax.f32 %v9708, 0.0
        %v9719 = vmax.f32 %v9709, 0.0
        %v9720 = vmax.f32 %v9710, 0.0
        %v9721 = vmax.f32 %v9711, 0.0
        %v9722 = vmax.f32 %v9712, 0.0
        %v9723 = vmax.f32 %v9713, 0.0
        %v9724 = vmax.f32 %v9714, 0.0
        %v9725 = vld [vmem:[#allocation11] sm:$0x3]
        %v9726 = vpack.c.bf16 %v9715, %v9715
        %v9727 = vpack.c.bf16 %v9716, %v9716
        %v9728 = vpack.c.bf16 %v9717, %v9717
        %v9729 = vpack.c.bf16 %v9718, %v9718
        %v9730 = vpack.c.bf16 %v9719, %v9719
        %v9731 = vpack.c.bf16 %v9720, %v9720
        %v9732 = vpack.c.bf16 %v9721, %v9721
        %v9733 = vpack.c.bf16 %v9722, %v9722
        %v9734 = vpack.c.bf16 %v9723, %v9723
        %v9735 = vpack.c.bf16 %v9724, %v9724
        %v9736 = vld [vmem:[%s340] sm:$0xf]
        %v9737 = vld [vmem:[%s340 + $0x4] sm:$0xf]
        %v9738 = vld [vmem:[%s340 + $0x8] sm:$0xf]
        %v9739 = vld [vmem:[%s340 + $0xc] sm:$0xf]
        %v9740 = vld [vmem:[%s340 + $0x10] sm:$0xf]
        %v9741 = vld [vmem:[%s340 + $0x14] sm:$0xf]
        %v9742 = vld [vmem:[%s340 + $0x18] sm:$0xf]
        %v9743 = vld [vmem:[%s340 + $0x1c] sm:$0xf]
        %v9744 = vld [vmem:[%s340 + $0x20] sm:$0xf]
        %v9745 = vld [vmem:[%s340 + $0x24] sm:$0xf]
        %v9746 = vld [vmem:[%s340 + $0x28] sm:$0xf]
        %v9747 = vld [vmem:[%s340 + $0x2c] sm:$0xf]
        %v9748 = vld [vmem:[%s340 + $0x30] sm:$0xf]
        %v9749 = vld [vmem:[%s340 + $0x34] sm:$0xf]
        %v9750 = vld [vmem:[%s340 + $0x38] sm:$0xf]
        %v9751 = vld [vmem:[%s340 + $0x3c] sm:$0xf]
        %v9752 = vld [vmem:[%s340 + $0x40] sm:$0xf]
        %v9753 = vld [vmem:[%s340 + $0x44] sm:$0xf]
        %v9754 = vld [vmem:[%s340 + $0x48] sm:$0xf]
        %v9755 = vld [vmem:[%s340 + $0x4c] sm:$0xf]
        %v9756 = vld [vmem:[%s340 + $0x50] sm:$0xf]
        %v9757 = vld [vmem:[%s340 + $0x54] sm:$0xf]
        %v9758 = vld [vmem:[%s340 + $0x58] sm:$0xf]
        %v9759 = vld [vmem:[%s340 + $0x5c] sm:$0xf]
        %v9760 = vld [vmem:[%s340 + $0x60] sm:$0xf]
        %v9761 = vld [vmem:[%s340 + $0x64] sm:$0xf]
        %v9762 = vld [vmem:[%s340 + $0x68] sm:$0xf]
        %v9763 = vld [vmem:[%s340 + $0x6c] sm:$0xf]
        %v9764 = vld [vmem:[%s340 + $0x70] sm:$0xf]
        %v9765 = vld [vmem:[%s340 + $0x74] sm:$0xf]
        %v9766 = vld [vmem:[%s340 + $0x78] sm:$0xf]
        %v9767 = vld [vmem:[%s340 + $0x7c] sm:$0xf]
        %v9768 = vld [vmem:[%s340 + $0x80] sm:$0xf]
        %v9769 = vld [vmem:[%s340 + $0x84] sm:$0xf]
        %v9770 = vld [vmem:[%s340 + $0x88] sm:$0xf]
        %v9771 = vld [vmem:[%s340 + $0x8c] sm:$0xf]
        %v9772 = vld [vmem:[%s340 + $0x90] sm:$0xf]
        %v9773 = vld [vmem:[%s340 + $0x94] sm:$0xf]
        %v9774 = vld [vmem:[%s340 + $0x98] sm:$0xf]
        %v9775 = vld [vmem:[%s340 + $0x9c] sm:$0xf]
        %v9776 = vld [vmem:[%s340 + $0xa0] sm:$0xf]
        %v9777 = vld [vmem:[%s340 + $0xa4] sm:$0xf]
        %v9778 = vld [vmem:[%s340 + $0xa8] sm:$0xf]
        %v9779 = vld [vmem:[%s340 + $0xac] sm:$0xf]
        %v9780 = vld [vmem:[%s340 + $0xb0] sm:$0xf]
        %v9781 = vld [vmem:[%s340 + $0xb4] sm:$0xf]
        %v9782 = vld [vmem:[%s340 + $0xb8] sm:$0xf]
        %v9783 = vld [vmem:[%s340 + $0xbc] sm:$0xf]
        %v9784 = vld [vmem:[%s340 + $0xc0] sm:$0xf]
        %v9785 = vld [vmem:[%s340 + $0xc4] sm:$0xf]
        %v9786 = vld [vmem:[%s340 + $0xc8] sm:$0xf]
        %v9787 = vld [vmem:[%s340 + $0xcc] sm:$0xf]
        %v9788 = vld [vmem:[%s340 + $0xd0] sm:$0xf]
        %v9789 = vld [vmem:[%s340 + $0xd4] sm:$0xf]
        %v9790 = vld [vmem:[%s340 + $0xd8] sm:$0xf]
        %v9791 = vld [vmem:[%s340 + $0xdc] sm:$0xf]
        %v9792 = vld [vmem:[%s340 + $0xe0] sm:$0xf]
        %v9793 = vld [vmem:[%s340 + $0xe4] sm:$0xf]
        %v9794 = vld [vmem:[%s340 + $0xe8] sm:$0xf]
        %v9795 = vld [vmem:[%s340 + $0xec] sm:$0xf]
        %v9796 = vld [vmem:[%s340 + $0xf0] sm:$0xf]
        %v9797 = vld [vmem:[%s340 + $0xf4] sm:$0xf]
        %v9798 = vld [vmem:[%s340 + $0xf8] sm:$0xf]
        %v9799 = vld [vmem:[%s340 + $0xfc] sm:$0xf]
        %v9800 = vld [vmem:[%s340 + $0x100] sm:$0xf]
        %v9801 = vld [vmem:[%s340 + $0x104] sm:$0xf]
        %v9802 = vld [vmem:[%s340 + $0x108] sm:$0xf]
        %v9803 = vld [vmem:[%s340 + $0x10c] sm:$0xf]
        %v9804 = vld [vmem:[%s340 + $0x110] sm:$0xf]
        %v9805 = vld [vmem:[%s340 + $0x114] sm:$0xf]
        %v9806 = vld [vmem:[%s340 + $0x118] sm:$0xf]
        %v9807 = vld [vmem:[%s340 + $0x11c] sm:$0xf]
        %v9808 = vld [vmem:[%s340 + $0x120] sm:$0xf]
        %v9809 = vld [vmem:[%s340 + $0x124] sm:$0xf]
        %v9810 = vld [vmem:[%s340 + $0x128] sm:$0xf]
        %v9811 = vld [vmem:[%s340 + $0x12c] sm:$0xf]
        %v9812 = vld [vmem:[%s340 + $0x130] sm:$0xf]
        %v9813 = vld [vmem:[%s340 + $0x134] sm:$0xf]
        %v9814 = vld [vmem:[%s340 + $0x138] sm:$0xf]
        %v9815 = vld [vmem:[%s340 + $0x13c] sm:$0xf]
        %v9816 = vld [vmem:[%s340 + $0x140] sm:$0xf]
        %v9817 = vld [vmem:[%s340 + $0x144] sm:$0xf]
        %v9818 = vld [vmem:[%s340 + $0x148] sm:$0xf]
        %v9819 = vld [vmem:[%s340 + $0x14c] sm:$0xf]
        %v9820 = vld [vmem:[%s340 + $0x150] sm:$0xf]
        %v9821 = vld [vmem:[%s340 + $0x154] sm:$0xf]
        %v9822 = vld [vmem:[%s340 + $0x158] sm:$0xf]
        %v9823 = vld [vmem:[%s340 + $0x15c] sm:$0xf]
        %v9824 = vld [vmem:[%s340 + $0x160] sm:$0xf]
        %v9825 = vld [vmem:[%s340 + $0x164] sm:$0xf]
        %v9826 = vld [vmem:[%s340 + $0x168] sm:$0xf]
        %v9827 = vld [vmem:[%s340 + $0x16c] sm:$0xf]
        %v9828 = vld [vmem:[%s340 + $0x170] sm:$0xf]
        %v9829 = vld [vmem:[%s340 + $0x174] sm:$0xf]
        %v9830 = vld [vmem:[%s340 + $0x178] sm:$0xf]
        %v9831 = vld [vmem:[%s340 + $0x17c] sm:$0xf]
        %v9832 = vld [vmem:[%s340 + $0x180] sm:$0xf]
        %v9833 = vld [vmem:[%s340 + $0x184] sm:$0xf]
        %v9834 = vld [vmem:[%s340 + $0x188] sm:$0xf]
        %v9835 = vld [vmem:[%s340 + $0x18c] sm:$0xf]
        %v9836 = vld [vmem:[%s340 + $0x190] sm:$0xf]
        %v9837 = vld [vmem:[%s340 + $0x194] sm:$0xf]
        %v9838 = vld [vmem:[%s340 + $0x198] sm:$0xf]
        %v9839 = vld [vmem:[%s340 + $0x19c] sm:$0xf]
        %v9840 = vld [vmem:[%s340 + $0x1a0] sm:$0xf]
        %v9841 = vld [vmem:[%s340 + $0x1a4] sm:$0xf]
        %v9842 = vld [vmem:[%s340 + $0x1a8] sm:$0xf]
        %v9843 = vld [vmem:[%s340 + $0x1ac] sm:$0xf]
        %v9844 = vld [vmem:[%s340 + $0x1b0] sm:$0xf]
        %v9845 = vld [vmem:[%s340 + $0x1b4] sm:$0xf]
        %v9846 = vld [vmem:[%s340 + $0x1b8] sm:$0xf]
        %v9847 = vld [vmem:[%s340 + $0x1bc] sm:$0xf]
        %v9848 = vld [vmem:[%s340 + $0x1c0] sm:$0xf]
        %v9849 = vld [vmem:[%s340 + $0x1c4] sm:$0xf]
        %v9850 = vld [vmem:[%s340 + $0x1c8] sm:$0xf]
        %v9851 = vld [vmem:[%s340 + $0x1cc] sm:$0xf]
        %v9852 = vld [vmem:[%s340 + $0x1d0] sm:$0xf]
        %v9853 = vld [vmem:[%s340 + $0x1d4] sm:$0xf]
        %v9854 = vld [vmem:[%s340 + $0x1d8] sm:$0xf]
        %v9855 = vld [vmem:[%s340 + $0x1dc] sm:$0xf]
        %v9856 = vld [vmem:[%s340 + $0x1e0] sm:$0xf]
        %v9857 = vld [vmem:[%s340 + $0x1e4] sm:$0xf]
        %v9858 = vld [vmem:[%s340 + $0x1e8] sm:$0xf]
        %v9859 = vld [vmem:[%s340 + $0x1ec] sm:$0xf]
        %v9860 = vld [vmem:[%s340 + $0x1f0] sm:$0xf]
        %v9861 = vld [vmem:[%s340 + $0x1f4] sm:$0xf]
        %v9862 = vld [vmem:[%s340 + $0x1f8] sm:$0xf]
        %v9863 = vld [vmem:[%s340 + $0x1fc] sm:$0xf]
        %v9864 = vld [vmem:[%s340 + $0x200] sm:$0xf]
        %v9865 = vld [vmem:[%s340 + $0x204] sm:$0xf]
        %v9866 = vld [vmem:[%s340 + $0x208] sm:$0xf]
        %v9867 = vld [vmem:[%s340 + $0x20c] sm:$0xf]
        %v9868 = vld [vmem:[%s340 + $0x210] sm:$0xf]
        %v9869 = vld [vmem:[%s340 + $0x214] sm:$0xf]
        %v9870 = vld [vmem:[%s340 + $0x218] sm:$0xf]
        %v9871 = vld [vmem:[%s340 + $0x21c] sm:$0xf]
        %v9872 = vld [vmem:[%s340 + $0x220] sm:$0xf]
        %v9873 = vld [vmem:[%s340 + $0x224] sm:$0xf]
        %v9874 = vld [vmem:[%s340 + $0x228] sm:$0xf]
        %v9875 = vld [vmem:[%s340 + $0x22c] sm:$0xf]
        %v9876 = vld [vmem:[%s340 + $0x230] sm:$0xf]
        %v9877 = vld [vmem:[%s340 + $0x234] sm:$0xf]
        %v9878 = vld [vmem:[%s340 + $0x238] sm:$0xf]
        %v9879 = vld [vmem:[%s340 + $0x23c] sm:$0xf]
        %v9880 = vld [vmem:[%s340 + $0x240] sm:$0xf]
        %v9881 = vld [vmem:[%s340 + $0x244] sm:$0xf]
        %v9882 = vld [vmem:[%s340 + $0x248] sm:$0xf]
        %v9883 = vld [vmem:[%s340 + $0x24c] sm:$0xf]
        %v9884 = vld [vmem:[%s340 + $0x250] sm:$0xf]
        %v9885 = vld [vmem:[%s340 + $0x254] sm:$0xf]
        %v9886 = vld [vmem:[%s340 + $0x258] sm:$0xf]
        %v9887 = vld [vmem:[%s340 + $0x25c] sm:$0xf]
        %v9888 = vld [vmem:[%s340 + $0x260] sm:$0xf]
        %v9889 = vld [vmem:[%s340 + $0x264] sm:$0xf]
        %v9890 = vld [vmem:[%s340 + $0x268] sm:$0xf]
        %v9891 = vld [vmem:[%s340 + $0x26c] sm:$0xf]
        %v9892 = vld [vmem:[%s340 + $0x270] sm:$0xf]
        %v9893 = vld [vmem:[%s340 + $0x274] sm:$0xf]
        %v9894 = vld [vmem:[%s340 + $0x278] sm:$0xf]
        %v9895 = vld [vmem:[%s340 + $0x27c] sm:$0xf]
        %v10056 = vunpack.c.l.b16 %v9736
        %v10057 = vunpack.c.l.b16 %v9737
        %v10058 = vunpack.c.l.b16 %v9738
        %v10059 = vunpack.c.l.b16 %v9739
        %v10060 = vunpack.c.l.b16 %v9740
        %v10061 = vunpack.c.l.b16 %v9741
        %v10062 = vunpack.c.l.b16 %v9742
        %v10063 = vunpack.c.l.b16 %v9743
        %v10064 = vunpack.c.l.b16 %v9744
        %v10065 = vunpack.c.l.b16 %v9745
        %v10066 = vunpack.c.l.b16 %v9746
        %v10067 = vunpack.c.l.b16 %v9747
        %v10068 = vunpack.c.l.b16 %v9748
        %v10069 = vunpack.c.l.b16 %v9749
        %v10070 = vunpack.c.l.b16 %v9750
        %v10071 = vunpack.c.l.b16 %v9751
        %v10072 = vunpack.c.l.b16 %v9752
        %v10073 = vunpack.c.l.b16 %v9753
        %v10074 = vunpack.c.l.b16 %v9754
        %v10075 = vunpack.c.l.b16 %v9755
        %v10076 = vunpack.c.l.b16 %v9756
        %v10077 = vunpack.c.l.b16 %v9757
        %v10078 = vunpack.c.l.b16 %v9758
        %v10079 = vunpack.c.l.b16 %v9759
        %v10080 = vunpack.c.l.b16 %v9760
        %v10081 = vunpack.c.l.b16 %v9761
        %v10082 = vunpack.c.l.b16 %v9762
        %v10083 = vunpack.c.l.b16 %v9763
        %v10084 = vunpack.c.l.b16 %v9764
        %v10085 = vunpack.c.l.b16 %v9765
        %v10086 = vunpack.c.l.b16 %v9766
        %v10087 = vunpack.c.l.b16 %v9767
        %v10088 = vunpack.c.l.b16 %v9768
        %v10089 = vunpack.c.l.b16 %v9769
        %v10090 = vunpack.c.l.b16 %v9770
        %v10091 = vunpack.c.l.b16 %v9771
        %v10092 = vunpack.c.l.b16 %v9772
        %v10093 = vunpack.c.l.b16 %v9773
        %v10094 = vunpack.c.l.b16 %v9774
        %v10095 = vunpack.c.l.b16 %v9775
        %v10096 = vunpack.c.l.b16 %v9776
        %v10097 = vunpack.c.l.b16 %v9777
        %v10098 = vunpack.c.l.b16 %v9778
        %v10099 = vunpack.c.l.b16 %v9779
        %v10100 = vunpack.c.l.b16 %v9780
        %v10101 = vunpack.c.l.b16 %v9781
        %v10102 = vunpack.c.l.b16 %v9782
        %v10103 = vunpack.c.l.b16 %v9783
        %v10104 = vunpack.c.l.b16 %v9784
        %v10105 = vunpack.c.l.b16 %v9785
        %v10106 = vunpack.c.l.b16 %v9786
        %v10107 = vunpack.c.l.b16 %v9787
        %v10108 = vunpack.c.l.b16 %v9788
        %v10109 = vunpack.c.l.b16 %v9789
        %v10110 = vunpack.c.l.b16 %v9790
        %v10111 = vunpack.c.l.b16 %v9791
        %v10112 = vunpack.c.l.b16 %v9792
        %v10113 = vunpack.c.l.b16 %v9793
        %v10114 = vunpack.c.l.b16 %v9794
        %v10115 = vunpack.c.l.b16 %v9795
        %v10116 = vunpack.c.l.b16 %v9796
        %v10117 = vunpack.c.l.b16 %v9797
        %v10118 = vunpack.c.l.b16 %v9798
        %v10119 = vunpack.c.l.b16 %v9799
        %v10120 = vunpack.c.l.b16 %v9800
        %v10121 = vunpack.c.l.b16 %v9801
        %v10122 = vunpack.c.l.b16 %v9802
        %v10123 = vunpack.c.l.b16 %v9803
        %v10124 = vunpack.c.l.b16 %v9804
        %v10125 = vunpack.c.l.b16 %v9805
        %v10126 = vunpack.c.l.b16 %v9806
        %v10127 = vunpack.c.l.b16 %v9807
        %v10128 = vunpack.c.l.b16 %v9808
        %v10129 = vunpack.c.l.b16 %v9809
        %v10130 = vunpack.c.l.b16 %v9810
        %v10131 = vunpack.c.l.b16 %v9811
        %v10132 = vunpack.c.l.b16 %v9812
        %v10133 = vunpack.c.l.b16 %v9813
        %v10134 = vunpack.c.l.b16 %v9814
        %v10135 = vunpack.c.l.b16 %v9815
        %v10136 = vunpack.c.l.b16 %v9816
        %v10137 = vunpack.c.l.b16 %v9817
        %v10138 = vunpack.c.l.b16 %v9818
        %v10139 = vunpack.c.l.b16 %v9819
        %v10140 = vunpack.c.l.b16 %v9820
        %v10141 = vunpack.c.l.b16 %v9821
        %v10142 = vunpack.c.l.b16 %v9822
        %v10143 = vunpack.c.l.b16 %v9823
        %v10144 = vunpack.c.l.b16 %v9824
        %v10145 = vunpack.c.l.b16 %v9825
        %v10146 = vunpack.c.l.b16 %v9826
        %v10147 = vunpack.c.l.b16 %v9827
        %v10148 = vunpack.c.l.b16 %v9828
        %v10149 = vunpack.c.l.b16 %v9829
        %v10150 = vunpack.c.l.b16 %v9830
        %v10151 = vunpack.c.l.b16 %v9831
        %v10152 = vunpack.c.l.b16 %v9832
        %v10153 = vunpack.c.l.b16 %v9833
        %v10154 = vunpack.c.l.b16 %v9834
        %v10155 = vunpack.c.l.b16 %v9835
        %v10156 = vunpack.c.l.b16 %v9836
        %v10157 = vunpack.c.l.b16 %v9837
        %v10158 = vunpack.c.l.b16 %v9838
        %v10159 = vunpack.c.l.b16 %v9839
        %v10160 = vunpack.c.l.b16 %v9840
        %v10161 = vunpack.c.l.b16 %v9841
        %v10162 = vunpack.c.l.b16 %v9842
        %v10163 = vunpack.c.l.b16 %v9843
        %v10164 = vunpack.c.l.b16 %v9844
        %v10165 = vunpack.c.l.b16 %v9845
        %v10166 = vunpack.c.l.b16 %v9846
        %v10167 = vunpack.c.l.b16 %v9847
        %v10168 = vunpack.c.l.b16 %v9848
        %v10169 = vunpack.c.l.b16 %v9849
        %v10170 = vunpack.c.l.b16 %v9850
        %v10171 = vunpack.c.l.b16 %v9851
        %v10172 = vunpack.c.l.b16 %v9852
        %v10173 = vunpack.c.l.b16 %v9853
        %v10174 = vunpack.c.l.b16 %v9854
        %v10175 = vunpack.c.l.b16 %v9855
        %v10176 = vunpack.c.l.b16 %v9856
        %v10177 = vunpack.c.l.b16 %v9857
        %v10178 = vunpack.c.l.b16 %v9858
        %v10179 = vunpack.c.l.b16 %v9859
        %v10180 = vunpack.c.l.b16 %v9860
        %v10181 = vunpack.c.l.b16 %v9861
        %v10182 = vunpack.c.l.b16 %v9862
        %v10183 = vunpack.c.l.b16 %v9863
        %v10184 = vunpack.c.l.b16 %v9864
        %v10185 = vunpack.c.l.b16 %v9865
        %v10186 = vunpack.c.l.b16 %v9866
        %v10187 = vunpack.c.l.b16 %v9867
        %v10188 = vunpack.c.l.b16 %v9868
        %v10189 = vunpack.c.l.b16 %v9869
        %v10190 = vunpack.c.l.b16 %v9870
        %v10191 = vunpack.c.l.b16 %v9871
        %v10192 = vunpack.c.l.b16 %v9872
        %v10193 = vunpack.c.l.b16 %v9873
        %v10194 = vunpack.c.l.b16 %v9874
        %v10195 = vunpack.c.l.b16 %v9875
        %v10196 = vunpack.c.l.b16 %v9876
        %v10197 = vunpack.c.l.b16 %v9877
        %v10198 = vunpack.c.l.b16 %v9878
        %v10199 = vunpack.c.l.b16 %v9879
        %v10200 = vunpack.c.l.b16 %v9880
        %v10201 = vunpack.c.l.b16 %v9881
        %v10202 = vunpack.c.l.b16 %v9882
        %v10203 = vunpack.c.l.b16 %v9883
        %v10204 = vunpack.c.l.b16 %v9884
        %v10205 = vunpack.c.l.b16 %v9885
        %v10206 = vunpack.c.l.b16 %v9886
        %v10207 = vunpack.c.l.b16 %v9887
        %v10208 = vunpack.c.l.b16 %v9888
        %v10209 = vunpack.c.l.b16 %v9889
        %v10210 = vunpack.c.l.b16 %v9890
        %v10211 = vunpack.c.l.b16 %v9891
        %v10212 = vunpack.c.l.b16 %v9892
        %v10213 = vunpack.c.l.b16 %v9893
        %v10214 = vunpack.c.l.b16 %v9894
        %v10215 = vunpack.c.l.b16 %v9895
        %v10216 = vpack.c.b16 %v10057, %v10056
        %v10217 = vpack.c.b16 %v10059, %v10058
        %v10218 = vpack.c.b16 %v10061, %v10060
        %v10219 = vpack.c.b16 %v10063, %v10062
        %v10220 = vpack.c.b16 %v10065, %v10064
        %v10221 = vpack.c.b16 %v10067, %v10066
        %v10222 = vpack.c.b16 %v10069, %v10068
        %v10223 = vpack.c.b16 %v10071, %v10070
        %v10224 = vpack.c.b16 %v10073, %v10072
        %v10225 = vpack.c.b16 %v10075, %v10074
        %v10226 = vpack.c.b16 %v10077, %v10076
        %v10227 = vpack.c.b16 %v10079, %v10078
        %v10228 = vpack.c.b16 %v10081, %v10080
        %v10229 = vpack.c.b16 %v10083, %v10082
        %v10230 = vpack.c.b16 %v10085, %v10084
        %v10231 = vpack.c.b16 %v10087, %v10086
        %v10232 = vpack.c.b16 %v10089, %v10088
        %v10233 = vpack.c.b16 %v10091, %v10090
        %v10234 = vpack.c.b16 %v10093, %v10092
        %v10235 = vpack.c.b16 %v10095, %v10094
        %v10236 = vpack.c.b16 %v10097, %v10096
        %v10237 = vpack.c.b16 %v10099, %v10098
        %v10238 = vpack.c.b16 %v10101, %v10100
        %v10239 = vpack.c.b16 %v10103, %v10102
        %v10240 = vpack.c.b16 %v10105, %v10104
        %v10241 = vpack.c.b16 %v10107, %v10106
        %v10242 = vpack.c.b16 %v10109, %v10108
        %v10243 = vpack.c.b16 %v10111, %v10110
        %v10244 = vpack.c.b16 %v10113, %v10112
        %v10245 = vpack.c.b16 %v10115, %v10114
        %v10246 = vpack.c.b16 %v10117, %v10116
        %v10247 = vpack.c.b16 %v10119, %v10118
        %v10248 = vpack.c.b16 %v10121, %v10120
        %v10249 = vpack.c.b16 %v10123, %v10122
        %v10250 = vpack.c.b16 %v10125, %v10124
        %v10251 = vpack.c.b16 %v10127, %v10126
        %v10252 = vpack.c.b16 %v10129, %v10128
        %v10253 = vpack.c.b16 %v10131, %v10130
        %v10254 = vpack.c.b16 %v10133, %v10132
        %v10255 = vpack.c.b16 %v10135, %v10134
        %v10256 = vpack.c.b16 %v10137, %v10136
        %v10257 = vpack.c.b16 %v10139, %v10138
        %v10258 = vpack.c.b16 %v10141, %v10140
        %v10259 = vpack.c.b16 %v10143, %v10142
        %v10260 = vpack.c.b16 %v10145, %v10144
        %v10261 = vpack.c.b16 %v10147, %v10146
        %v10262 = vpack.c.b16 %v10149, %v10148
        %v10263 = vpack.c.b16 %v10151, %v10150
        %v10264 = vpack.c.b16 %v10153, %v10152
        %v10265 = vpack.c.b16 %v10155, %v10154
        %v10266 = vpack.c.b16 %v10157, %v10156
        %v10267 = vpack.c.b16 %v10159, %v10158
        %v10268 = vpack.c.b16 %v10161, %v10160
        %v10269 = vpack.c.b16 %v10163, %v10162
        %v10270 = vpack.c.b16 %v10165, %v10164
        %v10271 = vpack.c.b16 %v10167, %v10166
        %v10272 = vpack.c.b16 %v10169, %v10168
        %v10273 = vpack.c.b16 %v10171, %v10170
        %v10274 = vpack.c.b16 %v10173, %v10172
        %v10275 = vpack.c.b16 %v10175, %v10174
        %v10276 = vpack.c.b16 %v10177, %v10176
        %v10277 = vpack.c.b16 %v10179, %v10178
        %v10278 = vpack.c.b16 %v10181, %v10180
        %v10279 = vpack.c.b16 %v10183, %v10182
        %v10280 = vpack.c.b16 %v10185, %v10184
        %v10281 = vpack.c.b16 %v10187, %v10186
        %v10282 = vpack.c.b16 %v10189, %v10188
        %v10283 = vpack.c.b16 %v10191, %v10190
        %v10284 = vpack.c.b16 %v10193, %v10192
        %v10285 = vpack.c.b16 %v10195, %v10194
        %v10286 = vpack.c.b16 %v10197, %v10196
        %v10287 = vpack.c.b16 %v10199, %v10198
        %v10288 = vpack.c.b16 %v10201, %v10200
        %v10289 = vpack.c.b16 %v10203, %v10202
        %v10290 = vpack.c.b16 %v10205, %v10204
        %v10291 = vpack.c.b16 %v10207, %v10206
        %v10292 = vpack.c.b16 %v10209, %v10208
        %v10293 = vpack.c.b16 %v10211, %v10210
        %v10294 = vpack.c.b16 %v10213, %v10212
        %v10295 = vpack.c.b16 %v10215, %v10214
        %10376 = vmatprep.subr.bf16.mxu0 0
        %10377 = vmatpush1.bf16.msra.mxu0 %v10216
        %10378 = vmatprep.subr.bf16.mxu0 0
        %10379 = vmatpush1.bf16.msra.mxu0 %v10217
        %10380 = vmatprep.subr.bf16.mxu0 0
        %10381 = vmatpush1.bf16.msra.mxu0 %v10218
        %10382 = vmatprep.subr.bf16.mxu0 0
        %10383 = vmatpush1.bf16.msra.mxu0 %v10219
        %10384 = vmatprep.subr.bf16.mxu0 0
        %10385 = vmatpush1.bf16.msra.mxu0 %v10220
        %10386 = vmatprep.subr.bf16.mxu0 0
        %10387 = vmatpush1.bf16.msra.mxu0 %v10221
        %10388 = vmatprep.subr.bf16.mxu0 0
        %10389 = vmatpush1.bf16.msra.mxu0 %v10222
        %10390 = vmatprep.subr.bf16.mxu0 0
        %10391 = vmatpush1.bf16.msra.mxu0 %v10223
        %10392 = vmatprep.subr.bf16.mxu0 0
        %10393 = vmatpush1.bf16.msra.mxu0 %v10224
        %10394 = vmatprep.subr.bf16.mxu0 0
        %10395 = vmatpush1.bf16.msra.mxu0 %v10225
        %10396 = vmatprep.subr.bf16.mxu0 0
        %10397 = vmatpush1.bf16.msra.mxu0 %v10226
        %10398 = vmatprep.subr.bf16.mxu0 0
        %10399 = vmatpush1.bf16.msra.mxu0 %v10227
        %10400 = vmatprep.subr.bf16.mxu0 0
        %10401 = vmatpush1.bf16.msra.mxu0 %v10228
        %10402 = vmatprep.subr.bf16.mxu0 0
        %10403 = vmatpush1.bf16.msra.mxu0 %v10229
        %10404 = vmatprep.subr.bf16.mxu0 0
        %10405 = vmatpush1.bf16.msra.mxu0 %v10230
        %10406 = vmatprep.subr.bf16.mxu0 0
        %10407 = vmatpush1.bf16.msra.mxu0 %v10231
        %10408 = vmatprep.mubr.bf16.mxu0 %v9727
        %10409 = vmatmul.mubr.bf16.gmra.mrb[0].mxu0 %v9726
        %v10410 = vpop.f32.mrb[0].mxu0
        %v10411 = vadd.f32 0.0, %v10410
        %v10412 = vpop.f32.mrb[0].mxu0
        %v10413 = vpop.f32.mrb[0].mxu0
        %v10414 = vpop.f32.mrb[0].mxu0
        %10415 = vdwg.mxu0
        %10416 = vmatprep.subr.bf16.mxu0 0
        %10417 = vmatpush1.bf16.msra.mxu0 %v10232
        %10418 = vmatprep.subr.bf16.mxu0 0
        %10419 = vmatpush1.bf16.msra.mxu0 %v10233
        %10420 = vmatprep.subr.bf16.mxu0 0
        %10421 = vmatpush1.bf16.msra.mxu0 %v10234
        %10422 = vmatprep.subr.bf16.mxu0 0
        %10423 = vmatpush1.bf16.msra.mxu0 %v10235
        %10424 = vmatprep.subr.bf16.mxu0 0
        %10425 = vmatpush1.bf16.msra.mxu0 %v10236
        %10426 = vmatprep.subr.bf16.mxu0 0
        %10427 = vmatpush1.bf16.msra.mxu0 %v10237
        %10428 = vmatprep.subr.bf16.mxu0 0
        %10429 = vmatpush1.bf16.msra.mxu0 %v10238
        %10430 = vmatprep.subr.bf16.mxu0 0
        %10431 = vmatpush1.bf16.msra.mxu0 %v10239
        %10432 = vmatprep.subr.bf16.mxu0 0
        %10433 = vmatpush1.bf16.msra.mxu0 %v10240
        %10434 = vmatprep.subr.bf16.mxu0 0
        %10435 = vmatpush1.bf16.msra.mxu0 %v10241
        %10436 = vmatprep.subr.bf16.mxu0 0
        %10437 = vmatpush1.bf16.msra.mxu0 %v10242
        %10438 = vmatprep.subr.bf16.mxu0 0
        %10439 = vmatpush1.bf16.msra.mxu0 %v10243
        %10440 = vmatprep.subr.bf16.mxu0 0
        %10441 = vmatpush1.bf16.msra.mxu0 %v10244
        %10442 = vmatprep.subr.bf16.mxu0 0
        %10443 = vmatpush1.bf16.msra.mxu0 %v10245
        %10444 = vmatprep.subr.bf16.mxu0 0
        %10445 = vmatpush1.bf16.msra.mxu0 %v10246
        %10446 = vmatprep.subr.bf16.mxu0 0
        %10447 = vmatpush1.bf16.msra.mxu0 %v10247
        %10448 = vmatprep.mubr.bf16.mxu0 %v9729
        %10449 = vmatmul.mubr.bf16.gmra.mrb[0].mxu0 %v9728
        %v10450 = vpop.f32.mrb[0].mxu0
        %v10451 = vadd.f32 %v10411, %v10450
        %v10452 = vpop.f32.mrb[0].mxu0
        %v10453 = vpop.f32.mrb[0].mxu0
        %v10454 = vpop.f32.mrb[0].mxu0
        %10455 = vdwg.mxu0
        %10456 = vmatprep.subr.bf16.mxu0 0
        %10457 = vmatpush1.bf16.msra.mxu0 %v10248
        %10458 = vmatprep.subr.bf16.mxu0 0
        %10459 = vmatpush1.bf16.msra.mxu0 %v10249
        %10460 = vmatprep.subr.bf16.mxu0 0
        %10461 = vmatpush1.bf16.msra.mxu0 %v10250
        %10462 = vmatprep.subr.bf16.mxu0 0
        %10463 = vmatpush1.bf16.msra.mxu0 %v10251
        %10464 = vmatprep.subr.bf16.mxu0 0
        %10465 = vmatpush1.bf16.msra.mxu0 %v10252
        %10466 = vmatprep.subr.bf16.mxu0 0
        %10467 = vmatpush1.bf16.msra.mxu0 %v10253
        %10468 = vmatprep.subr.bf16.mxu0 0
        %10469 = vmatpush1.bf16.msra.mxu0 %v10254
        %10470 = vmatprep.subr.bf16.mxu0 0
        %10471 = vmatpush1.bf16.msra.mxu0 %v10255
        %10472 = vmatprep.subr.bf16.mxu0 0
        %10473 = vmatpush1.bf16.msra.mxu0 %v10256
        %10474 = vmatprep.subr.bf16.mxu0 0
        %10475 = vmatpush1.bf16.msra.mxu0 %v10257
        %10476 = vmatprep.subr.bf16.mxu0 0
        %10477 = vmatpush1.bf16.msra.mxu0 %v10258
        %10478 = vmatprep.subr.bf16.mxu0 0
        %10479 = vmatpush1.bf16.msra.mxu0 %v10259
        %10480 = vmatprep.subr.bf16.mxu0 0
        %10481 = vmatpush1.bf16.msra.mxu0 %v10260
        %10482 = vmatprep.subr.bf16.mxu0 0
        %10483 = vmatpush1.bf16.msra.mxu0 %v10261
        %10484 = vmatprep.subr.bf16.mxu0 0
        %10485 = vmatpush1.bf16.msra.mxu0 %v10262
        %10486 = vmatprep.subr.bf16.mxu0 0
        %10487 = vmatpush1.bf16.msra.mxu0 %v10263
        %10488 = vmatprep.mubr.bf16.mxu0 %v9731
        %10489 = vmatmul.mubr.bf16.gmra.mrb[0].mxu0 %v9730
        %v10490 = vpop.f32.mrb[0].mxu0
        %v10491 = vadd.f32 %v10451, %v10490
        %v10492 = vpop.f32.mrb[0].mxu0
        %v10493 = vpop.f32.mrb[0].mxu0
        %v10494 = vpop.f32.mrb[0].mxu0
        %10495 = vdwg.mxu0
        %10496 = vmatprep.subr.bf16.mxu0 0
        %10497 = vmatpush1.bf16.msra.mxu0 %v10264
        %10498 = vmatprep.subr.bf16.mxu0 0
        %10499 = vmatpush1.bf16.msra.mxu0 %v10265
        %10500 = vmatprep.subr.bf16.mxu0 0
        %10501 = vmatpush1.bf16.msra.mxu0 %v10266
        %10502 = vmatprep.subr.bf16.mxu0 0
        %10503 = vmatpush1.bf16.msra.mxu0 %v10267
        %10504 = vmatprep.subr.bf16.mxu0 0
        %10505 = vmatpush1.bf16.msra.mxu0 %v10268
        %10506 = vmatprep.subr.bf16.mxu0 0
        %10507 = vmatpush1.bf16.msra.mxu0 %v10269
        %10508 = vmatprep.subr.bf16.mxu0 0
        %10509 = vmatpush1.bf16.msra.mxu0 %v10270
        %10510 = vmatprep.subr.bf16.mxu0 0
        %10511 = vmatpush1.bf16.msra.mxu0 %v10271
        %10512 = vmatprep.subr.bf16.mxu0 0
        %10513 = vmatpush1.bf16.msra.mxu0 %v10272
        %10514 = vmatprep.subr.bf16.mxu0 0
        %10515 = vmatpush1.bf16.msra.mxu0 %v10273
        %10516 = vmatprep.subr.bf16.mxu0 0
        %10517 = vmatpush1.bf16.msra.mxu0 %v10274
        %10518 = vmatprep.subr.bf16.mxu0 0
        %10519 = vmatpush1.bf16.msra.mxu0 %v10275
        %10520 = vmatprep.subr.bf16.mxu0 0
        %10521 = vmatpush1.bf16.msra.mxu0 %v10276
        %10522 = vmatprep.subr.bf16.mxu0 0
        %10523 = vmatpush1.bf16.msra.mxu0 %v10277
        %10524 = vmatprep.subr.bf16.mxu0 0
        %10525 = vmatpush1.bf16.msra.mxu0 %v10278
        %10526 = vmatprep.subr.bf16.mxu0 0
        %10527 = vmatpush1.bf16.msra.mxu0 %v10279
        %10528 = vmatprep.mubr.bf16.mxu0 %v9733
        %10529 = vmatmul.mubr.bf16.gmra.mrb[0].mxu0 %v9732
        %v10530 = vpop.f32.mrb[0].mxu0
        %v10531 = vadd.f32 %v10491, %v10530
        %v10532 = vpop.f32.mrb[0].mxu0
        %v10533 = vpop.f32.mrb[0].mxu0
        %v10534 = vpop.f32.mrb[0].mxu0
        %10535 = vdwg.mxu0
        %10536 = vmatprep.subr.bf16.mxu0 0
        %10537 = vmatpush1.bf16.msra.mxu0 %v10280
        %10538 = vmatprep.subr.bf16.mxu0 0
        %10539 = vmatpush1.bf16.msra.mxu0 %v10281
        %10540 = vmatprep.subr.bf16.mxu0 0
        %10541 = vmatpush1.bf16.msra.mxu0 %v10282
        %10542 = vmatprep.subr.bf16.mxu0 0
        %10543 = vmatpush1.bf16.msra.mxu0 %v10283
        %10544 = vmatprep.subr.bf16.mxu0 0
        %10545 = vmatpush1.bf16.msra.mxu0 %v10284
        %10546 = vmatprep.subr.bf16.mxu0 0
        %10547 = vmatpush1.bf16.msra.mxu0 %v10285
        %10548 = vmatprep.subr.bf16.mxu0 0
        %10549 = vmatpush1.bf16.msra.mxu0 %v10286
        %10550 = vmatprep.subr.bf16.mxu0 0
        %10551 = vmatpush1.bf16.msra.mxu0 %v10287
        %10552 = vmatprep.subr.bf16.mxu0 0
        %10553 = vmatpush1.bf16.msra.mxu0 %v10288
        %10554 = vmatprep.subr.bf16.mxu0 0
        %10555 = vmatpush1.bf16.msra.mxu0 %v10289
        %10556 = vmatprep.subr.bf16.mxu0 0
        %10557 = vmatpush1.bf16.msra.mxu0 %v10290
        %10558 = vmatprep.subr.bf16.mxu0 0
        %10559 = vmatpush1.bf16.msra.mxu0 %v10291
        %10560 = vmatprep.subr.bf16.mxu0 0
        %10561 = vmatpush1.bf16.msra.mxu0 %v10292
        %10562 = vmatprep.subr.bf16.mxu0 0
        %10563 = vmatpush1.bf16.msra.mxu0 %v10293
        %10564 = vmatprep.subr.bf16.mxu0 0
        %10565 = vmatpush1.bf16.msra.mxu0 %v10294
        %10566 = vmatprep.subr.bf16.mxu0 0
        %10567 = vmatpush1.bf16.msra.mxu0 %v10295
        %10568 = vmatprep.mubr.bf16.mxu0 %v9735
        %10569 = vmatmul.mubr.bf16.gmra.mrb[0].mxu0 %v9734
        %v10570 = vpop.f32.mrb[0].mxu0
        %v10571 = vadd.f32 %v10531, %v10570
        %v10572 = vpop.f32.mrb[0].mxu0
        %v10573 = vpop.f32.mrb[0].mxu0
        %v10574 = vpop.f32.mrb[0].mxu0
        %10575 = vdwg.mxu0
        %v10576 = vadd.f32 %v9725, %v10571
        %10577 = vst [vmem:[#allocation11] sm:$0x3] %v10576
        %p10578 = scmp.eq.s32.totalorder %s27, 1
        // Predicated region
        $region69: #{mlp_forward.1} parent=43 // pred_check
          %p10579 = pneg %p10578
        $region70: #{mlp_forward.1} parent=43 // pred_check_branch
          %10581 = sbr.rel (%p10579) target = $region72
        $region71: #{mlp_forward.1} parent=43 // pred_region
          %v10582 = vld [vmem:[#allocation11] sm:$0x3]
          %v10583 = vld [vmem:[#allocation10] sm:$0x1]
          %v10585 = vlaneseq
          %v10586 = vshrl.u32 %v10585, 7
          %v10587 = vsub.s32 0, %v10586
          %v10588 = vrot.slane %v10583, %v10587
          %v10590 = vadd.f32 %v10582, %v10588
          %10591 = vst [vmem:[#allocation11] sm:$0x3] %v10590
        $region72: #{mlp_forward.1} parent=43 // pred_fallthru
          _
        // Predicated region
        $region73: #{mlp_forward.1} parent=43 // pred_check
          %p10592 = pneg %p186
        $region74: #{mlp_forward.1} parent=43 // pred_check_branch
          %10594 = sbr.rel (%p10592) target = $region76
        $region75: #{mlp_forward.1} parent=43 // pred_region
          %s10596 = ssub.s32 32, 32
          %10597 = vsyncadd [#allocation4], %s10596
          %s10599 = sshll.u32 [#allocation11], 4
          %s10600 = int_to_ptr.vmem [resolvable:$true] %s10599
          %10602 = dma.vmem_to_hbm [thread:$0]  %s10600, 32, %s6, [#allocation4]
        $region76: #{mlp_forward.1} parent=43 // pred_fallthru
          _
        // Predicated region
        $region77: #{mlp_forward.1} parent=43 // pred_check
          %p10603 = pneg %p186
        $region78: #{mlp_forward.1} parent=43 // pred_check_branch
          %10605 = sbr.rel (%p10603) target = $region80
        $region79: #{mlp_forward.1} parent=43 // pred_region
          %10606 = dma.done [#allocation4], 32
        $region80: #{mlp_forward.1} parent=43 // pred_fallthru
          _
      $region44: #{mlp_forward.1} parent=5 // pred_fallthru
        _
      %p10607 = scmp.le.s32.totalorder 2, %s22
      // Predicated region
      $region81: #{mlp_forward.1} parent=5 // pred_check
        %p10608 = pneg %p10607
      $region82: #{mlp_forward.1} parent=5 // pred_check_branch
        %10610 = sbr.rel (%p10608) target = $region84
      $region83: #{mlp_forward.1} parent=5 // pred_region
        %s10611 = ssub.s32 %s22, 2
      $region84: #{mlp_forward.1} parent=5 // pred_fallthru
        _
    $region6: #{mlp_forward.1} parent=1 // loop_footer
      %s26 = sadd.s32 1, %s22
    $region7: #{mlp_forward.1} parent=1 // loop_footer_branch
      %21 = sbr.rel target = $region3
    $region8: #{mlp_forward.1} parent=1 // loop_exit
      _
    %10612 = vsyncpa [#allocation3], 1
    %s10613 = scalar_lea.sflag [#allocation3], 1
    %10614 = vsyncpa %s10613, 1
    %10615 = vsyncpa [#allocation6], 1
    %s10616 = scalar_lea.sflag [#allocation6], 1
    %10617 = vsyncpa %s10616, 1
    %10618 = vsyncpa [#allocation9], 1
    %s10619 = scalar_lea.sflag [#allocation9], 1
    %10620 = vsyncpa %s10619, 1
    %10621 = vsyncpa [#allocation4], 1
    %s10622 = scalar_lea.sflag [#allocation4], 1
    %10623 = vsyncpa %s10622, 1

</llo_original>
